<compile_context>
chip_gen: v6e
topology: v6e:2x2x1
jax: 0.10.0
libtpu: 0.0.40
codegen_flags: <defaults>
</compile_context>

<pallas_src>
import jax
import jax.numpy as jnp
from jax.experimental import pallas as pl
from jax.experimental.pallas import tpu as pltpu

IN_CHANNELS = 2
NUM_KEYPOINTS = 17
NUM_CLASS = 12
VC = IN_CHANNELS * NUM_KEYPOINTS   # 34
HID = 256                          # LSTM hidden size

# (param name, cast-to-bf16-for-MXU?) in kernel-argument order.
_ARG_ORDER = (
    ("r1_w", True), ("r1_b", False),
    ("c1_w", True), ("c1_scale", False), ("c1_shift", False),
    ("c2_w", True), ("c2_scale", False), ("c2_shift", False),
    ("r2_w", True), ("r2_b", False),
    ("c3_w", True), ("c3_scale", False), ("c3_shift", False),
    ("c4_w", True), ("c4_scale", False), ("c4_shift", False),
    ("wih0", True), ("whh0", True), ("b0", False),
    ("w1f", True), ("b1", False),
    ("fc1_w", True), ("fc1_b", False),
    ("fc2_w", True), ("fc2_b", False),
)


# ----------------------------------------------------------------------------
# Fused kernel: conv1/bn1/relu -> conv2/bn2/relu -> +res1 -> pool ->
#               conv3/bn3/relu -> conv4/bn4/relu -> +res2 -> pool ->
#               2-layer LSTM (last step) -> fc1/relu -> fc2
# Single invocation (no grid); everything resident in VMEM.
# ----------------------------------------------------------------------------
def model_kernel(x_ref,
                 r1w_ref, r1b_ref,
                 c1w_ref, c1s_ref, c1h_ref,
                 c2w_ref, c2s_ref, c2h_ref,
                 r2w_ref, r2b_ref,
                 c3w_ref, c3s_ref, c3h_ref,
                 c4w_ref, c4s_ref, c4h_ref,
                 wih0_ref, whh0_ref, b0_ref,
                 w1f_ref, b1_ref,
                 fc1w_ref, fc1b_ref,
                 fc2w_ref, fc2b_ref,
                 out_ref,
                 s1_ref, s2_ref):
    B, T, _ = x_ref.shape
    T2, T4 = T // 2, T // 4
    H = whh0_ref.shape[0]
    bf16 = jnp.bfloat16

    def dotf(a, w_bf16):
        # bf16 MXU operands, f32 accumulation.
        return jnp.dot(a.astype(bf16), w_bf16, preferred_element_type=jnp.float32)

    relu = lambda a: jnp.maximum(a, 0.0)

    def conv3(h, w_ref, scale_ref, shift_ref):
        """k=3, pad=1 Conv1d + folded BatchNorm, time-major (f32 in/out)."""
        zero = jnp.zeros((1, h.shape[1]), jnp.float32)
        hp = jnp.concatenate([zero, h[:-1, :]], axis=0)   # h[t-1]
        hn = jnp.concatenate([h[1:, :], zero], axis=0)    # h[t+1]
        # TODO(synk): fuse the 3 taps into one K-stacked matmul once the
        # lane-unaligned activation concat (34/64-wide) is safe in Mosaic.
        y = dotf(hp, w_ref[0]) + dotf(h, w_ref[1]) + dotf(hn, w_ref[2])
        return y * scale_ref[...] + shift_ref[...]

    # Hoist LSTM / head weights out of all loops.
    whh0 = whh0_ref[...]
    b0 = b0_ref[...]
    w1f = w1f_ref[...]
    b1 = b1_ref[...]

    # ---- conv stack + hoisted LSTM layer-0 input projection, per sample ----
    # TODO(synk): B=2 toy batch; for larger B fold samples into the matmul M
    # dim (or use a "parallel" batch grid to use v7x's second TensorCore).
    zx_list = []
    for b in range(B):
        x_b = x_ref[b].astype(jnp.float32)                       # (T, VC)

        # block 1: res_adapter1 + conv1/bn1/relu + conv2/bn2/relu + residual
        res = dotf(x_b, r1w_ref[...]) + r1b_ref[...]             # (T, 64)
        h = relu(conv3(x_b, c1w_ref, c1s_ref, c1h_ref))
        h = relu(conv3(h, c2w_ref, c2s_ref, c2h_ref))
        s1_ref[...] = h + res
        # MaxPool1d(k=2,s=2) via strided sublane reads; dropout_conv = identity
        p1 = jnp.maximum(s1_ref[pl.ds(0, T2, 2), :],
                         s1_ref[pl.ds(1, T2, 2), :])             # (T/2, 64)

        # block 2
        res = dotf(p1, r2w_ref[...]) + r2b_ref[...]              # (T/2, 128)
        g = relu(conv3(p1, c3w_ref, c3s_ref, c3h_ref))
        g = relu(conv3(g, c4w_ref, c4s_ref, c4h_ref))
        s2_ref[...] = g + res
        p2 = jnp.maximum(s2_ref[pl.ds(0, T4, 2), :],
                         s2_ref[pl.ds(1, T4, 2), :])             # (T/4, 128)

        # Layer-0 input projection hoisted out of the time loop.
        zx_list.append(dotf(p2, wih0_ref[...]))                  # (T/4, 4H)

    # ---- 2-layer LSTM over T//4 steps, whole batch, f32 state ----
    h0 = jnp.zeros((B, H), jnp.float32)
    c0 = jnp.zeros((B, H), jnp.float32)
    h1 = jnp.zeros((B, H), jnp.float32)
    c1 = jnp.zeros((B, H), jnp.float32)

    def lstm_update(z, c):                    # PyTorch gate order: i, f, g, o
        i = jax.nn.sigmoid(z[:, 0:H])
        f = jax.nn.sigmoid(z[:, H:2 * H])
        g = jnp.tanh(z[:, 2 * H:3 * H])
        o = jax.nn.sigmoid(z[:, 3 * H:4 * H])
        c_new = f * c + i * g
        return o * jnp.tanh(c_new), c_new

    for t in range(T4):   # T4 is tiny; switch to lax.fori_loop if it grows >~8
        z0x = jnp.concatenate([zx[t:t + 1, :] for zx in zx_list], axis=0)
        h0, c0 = lstm_update(z0x + dotf(h0, whh0) + b0, c0)
        # inter-layer LSTM dropout(0.3): identity in eval mode
        z1 = dotf(jnp.concatenate([h0, h1], axis=1), w1f) + b1   # fused Wih1/Whh1
        h1, c1 = lstm_update(z1, c1)

    hid = relu(dotf(h1, fc1w_ref[...]) + fc1b_ref[...])          # (B, 128)
    # dropout_fc(0.5): identity in eval mode
    # TODO(synk): logits last-dim is 12 (<128 lanes) -> masked store; pad to a
    # lane-friendly width and slice outside if this ever matters at scale.
    out_ref[...] = dotf(hid, fc2w_ref[...]) + fc2b_ref[...]      # (B, 12)


# ----------------------------------------------------------------------------
# Wrapper: input permute (layout plumbing) + single pallas_call
# ----------------------------------------------------------------------------
def model_forward(x, P):
    B, T, vc = x.shape
    assert T % 4 == 0
    cin = vc // NUM_KEYPOINTS
    # PyTorch: view(B,T,K,C).permute(0,3,2,1).reshape(B,VC,T); kept time-major.
    xp = x.reshape(B, T, NUM_KEYPOINTS, cin).transpose(0, 1, 3, 2).reshape(B, T, vc)

    args = [xp]
    for name, to_bf16 in _ARG_ORDER:
        w = P[name]
        args.append(w.astype(jnp.bfloat16) if to_bf16 else w)

    vmem_specs = [pl.BlockSpec(memory_space=pltpu.MemorySpace.VMEM)
                  for _ in args]
    # All operands comfortably fit VMEM at these sizes; no grid / pipelining
    # needed.  (If T scales up, re-introduce a time-tiled grid and set
    # pltpu.CompilerParams(vmem_limit_bytes=...) — v7x has 64 MiB VMEM.)
    return pl.pallas_call(
        model_kernel,
        out_shape=jax.ShapeDtypeStruct((B, NUM_CLASS), jnp.float32),
        in_specs=vmem_specs,
        out_specs=pl.BlockSpec(memory_space=pltpu.MemorySpace.VMEM),
        scratch_shapes=[pltpu.VMEM((T, 64), jnp.float32),
                        pltpu.VMEM((T // 2, 128), jnp.float32)],
    )(*args)


# ----------------------------------------------------------------------------
# Deterministic parameter init (PyTorch shapes, converted to kernel layout)
# ----------------------------------------------------------------------------
def init_params(key):
    ks = iter(jax.random.split(key, 64))

    def nrm(shape, scale=0.1):
        return (scale * jax.random.normal(next(ks), shape)).astype(jnp.float32)

    def bn_stats(c):
        gamma = (1.0 + 0.1 * jax.random.normal(next(ks), (c,))).astype(jnp.float32)
        beta = (0.1 * jax.random.normal(next(ks), (c,))).astype(jnp.float32)
        mean = (0.1 * jax.random.normal(next(ks), (c,))).astype(jnp.float32)
        var = (1.0 + 0.1 * jnp.abs(jax.random.normal(next(ks), (c,)))).astype(jnp.float32)
        return gamma, beta, mean, var

    P = {}
    for name, cin, cout in (("c1", VC, 64), ("c2", 64, 64),
                            ("c3", 64, 128), ("c4", 128, 128)):
        w = nrm((cout, cin, 3))                     # torch Conv1d weight
        b = nrm((cout,))
        g, be, m, v = bn_stats(cout)
        scale = g / jnp.sqrt(v + 1e-5)
        shift = (b - m) * scale + be                # fold conv bias + BN(eval)
        P[name + "_w"] = jnp.transpose(w, (2, 1, 0))      # (3, cin, cout)
        P[name + "_scale"] = scale.reshape(1, cout)
        P[name + "_shift"] = shift.reshape(1, cout)

    r1w, r1b = nrm((64, VC, 1)), nrm((64,))
    P["r1_w"], P["r1_b"] = r1w[:, :, 0].T, r1b.reshape(1, 64)
    r2w, r2b = nrm((128, 64, 1)), nrm((128,))
    P["r2_w"], P["r2_b"] = r2w[:, :, 0].T, r2b.reshape(1, 128)

    for layer, in_sz in ((0, 128), (1, HID)):
        wih = nrm((4 * HID, in_sz))
        whh = nrm((4 * HID, HID))
        bih = nrm((4 * HID,))
        bhh = nrm((4 * HID,))
        P[f"wih{layer}"] = wih.T                    # (in, 4H)
        P[f"whh{layer}"] = whh.T                    # (H, 4H)
        P[f"b{layer}"] = (bih + bhh).reshape(1, 4 * HID)
    # Fused layer-1 weight for concat([h0, h1]) @ [Wih1; Whh1].
    P["w1f"] = jnp.concatenate([P["wih1"], P["whh1"]], axis=0)   # (2H, 4H)

    fc1w, fc1b = nrm((128, HID)), nrm((128,))
    fc2w, fc2b = nrm((NUM_CLASS, 128)), nrm((NUM_CLASS,))
    P["fc1_w"], P["fc1_b"] = fc1w.T, fc1b.reshape(1, 128)
    P["fc2_w"], P["fc2_b"] = fc2w.T, fc2b.reshape(1, NUM_CLASS)
    return P


# ----------------------------------------------------------------------------
# Plain-JAX f32 reference (same eval-mode math) for correctness check
# ----------------------------------------------------------------------------
def ref_forward(x, P):
    B, T, vc = x.shape
    cin = vc // NUM_KEYPOINTS
    xp = x.reshape(B, T, NUM_KEYPOINTS, cin).transpose(0, 1, 3, 2).reshape(B, T, vc)

    relu = lambda a: jnp.maximum(a, 0.0)
    pool = lambda a: jnp.maximum(a[:, 0::2], a[:, 1::2])

    def conv3(h, w3, scale, shift):
        zero = jnp.zeros((B, 1, h.shape[-1]), jnp.float32)
        hp = jnp.concatenate([zero, h[:, :-1]], axis=1)
        hn = jnp.concatenate([h[:, 1:], zero], axis=1)
        return (hp @ w3[0] + h @ w3[1] + hn @ w3[2]) * scale + shift

    res = xp @ P["r1_w"] + P["r1_b"]
    h = relu(conv3(xp, P["c1_w"], P["c1_scale"], P["c1_shift"]))
    h = relu(conv3(h, P["c2_w"], P["c2_scale"], P["c2_shift"]))
    h = pool(h + res)
    res = h @ P["r2_w"] + P["r2_b"]
    g = relu(conv3(h, P["c3_w"], P["c3_scale"], P["c3_shift"]))
    g = relu(conv3(g, P["c4_w"], P["c4_scale"], P["c4_shift"]))
    feat = pool(g + res)                            # (B, T//4, 128)

    H = HID
    h0 = jnp.zeros((B, H)); c0 = jnp.zeros((B, H))
    h1 = jnp.zeros((B, H)); c1 = jnp.zeros((B, H))

    def cell(x_t, h, c, wih, whh, b):
        z = x_t @ wih + h @ whh + b
        i = jax.nn.sigmoid(z[:, :H]); f = jax.nn.sigmoid(z[:, H:2 * H])
        gg = jnp.tanh(z[:, 2 * H:3 * H]); o = jax.nn.sigmoid(z[:, 3 * H:])
        c = f * c + i * gg
        return o * jnp.tanh(c), c

    for t in range(feat.shape[1]):
        x_t = feat[:, t, :]
        h0, c0 = cell(x_t, h0, c0, P["wih0"], P["whh0"], P["b0"])
        h1, c1 = cell(h0, h1, c1, P["wih1"], P["whh1"], P["b1"])

    hid = relu(h1 @ P["fc1_w"] + P["fc1_b"])
    return hid @ P["fc2_w"] + P["fc2_b"]


if __name__ == "__main__":
    B, T = 2, 16                                   # T must be divisible by 4
    key = jax.random.PRNGKey(0)
    kx, kp = jax.random.split(key)
    x = jax.random.normal(kx, (B, T, VC), dtype=jnp.float32)
    P = init_params(kp)

    out = jax.jit(model_forward)(x, P)
    out = jax.block_until_ready(out)

    ref = ref_forward(x, P)
    assert out.shape == (B, NUM_CLASS), out.shape
    # Kernel uses bf16 MXU operands (f32 accumulate), reference is pure f32,
    # so the tolerance is looser than an all-f32 comparison.
    err = float(jnp.max(jnp.abs(out - ref)))
    assert err < 1e-1, f"kernel/reference mismatch: max abs err = {err}"
    print("KERNEL_OK")
</pallas_src>

<mosaic_0001>
module attributes {stable_mosaic.version = 11 : i64} {
  func.func @model_kernel(%arg0: memref<2x16x34xf32, #tpu.memory_space<vmem>>, %arg1: memref<34x64xbf16, #tpu.memory_space<vmem>>, %arg2: memref<1x64xf32, #tpu.memory_space<vmem>>, %arg3: memref<3x34x64xbf16, #tpu.memory_space<vmem>>, %arg4: memref<1x64xf32, #tpu.memory_space<vmem>>, %arg5: memref<1x64xf32, #tpu.memory_space<vmem>>, %arg6: memref<3x64x64xbf16, #tpu.memory_space<vmem>>, %arg7: memref<1x64xf32, #tpu.memory_space<vmem>>, %arg8: memref<1x64xf32, #tpu.memory_space<vmem>>, %arg9: memref<64x128xbf16, #tpu.memory_space<vmem>>, %arg10: memref<1x128xf32, #tpu.memory_space<vmem>>, %arg11: memref<3x64x128xbf16, #tpu.memory_space<vmem>>, %arg12: memref<1x128xf32, #tpu.memory_space<vmem>>, %arg13: memref<1x128xf32, #tpu.memory_space<vmem>>, %arg14: memref<3x128x128xbf16, #tpu.memory_space<vmem>>, %arg15: memref<1x128xf32, #tpu.memory_space<vmem>>, %arg16: memref<1x128xf32, #tpu.memory_space<vmem>>, %arg17: memref<128x1024xbf16, #tpu.memory_space<vmem>>, %arg18: memref<256x1024xbf16, #tpu.memory_space<vmem>>, %arg19: memref<1x1024xf32, #tpu.memory_space<vmem>>, %arg20: memref<512x1024xbf16, #tpu.memory_space<vmem>>, %arg21: memref<1x1024xf32, #tpu.memory_space<vmem>>, %arg22: memref<256x128xbf16, #tpu.memory_space<vmem>>, %arg23: memref<1x128xf32, #tpu.memory_space<vmem>>, %arg24: memref<128x12xbf16, #tpu.memory_space<vmem>>, %arg25: memref<1x12xf32, #tpu.memory_space<vmem>>, %arg26: memref<2x12xf32, #tpu.memory_space<vmem>>, %arg27: memref<16x64xf32, #tpu.memory_space<vmem>>, %arg28: memref<8x128xf32, #tpu.memory_space<vmem>>) attributes {dimension_semantics = [], scalar_prefetch = 0 : i64, scratch_operands = 2 : i64, tpu.core_type = #tpu.core_type<tc>} {
    %c0 = arith.constant 0 : index
    %c0_0 = arith.constant 0 : index
    %0 = vector.load %arg18[%c0, %c0_0] : memref<256x1024xbf16, #tpu.memory_space<vmem>>, vector<256x1024xbf16>
    %c0_1 = arith.constant 0 : index
    %c0_2 = arith.constant 0 : index
    %1 = vector.load %arg19[%c0_1, %c0_2] : memref<1x1024xf32, #tpu.memory_space<vmem>>, vector<1x1024xf32>
    %c0_3 = arith.constant 0 : index
    %c0_4 = arith.constant 0 : index
    %2 = vector.load %arg20[%c0_3, %c0_4] : memref<512x1024xbf16, #tpu.memory_space<vmem>>, vector<512x1024xbf16>
    %c0_5 = arith.constant 0 : index
    %c0_6 = arith.constant 0 : index
    %3 = vector.load %arg21[%c0_5, %c0_6] : memref<1x1024xf32, #tpu.memory_space<vmem>>, vector<1x1024xf32>
    %c0_7 = arith.constant 0 : index
    %c0_8 = arith.constant 0 : index
    %c0_9 = arith.constant 0 : index
    %4 = vector.load %arg0[%c0_7, %c0_8, %c0_9] : memref<2x16x34xf32, #tpu.memory_space<vmem>>, vector<1x16x34xf32>
    %5 = vector.shape_cast %4 : vector<1x16x34xf32> to vector<16x34xf32>
    %c0_10 = arith.constant 0 : index
    %c0_11 = arith.constant 0 : index
    %6 = vector.load %arg1[%c0_10, %c0_11] : memref<34x64xbf16, #tpu.memory_space<vmem>>, vector<34x64xbf16>
    %7 = arith.truncf %5 : vector<16x34xf32> to vector<16x34xbf16>
    %cst = arith.constant dense<0.000000e+00> : vector<16x64xf32>
    %8 = tpu.matmul %7, %6, %cst {dimension_numbers = #tpu.dot_dimension_numbers<[1], [0], [0], [1], [0, 0, 1, 1], [], []>} : vector<16x34xbf16>, vector<34x64xbf16>, vector<16x64xf32> -> vector<16x64xf32>
    %c0_12 = arith.constant 0 : index
    %c0_13 = arith.constant 0 : index
    %9 = vector.load %arg2[%c0_12, %c0_13] : memref<1x64xf32, #tpu.memory_space<vmem>>, vector<1x64xf32>
    %10 = vector.broadcast %9 : vector<1x64xf32> to vector<16x64xf32>
    %11 = arith.addf %8, %10 : vector<16x64xf32>
    %cst_14 = arith.constant 0.000000e+00 : f32
    %12 = vector.broadcast %cst_14 : f32 to vector<1x34xf32>
    %13 = vector.extract_strided_slice %5 {offsets = [0, 0], sizes = [15, 34], strides = [1, 1]} : vector<16x34xf32> to vector<15x34xf32>
    %14 = tpu.concatenate %12, %13 in 0 : vector<1x34xf32>, vector<15x34xf32> -> vector<16x34xf32>
    %15 = vector.extract_strided_slice %5 {offsets = [1, 0], sizes = [15, 34], strides = [1, 1]} : vector<16x34xf32> to vector<15x34xf32>
    %16 = tpu.concatenate %15, %12 in 0 : vector<15x34xf32>, vector<1x34xf32> -> vector<16x34xf32>
    %c0_15 = arith.constant 0 : index
    %c0_16 = arith.constant 0 : index
    %c0_17 = arith.constant 0 : index
    %17 = vector.load %arg3[%c0_15, %c0_16, %c0_17] : memref<3x34x64xbf16, #tpu.memory_space<vmem>>, vector<1x34x64xbf16>
    %18 = vector.shape_cast %17 : vector<1x34x64xbf16> to vector<34x64xbf16>
    %19 = arith.truncf %14 : vector<16x34xf32> to vector<16x34xbf16>
    %cst_18 = arith.constant dense<0.000000e+00> : vector<16x64xf32>
    %20 = tpu.matmul %19, %18, %cst_18 {dimension_numbers = #tpu.dot_dimension_numbers<[1], [0], [0], [1], [0, 0, 1, 1], [], []>} : vector<16x34xbf16>, vector<34x64xbf16>, vector<16x64xf32> -> vector<16x64xf32>
    %c1 = arith.constant 1 : index
    %c0_19 = arith.constant 0 : index
    %c0_20 = arith.constant 0 : index
    %21 = vector.load %arg3[%c1, %c0_19, %c0_20] : memref<3x34x64xbf16, #tpu.memory_space<vmem>>, vector<1x34x64xbf16>
    %22 = vector.shape_cast %21 : vector<1x34x64xbf16> to vector<34x64xbf16>
    %23 = arith.truncf %5 : vector<16x34xf32> to vector<16x34xbf16>
    %cst_21 = arith.constant dense<0.000000e+00> : vector<16x64xf32>
    %24 = tpu.matmul %23, %22, %cst_21 {dimension_numbers = #tpu.dot_dimension_numbers<[1], [0], [0], [1], [0, 0, 1, 1], [], []>} : vector<16x34xbf16>, vector<34x64xbf16>, vector<16x64xf32> -> vector<16x64xf32>
    %25 = arith.addf %20, %24 : vector<16x64xf32>
    %c2 = arith.constant 2 : index
    %c0_22 = arith.constant 0 : index
    %c0_23 = arith.constant 0 : index
    %26 = vector.load %arg3[%c2, %c0_22, %c0_23] : memref<3x34x64xbf16, #tpu.memory_space<vmem>>, vector<1x34x64xbf16>
    %27 = vector.shape_cast %26 : vector<1x34x64xbf16> to vector<34x64xbf16>
    %28 = arith.truncf %16 : vector<16x34xf32> to vector<16x34xbf16>
    %cst_24 = arith.constant dense<0.000000e+00> : vector<16x64xf32>
    %29 = tpu.matmul %28, %27, %cst_24 {dimension_numbers = #tpu.dot_dimension_numbers<[1], [0], [0], [1], [0, 0, 1, 1], [], []>} : vector<16x34xbf16>, vector<34x64xbf16>, vector<16x64xf32> -> vector<16x64xf32>
    %30 = arith.addf %25, %29 : vector<16x64xf32>
    %c0_25 = arith.constant 0 : index
    %c0_26 = arith.constant 0 : index
    %31 = vector.load %arg4[%c0_25, %c0_26] : memref<1x64xf32, #tpu.memory_space<vmem>>, vector<1x64xf32>
    %32 = vector.broadcast %31 : vector<1x64xf32> to vector<16x64xf32>
    %33 = arith.mulf %30, %32 : vector<16x64xf32>
    %c0_27 = arith.constant 0 : index
    %c0_28 = arith.constant 0 : index
    %34 = vector.load %arg5[%c0_27, %c0_28] : memref<1x64xf32, #tpu.memory_space<vmem>>, vector<1x64xf32>
    %35 = vector.broadcast %34 : vector<1x64xf32> to vector<16x64xf32>
    %36 = arith.addf %33, %35 : vector<16x64xf32>
    %cst_29 = arith.constant 0.000000e+00 : f32
    %37 = vector.broadcast %cst_29 : f32 to vector<16x64xf32>
    %38 = arith.maximumf %36, %37 : vector<16x64xf32>
    %cst_30 = arith.constant 0.000000e+00 : f32
    %39 = vector.broadcast %cst_30 : f32 to vector<1x64xf32>
    %40 = vector.extract_strided_slice %38 {offsets = [0, 0], sizes = [15, 64], strides = [1, 1]} : vector<16x64xf32> to vector<15x64xf32>
    %41 = tpu.concatenate %39, %40 in 0 : vector<1x64xf32>, vector<15x64xf32> -> vector<16x64xf32>
    %42 = vector.extract_strided_slice %38 {offsets = [1, 0], sizes = [15, 64], strides = [1, 1]} : vector<16x64xf32> to vector<15x64xf32>
    %43 = tpu.concatenate %42, %39 in 0 : vector<15x64xf32>, vector<1x64xf32> -> vector<16x64xf32>
    %c0_31 = arith.constant 0 : index
    %c0_32 = arith.constant 0 : index
    %c0_33 = arith.constant 0 : index
    %44 = vector.load %arg6[%c0_31, %c0_32, %c0_33] : memref<3x64x64xbf16, #tpu.memory_space<vmem>>, vector<1x64x64xbf16>
    %45 = vector.shape_cast %44 : vector<1x64x64xbf16> to vector<64x64xbf16>
    %46 = arith.truncf %41 : vector<16x64xf32> to vector<16x64xbf16>
    %cst_34 = arith.constant dense<0.000000e+00> : vector<16x64xf32>
    %47 = tpu.matmul %46, %45, %cst_34 {dimension_numbers = #tpu.dot_dimension_numbers<[1], [0], [0], [1], [0, 0, 1, 1], [], []>} : vector<16x64xbf16>, vector<64x64xbf16>, vector<16x64xf32> -> vector<16x64xf32>
    %c1_35 = arith.constant 1 : index
    %c0_36 = arith.constant 0 : index
    %c0_37 = arith.constant 0 : index
    %48 = vector.load %arg6[%c1_35, %c0_36, %c0_37] : memref<3x64x64xbf16, #tpu.memory_space<vmem>>, vector<1x64x64xbf16>
    %49 = vector.shape_cast %48 : vector<1x64x64xbf16> to vector<64x64xbf16>
    %50 = arith.truncf %38 : vector<16x64xf32> to vector<16x64xbf16>
    %cst_38 = arith.constant dense<0.000000e+00> : vector<16x64xf32>
    %51 = tpu.matmul %50, %49, %cst_38 {dimension_numbers = #tpu.dot_dimension_numbers<[1], [0], [0], [1], [0, 0, 1, 1], [], []>} : vector<16x64xbf16>, vector<64x64xbf16>, vector<16x64xf32> -> vector<16x64xf32>
    %52 = arith.addf %47, %51 : vector<16x64xf32>
    %c2_39 = arith.constant 2 : index
    %c0_40 = arith.constant 0 : index
    %c0_41 = arith.constant 0 : index
    %53 = vector.load %arg6[%c2_39, %c0_40, %c0_41] : memref<3x64x64xbf16, #tpu.memory_space<vmem>>, vector<1x64x64xbf16>
    %54 = vector.shape_cast %53 : vector<1x64x64xbf16> to vector<64x64xbf16>
    %55 = arith.truncf %43 : vector<16x64xf32> to vector<16x64xbf16>
    %cst_42 = arith.constant dense<0.000000e+00> : vector<16x64xf32>
    %56 = tpu.matmul %55, %54, %cst_42 {dimension_numbers = #tpu.dot_dimension_numbers<[1], [0], [0], [1], [0, 0, 1, 1], [], []>} : vector<16x64xbf16>, vector<64x64xbf16>, vector<16x64xf32> -> vector<16x64xf32>
    %57 = arith.addf %52, %56 : vector<16x64xf32>
    %c0_43 = arith.constant 0 : index
    %c0_44 = arith.constant 0 : index
    %58 = vector.load %arg7[%c0_43, %c0_44] : memref<1x64xf32, #tpu.memory_space<vmem>>, vector<1x64xf32>
    %59 = vector.broadcast %58 : vector<1x64xf32> to vector<16x64xf32>
    %60 = arith.mulf %57, %59 : vector<16x64xf32>
    %c0_45 = arith.constant 0 : index
    %c0_46 = arith.constant 0 : index
    %61 = vector.load %arg8[%c0_45, %c0_46] : memref<1x64xf32, #tpu.memory_space<vmem>>, vector<1x64xf32>
    %62 = vector.broadcast %61 : vector<1x64xf32> to vector<16x64xf32>
    %63 = arith.addf %60, %62 : vector<16x64xf32>
    %cst_47 = arith.constant 0.000000e+00 : f32
    %64 = vector.broadcast %cst_47 : f32 to vector<16x64xf32>
    %65 = arith.maximumf %63, %64 : vector<16x64xf32>
    %66 = arith.addf %65, %11 : vector<16x64xf32>
    %c0_48 = arith.constant 0 : index
    %c0_49 = arith.constant 0 : index
    %67 = vector.load %arg27[%c0_48, %c0_49] : memref<16x64xf32, #tpu.memory_space<vmem>>, vector<16x64xf32>
    tpu.vector_store %arg27[%c0_48, %c0_49], %66 {strides = array<i32>} : memref<16x64xf32, #tpu.memory_space<vmem>>, vector<16x64xf32>,
    %c0_50 = arith.constant 0 : index
    %c0_51 = arith.constant 0 : index
    %68 = tpu.strided_load %arg27[%c0_50, %c0_51] {strides = array<i32: 2, 1>} : memref<16x64xf32, #tpu.memory_space<vmem>>, vector<8x64xf32>
    %c1_52 = arith.constant 1 : index
    %c0_53 = arith.constant 0 : index
    %69 = tpu.strided_load %arg27[%c1_52, %c0_53] {strides = array<i32: 2, 1>} : memref<16x64xf32, #tpu.memory_space<vmem>>, vector<8x64xf32>
    %70 = arith.maximumf %68, %69 : vector<8x64xf32>
    %c0_54 = arith.constant 0 : index
    %c0_55 = arith.constant 0 : index
    %71 = vector.load %arg9[%c0_54, %c0_55] : memref<64x128xbf16, #tpu.memory_space<vmem>>, vector<64x128xbf16>
    %72 = arith.truncf %70 : vector<8x64xf32> to vector<8x64xbf16>
    %cst_56 = arith.constant dense<0.000000e+00> : vector<8x128xf32>
    %73 = tpu.matmul %72, %71, %cst_56 {dimension_numbers = #tpu.dot_dimension_numbers<[1], [0], [0], [1], [0, 0, 1, 1], [], []>} : vector<8x64xbf16>, vector<64x128xbf16>, vector<8x128xf32> -> vector<8x128xf32>
    %c0_57 = arith.constant 0 : index
    %c0_58 = arith.constant 0 : index
    %74 = vector.load %arg10[%c0_57, %c0_58] : memref<1x128xf32, #tpu.memory_space<vmem>>, vector<1x128xf32>
    %75 = vector.broadcast %74 : vector<1x128xf32> to vector<8x128xf32>
    %76 = arith.addf %73, %75 : vector<8x128xf32>
    %cst_59 = arith.constant 0.000000e+00 : f32
    %77 = vector.broadcast %cst_59 : f32 to vector<1x64xf32>
    %78 = vector.extract_strided_slice %70 {offsets = [0, 0], sizes = [7, 64], strides = [1, 1]} : vector<8x64xf32> to vector<7x64xf32>
    %79 = tpu.concatenate %77, %78 in 0 : vector<1x64xf32>, vector<7x64xf32> -> vector<8x64xf32>
    %80 = vector.extract_strided_slice %70 {offsets = [1, 0], sizes = [7, 64], strides = [1, 1]} : vector<8x64xf32> to vector<7x64xf32>
    %81 = tpu.concatenate %80, %77 in 0 : vector<7x64xf32>, vector<1x64xf32> -> vector<8x64xf32>
    %c0_60 = arith.constant 0 : index
    %c0_61 = arith.constant 0 : index
    %c0_62 = arith.constant 0 : index
    %82 = vector.load %arg11[%c0_60, %c0_61, %c0_62] : memref<3x64x128xbf16, #tpu.memory_space<vmem>>, vector<1x64x128xbf16>
    %83 = vector.shape_cast %82 : vector<1x64x128xbf16> to vector<64x128xbf16>
    %84 = arith.truncf %79 : vector<8x64xf32> to vector<8x64xbf16>
    %cst_63 = arith.constant dense<0.000000e+00> : vector<8x128xf32>
    %85 = tpu.matmul %84, %83, %cst_63 {dimension_numbers = #tpu.dot_dimension_numbers<[1], [0], [0], [1], [0, 0, 1, 1], [], []>} : vector<8x64xbf16>, vector<64x128xbf16>, vector<8x128xf32> -> vector<8x128xf32>
    %c1_64 = arith.constant 1 : index
    %c0_65 = arith.constant 0 : index
    %c0_66 = arith.constant 0 : index
    %86 = vector.load %arg11[%c1_64, %c0_65, %c0_66] : memref<3x64x128xbf16, #tpu.memory_space<vmem>>, vector<1x64x128xbf16>
    %87 = vector.shape_cast %86 : vector<1x64x128xbf16> to vector<64x128xbf16>
    %88 = arith.truncf %70 : vector<8x64xf32> to vector<8x64xbf16>
    %cst_67 = arith.constant dense<0.000000e+00> : vector<8x128xf32>
    %89 = tpu.matmul %88, %87, %cst_67 {dimension_numbers = #tpu.dot_dimension_numbers<[1], [0], [0], [1], [0, 0, 1, 1], [], []>} : vector<8x64xbf16>, vector<64x128xbf16>, vector<8x128xf32> -> vector<8x128xf32>
    %90 = arith.addf %85, %89 : vector<8x128xf32>
    %c2_68 = arith.constant 2 : index
    %c0_69 = arith.constant 0 : index
    %c0_70 = arith.constant 0 : index
    %91 = vector.load %arg11[%c2_68, %c0_69, %c0_70] : memref<3x64x128xbf16, #tpu.memory_space<vmem>>, vector<1x64x128xbf16>
    %92 = vector.shape_cast %91 : vector<1x64x128xbf16> to vector<64x128xbf16>
    %93 = arith.truncf %81 : vector<8x64xf32> to vector<8x64xbf16>
    %cst_71 = arith.constant dense<0.000000e+00> : vector<8x128xf32>
    %94 = tpu.matmul %93, %92, %cst_71 {dimension_numbers = #tpu.dot_dimension_numbers<[1], [0], [0], [1], [0, 0, 1, 1], [], []>} : vector<8x64xbf16>, vector<64x128xbf16>, vector<8x128xf32> -> vector<8x128xf32>
    %95 = arith.addf %90, %94 : vector<8x128xf32>
    %c0_72 = arith.constant 0 : index
    %c0_73 = arith.constant 0 : index
    %96 = vector.load %arg12[%c0_72, %c0_73] : memref<1x128xf32, #tpu.memory_space<vmem>>, vector<1x128xf32>
    %97 = vector.broadcast %96 : vector<1x128xf32> to vector<8x128xf32>
    %98 = arith.mulf %95, %97 : vector<8x128xf32>
    %c0_74 = arith.constant 0 : index
    %c0_75 = arith.constant 0 : index
    %99 = vector.load %arg13[%c0_74, %c0_75] : memref<1x128xf32, #tpu.memory_space<vmem>>, vector<1x128xf32>
    %100 = vector.broadcast %99 : vector<1x128xf32> to vector<8x128xf32>
    %101 = arith.addf %98, %100 : vector<8x128xf32>
    %cst_76 = arith.constant 0.000000e+00 : f32
    %102 = vector.broadcast %cst_76 : f32 to vector<8x128xf32>
    %103 = arith.maximumf %101, %102 : vector<8x128xf32>
    %cst_77 = arith.constant 0.000000e+00 : f32
    %104 = vector.broadcast %cst_77 : f32 to vector<1x128xf32>
    %105 = vector.extract_strided_slice %103 {offsets = [0, 0], sizes = [7, 128], strides = [1, 1]} : vector<8x128xf32> to vector<7x128xf32>
    %106 = tpu.concatenate %104, %105 in 0 : vector<1x128xf32>, vector<7x128xf32> -> vector<8x128xf32>
    %107 = vector.extract_strided_slice %103 {offsets = [1, 0], sizes = [7, 128], strides = [1, 1]} : vector<8x128xf32> to vector<7x128xf32>
    %108 = tpu.concatenate %107, %104 in 0 : vector<7x128xf32>, vector<1x128xf32> -> vector<8x128xf32>
    %c0_78 = arith.constant 0 : index
    %c0_79 = arith.constant 0 : index
    %c0_80 = arith.constant 0 : index
    %109 = vector.load %arg14[%c0_78, %c0_79, %c0_80] : memref<3x128x128xbf16, #tpu.memory_space<vmem>>, vector<1x128x128xbf16>
    %110 = vector.shape_cast %109 : vector<1x128x128xbf16> to vector<128x128xbf16>
    %111 = arith.truncf %106 : vector<8x128xf32> to vector<8x128xbf16>
    %cst_81 = arith.constant dense<0.000000e+00> : vector<8x128xf32>
    %112 = tpu.matmul %111, %110, %cst_81 {dimension_numbers = #tpu.dot_dimension_numbers<[1], [0], [0], [1], [0, 0, 1, 1], [], []>} : vector<8x128xbf16>, vector<128x128xbf16>, vector<8x128xf32> -> vector<8x128xf32>
    %c1_82 = arith.constant 1 : index
    %c0_83 = arith.constant 0 : index
    %c0_84 = arith.constant 0 : index
    %113 = vector.load %arg14[%c1_82, %c0_83, %c0_84] : memref<3x128x128xbf16, #tpu.memory_space<vmem>>, vector<1x128x128xbf16>
    %114 = vector.shape_cast %113 : vector<1x128x128xbf16> to vector<128x128xbf16>
    %115 = arith.truncf %103 : vector<8x128xf32> to vector<8x128xbf16>
    %cst_85 = arith.constant dense<0.000000e+00> : vector<8x128xf32>
    %116 = tpu.matmul %115, %114, %cst_85 {dimension_numbers = #tpu.dot_dimension_numbers<[1], [0], [0], [1], [0, 0, 1, 1], [], []>} : vector<8x128xbf16>, vector<128x128xbf16>, vector<8x128xf32> -> vector<8x128xf32>
    %117 = arith.addf %112, %116 : vector<8x128xf32>
    %c2_86 = arith.constant 2 : index
    %c0_87 = arith.constant 0 : index
    %c0_88 = arith.constant 0 : index
    %118 = vector.load %arg14[%c2_86, %c0_87, %c0_88] : memref<3x128x128xbf16, #tpu.memory_space<vmem>>, vector<1x128x128xbf16>
    %119 = vector.shape_cast %118 : vector<1x128x128xbf16> to vector<128x128xbf16>
    %120 = arith.truncf %108 : vector<8x128xf32> to vector<8x128xbf16>
    %cst_89 = arith.constant dense<0.000000e+00> : vector<8x128xf32>
    %121 = tpu.matmul %120, %119, %cst_89 {dimension_numbers = #tpu.dot_dimension_numbers<[1], [0], [0], [1], [0, 0, 1, 1], [], []>} : vector<8x128xbf16>, vector<128x128xbf16>, vector<8x128xf32> -> vector<8x128xf32>
    %122 = arith.addf %117, %121 : vector<8x128xf32>
    %c0_90 = arith.constant 0 : index
    %c0_91 = arith.constant 0 : index
    %123 = vector.load %arg15[%c0_90, %c0_91] : memref<1x128xf32, #tpu.memory_space<vmem>>, vector<1x128xf32>
    %124 = vector.broadcast %123 : vector<1x128xf32> to vector<8x128xf32>
    %125 = arith.mulf %122, %124 : vector<8x128xf32>
    %c0_92 = arith.constant 0 : index
    %c0_93 = arith.constant 0 : index
    %126 = vector.load %arg16[%c0_92, %c0_93] : memref<1x128xf32, #tpu.memory_space<vmem>>, vector<1x128xf32>
    %127 = vector.broadcast %126 : vector<1x128xf32> to vector<8x128xf32>
    %128 = arith.addf %125, %127 : vector<8x128xf32>
    %cst_94 = arith.constant 0.000000e+00 : f32
    %129 = vector.broadcast %cst_94 : f32 to vector<8x128xf32>
    %130 = arith.maximumf %128, %129 : vector<8x128xf32>
    %131 = arith.addf %130, %76 : vector<8x128xf32>
    %c0_95 = arith.constant 0 : index
    %c0_96 = arith.constant 0 : index
    %132 = vector.load %arg28[%c0_95, %c0_96] : memref<8x128xf32, #tpu.memory_space<vmem>>, vector<8x128xf32>
    tpu.vector_store %arg28[%c0_95, %c0_96], %131 {strides = array<i32>} : memref<8x128xf32, #tpu.memory_space<vmem>>, vector<8x128xf32>,
    %c0_97 = arith.constant 0 : index
    %c0_98 = arith.constant 0 : index
    %133 = tpu.strided_load %arg28[%c0_97, %c0_98] {strides = array<i32: 2, 1>} : memref<8x128xf32, #tpu.memory_space<vmem>>, vector<4x128xf32>
    %c1_99 = arith.constant 1 : index
    %c0_100 = arith.constant 0 : index
    %134 = tpu.strided_load %arg28[%c1_99, %c0_100] {strides = array<i32: 2, 1>} : memref<8x128xf32, #tpu.memory_space<vmem>>, vector<4x128xf32>
    %135 = arith.maximumf %133, %134 : vector<4x128xf32>
    %c0_101 = arith.constant 0 : index
    %c0_102 = arith.constant 0 : index
    %136 = vector.load %arg17[%c0_101, %c0_102] : memref<128x1024xbf16, #tpu.memory_space<vmem>>, vector<128x1024xbf16>
    %137 = arith.truncf %135 : vector<4x128xf32> to vector<4x128xbf16>
    %cst_103 = arith.constant dense<0.000000e+00> : vector<4x1024xf32>
    %138 = tpu.matmul %137, %136, %cst_103 {dimension_numbers = #tpu.dot_dimension_numbers<[1], [0], [0], [1], [0, 0, 1, 1], [], []>} : vector<4x128xbf16>, vector<128x1024xbf16>, vector<4x1024xf32> -> vector<4x1024xf32>
    %c1_104 = arith.constant 1 : index
    %c0_105 = arith.constant 0 : index
    %c0_106 = arith.constant 0 : index
    %139 = vector.load %arg0[%c1_104, %c0_105, %c0_106] : memref<2x16x34xf32, #tpu.memory_space<vmem>>, vector<1x16x34xf32>
    %140 = vector.shape_cast %139 : vector<1x16x34xf32> to vector<16x34xf32>
    %c0_107 = arith.constant 0 : index
    %c0_108 = arith.constant 0 : index
    %141 = vector.load %arg1[%c0_107, %c0_108] : memref<34x64xbf16, #tpu.memory_space<vmem>>, vector<34x64xbf16>
    %142 = arith.truncf %140 : vector<16x34xf32> to vector<16x34xbf16>
    %cst_109 = arith.constant dense<0.000000e+00> : vector<16x64xf32>
    %143 = tpu.matmul %142, %141, %cst_109 {dimension_numbers = #tpu.dot_dimension_numbers<[1], [0], [0], [1], [0, 0, 1, 1], [], []>} : vector<16x34xbf16>, vector<34x64xbf16>, vector<16x64xf32> -> vector<16x64xf32>
    %c0_110 = arith.constant 0 : index
    %c0_111 = arith.constant 0 : index
    %144 = vector.load %arg2[%c0_110, %c0_111] : memref<1x64xf32, #tpu.memory_space<vmem>>, vector<1x64xf32>
    %145 = vector.broadcast %144 : vector<1x64xf32> to vector<16x64xf32>
    %146 = arith.addf %143, %145 : vector<16x64xf32>
    %cst_112 = arith.constant 0.000000e+00 : f32
    %147 = vector.broadcast %cst_112 : f32 to vector<1x34xf32>
    %148 = vector.extract_strided_slice %140 {offsets = [0, 0], sizes = [15, 34], strides = [1, 1]} : vector<16x34xf32> to vector<15x34xf32>
    %149 = tpu.concatenate %147, %148 in 0 : vector<1x34xf32>, vector<15x34xf32> -> vector<16x34xf32>
    %150 = vector.extract_strided_slice %140 {offsets = [1, 0], sizes = [15, 34], strides = [1, 1]} : vector<16x34xf32> to vector<15x34xf32>
    %151 = tpu.concatenate %150, %147 in 0 : vector<15x34xf32>, vector<1x34xf32> -> vector<16x34xf32>
    %c0_113 = arith.constant 0 : index
    %c0_114 = arith.constant 0 : index
    %c0_115 = arith.constant 0 : index
    %152 = vector.load %arg3[%c0_113, %c0_114, %c0_115] : memref<3x34x64xbf16, #tpu.memory_space<vmem>>, vector<1x34x64xbf16>
    %153 = vector.shape_cast %152 : vector<1x34x64xbf16> to vector<34x64xbf16>
    %154 = arith.truncf %149 : vector<16x34xf32> to vector<16x34xbf16>
    %cst_116 = arith.constant dense<0.000000e+00> : vector<16x64xf32>
    %155 = tpu.matmul %154, %153, %cst_116 {dimension_numbers = #tpu.dot_dimension_numbers<[1], [0], [0], [1], [0, 0, 1, 1], [], []>} : vector<16x34xbf16>, vector<34x64xbf16>, vector<16x64xf32> -> vector<16x64xf32>
    %c1_117 = arith.constant 1 : index
    %c0_118 = arith.constant 0 : index
    %c0_119 = arith.constant 0 : index
    %156 = vector.load %arg3[%c1_117, %c0_118, %c0_119] : memref<3x34x64xbf16, #tpu.memory_space<vmem>>, vector<1x34x64xbf16>
    %157 = vector.shape_cast %156 : vector<1x34x64xbf16> to vector<34x64xbf16>
    %158 = arith.truncf %140 : vector<16x34xf32> to vector<16x34xbf16>
    %cst_120 = arith.constant dense<0.000000e+00> : vector<16x64xf32>
    %159 = tpu.matmul %158, %157, %cst_120 {dimension_numbers = #tpu.dot_dimension_numbers<[1], [0], [0], [1], [0, 0, 1, 1], [], []>} : vector<16x34xbf16>, vector<34x64xbf16>, vector<16x64xf32> -> vector<16x64xf32>
    %160 = arith.addf %155, %159 : vector<16x64xf32>
    %c2_121 = arith.constant 2 : index
    %c0_122 = arith.constant 0 : index
    %c0_123 = arith.constant 0 : index
    %161 = vector.load %arg3[%c2_121, %c0_122, %c0_123] : memref<3x34x64xbf16, #tpu.memory_space<vmem>>, vector<1x34x64xbf16>
    %162 = vector.shape_cast %161 : vector<1x34x64xbf16> to vector<34x64xbf16>
    %163 = arith.truncf %151 : vector<16x34xf32> to vector<16x34xbf16>
    %cst_124 = arith.constant dense<0.000000e+00> : vector<16x64xf32>
    %164 = tpu.matmul %163, %162, %cst_124 {dimension_numbers = #tpu.dot_dimension_numbers<[1], [0], [0], [1], [0, 0, 1, 1], [], []>} : vector<16x34xbf16>, vector<34x64xbf16>, vector<16x64xf32> -> vector<16x64xf32>
    %165 = arith.addf %160, %164 : vector<16x64xf32>
    %c0_125 = arith.constant 0 : index
    %c0_126 = arith.constant 0 : index
    %166 = vector.load %arg4[%c0_125, %c0_126] : memref<1x64xf32, #tpu.memory_space<vmem>>, vector<1x64xf32>
    %167 = vector.broadcast %166 : vector<1x64xf32> to vector<16x64xf32>
    %168 = arith.mulf %165, %167 : vector<16x64xf32>
    %c0_127 = arith.constant 0 : index
    %c0_128 = arith.constant 0 : index
    %169 = vector.load %arg5[%c0_127, %c0_128] : memref<1x64xf32, #tpu.memory_space<vmem>>, vector<1x64xf32>
    %170 = vector.broadcast %169 : vector<1x64xf32> to vector<16x64xf32>
    %171 = arith.addf %168, %170 : vector<16x64xf32>
    %cst_129 = arith.constant 0.000000e+00 : f32
    %172 = vector.broadcast %cst_129 : f32 to vector<16x64xf32>
    %173 = arith.maximumf %171, %172 : vector<16x64xf32>
    %cst_130 = arith.constant 0.000000e+00 : f32
    %174 = vector.broadcast %cst_130 : f32 to vector<1x64xf32>
    %175 = vector.extract_strided_slice %173 {offsets = [0, 0], sizes = [15, 64], strides = [1, 1]} : vector<16x64xf32> to vector<15x64xf32>
    %176 = tpu.concatenate %174, %175 in 0 : vector<1x64xf32>, vector<15x64xf32> -> vector<16x64xf32>
    %177 = vector.extract_strided_slice %173 {offsets = [1, 0], sizes = [15, 64], strides = [1, 1]} : vector<16x64xf32> to vector<15x64xf32>
    %178 = tpu.concatenate %177, %174 in 0 : vector<15x64xf32>, vector<1x64xf32> -> vector<16x64xf32>
    %c0_131 = arith.constant 0 : index
    %c0_132 = arith.constant 0 : index
    %c0_133 = arith.constant 0 : index
    %179 = vector.load %arg6[%c0_131, %c0_132, %c0_133] : memref<3x64x64xbf16, #tpu.memory_space<vmem>>, vector<1x64x64xbf16>
    %180 = vector.shape_cast %179 : vector<1x64x64xbf16> to vector<64x64xbf16>
    %181 = arith.truncf %176 : vector<16x64xf32> to vector<16x64xbf16>
    %cst_134 = arith.constant dense<0.000000e+00> : vector<16x64xf32>
    %182 = tpu.matmul %181, %180, %cst_134 {dimension_numbers = #tpu.dot_dimension_numbers<[1], [0], [0], [1], [0, 0, 1, 1], [], []>} : vector<16x64xbf16>, vector<64x64xbf16>, vector<16x64xf32> -> vector<16x64xf32>
    %c1_135 = arith.constant 1 : index
    %c0_136 = arith.constant 0 : index
    %c0_137 = arith.constant 0 : index
    %183 = vector.load %arg6[%c1_135, %c0_136, %c0_137] : memref<3x64x64xbf16, #tpu.memory_space<vmem>>, vector<1x64x64xbf16>
    %184 = vector.shape_cast %183 : vector<1x64x64xbf16> to vector<64x64xbf16>
    %185 = arith.truncf %173 : vector<16x64xf32> to vector<16x64xbf16>
    %cst_138 = arith.constant dense<0.000000e+00> : vector<16x64xf32>
    %186 = tpu.matmul %185, %184, %cst_138 {dimension_numbers = #tpu.dot_dimension_numbers<[1], [0], [0], [1], [0, 0, 1, 1], [], []>} : vector<16x64xbf16>, vector<64x64xbf16>, vector<16x64xf32> -> vector<16x64xf32>
    %187 = arith.addf %182, %186 : vector<16x64xf32>
    %c2_139 = arith.constant 2 : index
    %c0_140 = arith.constant 0 : index
    %c0_141 = arith.constant 0 : index
    %188 = vector.load %arg6[%c2_139, %c0_140, %c0_141] : memref<3x64x64xbf16, #tpu.memory_space<vmem>>, vector<1x64x64xbf16>
    %189 = vector.shape_cast %188 : vector<1x64x64xbf16> to vector<64x64xbf16>
    %190 = arith.truncf %178 : vector<16x64xf32> to vector<16x64xbf16>
    %cst_142 = arith.constant dense<0.000000e+00> : vector<16x64xf32>
    %191 = tpu.matmul %190, %189, %cst_142 {dimension_numbers = #tpu.dot_dimension_numbers<[1], [0], [0], [1], [0, 0, 1, 1], [], []>} : vector<16x64xbf16>, vector<64x64xbf16>, vector<16x64xf32> -> vector<16x64xf32>
    %192 = arith.addf %187, %191 : vector<16x64xf32>
    %c0_143 = arith.constant 0 : index
    %c0_144 = arith.constant 0 : index
    %193 = vector.load %arg7[%c0_143, %c0_144] : memref<1x64xf32, #tpu.memory_space<vmem>>, vector<1x64xf32>
    %194 = vector.broadcast %193 : vector<1x64xf32> to vector<16x64xf32>
    %195 = arith.mulf %192, %194 : vector<16x64xf32>
    %c0_145 = arith.constant 0 : index
    %c0_146 = arith.constant 0 : index
    %196 = vector.load %arg8[%c0_145, %c0_146] : memref<1x64xf32, #tpu.memory_space<vmem>>, vector<1x64xf32>
    %197 = vector.broadcast %196 : vector<1x64xf32> to vector<16x64xf32>
    %198 = arith.addf %195, %197 : vector<16x64xf32>
    %cst_147 = arith.constant 0.000000e+00 : f32
    %199 = vector.broadcast %cst_147 : f32 to vector<16x64xf32>
    %200 = arith.maximumf %198, %199 : vector<16x64xf32>
    %201 = arith.addf %200, %146 : vector<16x64xf32>
    %c0_148 = arith.constant 0 : index
    %c0_149 = arith.constant 0 : index
    %202 = vector.load %arg27[%c0_148, %c0_149] : memref<16x64xf32, #tpu.memory_space<vmem>>, vector<16x64xf32>
    tpu.vector_store %arg27[%c0_148, %c0_149], %201 {strides = array<i32>} : memref<16x64xf32, #tpu.memory_space<vmem>>, vector<16x64xf32>,
    %c0_150 = arith.constant 0 : index
    %c0_151 = arith.constant 0 : index
    %203 = tpu.strided_load %arg27[%c0_150, %c0_151] {strides = array<i32: 2, 1>} : memref<16x64xf32, #tpu.memory_space<vmem>>, vector<8x64xf32>
    %c1_152 = arith.constant 1 : index
    %c0_153 = arith.constant 0 : index
    %204 = tpu.strided_load %arg27[%c1_152, %c0_153] {strides = array<i32: 2, 1>} : memref<16x64xf32, #tpu.memory_space<vmem>>, vector<8x64xf32>
    %205 = arith.maximumf %203, %204 : vector<8x64xf32>
    %c0_154 = arith.constant 0 : index
    %c0_155 = arith.constant 0 : index
    %206 = vector.load %arg9[%c0_154, %c0_155] : memref<64x128xbf16, #tpu.memory_space<vmem>>, vector<64x128xbf16>
    %207 = arith.truncf %205 : vector<8x64xf32> to vector<8x64xbf16>
    %cst_156 = arith.constant dense<0.000000e+00> : vector<8x128xf32>
    %208 = tpu.matmul %207, %206, %cst_156 {dimension_numbers = #tpu.dot_dimension_numbers<[1], [0], [0], [1], [0, 0, 1, 1], [], []>} : vector<8x64xbf16>, vector<64x128xbf16>, vector<8x128xf32> -> vector<8x128xf32>
    %c0_157 = arith.constant 0 : index
    %c0_158 = arith.constant 0 : index
    %209 = vector.load %arg10[%c0_157, %c0_158] : memref<1x128xf32, #tpu.memory_space<vmem>>, vector<1x128xf32>
    %210 = vector.broadcast %209 : vector<1x128xf32> to vector<8x128xf32>
    %211 = arith.addf %208, %210 : vector<8x128xf32>
    %cst_159 = arith.constant 0.000000e+00 : f32
    %212 = vector.broadcast %cst_159 : f32 to vector<1x64xf32>
    %213 = vector.extract_strided_slice %205 {offsets = [0, 0], sizes = [7, 64], strides = [1, 1]} : vector<8x64xf32> to vector<7x64xf32>
    %214 = tpu.concatenate %212, %213 in 0 : vector<1x64xf32>, vector<7x64xf32> -> vector<8x64xf32>
    %215 = vector.extract_strided_slice %205 {offsets = [1, 0], sizes = [7, 64], strides = [1, 1]} : vector<8x64xf32> to vector<7x64xf32>
    %216 = tpu.concatenate %215, %212 in 0 : vector<7x64xf32>, vector<1x64xf32> -> vector<8x64xf32>
    %c0_160 = arith.constant 0 : index
    %c0_161 = arith.constant 0 : index
    %c0_162 = arith.constant 0 : index
    %217 = vector.load %arg11[%c0_160, %c0_161, %c0_162] : memref<3x64x128xbf16, #tpu.memory_space<vmem>>, vector<1x64x128xbf16>
    %218 = vector.shape_cast %217 : vector<1x64x128xbf16> to vector<64x128xbf16>
    %219 = arith.truncf %214 : vector<8x64xf32> to vector<8x64xbf16>
    %cst_163 = arith.constant dense<0.000000e+00> : vector<8x128xf32>
    %220 = tpu.matmul %219, %218, %cst_163 {dimension_numbers = #tpu.dot_dimension_numbers<[1], [0], [0], [1], [0, 0, 1, 1], [], []>} : vector<8x64xbf16>, vector<64x128xbf16>, vector<8x128xf32> -> vector<8x128xf32>
    %c1_164 = arith.constant 1 : index
    %c0_165 = arith.constant 0 : index
    %c0_166 = arith.constant 0 : index
    %221 = vector.load %arg11[%c1_164, %c0_165, %c0_166] : memref<3x64x128xbf16, #tpu.memory_space<vmem>>, vector<1x64x128xbf16>
    %222 = vector.shape_cast %221 : vector<1x64x128xbf16> to vector<64x128xbf16>
    %223 = arith.truncf %205 : vector<8x64xf32> to vector<8x64xbf16>
    %cst_167 = arith.constant dense<0.000000e+00> : vector<8x128xf32>
    %224 = tpu.matmul %223, %222, %cst_167 {dimension_numbers = #tpu.dot_dimension_numbers<[1], [0], [0], [1], [0, 0, 1, 1], [], []>} : vector<8x64xbf16>, vector<64x128xbf16>, vector<8x128xf32> -> vector<8x128xf32>
    %225 = arith.addf %220, %224 : vector<8x128xf32>
    %c2_168 = arith.constant 2 : index
    %c0_169 = arith.constant 0 : index
    %c0_170 = arith.constant 0 : index
    %226 = vector.load %arg11[%c2_168, %c0_169, %c0_170] : memref<3x64x128xbf16, #tpu.memory_space<vmem>>, vector<1x64x128xbf16>
    %227 = vector.shape_cast %226 : vector<1x64x128xbf16> to vector<64x128xbf16>
    %228 = arith.truncf %216 : vector<8x64xf32> to vector<8x64xbf16>
    %cst_171 = arith.constant dense<0.000000e+00> : vector<8x128xf32>
    %229 = tpu.matmul %228, %227, %cst_171 {dimension_numbers = #tpu.dot_dimension_numbers<[1], [0], [0], [1], [0, 0, 1, 1], [], []>} : vector<8x64xbf16>, vector<64x128xbf16>, vector<8x128xf32> -> vector<8x128xf32>
    %230 = arith.addf %225, %229 : vector<8x128xf32>
    %c0_172 = arith.constant 0 : index
    %c0_173 = arith.constant 0 : index
    %231 = vector.load %arg12[%c0_172, %c0_173] : memref<1x128xf32, #tpu.memory_space<vmem>>, vector<1x128xf32>
    %232 = vector.broadcast %231 : vector<1x128xf32> to vector<8x128xf32>
    %233 = arith.mulf %230, %232 : vector<8x128xf32>
    %c0_174 = arith.constant 0 : index
    %c0_175 = arith.constant 0 : index
    %234 = vector.load %arg13[%c0_174, %c0_175] : memref<1x128xf32, #tpu.memory_space<vmem>>, vector<1x128xf32>
    %235 = vector.broadcast %234 : vector<1x128xf32> to vector<8x128xf32>
    %236 = arith.addf %233, %235 : vector<8x128xf32>
    %cst_176 = arith.constant 0.000000e+00 : f32
    %237 = vector.broadcast %cst_176 : f32 to vector<8x128xf32>
    %238 = arith.maximumf %236, %237 : vector<8x128xf32>
    %cst_177 = arith.constant 0.000000e+00 : f32
    %239 = vector.broadcast %cst_177 : f32 to vector<1x128xf32>
    %240 = vector.extract_strided_slice %238 {offsets = [0, 0], sizes = [7, 128], strides = [1, 1]} : vector<8x128xf32> to vector<7x128xf32>
    %241 = tpu.concatenate %239, %240 in 0 : vector<1x128xf32>, vector<7x128xf32> -> vector<8x128xf32>
    %242 = vector.extract_strided_slice %238 {offsets = [1, 0], sizes = [7, 128], strides = [1, 1]} : vector<8x128xf32> to vector<7x128xf32>
    %243 = tpu.concatenate %242, %239 in 0 : vector<7x128xf32>, vector<1x128xf32> -> vector<8x128xf32>
    %c0_178 = arith.constant 0 : index
    %c0_179 = arith.constant 0 : index
    %c0_180 = arith.constant 0 : index
    %244 = vector.load %arg14[%c0_178, %c0_179, %c0_180] : memref<3x128x128xbf16, #tpu.memory_space<vmem>>, vector<1x128x128xbf16>
    %245 = vector.shape_cast %244 : vector<1x128x128xbf16> to vector<128x128xbf16>
    %246 = arith.truncf %241 : vector<8x128xf32> to vector<8x128xbf16>
    %cst_181 = arith.constant dense<0.000000e+00> : vector<8x128xf32>
    %247 = tpu.matmul %246, %245, %cst_181 {dimension_numbers = #tpu.dot_dimension_numbers<[1], [0], [0], [1], [0, 0, 1, 1], [], []>} : vector<8x128xbf16>, vector<128x128xbf16>, vector<8x128xf32> -> vector<8x128xf32>
    %c1_182 = arith.constant 1 : index
    %c0_183 = arith.constant 0 : index
    %c0_184 = arith.constant 0 : index
    %248 = vector.load %arg14[%c1_182, %c0_183, %c0_184] : memref<3x128x128xbf16, #tpu.memory_space<vmem>>, vector<1x128x128xbf16>
    %249 = vector.shape_cast %248 : vector<1x128x128xbf16> to vector<128x128xbf16>
    %250 = arith.truncf %238 : vector<8x128xf32> to vector<8x128xbf16>
    %cst_185 = arith.constant dense<0.000000e+00> : vector<8x128xf32>
    %251 = tpu.matmul %250, %249, %cst_185 {dimension_numbers = #tpu.dot_dimension_numbers<[1], [0], [0], [1], [0, 0, 1, 1], [], []>} : vector<8x128xbf16>, vector<128x128xbf16>, vector<8x128xf32> -> vector<8x128xf32>
    %252 = arith.addf %247, %251 : vector<8x128xf32>
    %c2_186 = arith.constant 2 : index
    %c0_187 = arith.constant 0 : index
    %c0_188 = arith.constant 0 : index
    %253 = vector.load %arg14[%c2_186, %c0_187, %c0_188] : memref<3x128x128xbf16, #tpu.memory_space<vmem>>, vector<1x128x128xbf16>
    %254 = vector.shape_cast %253 : vector<1x128x128xbf16> to vector<128x128xbf16>
    %255 = arith.truncf %243 : vector<8x128xf32> to vector<8x128xbf16>
    %cst_189 = arith.constant dense<0.000000e+00> : vector<8x128xf32>
    %256 = tpu.matmul %255, %254, %cst_189 {dimension_numbers = #tpu.dot_dimension_numbers<[1], [0], [0], [1], [0, 0, 1, 1], [], []>} : vector<8x128xbf16>, vector<128x128xbf16>, vector<8x128xf32> -> vector<8x128xf32>
    %257 = arith.addf %252, %256 : vector<8x128xf32>
    %c0_190 = arith.constant 0 : index
    %c0_191 = arith.constant 0 : index
    %258 = vector.load %arg15[%c0_190, %c0_191] : memref<1x128xf32, #tpu.memory_space<vmem>>, vector<1x128xf32>
    %259 = vector.broadcast %258 : vector<1x128xf32> to vector<8x128xf32>
    %260 = arith.mulf %257, %259 : vector<8x128xf32>
    %c0_192 = arith.constant 0 : index
    %c0_193 = arith.constant 0 : index
    %261 = vector.load %arg16[%c0_192, %c0_193] : memref<1x128xf32, #tpu.memory_space<vmem>>, vector<1x128xf32>
    %262 = vector.broadcast %261 : vector<1x128xf32> to vector<8x128xf32>
    %263 = arith.addf %260, %262 : vector<8x128xf32>
    %cst_194 = arith.constant 0.000000e+00 : f32
    %264 = vector.broadcast %cst_194 : f32 to vector<8x128xf32>
    %265 = arith.maximumf %263, %264 : vector<8x128xf32>
    %266 = arith.addf %265, %211 : vector<8x128xf32>
    %c0_195 = arith.constant 0 : index
    %c0_196 = arith.constant 0 : index
    %267 = vector.load %arg28[%c0_195, %c0_196] : memref<8x128xf32, #tpu.memory_space<vmem>>, vector<8x128xf32>
    tpu.vector_store %arg28[%c0_195, %c0_196], %266 {strides = array<i32>} : memref<8x128xf32, #tpu.memory_space<vmem>>, vector<8x128xf32>,
    %c0_197 = arith.constant 0 : index
    %c0_198 = arith.constant 0 : index
    %268 = tpu.strided_load %arg28[%c0_197, %c0_198] {strides = array<i32: 2, 1>} : memref<8x128xf32, #tpu.memory_space<vmem>>, vector<4x128xf32>
    %c1_199 = arith.constant 1 : index
    %c0_200 = arith.constant 0 : index
    %269 = tpu.strided_load %arg28[%c1_199, %c0_200] {strides = array<i32: 2, 1>} : memref<8x128xf32, #tpu.memory_space<vmem>>, vector<4x128xf32>
    %270 = arith.maximumf %268, %269 : vector<4x128xf32>
    %c0_201 = arith.constant 0 : index
    %c0_202 = arith.constant 0 : index
    %271 = vector.load %arg17[%c0_201, %c0_202] : memref<128x1024xbf16, #tpu.memory_space<vmem>>, vector<128x1024xbf16>
    %272 = arith.truncf %270 : vector<4x128xf32> to vector<4x128xbf16>
    %cst_203 = arith.constant dense<0.000000e+00> : vector<4x1024xf32>
    %273 = tpu.matmul %272, %271, %cst_203 {dimension_numbers = #tpu.dot_dimension_numbers<[1], [0], [0], [1], [0, 0, 1, 1], [], []>} : vector<4x128xbf16>, vector<128x1024xbf16>, vector<4x1024xf32> -> vector<4x1024xf32>
    %cst_204 = arith.constant 0.000000e+00 : f32
    %274 = vector.broadcast %cst_204 : f32 to vector<2x256xf32>
    %cst_205 = arith.constant 0.000000e+00 : f32
    %275 = vector.broadcast %cst_205 : f32 to vector<2x256xf32>
    %cst_206 = arith.constant 0.000000e+00 : f32
    %276 = vector.broadcast %cst_206 : f32 to vector<2x256xf32>
    %cst_207 = arith.constant 0.000000e+00 : f32
    %277 = vector.broadcast %cst_207 : f32 to vector<2x256xf32>
    %278 = vector.extract_strided_slice %138 {offsets = [0, 0], sizes = [1, 1024], strides = [1, 1]} : vector<4x1024xf32> to vector<1x1024xf32>
    %279 = vector.extract_strided_slice %273 {offsets = [0, 0], sizes = [1, 1024], strides = [1, 1]} : vector<4x1024xf32> to vector<1x1024xf32>
    %280 = tpu.concatenate %278, %279 in 0 : vector<1x1024xf32>, vector<1x1024xf32> -> vector<2x1024xf32>
    %281 = arith.truncf %274 : vector<2x256xf32> to vector<2x256xbf16>
    %cst_208 = arith.constant dense<0.000000e+00> : vector<2x1024xf32>
    %282 = tpu.matmul %281, %0, %cst_208 {dimension_numbers = #tpu.dot_dimension_numbers<[1], [0], [0], [1], [0, 0, 1, 1], [], []>} : vector<2x256xbf16>, vector<256x1024xbf16>, vector<2x1024xf32> -> vector<2x1024xf32>
    %283 = arith.addf %280, %282 : vector<2x1024xf32>
    %284 = vector.broadcast %1 : vector<1x1024xf32> to vector<2x1024xf32>
    %285 = arith.addf %283, %284 : vector<2x1024xf32>
    %286 = vector.extract_strided_slice %285 {offsets = [0, 0], sizes = [2, 256], strides = [1, 1]} : vector<2x1024xf32> to vector<2x256xf32>
    %287 = arith.negf %286 : vector<2x256xf32>
    %288 = math.exp %287 : vector<2x256xf32>
    %cst_209 = arith.constant 1.000000e+00 : f32
    %289 = vector.broadcast %cst_209 : f32 to vector<2x256xf32>
    %290 = arith.addf %289, %288 : vector<2x256xf32>
    %291 = arith.divf %289, %290 : vector<2x256xf32>
    %292 = vector.extract_strided_slice %285 {offsets = [0, 256], sizes = [2, 256], strides = [1, 1]} : vector<2x1024xf32> to vector<2x256xf32>
    %293 = arith.negf %292 : vector<2x256xf32>
    %294 = math.exp %293 : vector<2x256xf32>
    %cst_210 = arith.constant 1.000000e+00 : f32
    %295 = vector.broadcast %cst_210 : f32 to vector<2x256xf32>
    %296 = arith.addf %295, %294 : vector<2x256xf32>
    %297 = arith.divf %295, %296 : vector<2x256xf32>
    %298 = vector.extract_strided_slice %285 {offsets = [0, 512], sizes = [2, 256], strides = [1, 1]} : vector<2x1024xf32> to vector<2x256xf32>
    %299 = math.tanh %298 : vector<2x256xf32>
    %300 = vector.extract_strided_slice %285 {offsets = [0, 768], sizes = [2, 256], strides = [1, 1]} : vector<2x1024xf32> to vector<2x256xf32>
    %301 = arith.negf %300 : vector<2x256xf32>
    %302 = math.exp %301 : vector<2x256xf32>
    %cst_211 = arith.constant 1.000000e+00 : f32
    %303 = vector.broadcast %cst_211 : f32 to vector<2x256xf32>
    %304 = arith.addf %303, %302 : vector<2x256xf32>
    %305 = arith.divf %303, %304 : vector<2x256xf32>
    %306 = arith.mulf %297, %275 : vector<2x256xf32>
    %307 = arith.mulf %291, %299 : vector<2x256xf32>
    %308 = arith.addf %306, %307 : vector<2x256xf32>
    %309 = math.tanh %308 : vector<2x256xf32>
    %310 = arith.mulf %305, %309 : vector<2x256xf32>
    %311 = tpu.concatenate %310, %276 in 1 : vector<2x256xf32>, vector<2x256xf32> -> vector<2x512xf32>
    %312 = arith.truncf %311 : vector<2x512xf32> to vector<2x512xbf16>
    %cst_212 = arith.constant dense<0.000000e+00> : vector<2x1024xf32>
    %313 = tpu.matmul %312, %2, %cst_212 {dimension_numbers = #tpu.dot_dimension_numbers<[1], [0], [0], [1], [0, 0, 1, 1], [], []>} : vector<2x512xbf16>, vector<512x1024xbf16>, vector<2x1024xf32> -> vector<2x1024xf32>
    %314 = vector.broadcast %3 : vector<1x1024xf32> to vector<2x1024xf32>
    %315 = arith.addf %313, %314 : vector<2x1024xf32>
    %316 = vector.extract_strided_slice %315 {offsets = [0, 0], sizes = [2, 256], strides = [1, 1]} : vector<2x1024xf32> to vector<2x256xf32>
    %317 = arith.negf %316 : vector<2x256xf32>
    %318 = math.exp %317 : vector<2x256xf32>
    %cst_213 = arith.constant 1.000000e+00 : f32
    %319 = vector.broadcast %cst_213 : f32 to vector<2x256xf32>
    %320 = arith.addf %319, %318 : vector<2x256xf32>
    %321 = arith.divf %319, %320 : vector<2x256xf32>
    %322 = vector.extract_strided_slice %315 {offsets = [0, 256], sizes = [2, 256], strides = [1, 1]} : vector<2x1024xf32> to vector<2x256xf32>
    %323 = arith.negf %322 : vector<2x256xf32>
    %324 = math.exp %323 : vector<2x256xf32>
    %cst_214 = arith.constant 1.000000e+00 : f32
    %325 = vector.broadcast %cst_214 : f32 to vector<2x256xf32>
    %326 = arith.addf %325, %324 : vector<2x256xf32>
    %327 = arith.divf %325, %326 : vector<2x256xf32>
    %328 = vector.extract_strided_slice %315 {offsets = [0, 512], sizes = [2, 256], strides = [1, 1]} : vector<2x1024xf32> to vector<2x256xf32>
    %329 = math.tanh %328 : vector<2x256xf32>
    %330 = vector.extract_strided_slice %315 {offsets = [0, 768], sizes = [2, 256], strides = [1, 1]} : vector<2x1024xf32> to vector<2x256xf32>
    %331 = arith.negf %330 : vector<2x256xf32>
    %332 = math.exp %331 : vector<2x256xf32>
    %cst_215 = arith.constant 1.000000e+00 : f32
    %333 = vector.broadcast %cst_215 : f32 to vector<2x256xf32>
    %334 = arith.addf %333, %332 : vector<2x256xf32>
    %335 = arith.divf %333, %334 : vector<2x256xf32>
    %336 = arith.mulf %327, %277 : vector<2x256xf32>
    %337 = arith.mulf %321, %329 : vector<2x256xf32>
    %338 = arith.addf %336, %337 : vector<2x256xf32>
    %339 = math.tanh %338 : vector<2x256xf32>
    %340 = arith.mulf %335, %339 : vector<2x256xf32>
    %341 = vector.extract_strided_slice %138 {offsets = [1, 0], sizes = [1, 1024], strides = [1, 1]} : vector<4x1024xf32> to vector<1x1024xf32>
    %342 = vector.extract_strided_slice %273 {offsets = [1, 0], sizes = [1, 1024], strides = [1, 1]} : vector<4x1024xf32> to vector<1x1024xf32>
    %343 = tpu.concatenate %341, %342 in 0 : vector<1x1024xf32>, vector<1x1024xf32> -> vector<2x1024xf32>
    %344 = arith.truncf %310 : vector<2x256xf32> to vector<2x256xbf16>
    %cst_216 = arith.constant dense<0.000000e+00> : vector<2x1024xf32>
    %345 = tpu.matmul %344, %0, %cst_216 {dimension_numbers = #tpu.dot_dimension_numbers<[1], [0], [0], [1], [0, 0, 1, 1], [], []>} : vector<2x256xbf16>, vector<256x1024xbf16>, vector<2x1024xf32> -> vector<2x1024xf32>
    %346 = arith.addf %343, %345 : vector<2x1024xf32>
    %347 = vector.broadcast %1 : vector<1x1024xf32> to vector<2x1024xf32>
    %348 = arith.addf %346, %347 : vector<2x1024xf32>
    %349 = vector.extract_strided_slice %348 {offsets = [0, 0], sizes = [2, 256], strides = [1, 1]} : vector<2x1024xf32> to vector<2x256xf32>
    %350 = arith.negf %349 : vector<2x256xf32>
    %351 = math.exp %350 : vector<2x256xf32>
    %cst_217 = arith.constant 1.000000e+00 : f32
    %352 = vector.broadcast %cst_217 : f32 to vector<2x256xf32>
    %353 = arith.addf %352, %351 : vector<2x256xf32>
    %354 = arith.divf %352, %353 : vector<2x256xf32>
    %355 = vector.extract_strided_slice %348 {offsets = [0, 256], sizes = [2, 256], strides = [1, 1]} : vector<2x1024xf32> to vector<2x256xf32>
    %356 = arith.negf %355 : vector<2x256xf32>
    %357 = math.exp %356 : vector<2x256xf32>
    %cst_218 = arith.constant 1.000000e+00 : f32
    %358 = vector.broadcast %cst_218 : f32 to vector<2x256xf32>
    %359 = arith.addf %358, %357 : vector<2x256xf32>
    %360 = arith.divf %358, %359 : vector<2x256xf32>
    %361 = vector.extract_strided_slice %348 {offsets = [0, 512], sizes = [2, 256], strides = [1, 1]} : vector<2x1024xf32> to vector<2x256xf32>
    %362 = math.tanh %361 : vector<2x256xf32>
    %363 = vector.extract_strided_slice %348 {offsets = [0, 768], sizes = [2, 256], strides = [1, 1]} : vector<2x1024xf32> to vector<2x256xf32>
    %364 = arith.negf %363 : vector<2x256xf32>
    %365 = math.exp %364 : vector<2x256xf32>
    %cst_219 = arith.constant 1.000000e+00 : f32
    %366 = vector.broadcast %cst_219 : f32 to vector<2x256xf32>
    %367 = arith.addf %366, %365 : vector<2x256xf32>
    %368 = arith.divf %366, %367 : vector<2x256xf32>
    %369 = arith.mulf %360, %308 : vector<2x256xf32>
    %370 = arith.mulf %354, %362 : vector<2x256xf32>
    %371 = arith.addf %369, %370 : vector<2x256xf32>
    %372 = math.tanh %371 : vector<2x256xf32>
    %373 = arith.mulf %368, %372 : vector<2x256xf32>
    %374 = tpu.concatenate %373, %340 in 1 : vector<2x256xf32>, vector<2x256xf32> -> vector<2x512xf32>
    %375 = arith.truncf %374 : vector<2x512xf32> to vector<2x512xbf16>
    %cst_220 = arith.constant dense<0.000000e+00> : vector<2x1024xf32>
    %376 = tpu.matmul %375, %2, %cst_220 {dimension_numbers = #tpu.dot_dimension_numbers<[1], [0], [0], [1], [0, 0, 1, 1], [], []>} : vector<2x512xbf16>, vector<512x1024xbf16>, vector<2x1024xf32> -> vector<2x1024xf32>
    %377 = vector.broadcast %3 : vector<1x1024xf32> to vector<2x1024xf32>
    %378 = arith.addf %376, %377 : vector<2x1024xf32>
    %379 = vector.extract_strided_slice %378 {offsets = [0, 0], sizes = [2, 256], strides = [1, 1]} : vector<2x1024xf32> to vector<2x256xf32>
    %380 = arith.negf %379 : vector<2x256xf32>
    %381 = math.exp %380 : vector<2x256xf32>
    %cst_221 = arith.constant 1.000000e+00 : f32
    %382 = vector.broadcast %cst_221 : f32 to vector<2x256xf32>
    %383 = arith.addf %382, %381 : vector<2x256xf32>
    %384 = arith.divf %382, %383 : vector<2x256xf32>
    %385 = vector.extract_strided_slice %378 {offsets = [0, 256], sizes = [2, 256], strides = [1, 1]} : vector<2x1024xf32> to vector<2x256xf32>
    %386 = arith.negf %385 : vector<2x256xf32>
    %387 = math.exp %386 : vector<2x256xf32>
    %cst_222 = arith.constant 1.000000e+00 : f32
    %388 = vector.broadcast %cst_222 : f32 to vector<2x256xf32>
    %389 = arith.addf %388, %387 : vector<2x256xf32>
    %390 = arith.divf %388, %389 : vector<2x256xf32>
    %391 = vector.extract_strided_slice %378 {offsets = [0, 512], sizes = [2, 256], strides = [1, 1]} : vector<2x1024xf32> to vector<2x256xf32>
    %392 = math.tanh %391 : vector<2x256xf32>
    %393 = vector.extract_strided_slice %378 {offsets = [0, 768], sizes = [2, 256], strides = [1, 1]} : vector<2x1024xf32> to vector<2x256xf32>
    %394 = arith.negf %393 : vector<2x256xf32>
    %395 = math.exp %394 : vector<2x256xf32>
    %cst_223 = arith.constant 1.000000e+00 : f32
    %396 = vector.broadcast %cst_223 : f32 to vector<2x256xf32>
    %397 = arith.addf %396, %395 : vector<2x256xf32>
    %398 = arith.divf %396, %397 : vector<2x256xf32>
    %399 = arith.mulf %390, %338 : vector<2x256xf32>
    %400 = arith.mulf %384, %392 : vector<2x256xf32>
    %401 = arith.addf %399, %400 : vector<2x256xf32>
    %402 = math.tanh %401 : vector<2x256xf32>
    %403 = arith.mulf %398, %402 : vector<2x256xf32>
    %404 = vector.extract_strided_slice %138 {offsets = [2, 0], sizes = [1, 1024], strides = [1, 1]} : vector<4x1024xf32> to vector<1x1024xf32>
    %405 = vector.extract_strided_slice %273 {offsets = [2, 0], sizes = [1, 1024], strides = [1, 1]} : vector<4x1024xf32> to vector<1x1024xf32>
    %406 = tpu.concatenate %404, %405 in 0 : vector<1x1024xf32>, vector<1x1024xf32> -> vector<2x1024xf32>
    %407 = arith.truncf %373 : vector<2x256xf32> to vector<2x256xbf16>
    %cst_224 = arith.constant dense<0.000000e+00> : vector<2x1024xf32>
    %408 = tpu.matmul %407, %0, %cst_224 {dimension_numbers = #tpu.dot_dimension_numbers<[1], [0], [0], [1], [0, 0, 1, 1], [], []>} : vector<2x256xbf16>, vector<256x1024xbf16>, vector<2x1024xf32> -> vector<2x1024xf32>
    %409 = arith.addf %406, %408 : vector<2x1024xf32>
    %410 = vector.broadcast %1 : vector<1x1024xf32> to vector<2x1024xf32>
    %411 = arith.addf %409, %410 : vector<2x1024xf32>
    %412 = vector.extract_strided_slice %411 {offsets = [0, 0], sizes = [2, 256], strides = [1, 1]} : vector<2x1024xf32> to vector<2x256xf32>
    %413 = arith.negf %412 : vector<2x256xf32>
    %414 = math.exp %413 : vector<2x256xf32>
    %cst_225 = arith.constant 1.000000e+00 : f32
    %415 = vector.broadcast %cst_225 : f32 to vector<2x256xf32>
    %416 = arith.addf %415, %414 : vector<2x256xf32>
    %417 = arith.divf %415, %416 : vector<2x256xf32>
    %418 = vector.extract_strided_slice %411 {offsets = [0, 256], sizes = [2, 256], strides = [1, 1]} : vector<2x1024xf32> to vector<2x256xf32>
    %419 = arith.negf %418 : vector<2x256xf32>
    %420 = math.exp %419 : vector<2x256xf32>
    %cst_226 = arith.constant 1.000000e+00 : f32
    %421 = vector.broadcast %cst_226 : f32 to vector<2x256xf32>
    %422 = arith.addf %421, %420 : vector<2x256xf32>
    %423 = arith.divf %421, %422 : vector<2x256xf32>
    %424 = vector.extract_strided_slice %411 {offsets = [0, 512], sizes = [2, 256], strides = [1, 1]} : vector<2x1024xf32> to vector<2x256xf32>
    %425 = math.tanh %424 : vector<2x256xf32>
    %426 = vector.extract_strided_slice %411 {offsets = [0, 768], sizes = [2, 256], strides = [1, 1]} : vector<2x1024xf32> to vector<2x256xf32>
    %427 = arith.negf %426 : vector<2x256xf32>
    %428 = math.exp %427 : vector<2x256xf32>
    %cst_227 = arith.constant 1.000000e+00 : f32
    %429 = vector.broadcast %cst_227 : f32 to vector<2x256xf32>
    %430 = arith.addf %429, %428 : vector<2x256xf32>
    %431 = arith.divf %429, %430 : vector<2x256xf32>
    %432 = arith.mulf %423, %371 : vector<2x256xf32>
    %433 = arith.mulf %417, %425 : vector<2x256xf32>
    %434 = arith.addf %432, %433 : vector<2x256xf32>
    %435 = math.tanh %434 : vector<2x256xf32>
    %436 = arith.mulf %431, %435 : vector<2x256xf32>
    %437 = tpu.concatenate %436, %403 in 1 : vector<2x256xf32>, vector<2x256xf32> -> vector<2x512xf32>
    %438 = arith.truncf %437 : vector<2x512xf32> to vector<2x512xbf16>
    %cst_228 = arith.constant dense<0.000000e+00> : vector<2x1024xf32>
    %439 = tpu.matmul %438, %2, %cst_228 {dimension_numbers = #tpu.dot_dimension_numbers<[1], [0], [0], [1], [0, 0, 1, 1], [], []>} : vector<2x512xbf16>, vector<512x1024xbf16>, vector<2x1024xf32> -> vector<2x1024xf32>
    %440 = vector.broadcast %3 : vector<1x1024xf32> to vector<2x1024xf32>
    %441 = arith.addf %439, %440 : vector<2x1024xf32>
    %442 = vector.extract_strided_slice %441 {offsets = [0, 0], sizes = [2, 256], strides = [1, 1]} : vector<2x1024xf32> to vector<2x256xf32>
    %443 = arith.negf %442 : vector<2x256xf32>
    %444 = math.exp %443 : vector<2x256xf32>
    %cst_229 = arith.constant 1.000000e+00 : f32
    %445 = vector.broadcast %cst_229 : f32 to vector<2x256xf32>
    %446 = arith.addf %445, %444 : vector<2x256xf32>
    %447 = arith.divf %445, %446 : vector<2x256xf32>
    %448 = vector.extract_strided_slice %441 {offsets = [0, 256], sizes = [2, 256], strides = [1, 1]} : vector<2x1024xf32> to vector<2x256xf32>
    %449 = arith.negf %448 : vector<2x256xf32>
    %450 = math.exp %449 : vector<2x256xf32>
    %cst_230 = arith.constant 1.000000e+00 : f32
    %451 = vector.broadcast %cst_230 : f32 to vector<2x256xf32>
    %452 = arith.addf %451, %450 : vector<2x256xf32>
    %453 = arith.divf %451, %452 : vector<2x256xf32>
    %454 = vector.extract_strided_slice %441 {offsets = [0, 512], sizes = [2, 256], strides = [1, 1]} : vector<2x1024xf32> to vector<2x256xf32>
    %455 = math.tanh %454 : vector<2x256xf32>
    %456 = vector.extract_strided_slice %441 {offsets = [0, 768], sizes = [2, 256], strides = [1, 1]} : vector<2x1024xf32> to vector<2x256xf32>
    %457 = arith.negf %456 : vector<2x256xf32>
    %458 = math.exp %457 : vector<2x256xf32>
    %cst_231 = arith.constant 1.000000e+00 : f32
    %459 = vector.broadcast %cst_231 : f32 to vector<2x256xf32>
    %460 = arith.addf %459, %458 : vector<2x256xf32>
    %461 = arith.divf %459, %460 : vector<2x256xf32>
    %462 = arith.mulf %453, %401 : vector<2x256xf32>
    %463 = arith.mulf %447, %455 : vector<2x256xf32>
    %464 = arith.addf %462, %463 : vector<2x256xf32>
    %465 = math.tanh %464 : vector<2x256xf32>
    %466 = arith.mulf %461, %465 : vector<2x256xf32>
    %467 = vector.extract_strided_slice %138 {offsets = [3, 0], sizes = [1, 1024], strides = [1, 1]} : vector<4x1024xf32> to vector<1x1024xf32>
    %468 = vector.extract_strided_slice %273 {offsets = [3, 0], sizes = [1, 1024], strides = [1, 1]} : vector<4x1024xf32> to vector<1x1024xf32>
    %469 = tpu.concatenate %467, %468 in 0 : vector<1x1024xf32>, vector<1x1024xf32> -> vector<2x1024xf32>
    %470 = arith.truncf %436 : vector<2x256xf32> to vector<2x256xbf16>
    %cst_232 = arith.constant dense<0.000000e+00> : vector<2x1024xf32>
    %471 = tpu.matmul %470, %0, %cst_232 {dimension_numbers = #tpu.dot_dimension_numbers<[1], [0], [0], [1], [0, 0, 1, 1], [], []>} : vector<2x256xbf16>, vector<256x1024xbf16>, vector<2x1024xf32> -> vector<2x1024xf32>
    %472 = arith.addf %469, %471 : vector<2x1024xf32>
    %473 = vector.broadcast %1 : vector<1x1024xf32> to vector<2x1024xf32>
    %474 = arith.addf %472, %473 : vector<2x1024xf32>
    %475 = vector.extract_strided_slice %474 {offsets = [0, 0], sizes = [2, 256], strides = [1, 1]} : vector<2x1024xf32> to vector<2x256xf32>
    %476 = arith.negf %475 : vector<2x256xf32>
    %477 = math.exp %476 : vector<2x256xf32>
    %cst_233 = arith.constant 1.000000e+00 : f32
    %478 = vector.broadcast %cst_233 : f32 to vector<2x256xf32>
    %479 = arith.addf %478, %477 : vector<2x256xf32>
    %480 = arith.divf %478, %479 : vector<2x256xf32>
    %481 = vector.extract_strided_slice %474 {offsets = [0, 256], sizes = [2, 256], strides = [1, 1]} : vector<2x1024xf32> to vector<2x256xf32>
    %482 = arith.negf %481 : vector<2x256xf32>
    %483 = math.exp %482 : vector<2x256xf32>
    %cst_234 = arith.constant 1.000000e+00 : f32
    %484 = vector.broadcast %cst_234 : f32 to vector<2x256xf32>
    %485 = arith.addf %484, %483 : vector<2x256xf32>
    %486 = arith.divf %484, %485 : vector<2x256xf32>
    %487 = vector.extract_strided_slice %474 {offsets = [0, 512], sizes = [2, 256], strides = [1, 1]} : vector<2x1024xf32> to vector<2x256xf32>
    %488 = math.tanh %487 : vector<2x256xf32>
    %489 = vector.extract_strided_slice %474 {offsets = [0, 768], sizes = [2, 256], strides = [1, 1]} : vector<2x1024xf32> to vector<2x256xf32>
    %490 = arith.negf %489 : vector<2x256xf32>
    %491 = math.exp %490 : vector<2x256xf32>
    %cst_235 = arith.constant 1.000000e+00 : f32
    %492 = vector.broadcast %cst_235 : f32 to vector<2x256xf32>
    %493 = arith.addf %492, %491 : vector<2x256xf32>
    %494 = arith.divf %492, %493 : vector<2x256xf32>
    %495 = arith.mulf %486, %434 : vector<2x256xf32>
    %496 = arith.mulf %480, %488 : vector<2x256xf32>
    %497 = arith.addf %495, %496 : vector<2x256xf32>
    %498 = math.tanh %497 : vector<2x256xf32>
    %499 = arith.mulf %494, %498 : vector<2x256xf32>
    %500 = tpu.concatenate %499, %466 in 1 : vector<2x256xf32>, vector<2x256xf32> -> vector<2x512xf32>
    %501 = arith.truncf %500 : vector<2x512xf32> to vector<2x512xbf16>
    %cst_236 = arith.constant dense<0.000000e+00> : vector<2x1024xf32>
    %502 = tpu.matmul %501, %2, %cst_236 {dimension_numbers = #tpu.dot_dimension_numbers<[1], [0], [0], [1], [0, 0, 1, 1], [], []>} : vector<2x512xbf16>, vector<512x1024xbf16>, vector<2x1024xf32> -> vector<2x1024xf32>
    %503 = vector.broadcast %3 : vector<1x1024xf32> to vector<2x1024xf32>
    %504 = arith.addf %502, %503 : vector<2x1024xf32>
    %505 = vector.extract_strided_slice %504 {offsets = [0, 0], sizes = [2, 256], strides = [1, 1]} : vector<2x1024xf32> to vector<2x256xf32>
    %506 = arith.negf %505 : vector<2x256xf32>
    %507 = math.exp %506 : vector<2x256xf32>
    %cst_237 = arith.constant 1.000000e+00 : f32
    %508 = vector.broadcast %cst_237 : f32 to vector<2x256xf32>
    %509 = arith.addf %508, %507 : vector<2x256xf32>
    %510 = arith.divf %508, %509 : vector<2x256xf32>
    %511 = vector.extract_strided_slice %504 {offsets = [0, 256], sizes = [2, 256], strides = [1, 1]} : vector<2x1024xf32> to vector<2x256xf32>
    %512 = arith.negf %511 : vector<2x256xf32>
    %513 = math.exp %512 : vector<2x256xf32>
    %cst_238 = arith.constant 1.000000e+00 : f32
    %514 = vector.broadcast %cst_238 : f32 to vector<2x256xf32>
    %515 = arith.addf %514, %513 : vector<2x256xf32>
    %516 = arith.divf %514, %515 : vector<2x256xf32>
    %517 = vector.extract_strided_slice %504 {offsets = [0, 512], sizes = [2, 256], strides = [1, 1]} : vector<2x1024xf32> to vector<2x256xf32>
    %518 = math.tanh %517 : vector<2x256xf32>
    %519 = vector.extract_strided_slice %504 {offsets = [0, 768], sizes = [2, 256], strides = [1, 1]} : vector<2x1024xf32> to vector<2x256xf32>
    %520 = arith.negf %519 : vector<2x256xf32>
    %521 = math.exp %520 : vector<2x256xf32>
    %cst_239 = arith.constant 1.000000e+00 : f32
    %522 = vector.broadcast %cst_239 : f32 to vector<2x256xf32>
    %523 = arith.addf %522, %521 : vector<2x256xf32>
    %524 = arith.divf %522, %523 : vector<2x256xf32>
    %525 = arith.mulf %516, %464 : vector<2x256xf32>
    %526 = arith.mulf %510, %518 : vector<2x256xf32>
    %527 = arith.addf %525, %526 : vector<2x256xf32>
    %528 = math.tanh %527 : vector<2x256xf32>
    %529 = arith.mulf %524, %528 : vector<2x256xf32>
    %c0_240 = arith.constant 0 : index
    %c0_241 = arith.constant 0 : index
    %530 = vector.load %arg22[%c0_240, %c0_241] : memref<256x128xbf16, #tpu.memory_space<vmem>>, vector<256x128xbf16>
    %531 = arith.truncf %529 : vector<2x256xf32> to vector<2x256xbf16>
    %cst_242 = arith.constant dense<0.000000e+00> : vector<2x128xf32>
    %532 = tpu.matmul %531, %530, %cst_242 {dimension_numbers = #tpu.dot_dimension_numbers<[1], [0], [0], [1], [0, 0, 1, 1], [], []>} : vector<2x256xbf16>, vector<256x128xbf16>, vector<2x128xf32> -> vector<2x128xf32>
    %c0_243 = arith.constant 0 : index
    %c0_244 = arith.constant 0 : index
    %533 = vector.load %arg23[%c0_243, %c0_244] : memref<1x128xf32, #tpu.memory_space<vmem>>, vector<1x128xf32>
    %534 = vector.broadcast %533 : vector<1x128xf32> to vector<2x128xf32>
    %535 = arith.addf %532, %534 : vector<2x128xf32>
    %cst_245 = arith.constant 0.000000e+00 : f32
    %536 = vector.broadcast %cst_245 : f32 to vector<2x128xf32>
    %537 = arith.maximumf %535, %536 : vector<2x128xf32>
    %c0_246 = arith.constant 0 : index
    %c0_247 = arith.constant 0 : index
    %538 = vector.load %arg24[%c0_246, %c0_247] : memref<128x12xbf16, #tpu.memory_space<vmem>>, vector<128x12xbf16>
    %539 = arith.truncf %537 : vector<2x128xf32> to vector<2x128xbf16>
    %cst_248 = arith.constant dense<0.000000e+00> : vector<2x12xf32>
    %540 = tpu.matmul %539, %538, %cst_248 {dimension_numbers = #tpu.dot_dimension_numbers<[1], [0], [0], [1], [0, 0, 1, 1], [], []>} : vector<2x128xbf16>, vector<128x12xbf16>, vector<2x12xf32> -> vector<2x12xf32>
    %c0_249 = arith.constant 0 : index
    %c0_250 = arith.constant 0 : index
    %541 = vector.load %arg25[%c0_249, %c0_250] : memref<1x12xf32, #tpu.memory_space<vmem>>, vector<1x12xf32>
    %542 = vector.broadcast %541 : vector<1x12xf32> to vector<2x12xf32>
    %543 = arith.addf %540, %542 : vector<2x12xf32>
    %c0_251 = arith.constant 0 : index
    %c0_252 = arith.constant 0 : index
    %544 = vector.load %arg26[%c0_251, %c0_252] : memref<2x12xf32, #tpu.memory_space<vmem>>, vector<2x12xf32>
    tpu.vector_store %arg26[%c0_251, %c0_252], %543 {strides = array<i32>} : memref<2x12xf32, #tpu.memory_space<vmem>>, vector<2x12xf32>,
    return
  }
}

</mosaic_0001>

<llo_original>
// kernel: model_forward.1
$region0: #{model_forward.1}
  #allocation0 [shape = 'u32[]', space=smem, size = 0x4, offset = 0x4, fixed_abs, tag = 'smem constant byte address 0x4 - core index']
  #allocation1 [shape = 'u32[144,128]{1,0:T(1,128)}', space=vmem, size = 0x12000, scoped, tag = 'internal scratch']
  #allocation2 [shape = 'f32[16,64]{1,0:T(8,128)}', space=vmem, size = 0x2000, scoped, tag = 'scratch operand']
  #allocation3 [shape = 'f32[8,128]{1,0:T(8,128)}', space=vmem, size = 0x1000, scoped, tag = 'scratch operand']
  %s0 = inlined_call_operand.vmem [shape: f32[2,16,34], index: 0, kind: input, shape index: {}]
  %s1 = inlined_call_operand.vmem [shape: bf16[34,64], index: 1, kind: input, shape index: {}]
  %s2 = inlined_call_operand.vmem [shape: f32[1,64], index: 2, kind: input, shape index: {}]
  %s3 = inlined_call_operand.vmem [shape: bf16[3,34,64], index: 3, kind: input, shape index: {}]
  %s4 = inlined_call_operand.vmem [shape: f32[1,64], index: 4, kind: input, shape index: {}]
  %s5 = inlined_call_operand.vmem [shape: f32[1,64], index: 5, kind: input, shape index: {}]
  %s6 = inlined_call_operand.vmem [shape: bf16[3,64,64], index: 6, kind: input, shape index: {}]
  %s7 = inlined_call_operand.vmem [shape: f32[1,64], index: 7, kind: input, shape index: {}]
  %s8 = inlined_call_operand.vmem [shape: f32[1,64], index: 8, kind: input, shape index: {}]
  %s9 = inlined_call_operand.vmem [shape: bf16[64,128], index: 9, kind: input, shape index: {}]
  %s10 = inlined_call_operand.vmem [shape: f32[1,128], index: 10, kind: input, shape index: {}]
  %s11 = inlined_call_operand.vmem [shape: bf16[3,64,128], index: 11, kind: input, shape index: {}]
  %s12 = inlined_call_operand.vmem [shape: f32[1,128], index: 12, kind: input, shape index: {}]
  %s13 = inlined_call_operand.vmem [shape: f32[1,128], index: 13, kind: input, shape index: {}]
  %s14 = inlined_call_operand.vmem [shape: bf16[3,128,128], index: 14, kind: input, shape index: {}]
  %s15 = inlined_call_operand.vmem [shape: f32[1,128], index: 15, kind: input, shape index: {}]
  %s16 = inlined_call_operand.vmem [shape: f32[1,128], index: 16, kind: input, shape index: {}]
  %s17 = inlined_call_operand.vmem [shape: bf16[128,1024], index: 17, kind: input, shape index: {}]
  %s18 = inlined_call_operand.vmem [shape: bf16[256,1024], index: 18, kind: input, shape index: {}]
  %s19 = inlined_call_operand.vmem [shape: f32[1,1024], index: 19, kind: input, shape index: {}]
  %s20 = inlined_call_operand.vmem [shape: bf16[512,1024], index: 20, kind: input, shape index: {}]
  %s21 = inlined_call_operand.vmem [shape: f32[1,1024], index: 21, kind: input, shape index: {}]
  %s22 = inlined_call_operand.vmem [shape: bf16[256,128], index: 22, kind: input, shape index: {}]
  %s23 = inlined_call_operand.vmem [shape: f32[1,128], index: 23, kind: input, shape index: {}]
  %s24 = inlined_call_operand.vmem [shape: bf16[128,12], index: 24, kind: input, shape index: {}]
  %s25 = inlined_call_operand.vmem [shape: f32[1,12], index: 25, kind: input, shape index: {}]
  %s26 = inlined_call_operand.hbm [shape: f32[2,12], index: 26, kind: output, shape index: {}]
  %s27 = sld [smem:[#allocation0]]
  $region114: #{model_forward.1} parent=0
    _
  %s29 = ssub.s32 1, %s27
  %s30 = scalar_select 0, %s29, %s27
  $region1: #{model_forward.1} parent=0
    #allocation4 [shape = 'u8[1024]{0}', space=vmem, size = 0x400, scoped, tag = 'output window, operand 0, single buffered']
    #allocation5 [shape = 's32[1]{0}', space=sflag, size = 0x4, scoped, tag = 'scoped memory for model_forward.1']
    %31 = vsyncpa [#allocation5], 0
    // Predicated region
    $region2: #{model_forward.1} parent=1 // pred_check
      _
    $region3: #{model_forward.1} parent=1 // pred_check_branch
      %33 = sbr.rel (0) target = $region5
    $region4: #{model_forward.1} parent=1 // pred_region
      _
    $region5: #{model_forward.1} parent=1 // pred_fallthru
      _
    // Predicated region
    $region6: #{model_forward.1} parent=1 // pred_check
      _
    $region7: #{model_forward.1} parent=1 // pred_check_branch
      %35 = sbr.rel (0) target = $region9
    $region8: #{model_forward.1} parent=1 // pred_region
      _
    $region9: #{model_forward.1} parent=1 // pred_fallthru
      _
    // Predicated region
    $region10: #{model_forward.1} parent=1 // pred_check
      _
    $region11: #{model_forward.1} parent=1 // pred_check_branch
      %37 = sbr.rel (0) target = $region13
    $region12: #{model_forward.1} parent=1 // pred_region
      _
    $region13: #{model_forward.1} parent=1 // pred_fallthru
      _
    // Predicated region
    $region14: #{model_forward.1} parent=1 // pred_check
      _
    $region15: #{model_forward.1} parent=1 // pred_check_branch
      %39 = sbr.rel (0) target = $region17
    $region16: #{model_forward.1} parent=1 // pred_region
      _
    $region17: #{model_forward.1} parent=1 // pred_fallthru
      _
    // Predicated region
    $region18: #{model_forward.1} parent=1 // pred_check
      _
    $region19: #{model_forward.1} parent=1 // pred_check_branch
      %41 = sbr.rel (0) target = $region21
    $region20: #{model_forward.1} parent=1 // pred_region
      _
    $region21: #{model_forward.1} parent=1 // pred_fallthru
      _
    // Predicated region
    $region22: #{model_forward.1} parent=1 // pred_check
      _
    $region23: #{model_forward.1} parent=1 // pred_check_branch
      %43 = sbr.rel (0) target = $region25
    $region24: #{model_forward.1} parent=1 // pred_region
      _
    $region25: #{model_forward.1} parent=1 // pred_fallthru
      _
    // Predicated region
    $region26: #{model_forward.1} parent=1 // pred_check
      _
    $region27: #{model_forward.1} parent=1 // pred_check_branch
      %45 = sbr.rel (0) target = $region29
    $region28: #{model_forward.1} parent=1 // pred_region
      _
    $region29: #{model_forward.1} parent=1 // pred_fallthru
      _
    // Predicated region
    $region30: #{model_forward.1} parent=1 // pred_check
      _
    $region31: #{model_forward.1} parent=1 // pred_check_branch
      %47 = sbr.rel (0) target = $region33
    $region32: #{model_forward.1} parent=1 // pred_region
      _
    $region33: #{model_forward.1} parent=1 // pred_fallthru
      _
    // Predicated region
    $region34: #{model_forward.1} parent=1 // pred_check
      _
    $region35: #{model_forward.1} parent=1 // pred_check_branch
      %49 = sbr.rel (0) target = $region37
    $region36: #{model_forward.1} parent=1 // pred_region
      _
    $region37: #{model_forward.1} parent=1 // pred_fallthru
      _
    // Predicated region
    $region38: #{model_forward.1} parent=1 // pred_check
      _
    $region39: #{model_forward.1} parent=1 // pred_check_branch
      %51 = sbr.rel (0) target = $region41
    $region40: #{model_forward.1} parent=1 // pred_region
      _
    $region41: #{model_forward.1} parent=1 // pred_fallthru
      _
    // Predicated region
    $region42: #{model_forward.1} parent=1 // pred_check
      _
    $region43: #{model_forward.1} parent=1 // pred_check_branch
      %53 = sbr.rel (0) target = $region45
    $region44: #{model_forward.1} parent=1 // pred_region
      _
    $region45: #{model_forward.1} parent=1 // pred_fallthru
      _
    // Predicated region
    $region46: #{model_forward.1} parent=1 // pred_check
      _
    $region47: #{model_forward.1} parent=1 // pred_check_branch
      %55 = sbr.rel (0) target = $region49
    $region48: #{model_forward.1} parent=1 // pred_region
      _
    $region49: #{model_forward.1} parent=1 // pred_fallthru
      _
    // Predicated region
    $region50: #{model_forward.1} parent=1 // pred_check
      _
    $region51: #{model_forward.1} parent=1 // pred_check_branch
      %57 = sbr.rel (0) target = $region53
    $region52: #{model_forward.1} parent=1 // pred_region
      _
    $region53: #{model_forward.1} parent=1 // pred_fallthru
      _
    // Predicated region
    $region54: #{model_forward.1} parent=1 // pred_check
      _
    $region55: #{model_forward.1} parent=1 // pred_check_branch
      %59 = sbr.rel (0) target = $region57
    $region56: #{model_forward.1} parent=1 // pred_region
      _
    $region57: #{model_forward.1} parent=1 // pred_fallthru
      _
    // Predicated region
    $region58: #{model_forward.1} parent=1 // pred_check
      _
    $region59: #{model_forward.1} parent=1 // pred_check_branch
      %61 = sbr.rel (0) target = $region61
    $region60: #{model_forward.1} parent=1 // pred_region
      _
    $region61: #{model_forward.1} parent=1 // pred_fallthru
      _
    // Predicated region
    $region62: #{model_forward.1} parent=1 // pred_check
      _
    $region63: #{model_forward.1} parent=1 // pred_check_branch
      %63 = sbr.rel (0) target = $region65
    $region64: #{model_forward.1} parent=1 // pred_region
      _
    $region65: #{model_forward.1} parent=1 // pred_fallthru
      _
    // Predicated region
    $region66: #{model_forward.1} parent=1 // pred_check
      _
    $region67: #{model_forward.1} parent=1 // pred_check_branch
      %65 = sbr.rel (0) target = $region69
    $region68: #{model_forward.1} parent=1 // pred_region
      _
    $region69: #{model_forward.1} parent=1 // pred_fallthru
      _
    // Predicated region
    $region70: #{model_forward.1} parent=1 // pred_check
      _
    $region71: #{model_forward.1} parent=1 // pred_check_branch
      %67 = sbr.rel (0) target = $region73
    $region72: #{model_forward.1} parent=1 // pred_region
      _
    $region73: #{model_forward.1} parent=1 // pred_fallthru
      _
    // Predicated region
    $region74: #{model_forward.1} parent=1 // pred_check
      _
    $region75: #{model_forward.1} parent=1 // pred_check_branch
      %69 = sbr.rel (0) target = $region77
    $region76: #{model_forward.1} parent=1 // pred_region
      _
    $region77: #{model_forward.1} parent=1 // pred_fallthru
      _
    // Predicated region
    $region78: #{model_forward.1} parent=1 // pred_check
      _
    $region79: #{model_forward.1} parent=1 // pred_check_branch
      %71 = sbr.rel (0) target = $region81
    $region80: #{model_forward.1} parent=1 // pred_region
      _
    $region81: #{model_forward.1} parent=1 // pred_fallthru
      _
    // Predicated region
    $region82: #{model_forward.1} parent=1 // pred_check
      _
    $region83: #{model_forward.1} parent=1 // pred_check_branch
      %73 = sbr.rel (0) target = $region85
    $region84: #{model_forward.1} parent=1 // pred_region
      _
    $region85: #{model_forward.1} parent=1 // pred_fallthru
      _
    // Predicated region
    $region86: #{model_forward.1} parent=1 // pred_check
      _
    $region87: #{model_forward.1} parent=1 // pred_check_branch
      %75 = sbr.rel (0) target = $region89
    $region88: #{model_forward.1} parent=1 // pred_region
      _
    $region89: #{model_forward.1} parent=1 // pred_fallthru
      _
    // Predicated region
    $region90: #{model_forward.1} parent=1 // pred_check
      _
    $region91: #{model_forward.1} parent=1 // pred_check_branch
      %77 = sbr.rel (0) target = $region93
    $region92: #{model_forward.1} parent=1 // pred_region
      _
    $region93: #{model_forward.1} parent=1 // pred_fallthru
      _
    // Predicated region
    $region94: #{model_forward.1} parent=1 // pred_check
      _
    $region95: #{model_forward.1} parent=1 // pred_check_branch
      %79 = sbr.rel (0) target = $region97
    $region96: #{model_forward.1} parent=1 // pred_region
      _
    $region97: #{model_forward.1} parent=1 // pred_fallthru
      _
    // Predicated region
    $region98: #{model_forward.1} parent=1 // pred_check
      _
    $region99: #{model_forward.1} parent=1 // pred_check_branch
      %81 = sbr.rel (0) target = $region101
    $region100: #{model_forward.1} parent=1 // pred_region
      _
    $region101: #{model_forward.1} parent=1 // pred_fallthru
      _
    // Predicated region
    $region102: #{model_forward.1} parent=1 // pred_check
      _
    $region103: #{model_forward.1} parent=1 // pred_check_branch
      %83 = sbr.rel (0) target = $region105
    $region104: #{model_forward.1} parent=1 // pred_region
      _
    $region105: #{model_forward.1} parent=1 // pred_fallthru
      _
    %v85 = vld [vmem:[%s18] sm:$0xff]
    %v86 = vld [vmem:[%s18 + $0x8] sm:$0xff]
    %v87 = vld [vmem:[%s18 + $0x10] sm:$0xff]
    %v88 = vld [vmem:[%s18 + $0x18] sm:$0xff]
    %v89 = vld [vmem:[%s18 + $0x20] sm:$0xff]
    %v90 = vld [vmem:[%s18 + $0x28] sm:$0xff]
    %v91 = vld [vmem:[%s18 + $0x30] sm:$0xff]
    %v92 = vld [vmem:[%s18 + $0x38] sm:$0xff]
    %v93 = vld [vmem:[%s18 + $0x40] sm:$0xff]
    %v94 = vld [vmem:[%s18 + $0x48] sm:$0xff]
    %v95 = vld [vmem:[%s18 + $0x50] sm:$0xff]
    %v96 = vld [vmem:[%s18 + $0x58] sm:$0xff]
    %v97 = vld [vmem:[%s18 + $0x60] sm:$0xff]
    %v98 = vld [vmem:[%s18 + $0x68] sm:$0xff]
    %v99 = vld [vmem:[%s18 + $0x70] sm:$0xff]
    %v100 = vld [vmem:[%s18 + $0x78] sm:$0xff]
    %v101 = vld [vmem:[%s18 + $0x80] sm:$0xff]
    %v102 = vld [vmem:[%s18 + $0x88] sm:$0xff]
    %v103 = vld [vmem:[%s18 + $0x90] sm:$0xff]
    %v104 = vld [vmem:[%s18 + $0x98] sm:$0xff]
    %v105 = vld [vmem:[%s18 + $0xa0] sm:$0xff]
    %v106 = vld [vmem:[%s18 + $0xa8] sm:$0xff]
    %v107 = vld [vmem:[%s18 + $0xb0] sm:$0xff]
    %v108 = vld [vmem:[%s18 + $0xb8] sm:$0xff]
    %v109 = vld [vmem:[%s18 + $0xc0] sm:$0xff]
    %v110 = vld [vmem:[%s18 + $0xc8] sm:$0xff]
    %v111 = vld [vmem:[%s18 + $0xd0] sm:$0xff]
    %v112 = vld [vmem:[%s18 + $0xd8] sm:$0xff]
    %v113 = vld [vmem:[%s18 + $0xe0] sm:$0xff]
    %v114 = vld [vmem:[%s18 + $0xe8] sm:$0xff]
    %v115 = vld [vmem:[%s18 + $0xf0] sm:$0xff]
    %v116 = vld [vmem:[%s18 + $0xf8] sm:$0xff]
    %v117 = vld [vmem:[%s18 + $0x100] sm:$0xff]
    %v118 = vld [vmem:[%s18 + $0x108] sm:$0xff]
    %v119 = vld [vmem:[%s18 + $0x110] sm:$0xff]
    %v120 = vld [vmem:[%s18 + $0x118] sm:$0xff]
    %v121 = vld [vmem:[%s18 + $0x120] sm:$0xff]
    %v122 = vld [vmem:[%s18 + $0x128] sm:$0xff]
    %v123 = vld [vmem:[%s18 + $0x130] sm:$0xff]
    %v124 = vld [vmem:[%s18 + $0x138] sm:$0xff]
    %v125 = vld [vmem:[%s18 + $0x140] sm:$0xff]
    %v126 = vld [vmem:[%s18 + $0x148] sm:$0xff]
    %v127 = vld [vmem:[%s18 + $0x150] sm:$0xff]
    %v128 = vld [vmem:[%s18 + $0x158] sm:$0xff]
    %v129 = vld [vmem:[%s18 + $0x160] sm:$0xff]
    %v130 = vld [vmem:[%s18 + $0x168] sm:$0xff]
    %v131 = vld [vmem:[%s18 + $0x170] sm:$0xff]
    %v132 = vld [vmem:[%s18 + $0x178] sm:$0xff]
    %v133 = vld [vmem:[%s18 + $0x180] sm:$0xff]
    %v134 = vld [vmem:[%s18 + $0x188] sm:$0xff]
    %v135 = vld [vmem:[%s18 + $0x190] sm:$0xff]
    %v136 = vld [vmem:[%s18 + $0x198] sm:$0xff]
    %v137 = vld [vmem:[%s18 + $0x1a0] sm:$0xff]
    %v138 = vld [vmem:[%s18 + $0x1a8] sm:$0xff]
    %v139 = vld [vmem:[%s18 + $0x1b0] sm:$0xff]
    %v140 = vld [vmem:[%s18 + $0x1b8] sm:$0xff]
    %v141 = vld [vmem:[%s18 + $0x1c0] sm:$0xff]
    %v142 = vld [vmem:[%s18 + $0x1c8] sm:$0xff]
    %v143 = vld [vmem:[%s18 + $0x1d0] sm:$0xff]
    %v144 = vld [vmem:[%s18 + $0x1d8] sm:$0xff]
    %v145 = vld [vmem:[%s18 + $0x1e0] sm:$0xff]
    %v146 = vld [vmem:[%s18 + $0x1e8] sm:$0xff]
    %v147 = vld [vmem:[%s18 + $0x1f0] sm:$0xff]
    %v148 = vld [vmem:[%s18 + $0x1f8] sm:$0xff]
    %v149 = vld [vmem:[%s18 + $0x200] sm:$0xff]
    %v150 = vld [vmem:[%s18 + $0x208] sm:$0xff]
    %v151 = vld [vmem:[%s18 + $0x210] sm:$0xff]
    %v152 = vld [vmem:[%s18 + $0x218] sm:$0xff]
    %v153 = vld [vmem:[%s18 + $0x220] sm:$0xff]
    %v154 = vld [vmem:[%s18 + $0x228] sm:$0xff]
    %v155 = vld [vmem:[%s18 + $0x230] sm:$0xff]
    %v156 = vld [vmem:[%s18 + $0x238] sm:$0xff]
    %v157 = vld [vmem:[%s18 + $0x240] sm:$0xff]
    %v158 = vld [vmem:[%s18 + $0x248] sm:$0xff]
    %v159 = vld [vmem:[%s18 + $0x250] sm:$0xff]
    %v160 = vld [vmem:[%s18 + $0x258] sm:$0xff]
    %v161 = vld [vmem:[%s18 + $0x260] sm:$0xff]
    %v162 = vld [vmem:[%s18 + $0x268] sm:$0xff]
    %v163 = vld [vmem:[%s18 + $0x270] sm:$0xff]
    %v164 = vld [vmem:[%s18 + $0x278] sm:$0xff]
    %v165 = vld [vmem:[%s18 + $0x280] sm:$0xff]
    %v166 = vld [vmem:[%s18 + $0x288] sm:$0xff]
    %v167 = vld [vmem:[%s18 + $0x290] sm:$0xff]
    %v168 = vld [vmem:[%s18 + $0x298] sm:$0xff]
    %v169 = vld [vmem:[%s18 + $0x2a0] sm:$0xff]
    %v170 = vld [vmem:[%s18 + $0x2a8] sm:$0xff]
    %v171 = vld [vmem:[%s18 + $0x2b0] sm:$0xff]
    %v172 = vld [vmem:[%s18 + $0x2b8] sm:$0xff]
    %v173 = vld [vmem:[%s18 + $0x2c0] sm:$0xff]
    %v174 = vld [vmem:[%s18 + $0x2c8] sm:$0xff]
    %v175 = vld [vmem:[%s18 + $0x2d0] sm:$0xff]
    %v176 = vld [vmem:[%s18 + $0x2d8] sm:$0xff]
    %v177 = vld [vmem:[%s18 + $0x2e0] sm:$0xff]
    %v178 = vld [vmem:[%s18 + $0x2e8] sm:$0xff]
    %v179 = vld [vmem:[%s18 + $0x2f0] sm:$0xff]
    %v180 = vld [vmem:[%s18 + $0x2f8] sm:$0xff]
    %v181 = vld [vmem:[%s18 + $0x300] sm:$0xff]
    %v182 = vld [vmem:[%s18 + $0x308] sm:$0xff]
    %v183 = vld [vmem:[%s18 + $0x310] sm:$0xff]
    %v184 = vld [vmem:[%s18 + $0x318] sm:$0xff]
    %v185 = vld [vmem:[%s18 + $0x320] sm:$0xff]
    %v186 = vld [vmem:[%s18 + $0x328] sm:$0xff]
    %v187 = vld [vmem:[%s18 + $0x330] sm:$0xff]
    %v188 = vld [vmem:[%s18 + $0x338] sm:$0xff]
    %v189 = vld [vmem:[%s18 + $0x340] sm:$0xff]
    %v190 = vld [vmem:[%s18 + $0x348] sm:$0xff]
    %v191 = vld [vmem:[%s18 + $0x350] sm:$0xff]
    %v192 = vld [vmem:[%s18 + $0x358] sm:$0xff]
    %v193 = vld [vmem:[%s18 + $0x360] sm:$0xff]
    %v194 = vld [vmem:[%s18 + $0x368] sm:$0xff]
    %v195 = vld [vmem:[%s18 + $0x370] sm:$0xff]
    %v196 = vld [vmem:[%s18 + $0x378] sm:$0xff]
    %v197 = vld [vmem:[%s18 + $0x380] sm:$0xff]
    %v198 = vld [vmem:[%s18 + $0x388] sm:$0xff]
    %v199 = vld [vmem:[%s18 + $0x390] sm:$0xff]
    %v200 = vld [vmem:[%s18 + $0x398] sm:$0xff]
    %v201 = vld [vmem:[%s18 + $0x3a0] sm:$0xff]
    %v202 = vld [vmem:[%s18 + $0x3a8] sm:$0xff]
    %v203 = vld [vmem:[%s18 + $0x3b0] sm:$0xff]
    %v204 = vld [vmem:[%s18 + $0x3b8] sm:$0xff]
    %v205 = vld [vmem:[%s18 + $0x3c0] sm:$0xff]
    %v206 = vld [vmem:[%s18 + $0x3c8] sm:$0xff]
    %v207 = vld [vmem:[%s18 + $0x3d0] sm:$0xff]
    %v208 = vld [vmem:[%s18 + $0x3d8] sm:$0xff]
    %v209 = vld [vmem:[%s18 + $0x3e0] sm:$0xff]
    %v210 = vld [vmem:[%s18 + $0x3e8] sm:$0xff]
    %v211 = vld [vmem:[%s18 + $0x3f0] sm:$0xff]
    %v212 = vld [vmem:[%s18 + $0x3f8] sm:$0xff]
    %v213 = vld [vmem:[%s19] sm:$0xff]
    %v214 = vld [vmem:[%s20] sm:$0xff]
    %v215 = vld [vmem:[%s20 + $0x8] sm:$0xff]
    %v216 = vld [vmem:[%s20 + $0x10] sm:$0xff]
    %v217 = vld [vmem:[%s20 + $0x18] sm:$0xff]
    %v218 = vld [vmem:[%s20 + $0x20] sm:$0xff]
    %v219 = vld [vmem:[%s20 + $0x28] sm:$0xff]
    %v220 = vld [vmem:[%s20 + $0x30] sm:$0xff]
    %v221 = vld [vmem:[%s20 + $0x38] sm:$0xff]
    %v222 = vld [vmem:[%s20 + $0x40] sm:$0xff]
    %v223 = vld [vmem:[%s20 + $0x48] sm:$0xff]
    %v224 = vld [vmem:[%s20 + $0x50] sm:$0xff]
    %v225 = vld [vmem:[%s20 + $0x58] sm:$0xff]
    %v226 = vld [vmem:[%s20 + $0x60] sm:$0xff]
    %v227 = vld [vmem:[%s20 + $0x68] sm:$0xff]
    %v228 = vld [vmem:[%s20 + $0x70] sm:$0xff]
    %v229 = vld [vmem:[%s20 + $0x78] sm:$0xff]
    %v230 = vld [vmem:[%s20 + $0x80] sm:$0xff]
    %v231 = vld [vmem:[%s20 + $0x88] sm:$0xff]
    %v232 = vld [vmem:[%s20 + $0x90] sm:$0xff]
    %v233 = vld [vmem:[%s20 + $0x98] sm:$0xff]
    %v234 = vld [vmem:[%s20 + $0xa0] sm:$0xff]
    %v235 = vld [vmem:[%s20 + $0xa8] sm:$0xff]
    %v236 = vld [vmem:[%s20 + $0xb0] sm:$0xff]
    %v237 = vld [vmem:[%s20 + $0xb8] sm:$0xff]
    %v238 = vld [vmem:[%s20 + $0xc0] sm:$0xff]
    %v239 = vld [vmem:[%s20 + $0xc8] sm:$0xff]
    %v240 = vld [vmem:[%s20 + $0xd0] sm:$0xff]
    %v241 = vld [vmem:[%s20 + $0xd8] sm:$0xff]
    %v242 = vld [vmem:[%s20 + $0xe0] sm:$0xff]
    %v243 = vld [vmem:[%s20 + $0xe8] sm:$0xff]
    %v244 = vld [vmem:[%s20 + $0xf0] sm:$0xff]
    %v245 = vld [vmem:[%s20 + $0xf8] sm:$0xff]
    %v246 = vld [vmem:[%s20 + $0x100] sm:$0xff]
    %v247 = vld [vmem:[%s20 + $0x108] sm:$0xff]
    %v248 = vld [vmem:[%s20 + $0x110] sm:$0xff]
    %v249 = vld [vmem:[%s20 + $0x118] sm:$0xff]
    %v250 = vld [vmem:[%s20 + $0x120] sm:$0xff]
    %v251 = vld [vmem:[%s20 + $0x128] sm:$0xff]
    %v252 = vld [vmem:[%s20 + $0x130] sm:$0xff]
    %v253 = vld [vmem:[%s20 + $0x138] sm:$0xff]
    %v254 = vld [vmem:[%s20 + $0x140] sm:$0xff]
    %v255 = vld [vmem:[%s20 + $0x148] sm:$0xff]
    %v256 = vld [vmem:[%s20 + $0x150] sm:$0xff]
    %v257 = vld [vmem:[%s20 + $0x158] sm:$0xff]
    %v258 = vld [vmem:[%s20 + $0x160] sm:$0xff]
    %v259 = vld [vmem:[%s20 + $0x168] sm:$0xff]
    %v260 = vld [vmem:[%s20 + $0x170] sm:$0xff]
    %v261 = vld [vmem:[%s20 + $0x178] sm:$0xff]
    %v262 = vld [vmem:[%s20 + $0x180] sm:$0xff]
    %v263 = vld [vmem:[%s20 + $0x188] sm:$0xff]
    %v264 = vld [vmem:[%s20 + $0x190] sm:$0xff]
    %v265 = vld [vmem:[%s20 + $0x198] sm:$0xff]
    %v266 = vld [vmem:[%s20 + $0x1a0] sm:$0xff]
    %v267 = vld [vmem:[%s20 + $0x1a8] sm:$0xff]
    %v268 = vld [vmem:[%s20 + $0x1b0] sm:$0xff]
    %v269 = vld [vmem:[%s20 + $0x1b8] sm:$0xff]
    %v270 = vld [vmem:[%s20 + $0x1c0] sm:$0xff]
    %v271 = vld [vmem:[%s20 + $0x1c8] sm:$0xff]
    %v272 = vld [vmem:[%s20 + $0x1d0] sm:$0xff]
    %v273 = vld [vmem:[%s20 + $0x1d8] sm:$0xff]
    %v274 = vld [vmem:[%s20 + $0x1e0] sm:$0xff]
    %v275 = vld [vmem:[%s20 + $0x1e8] sm:$0xff]
    %v276 = vld [vmem:[%s20 + $0x1f0] sm:$0xff]
    %v277 = vld [vmem:[%s20 + $0x1f8] sm:$0xff]
    %v278 = vld [vmem:[%s20 + $0x200] sm:$0xff]
    %v279 = vld [vmem:[%s20 + $0x208] sm:$0xff]
    %v280 = vld [vmem:[%s20 + $0x210] sm:$0xff]
    %v281 = vld [vmem:[%s20 + $0x218] sm:$0xff]
    %v282 = vld [vmem:[%s20 + $0x220] sm:$0xff]
    %v283 = vld [vmem:[%s20 + $0x228] sm:$0xff]
    %v284 = vld [vmem:[%s20 + $0x230] sm:$0xff]
    %v285 = vld [vmem:[%s20 + $0x238] sm:$0xff]
    %v286 = vld [vmem:[%s20 + $0x240] sm:$0xff]
    %v287 = vld [vmem:[%s20 + $0x248] sm:$0xff]
    %v288 = vld [vmem:[%s20 + $0x250] sm:$0xff]
    %v289 = vld [vmem:[%s20 + $0x258] sm:$0xff]
    %v290 = vld [vmem:[%s20 + $0x260] sm:$0xff]
    %v291 = vld [vmem:[%s20 + $0x268] sm:$0xff]
    %v292 = vld [vmem:[%s20 + $0x270] sm:$0xff]
    %v293 = vld [vmem:[%s20 + $0x278] sm:$0xff]
    %v294 = vld [vmem:[%s20 + $0x280] sm:$0xff]
    %v295 = vld [vmem:[%s20 + $0x288] sm:$0xff]
    %v296 = vld [vmem:[%s20 + $0x290] sm:$0xff]
    %v297 = vld [vmem:[%s20 + $0x298] sm:$0xff]
    %v298 = vld [vmem:[%s20 + $0x2a0] sm:$0xff]
    %v299 = vld [vmem:[%s20 + $0x2a8] sm:$0xff]
    %v300 = vld [vmem:[%s20 + $0x2b0] sm:$0xff]
    %v301 = vld [vmem:[%s20 + $0x2b8] sm:$0xff]
    %v302 = vld [vmem:[%s20 + $0x2c0] sm:$0xff]
    %v303 = vld [vmem:[%s20 + $0x2c8] sm:$0xff]
    %v304 = vld [vmem:[%s20 + $0x2d0] sm:$0xff]
    %v305 = vld [vmem:[%s20 + $0x2d8] sm:$0xff]
    %v306 = vld [vmem:[%s20 + $0x2e0] sm:$0xff]
    %v307 = vld [vmem:[%s20 + $0x2e8] sm:$0xff]
    %v308 = vld [vmem:[%s20 + $0x2f0] sm:$0xff]
    %v309 = vld [vmem:[%s20 + $0x2f8] sm:$0xff]
    %v310 = vld [vmem:[%s20 + $0x300] sm:$0xff]
    %v311 = vld [vmem:[%s20 + $0x308] sm:$0xff]
    %v312 = vld [vmem:[%s20 + $0x310] sm:$0xff]
    %v313 = vld [vmem:[%s20 + $0x318] sm:$0xff]
    %v314 = vld [vmem:[%s20 + $0x320] sm:$0xff]
    %v315 = vld [vmem:[%s20 + $0x328] sm:$0xff]
    %v316 = vld [vmem:[%s20 + $0x330] sm:$0xff]
    %v317 = vld [vmem:[%s20 + $0x338] sm:$0xff]
    %v318 = vld [vmem:[%s20 + $0x340] sm:$0xff]
    %v319 = vld [vmem:[%s20 + $0x348] sm:$0xff]
    %v320 = vld [vmem:[%s20 + $0x350] sm:$0xff]
    %v321 = vld [vmem:[%s20 + $0x358] sm:$0xff]
    %v322 = vld [vmem:[%s20 + $0x360] sm:$0xff]
    %v323 = vld [vmem:[%s20 + $0x368] sm:$0xff]
    %v324 = vld [vmem:[%s20 + $0x370] sm:$0xff]
    %v325 = vld [vmem:[%s20 + $0x378] sm:$0xff]
    %v326 = vld [vmem:[%s20 + $0x380] sm:$0xff]
    %v327 = vld [vmem:[%s20 + $0x388] sm:$0xff]
    %v328 = vld [vmem:[%s20 + $0x390] sm:$0xff]
    %v329 = vld [vmem:[%s20 + $0x398] sm:$0xff]
    %v330 = vld [vmem:[%s20 + $0x3a0] sm:$0xff]
    %v331 = vld [vmem:[%s20 + $0x3a8] sm:$0xff]
    %v332 = vld [vmem:[%s20 + $0x3b0] sm:$0xff]
    %v333 = vld [vmem:[%s20 + $0x3b8] sm:$0xff]
    %v334 = vld [vmem:[%s20 + $0x3c0] sm:$0xff]
    %v335 = vld [vmem:[%s20 + $0x3c8] sm:$0xff]
    %v336 = vld [vmem:[%s20 + $0x3d0] sm:$0xff]
    %v337 = vld [vmem:[%s20 + $0x3d8] sm:$0xff]
    %v338 = vld [vmem:[%s20 + $0x3e0] sm:$0xff]
    %v339 = vld [vmem:[%s20 + $0x3e8] sm:$0xff]
    %v340 = vld [vmem:[%s20 + $0x3f0] sm:$0xff]
    %v341 = vld [vmem:[%s20 + $0x3f8] sm:$0xff]
    %v342 = vld [vmem:[%s20 + $0x400] sm:$0xff]
    %v343 = vld [vmem:[%s20 + $0x408] sm:$0xff]
    %v344 = vld [vmem:[%s20 + $0x410] sm:$0xff]
    %v345 = vld [vmem:[%s20 + $0x418] sm:$0xff]
    %v346 = vld [vmem:[%s20 + $0x420] sm:$0xff]
    %v347 = vld [vmem:[%s20 + $0x428] sm:$0xff]
    %v348 = vld [vmem:[%s20 + $0x430] sm:$0xff]
    %v349 = vld [vmem:[%s20 + $0x438] sm:$0xff]
    %v350 = vld [vmem:[%s20 + $0x440] sm:$0xff]
    %v351 = vld [vmem:[%s20 + $0x448] sm:$0xff]
    %v352 = vld [vmem:[%s20 + $0x450] sm:$0xff]
    %v353 = vld [vmem:[%s20 + $0x458] sm:$0xff]
    %v354 = vld [vmem:[%s20 + $0x460] sm:$0xff]
    %v355 = vld [vmem:[%s20 + $0x468] sm:$0xff]
    %v356 = vld [vmem:[%s20 + $0x470] sm:$0xff]
    %v357 = vld [vmem:[%s20 + $0x478] sm:$0xff]
    %v358 = vld [vmem:[%s20 + $0x480] sm:$0xff]
    %v359 = vld [vmem:[%s20 + $0x488] sm:$0xff]
    %v360 = vld [vmem:[%s20 + $0x490] sm:$0xff]
    %v361 = vld [vmem:[%s20 + $0x498] sm:$0xff]
    %v362 = vld [vmem:[%s20 + $0x4a0] sm:$0xff]
    %v363 = vld [vmem:[%s20 + $0x4a8] sm:$0xff]
    %v364 = vld [vmem:[%s20 + $0x4b0] sm:$0xff]
    %v365 = vld [vmem:[%s20 + $0x4b8] sm:$0xff]
    %v366 = vld [vmem:[%s20 + $0x4c0] sm:$0xff]
    %v367 = vld [vmem:[%s20 + $0x4c8] sm:$0xff]
    %v368 = vld [vmem:[%s20 + $0x4d0] sm:$0xff]
    %v369 = vld [vmem:[%s20 + $0x4d8] sm:$0xff]
    %v370 = vld [vmem:[%s20 + $0x4e0] sm:$0xff]
    %v371 = vld [vmem:[%s20 + $0x4e8] sm:$0xff]
    %v372 = vld [vmem:[%s20 + $0x4f0] sm:$0xff]
    %v373 = vld [vmem:[%s20 + $0x4f8] sm:$0xff]
    %v374 = vld [vmem:[%s20 + $0x500] sm:$0xff]
    %v375 = vld [vmem:[%s20 + $0x508] sm:$0xff]
    %v376 = vld [vmem:[%s20 + $0x510] sm:$0xff]
    %v377 = vld [vmem:[%s20 + $0x518] sm:$0xff]
    %v378 = vld [vmem:[%s20 + $0x520] sm:$0xff]
    %v379 = vld [vmem:[%s20 + $0x528] sm:$0xff]
    %v380 = vld [vmem:[%s20 + $0x530] sm:$0xff]
    %v381 = vld [vmem:[%s20 + $0x538] sm:$0xff]
    %v382 = vld [vmem:[%s20 + $0x540] sm:$0xff]
    %v383 = vld [vmem:[%s20 + $0x548] sm:$0xff]
    %v384 = vld [vmem:[%s20 + $0x550] sm:$0xff]
    %v385 = vld [vmem:[%s20 + $0x558] sm:$0xff]
    %v386 = vld [vmem:[%s20 + $0x560] sm:$0xff]
    %v387 = vld [vmem:[%s20 + $0x568] sm:$0xff]
    %v388 = vld [vmem:[%s20 + $0x570] sm:$0xff]
    %v389 = vld [vmem:[%s20 + $0x578] sm:$0xff]
    %v390 = vld [vmem:[%s20 + $0x580] sm:$0xff]
    %v391 = vld [vmem:[%s20 + $0x588] sm:$0xff]
    %v392 = vld [vmem:[%s20 + $0x590] sm:$0xff]
    %v393 = vld [vmem:[%s20 + $0x598] sm:$0xff]
    %v394 = vld [vmem:[%s20 + $0x5a0] sm:$0xff]
    %v395 = vld [vmem:[%s20 + $0x5a8] sm:$0xff]
    %v396 = vld [vmem:[%s20 + $0x5b0] sm:$0xff]
    %v397 = vld [vmem:[%s20 + $0x5b8] sm:$0xff]
    %v398 = vld [vmem:[%s20 + $0x5c0] sm:$0xff]
    %v399 = vld [vmem:[%s20 + $0x5c8] sm:$0xff]
    %v400 = vld [vmem:[%s20 + $0x5d0] sm:$0xff]
    %v401 = vld [vmem:[%s20 + $0x5d8] sm:$0xff]
    %v402 = vld [vmem:[%s20 + $0x5e0] sm:$0xff]
    %v403 = vld [vmem:[%s20 + $0x5e8] sm:$0xff]
    %v404 = vld [vmem:[%s20 + $0x5f0] sm:$0xff]
    %v405 = vld [vmem:[%s20 + $0x5f8] sm:$0xff]
    %v406 = vld [vmem:[%s20 + $0x600] sm:$0xff]
    %v407 = vld [vmem:[%s20 + $0x608] sm:$0xff]
    %v408 = vld [vmem:[%s20 + $0x610] sm:$0xff]
    %v409 = vld [vmem:[%s20 + $0x618] sm:$0xff]
    %v410 = vld [vmem:[%s20 + $0x620] sm:$0xff]
    %v411 = vld [vmem:[%s20 + $0x628] sm:$0xff]
    %v412 = vld [vmem:[%s20 + $0x630] sm:$0xff]
    %v413 = vld [vmem:[%s20 + $0x638] sm:$0xff]
    %v414 = vld [vmem:[%s20 + $0x640] sm:$0xff]
    %v415 = vld [vmem:[%s20 + $0x648] sm:$0xff]
    %v416 = vld [vmem:[%s20 + $0x650] sm:$0xff]
    %v417 = vld [vmem:[%s20 + $0x658] sm:$0xff]
    %v418 = vld [vmem:[%s20 + $0x660] sm:$0xff]
    %v419 = vld [vmem:[%s20 + $0x668] sm:$0xff]
    %v420 = vld [vmem:[%s20 + $0x670] sm:$0xff]
    %v421 = vld [vmem:[%s20 + $0x678] sm:$0xff]
    %v422 = vld [vmem:[%s20 + $0x680] sm:$0xff]
    %v423 = vld [vmem:[%s20 + $0x688] sm:$0xff]
    %v424 = vld [vmem:[%s20 + $0x690] sm:$0xff]
    %v425 = vld [vmem:[%s20 + $0x698] sm:$0xff]
    %v426 = vld [vmem:[%s20 + $0x6a0] sm:$0xff]
    %v427 = vld [vmem:[%s20 + $0x6a8] sm:$0xff]
    %v428 = vld [vmem:[%s20 + $0x6b0] sm:$0xff]
    %v429 = vld [vmem:[%s20 + $0x6b8] sm:$0xff]
    %v430 = vld [vmem:[%s20 + $0x6c0] sm:$0xff]
    %v431 = vld [vmem:[%s20 + $0x6c8] sm:$0xff]
    %v432 = vld [vmem:[%s20 + $0x6d0] sm:$0xff]
    %v433 = vld [vmem:[%s20 + $0x6d8] sm:$0xff]
    %v434 = vld [vmem:[%s20 + $0x6e0] sm:$0xff]
    %v435 = vld [vmem:[%s20 + $0x6e8] sm:$0xff]
    %v436 = vld [vmem:[%s20 + $0x6f0] sm:$0xff]
    %v437 = vld [vmem:[%s20 + $0x6f8] sm:$0xff]
    %v438 = vld [vmem:[%s20 + $0x700] sm:$0xff]
    %v439 = vld [vmem:[%s20 + $0x708] sm:$0xff]
    %v440 = vld [vmem:[%s20 + $0x710] sm:$0xff]
    %v441 = vld [vmem:[%s20 + $0x718] sm:$0xff]
    %v442 = vld [vmem:[%s20 + $0x720] sm:$0xff]
    %v443 = vld [vmem:[%s20 + $0x728] sm:$0xff]
    %v444 = vld [vmem:[%s20 + $0x730] sm:$0xff]
    %v445 = vld [vmem:[%s20 + $0x738] sm:$0xff]
    %v446 = vld [vmem:[%s20 + $0x740] sm:$0xff]
    %v447 = vld [vmem:[%s20 + $0x748] sm:$0xff]
    %v448 = vld [vmem:[%s20 + $0x750] sm:$0xff]
    %v449 = vld [vmem:[%s20 + $0x758] sm:$0xff]
    %v450 = vld [vmem:[%s20 + $0x760] sm:$0xff]
    %v451 = vld [vmem:[%s20 + $0x768] sm:$0xff]
    %v452 = vld [vmem:[%s20 + $0x770] sm:$0xff]
    %v453 = vld [vmem:[%s20 + $0x778] sm:$0xff]
    %v454 = vld [vmem:[%s20 + $0x780] sm:$0xff]
    %v455 = vld [vmem:[%s20 + $0x788] sm:$0xff]
    %v456 = vld [vmem:[%s20 + $0x790] sm:$0xff]
    %v457 = vld [vmem:[%s20 + $0x798] sm:$0xff]
    %v458 = vld [vmem:[%s20 + $0x7a0] sm:$0xff]
    %v459 = vld [vmem:[%s20 + $0x7a8] sm:$0xff]
    %v460 = vld [vmem:[%s20 + $0x7b0] sm:$0xff]
    %v461 = vld [vmem:[%s20 + $0x7b8] sm:$0xff]
    %v462 = vld [vmem:[%s20 + $0x7c0] sm:$0xff]
    %v463 = vld [vmem:[%s20 + $0x7c8] sm:$0xff]
    %v464 = vld [vmem:[%s20 + $0x7d0] sm:$0xff]
    %v465 = vld [vmem:[%s20 + $0x7d8] sm:$0xff]
    %v466 = vld [vmem:[%s20 + $0x7e0] sm:$0xff]
    %v467 = vld [vmem:[%s20 + $0x7e8] sm:$0xff]
    %v468 = vld [vmem:[%s20 + $0x7f0] sm:$0xff]
    %v469 = vld [vmem:[%s20 + $0x7f8] sm:$0xff]
    %v470 = vld [vmem:[%s21] sm:$0xff]
    %v471 = vld [vmem:[%s0] sm:$0xff]
    %v472 = vld [vmem:[%s0 + $0x8] sm:$0xff]
    %v473 = vld [vmem:[%s1] sm:$0xf]
    %v474 = vld [vmem:[%s1 + $0x4] sm:$0xf]
    %v475 = vld [vmem:[%s1 + $0x8] sm:$0xf]
    %v476 = vld [vmem:[%s1 + $0xc] sm:$0xf]
    %v477 = vld [vmem:[%s1 + $0x10] sm:$0x1]
    %v478 = vpack.c.bf16 %v472, %v471
    %v479 = vld [vmem:[%s2] sm:$0x1]
    %v481 = vlaneseq
    %v482 = vshrl.u32 %v481, 7
    %v483 = vsub.s32 0, %v482
    %v484 = vrot.slane %v479, %v483
    %v491 = vunpack.c.l.b16 %v473
    %v492 = vunpack.c.l.b16 %v474
    %v493 = vunpack.c.l.b16 %v475
    %v494 = vunpack.c.l.b16 %v476
    %v495 = vunpack.c.l.b16 %v477
    %v496 = vpack.c.b16 %v492, %v491
    %v497 = vpack.c.b16 %v494, %v493
    %v498 = vpack.c.b16 %v495, %v495
    %vm501 = vcmask 277504
    %v503 = vsel %vm501, %v478, 0
    %vm505 = vcmask 1040384
    %v507 = vsel %vm505, %v498, 0
    %509 = vmatprep.subr.bf16.mxu0 0
    %510 = vmatpush1.bf16.msra.mxu0 0
    %511 = vmatprep.subr.bf16.mxu0 0
    %512 = vmatpush1.bf16.msra.mxu0 0
    %513 = vmatprep.subr.bf16.mxu0 0
    %514 = vmatpush1.bf16.msra.mxu0 0
    %515 = vmatprep.subr.bf16.mxu0 0
    %516 = vmatpush1.bf16.msra.mxu0 0
    %517 = vmatprep.subr.bf16.mxu0 0
    %518 = vmatpush1.bf16.msra.mxu0 0
    %519 = vmatprep.subr.bf16.mxu0 0
    %520 = vmatpush1.bf16.msra.mxu0 %v507
    %521 = vmatprep.subr.bf16.mxu0 0
    %522 = vmatpush1.bf16.msra.mxu0 %v497
    %523 = vmatprep.subr.bf16.mxu0 0
    %524 = vmatpush1.bf16.msra.mxu0 %v496
    %525 = vmatprep.subr.bf16.mxu0 0
    %526 = vmatpush2.bf16.msra.mxu0 0
    %527 = vmatprep.subr.bf16.mxu0 0
    %528 = vmatpush2.bf16.msra.mxu0 0
    %529 = vmatprep.subr.bf16.mxu0 0
    %530 = vmatpush2.bf16.msra.mxu0 0
    %531 = vmatprep.subr.bf16.mxu0 0
    %532 = vmatpush2.bf16.msra.mxu0 0
    %533 = vmatprep.subr.bf16.mxu0 0
    %534 = vmatpush2.bf16.msra.mxu0 0
    %535 = vmatprep.subr.bf16.mxu0 0
    %536 = vmatpush2.bf16.msra.mxu0 0
    %537 = vmatprep.subr.bf16.mxu0 0
    %538 = vmatpush2.bf16.msra.mxu0 0
    %539 = vmatprep.subr.bf16.mxu0 0
    %540 = vmatpush2.bf16.msra.mxu0 0
    %541 = vmatprep.mubr.bf16.mxu0 0
    %542 = vmatmul.mubr.bf16.gmra.mxu0 %v503
    %v543 = vpop.f32.mrf.mxu0
    %v544 = vadd.f32 %v484, %v543
    %v545 = vpop.f32.mrf.mxu0
    %v546 = vpop.f32.mrf.mxu0
    %v547 = vadd.f32 %v484, %v546
    %v548 = vpop.f32.mrf.mxu0
    %549 = vdwg.mxu0
    %v552 = vrot.slane %v471, 7
    %v553 = vrot.slane %v472, 7
    %v554 = vsel %vm505, %v552, %v553
    %v557 = vsel %vm505, 0.0, %v552
    %vm558 = vcmask 1046528
    %v559 = vrot.slane %v471, 1
    %v560 = vrot.slane %v472, 1
    %v561 = vsel %vm558, %v559, %v560
    %v564 = vsel %vm558, %v560, 0.0
    %v565 = vld [vmem:[%s3] sm:$0xf]
    %v566 = vld [vmem:[%s3 + $0x4] sm:$0xf]
    %v567 = vld [vmem:[%s3 + $0x8] sm:$0xf]
    %v568 = vld [vmem:[%s3 + $0xc] sm:$0xf]
    %v569 = vld [vmem:[%s3 + $0x10] sm:$0x1]
    %v570 = vpack.c.bf16 %v554, %v557
    %s571 = scalar_lea.vmem %s3, 20
    %v572 = vld [vmem:[%s571] sm:$0xf]
    %v573 = vld [vmem:[%s571 + $0x4] sm:$0xf]
    %v574 = vld [vmem:[%s571 + $0x8] sm:$0xf]
    %v575 = vld [vmem:[%s571 + $0xc] sm:$0xf]
    %v576 = vld [vmem:[%s571 + $0x10] sm:$0x1]
    %v582 = vunpack.c.l.b16 %v572
    %v583 = vunpack.c.l.b16 %v573
    %v584 = vunpack.c.l.b16 %v574
    %v585 = vunpack.c.l.b16 %v575
    %v586 = vunpack.c.l.b16 %v576
    %v587 = vpack.c.b16 %v583, %v582
    %v588 = vpack.c.b16 %v585, %v584
    %v589 = vpack.c.b16 %v586, %v586
    %v593 = vsel %vm505, %v589, 0
    %595 = vmatprep.subr.bf16.mxu0 0
    %596 = vmatpush1.bf16.msra.mxu0 0
    %597 = vmatprep.subr.bf16.mxu0 0
    %598 = vmatpush1.bf16.msra.mxu0 0
    %599 = vmatprep.subr.bf16.mxu0 0
    %600 = vmatpush1.bf16.msra.mxu0 0
    %601 = vmatprep.subr.bf16.mxu0 0
    %602 = vmatpush1.bf16.msra.mxu0 0
    %603 = vmatprep.subr.bf16.mxu0 0
    %604 = vmatpush1.bf16.msra.mxu0 0
    %605 = vmatprep.subr.bf16.mxu0 0
    %606 = vmatpush1.bf16.msra.mxu0 %v593
    %607 = vmatprep.subr.bf16.mxu0 0
    %608 = vmatpush1.bf16.msra.mxu0 %v588
    %609 = vmatprep.subr.bf16.mxu0 0
    %610 = vmatpush1.bf16.msra.mxu0 %v587
    %611 = vmatprep.subr.bf16.mxu0 0
    %612 = vmatpush2.bf16.msra.mxu0 0
    %613 = vmatprep.subr.bf16.mxu0 0
    %614 = vmatpush2.bf16.msra.mxu0 0
    %615 = vmatprep.subr.bf16.mxu0 0
    %616 = vmatpush2.bf16.msra.mxu0 0
    %617 = vmatprep.subr.bf16.mxu0 0
    %618 = vmatpush2.bf16.msra.mxu0 0
    %619 = vmatprep.subr.bf16.mxu0 0
    %620 = vmatpush2.bf16.msra.mxu0 0
    %621 = vmatprep.subr.bf16.mxu0 0
    %622 = vmatpush2.bf16.msra.mxu0 0
    %623 = vmatprep.subr.bf16.mxu0 0
    %624 = vmatpush2.bf16.msra.mxu0 0
    %625 = vmatprep.subr.bf16.mxu0 0
    %626 = vmatpush2.bf16.msra.mxu0 0
    %627 = vmatprep.mubr.bf16.mxu0 0
    %628 = vmatmul.mubr.bf16.gmra.mxu0 %v503
    %v629 = vpop.f32.mrf.mxu0
    %v630 = vadd.f32 0.0, %v629
    %v631 = vpop.f32.mrf.mxu0
    %v632 = vpop.f32.mrf.mxu0
    %v633 = vadd.f32 0.0, %v632
    %v634 = vpop.f32.mrf.mxu0
    %635 = vdwg.mxu0
    %v641 = vunpack.c.l.b16 %v565
    %v642 = vunpack.c.l.b16 %v566
    %v643 = vunpack.c.l.b16 %v567
    %v644 = vunpack.c.l.b16 %v568
    %v645 = vunpack.c.l.b16 %v569
    %v646 = vpack.c.b16 %v642, %v641
    %v647 = vpack.c.b16 %v644, %v643
    %v648 = vpack.c.b16 %v645, %v645
    %v652 = vsel %vm501, %v570, 0
    %v655 = vsel %vm505, %v648, 0
    %657 = vmatprep.subr.bf16.mxu0 0
    %658 = vmatpush1.bf16.msra.mxu0 0
    %659 = vmatprep.subr.bf16.mxu0 0
    %660 = vmatpush1.bf16.msra.mxu0 0
    %661 = vmatprep.subr.bf16.mxu0 0
    %662 = vmatpush1.bf16.msra.mxu0 0
    %663 = vmatprep.subr.bf16.mxu0 0
    %664 = vmatpush1.bf16.msra.mxu0 0
    %665 = vmatprep.subr.bf16.mxu0 0
    %666 = vmatpush1.bf16.msra.mxu0 0
    %667 = vmatprep.subr.bf16.mxu0 0
    %668 = vmatpush1.bf16.msra.mxu0 %v655
    %669 = vmatprep.subr.bf16.mxu0 0
    %670 = vmatpush1.bf16.msra.mxu0 %v647
    %671 = vmatprep.subr.bf16.mxu0 0
    %672 = vmatpush1.bf16.msra.mxu0 %v646
    %673 = vmatprep.subr.bf16.mxu0 0
    %674 = vmatpush2.bf16.msra.mxu0 0
    %675 = vmatprep.subr.bf16.mxu0 0
    %676 = vmatpush2.bf16.msra.mxu0 0
    %677 = vmatprep.subr.bf16.mxu0 0
    %678 = vmatpush2.bf16.msra.mxu0 0
    %679 = vmatprep.subr.bf16.mxu0 0
    %680 = vmatpush2.bf16.msra.mxu0 0
    %681 = vmatprep.subr.bf16.mxu0 0
    %682 = vmatpush2.bf16.msra.mxu0 0
    %683 = vmatprep.subr.bf16.mxu0 0
    %684 = vmatpush2.bf16.msra.mxu0 0
    %685 = vmatprep.subr.bf16.mxu0 0
    %686 = vmatpush2.bf16.msra.mxu0 0
    %687 = vmatprep.subr.bf16.mxu0 0
    %688 = vmatpush2.bf16.msra.mxu0 0
    %689 = vmatprep.mubr.bf16.mxu0 0
    %690 = vmatmul.mubr.bf16.gmra.mxu0 %v652
    %v691 = vpop.f32.mrf.mxu0
    %v692 = vadd.f32 %v630, %v691
    %v693 = vpop.f32.mrf.mxu0
    %v694 = vpop.f32.mrf.mxu0
    %v695 = vadd.f32 %v633, %v694
    %v696 = vpop.f32.mrf.mxu0
    %697 = vdwg.mxu0
    %s698 = scalar_lea.vmem %s3, 40
    %v699 = vld [vmem:[%s698] sm:$0xf]
    %v700 = vld [vmem:[%s698 + $0x4] sm:$0xf]
    %v701 = vld [vmem:[%s698 + $0x8] sm:$0xf]
    %v702 = vld [vmem:[%s698 + $0xc] sm:$0xf]
    %v703 = vld [vmem:[%s698 + $0x10] sm:$0x1]
    %v704 = vpack.c.bf16 %v564, %v561
    %v710 = vunpack.c.l.b16 %v699
    %v711 = vunpack.c.l.b16 %v700
    %v712 = vunpack.c.l.b16 %v701
    %v713 = vunpack.c.l.b16 %v702
    %v714 = vunpack.c.l.b16 %v703
    %v715 = vpack.c.b16 %v711, %v710
    %v716 = vpack.c.b16 %v713, %v712
    %v717 = vpack.c.b16 %v714, %v714
    %v721 = vsel %vm501, %v704, 0
    %v724 = vsel %vm505, %v717, 0
    %726 = vmatprep.subr.bf16.mxu0 0
    %727 = vmatpush1.bf16.msra.mxu0 0
    %728 = vmatprep.subr.bf16.mxu0 0
    %729 = vmatpush1.bf16.msra.mxu0 0
    %730 = vmatprep.subr.bf16.mxu0 0
    %731 = vmatpush1.bf16.msra.mxu0 0
    %732 = vmatprep.subr.bf16.mxu0 0
    %733 = vmatpush1.bf16.msra.mxu0 0
    %734 = vmatprep.subr.bf16.mxu0 0
    %735 = vmatpush1.bf16.msra.mxu0 0
    %736 = vmatprep.subr.bf16.mxu0 0
    %737 = vmatpush1.bf16.msra.mxu0 %v724
    %738 = vmatprep.subr.bf16.mxu0 0
    %739 = vmatpush1.bf16.msra.mxu0 %v716
    %740 = vmatprep.subr.bf16.mxu0 0
    %741 = vmatpush1.bf16.msra.mxu0 %v715
    %742 = vmatprep.subr.bf16.mxu0 0
    %743 = vmatpush2.bf16.msra.mxu0 0
    %744 = vmatprep.subr.bf16.mxu0 0
    %745 = vmatpush2.bf16.msra.mxu0 0
    %746 = vmatprep.subr.bf16.mxu0 0
    %747 = vmatpush2.bf16.msra.mxu0 0
    %748 = vmatprep.subr.bf16.mxu0 0
    %749 = vmatpush2.bf16.msra.mxu0 0
    %750 = vmatprep.subr.bf16.mxu0 0
    %751 = vmatpush2.bf16.msra.mxu0 0
    %752 = vmatprep.subr.bf16.mxu0 0
    %753 = vmatpush2.bf16.msra.mxu0 0
    %754 = vmatprep.subr.bf16.mxu0 0
    %755 = vmatpush2.bf16.msra.mxu0 0
    %756 = vmatprep.subr.bf16.mxu0 0
    %757 = vmatpush2.bf16.msra.mxu0 0
    %758 = vmatprep.mubr.bf16.mxu0 0
    %759 = vmatmul.mubr.bf16.gmra.mxu0 %v721
    %v760 = vpop.f32.mrf.mxu0
    %v761 = vadd.f32 0.0, %v760
    %v762 = vpop.f32.mrf.mxu0
    %v763 = vpop.f32.mrf.mxu0
    %v764 = vadd.f32 0.0, %v763
    %v765 = vpop.f32.mrf.mxu0
    %766 = vdwg.mxu0
    %v767 = vadd.f32 %v692, %v761
    %v768 = vadd.f32 %v695, %v764
    %v769 = vld [vmem:[%s4] sm:$0x1]
    %v771 = vlaneseq
    %v772 = vshrl.u32 %v771, 7
    %v773 = vsub.s32 0, %v772
    %v774 = vrot.slane %v769, %v773
    %v776 = vmul.f32 %v767, %v774
    %v777 = vmul.f32 %v768, %v774
    %v778 = vld [vmem:[%s5] sm:$0x1]
    %v780 = vlaneseq
    %v781 = vshrl.u32 %v780, 7
    %v782 = vsub.s32 0, %v781
    %v783 = vrot.slane %v778, %v782
    %v785 = vadd.f32 %v776, %v783
    %v786 = vadd.f32 %v777, %v783
    %v787 = vmax.f32 %v785, 0.0
    %v788 = vmax.f32 %v786, 0.0
    %v791 = vrot.slane %v787, 7
    %v792 = vrot.slane %v788, 7
    %v793 = vsel %vm505, %v791, %v792
    %v796 = vsel %vm505, 0.0, %v791
    %v797 = vrot.slane %v787, 1
    %v798 = vrot.slane %v788, 1
    %v799 = vsel %vm558, %v797, %v798
    %v802 = vsel %vm558, %v798, 0.0
    %v803 = vld [vmem:[%s6] sm:$0xf]
    %v804 = vld [vmem:[%s6 + $0x4] sm:$0xf]
    %v805 = vld [vmem:[%s6 + $0x8] sm:$0xf]
    %v806 = vld [vmem:[%s6 + $0xc] sm:$0xf]
    %v807 = vld [vmem:[%s6 + $0x10] sm:$0xf]
    %v808 = vld [vmem:[%s6 + $0x14] sm:$0xf]
    %v809 = vld [vmem:[%s6 + $0x18] sm:$0xf]
    %v810 = vld [vmem:[%s6 + $0x1c] sm:$0xf]
    %v811 = vpack.c.bf16 %v793, %v796
    %s812 = scalar_lea.vmem %s6, 32
    %v813 = vld [vmem:[%s812] sm:$0xf]
    %v814 = vld [vmem:[%s812 + $0x4] sm:$0xf]
    %v815 = vld [vmem:[%s812 + $0x8] sm:$0xf]
    %v816 = vld [vmem:[%s812 + $0xc] sm:$0xf]
    %v817 = vld [vmem:[%s812 + $0x10] sm:$0xf]
    %v818 = vld [vmem:[%s812 + $0x14] sm:$0xf]
    %v819 = vld [vmem:[%s812 + $0x18] sm:$0xf]
    %v820 = vld [vmem:[%s812 + $0x1c] sm:$0xf]
    %v821 = vpack.c.bf16 %v788, %v787
    %v830 = vunpack.c.l.b16 %v813
    %v831 = vunpack.c.l.b16 %v814
    %v832 = vunpack.c.l.b16 %v815
    %v833 = vunpack.c.l.b16 %v816
    %v834 = vunpack.c.l.b16 %v817
    %v835 = vunpack.c.l.b16 %v818
    %v836 = vunpack.c.l.b16 %v819
    %v837 = vunpack.c.l.b16 %v820
    %v838 = vpack.c.b16 %v831, %v830
    %v839 = vpack.c.b16 %v833, %v832
    %v840 = vpack.c.b16 %v835, %v834
    %v841 = vpack.c.b16 %v837, %v836
    %vm846 = vcmask 523264
    %v848 = vsel %vm846, %v821, 0
    %850 = vmatprep.subr.bf16.mxu0 0
    %851 = vmatpush1.bf16.msra.mxu0 0
    %852 = vmatprep.subr.bf16.mxu0 0
    %853 = vmatpush1.bf16.msra.mxu0 0
    %854 = vmatprep.subr.bf16.mxu0 0
    %855 = vmatpush1.bf16.msra.mxu0 0
    %856 = vmatprep.subr.bf16.mxu0 0
    %857 = vmatpush1.bf16.msra.mxu0 0
    %858 = vmatprep.subr.bf16.mxu0 0
    %859 = vmatpush1.bf16.msra.mxu0 %v841
    %860 = vmatprep.subr.bf16.mxu0 0
    %861 = vmatpush1.bf16.msra.mxu0 %v840
    %862 = vmatprep.subr.bf16.mxu0 0
    %863 = vmatpush1.bf16.msra.mxu0 %v839
    %864 = vmatprep.subr.bf16.mxu0 0
    %865 = vmatpush1.bf16.msra.mxu0 %v838
    %866 = vmatprep.subr.bf16.mxu0 0
    %867 = vmatpush2.bf16.msra.mxu0 0
    %868 = vmatprep.subr.bf16.mxu0 0
    %869 = vmatpush2.bf16.msra.mxu0 0
    %870 = vmatprep.subr.bf16.mxu0 0
    %871 = vmatpush2.bf16.msra.mxu0 0
    %872 = vmatprep.subr.bf16.mxu0 0
    %873 = vmatpush2.bf16.msra.mxu0 0
    %874 = vmatprep.subr.bf16.mxu0 0
    %875 = vmatpush2.bf16.msra.mxu0 0
    %876 = vmatprep.subr.bf16.mxu0 0
    %877 = vmatpush2.bf16.msra.mxu0 0
    %878 = vmatprep.subr.bf16.mxu0 0
    %879 = vmatpush2.bf16.msra.mxu0 0
    %880 = vmatprep.subr.bf16.mxu0 0
    %881 = vmatpush2.bf16.msra.mxu0 0
    %882 = vmatprep.mubr.bf16.mxu0 0
    %883 = vmatmul.mubr.bf16.gmra.mxu0 %v848
    %v884 = vpop.f32.mrf.mxu0
    %v885 = vadd.f32 0.0, %v884
    %v886 = vpop.f32.mrf.mxu0
    %v887 = vpop.f32.mrf.mxu0
    %v888 = vadd.f32 0.0, %v887
    %v889 = vpop.f32.mrf.mxu0
    %890 = vdwg.mxu0
    %v899 = vunpack.c.l.b16 %v803
    %v900 = vunpack.c.l.b16 %v804
    %v901 = vunpack.c.l.b16 %v805
    %v902 = vunpack.c.l.b16 %v806
    %v903 = vunpack.c.l.b16 %v807
    %v904 = vunpack.c.l.b16 %v808
    %v905 = vunpack.c.l.b16 %v809
    %v906 = vunpack.c.l.b16 %v810
    %v907 = vpack.c.b16 %v900, %v899
    %v908 = vpack.c.b16 %v902, %v901
    %v909 = vpack.c.b16 %v904, %v903
    %v910 = vpack.c.b16 %v906, %v905
    %v916 = vsel %vm846, %v811, 0
    %918 = vmatprep.subr.bf16.mxu0 0
    %919 = vmatpush1.bf16.msra.mxu0 0
    %920 = vmatprep.subr.bf16.mxu0 0
    %921 = vmatpush1.bf16.msra.mxu0 0
    %922 = vmatprep.subr.bf16.mxu0 0
    %923 = vmatpush1.bf16.msra.mxu0 0
    %924 = vmatprep.subr.bf16.mxu0 0
    %925 = vmatpush1.bf16.msra.mxu0 0
    %926 = vmatprep.subr.bf16.mxu0 0
    %927 = vmatpush1.bf16.msra.mxu0 %v910
    %928 = vmatprep.subr.bf16.mxu0 0
    %929 = vmatpush1.bf16.msra.mxu0 %v909
    %930 = vmatprep.subr.bf16.mxu0 0
    %931 = vmatpush1.bf16.msra.mxu0 %v908
    %932 = vmatprep.subr.bf16.mxu0 0
    %933 = vmatpush1.bf16.msra.mxu0 %v907
    %934 = vmatprep.subr.bf16.mxu0 0
    %935 = vmatpush2.bf16.msra.mxu0 0
    %936 = vmatprep.subr.bf16.mxu0 0
    %937 = vmatpush2.bf16.msra.mxu0 0
    %938 = vmatprep.subr.bf16.mxu0 0
    %939 = vmatpush2.bf16.msra.mxu0 0
    %940 = vmatprep.subr.bf16.mxu0 0
    %941 = vmatpush2.bf16.msra.mxu0 0
    %942 = vmatprep.subr.bf16.mxu0 0
    %943 = vmatpush2.bf16.msra.mxu0 0
    %944 = vmatprep.subr.bf16.mxu0 0
    %945 = vmatpush2.bf16.msra.mxu0 0
    %946 = vmatprep.subr.bf16.mxu0 0
    %947 = vmatpush2.bf16.msra.mxu0 0
    %948 = vmatprep.subr.bf16.mxu0 0
    %949 = vmatpush2.bf16.msra.mxu0 0
    %950 = vmatprep.mubr.bf16.mxu0 0
    %951 = vmatmul.mubr.bf16.gmra.mxu0 %v916
    %v952 = vpop.f32.mrf.mxu0
    %v953 = vadd.f32 %v885, %v952
    %v954 = vpop.f32.mrf.mxu0
    %v955 = vpop.f32.mrf.mxu0
    %v956 = vadd.f32 %v888, %v955
    %v957 = vpop.f32.mrf.mxu0
    %958 = vdwg.mxu0
    %s959 = scalar_lea.vmem %s6, 64
    %v960 = vld [vmem:[%s959] sm:$0xf]
    %v961 = vld [vmem:[%s959 + $0x4] sm:$0xf]
    %v962 = vld [vmem:[%s959 + $0x8] sm:$0xf]
    %v963 = vld [vmem:[%s959 + $0xc] sm:$0xf]
    %v964 = vld [vmem:[%s959 + $0x10] sm:$0xf]
    %v965 = vld [vmem:[%s959 + $0x14] sm:$0xf]
    %v966 = vld [vmem:[%s959 + $0x18] sm:$0xf]
    %v967 = vld [vmem:[%s959 + $0x1c] sm:$0xf]
    %v968 = vpack.c.bf16 %v802, %v799
    %v977 = vunpack.c.l.b16 %v960
    %v978 = vunpack.c.l.b16 %v961
    %v979 = vunpack.c.l.b16 %v962
    %v980 = vunpack.c.l.b16 %v963
    %v981 = vunpack.c.l.b16 %v964
    %v982 = vunpack.c.l.b16 %v965
    %v983 = vunpack.c.l.b16 %v966
    %v984 = vunpack.c.l.b16 %v967
    %v985 = vpack.c.b16 %v978, %v977
    %v986 = vpack.c.b16 %v980, %v979
    %v987 = vpack.c.b16 %v982, %v981
    %v988 = vpack.c.b16 %v984, %v983
    %v994 = vsel %vm846, %v968, 0
    %996 = vmatprep.subr.bf16.mxu0 0
    %997 = vmatpush1.bf16.msra.mxu0 0
    %998 = vmatprep.subr.bf16.mxu0 0
    %999 = vmatpush1.bf16.msra.mxu0 0
    %1000 = vmatprep.subr.bf16.mxu0 0
    %1001 = vmatpush1.bf16.msra.mxu0 0
    %1002 = vmatprep.subr.bf16.mxu0 0
    %1003 = vmatpush1.bf16.msra.mxu0 0
    %1004 = vmatprep.subr.bf16.mxu0 0
    %1005 = vmatpush1.bf16.msra.mxu0 %v988
    %1006 = vmatprep.subr.bf16.mxu0 0
    %1007 = vmatpush1.bf16.msra.mxu0 %v987
    %1008 = vmatprep.subr.bf16.mxu0 0
    %1009 = vmatpush1.bf16.msra.mxu0 %v986
    %1010 = vmatprep.subr.bf16.mxu0 0
    %1011 = vmatpush1.bf16.msra.mxu0 %v985
    %1012 = vmatprep.subr.bf16.mxu0 0
    %1013 = vmatpush2.bf16.msra.mxu0 0
    %1014 = vmatprep.subr.bf16.mxu0 0
    %1015 = vmatpush2.bf16.msra.mxu0 0
    %1016 = vmatprep.subr.bf16.mxu0 0
    %1017 = vmatpush2.bf16.msra.mxu0 0
    %1018 = vmatprep.subr.bf16.mxu0 0
    %1019 = vmatpush2.bf16.msra.mxu0 0
    %1020 = vmatprep.subr.bf16.mxu0 0
    %1021 = vmatpush2.bf16.msra.mxu0 0
    %1022 = vmatprep.subr.bf16.mxu0 0
    %1023 = vmatpush2.bf16.msra.mxu0 0
    %1024 = vmatprep.subr.bf16.mxu0 0
    %1025 = vmatpush2.bf16.msra.mxu0 0
    %1026 = vmatprep.subr.bf16.mxu0 0
    %1027 = vmatpush2.bf16.msra.mxu0 0
    %1028 = vmatprep.mubr.bf16.mxu0 0
    %1029 = vmatmul.mubr.bf16.gmra.mxu0 %v994
    %v1030 = vpop.f32.mrf.mxu0
    %v1031 = vadd.f32 0.0, %v1030
    %v1032 = vpop.f32.mrf.mxu0
    %v1033 = vpop.f32.mrf.mxu0
    %v1034 = vadd.f32 0.0, %v1033
    %v1035 = vpop.f32.mrf.mxu0
    %1036 = vdwg.mxu0
    %v1037 = vadd.f32 %v953, %v1031
    %v1038 = vadd.f32 %v956, %v1034
    %v1039 = vld [vmem:[%s7] sm:$0x1]
    %v1041 = vlaneseq
    %v1042 = vshrl.u32 %v1041, 7
    %v1043 = vsub.s32 0, %v1042
    %v1044 = vrot.slane %v1039, %v1043
    %v1046 = vmul.f32 %v1037, %v1044
    %v1047 = vmul.f32 %v1038, %v1044
    %v1048 = vld [vmem:[%s8] sm:$0x1]
    %v1050 = vlaneseq
    %v1051 = vshrl.u32 %v1050, 7
    %v1052 = vsub.s32 0, %v1051
    %v1053 = vrot.slane %v1048, %v1052
    %v1055 = vadd.f32 %v1046, %v1053
    %v1056 = vadd.f32 %v1047, %v1053
    %v1057 = vmax.f32 %v1055, 0.0
    %v1058 = vmax.f32 %v1056, 0.0
    %v1059 = vadd.f32 %v1057, %v544
    %v1060 = vadd.f32 %v1058, %v547
    %1061 = vst.msk [vmem:[#allocation2] sm:$0xff] %vm846, %v1059
    %1062 = vst.msk [vmem:[#allocation2 + $0x8] sm:$0xff] %vm846, %v1060
    %v1063 = vld [vmem:[#allocation2] ss:$2 sm:$0xff]
    %s1064 = scalar_lea.vmem [#allocation2], 1
    %v1065 = vld [vmem:[%s1064] ss:$2 sm:$0xff]
    %v1066 = vmax.f32 %v1063, %v1065
    %v1067 = vld [vmem:[%s9] sm:$0xf]
    %v1068 = vld [vmem:[%s9 + $0x4] sm:$0xf]
    %v1069 = vld [vmem:[%s9 + $0x8] sm:$0xf]
    %v1070 = vld [vmem:[%s9 + $0xc] sm:$0xf]
    %v1071 = vld [vmem:[%s9 + $0x10] sm:$0xf]
    %v1072 = vld [vmem:[%s9 + $0x14] sm:$0xf]
    %v1073 = vld [vmem:[%s9 + $0x18] sm:$0xf]
    %v1074 = vld [vmem:[%s9 + $0x1c] sm:$0xf]
    %v1075 = vpack.c.bf16 %v1066, %v1066
    %v1076 = vld [vmem:[%s10] sm:$0x1]
    %v1078 = vlaneseq
    %v1079 = vshrl.u32 %v1078, 7
    %v1080 = vsub.s32 0, %v1079
    %v1081 = vrot.slane %v1076, %v1080
    %v1091 = vunpack.c.l.b16 %v1067
    %v1092 = vunpack.c.l.b16 %v1068
    %v1093 = vunpack.c.l.b16 %v1069
    %v1094 = vunpack.c.l.b16 %v1070
    %v1095 = vunpack.c.l.b16 %v1071
    %v1096 = vunpack.c.l.b16 %v1072
    %v1097 = vunpack.c.l.b16 %v1073
    %v1098 = vunpack.c.l.b16 %v1074
    %v1099 = vpack.c.b16 %v1092, %v1091
    %v1100 = vpack.c.b16 %v1094, %v1093
    %v1101 = vpack.c.b16 %v1096, %v1095
    %v1102 = vpack.c.b16 %v1098, %v1097
    %v1108 = vsel %vm846, %v1075, 0
    %1110 = vmatprep.subr.bf16.mxu0 0
    %1111 = vmatpush1.bf16.msra.mxu0 0
    %1112 = vmatprep.subr.bf16.mxu0 0
    %1113 = vmatpush1.bf16.msra.mxu0 0
    %1114 = vmatprep.subr.bf16.mxu0 0
    %1115 = vmatpush1.bf16.msra.mxu0 0
    %1116 = vmatprep.subr.bf16.mxu0 0
    %1117 = vmatpush1.bf16.msra.mxu0 0
    %1118 = vmatprep.subr.bf16.mxu0 0
    %1119 = vmatpush1.bf16.msra.mxu0 %v1102
    %1120 = vmatprep.subr.bf16.mxu0 0
    %1121 = vmatpush1.bf16.msra.mxu0 %v1101
    %1122 = vmatprep.subr.bf16.mxu0 0
    %1123 = vmatpush1.bf16.msra.mxu0 %v1100
    %1124 = vmatprep.subr.bf16.mxu0 0
    %1125 = vmatpush1.bf16.msra.mxu0 %v1099
    %1126 = vmatprep.subr.bf16.mxu0 0
    %1127 = vmatpush2.bf16.msra.mxu0 0
    %1128 = vmatprep.subr.bf16.mxu0 0
    %1129 = vmatpush2.bf16.msra.mxu0 0
    %1130 = vmatprep.subr.bf16.mxu0 0
    %1131 = vmatpush2.bf16.msra.mxu0 0
    %1132 = vmatprep.subr.bf16.mxu0 0
    %1133 = vmatpush2.bf16.msra.mxu0 0
    %1134 = vmatprep.subr.bf16.mxu0 0
    %1135 = vmatpush2.bf16.msra.mxu0 0
    %1136 = vmatprep.subr.bf16.mxu0 0
    %1137 = vmatpush2.bf16.msra.mxu0 0
    %1138 = vmatprep.subr.bf16.mxu0 0
    %1139 = vmatpush2.bf16.msra.mxu0 0
    %1140 = vmatprep.subr.bf16.mxu0 0
    %1141 = vmatpush2.bf16.msra.mxu0 0
    %1142 = vmatprep.mubr.bf16.mxu0 0
    %1143 = vmatmul.mubr.bf16.gmra.mxu0 %v1108
    %v1144 = vpop.f32.mrf.mxu0
    %v1145 = vadd.f32 %v1081, %v1144
    %v1146 = vpop.f32.mrf.mxu0
    %v1147 = vpop.f32.mrf.mxu0
    %v1148 = vpop.f32.mrf.mxu0
    %1149 = vdwg.mxu0
    %v1151 = vrot.slane %v1066, 7
    %v1153 = vsel %vm505, 0.0, %v1151
    %v1154 = vrot.slane %v1066, 1
    %v1156 = vsel %vm558, %v1154, 0.0
    %v1157 = vld [vmem:[%s11] sm:$0xf]
    %v1158 = vld [vmem:[%s11 + $0x4] sm:$0xf]
    %v1159 = vld [vmem:[%s11 + $0x8] sm:$0xf]
    %v1160 = vld [vmem:[%s11 + $0xc] sm:$0xf]
    %v1161 = vld [vmem:[%s11 + $0x10] sm:$0xf]
    %v1162 = vld [vmem:[%s11 + $0x14] sm:$0xf]
    %v1163 = vld [vmem:[%s11 + $0x18] sm:$0xf]
    %v1164 = vld [vmem:[%s11 + $0x1c] sm:$0xf]
    %v1165 = vpack.c.bf16 %v1153, %v1153
    %s1166 = scalar_lea.vmem %s11, 32
    %v1167 = vld [vmem:[%s1166] sm:$0xf]
    %v1168 = vld [vmem:[%s1166 + $0x4] sm:$0xf]
    %v1169 = vld [vmem:[%s1166 + $0x8] sm:$0xf]
    %v1170 = vld [vmem:[%s1166 + $0xc] sm:$0xf]
    %v1171 = vld [vmem:[%s1166 + $0x10] sm:$0xf]
    %v1172 = vld [vmem:[%s1166 + $0x14] sm:$0xf]
    %v1173 = vld [vmem:[%s1166 + $0x18] sm:$0xf]
    %v1174 = vld [vmem:[%s1166 + $0x1c] sm:$0xf]
    %v1183 = vunpack.c.l.b16 %v1167
    %v1184 = vunpack.c.l.b16 %v1168
    %v1185 = vunpack.c.l.b16 %v1169
    %v1186 = vunpack.c.l.b16 %v1170
    %v1187 = vunpack.c.l.b16 %v1171
    %v1188 = vunpack.c.l.b16 %v1172
    %v1189 = vunpack.c.l.b16 %v1173
    %v1190 = vunpack.c.l.b16 %v1174
    %v1191 = vpack.c.b16 %v1184, %v1183
    %v1192 = vpack.c.b16 %v1186, %v1185
    %v1193 = vpack.c.b16 %v1188, %v1187
    %v1194 = vpack.c.b16 %v1190, %v1189
    %1199 = vmatprep.subr.bf16.mxu0 0
    %1200 = vmatpush1.bf16.msra.mxu0 0
    %1201 = vmatprep.subr.bf16.mxu0 0
    %1202 = vmatpush1.bf16.msra.mxu0 0
    %1203 = vmatprep.subr.bf16.mxu0 0
    %1204 = vmatpush1.bf16.msra.mxu0 0
    %1205 = vmatprep.subr.bf16.mxu0 0
    %1206 = vmatpush1.bf16.msra.mxu0 0
    %1207 = vmatprep.subr.bf16.mxu0 0
    %1208 = vmatpush1.bf16.msra.mxu0 %v1194
    %1209 = vmatprep.subr.bf16.mxu0 0
    %1210 = vmatpush1.bf16.msra.mxu0 %v1193
    %1211 = vmatprep.subr.bf16.mxu0 0
    %1212 = vmatpush1.bf16.msra.mxu0 %v1192
    %1213 = vmatprep.subr.bf16.mxu0 0
    %1214 = vmatpush1.bf16.msra.mxu0 %v1191
    %1215 = vmatprep.subr.bf16.mxu0 0
    %1216 = vmatpush2.bf16.msra.mxu0 0
    %1217 = vmatprep.subr.bf16.mxu0 0
    %1218 = vmatpush2.bf16.msra.mxu0 0
    %1219 = vmatprep.subr.bf16.mxu0 0
    %1220 = vmatpush2.bf16.msra.mxu0 0
    %1221 = vmatprep.subr.bf16.mxu0 0
    %1222 = vmatpush2.bf16.msra.mxu0 0
    %1223 = vmatprep.subr.bf16.mxu0 0
    %1224 = vmatpush2.bf16.msra.mxu0 0
    %1225 = vmatprep.subr.bf16.mxu0 0
    %1226 = vmatpush2.bf16.msra.mxu0 0
    %1227 = vmatprep.subr.bf16.mxu0 0
    %1228 = vmatpush2.bf16.msra.mxu0 0
    %1229 = vmatprep.subr.bf16.mxu0 0
    %1230 = vmatpush2.bf16.msra.mxu0 0
    %1231 = vmatprep.mubr.bf16.mxu0 0
    %1232 = vmatmul.mubr.bf16.gmra.mxu0 %v1108
    %v1233 = vpop.f32.mrf.mxu0
    %v1234 = vadd.f32 0.0, %v1233
    %v1235 = vpop.f32.mrf.mxu0
    %v1236 = vpop.f32.mrf.mxu0
    %v1237 = vpop.f32.mrf.mxu0
    %1238 = vdwg.mxu0
    %v1247 = vunpack.c.l.b16 %v1157
    %v1248 = vunpack.c.l.b16 %v1158
    %v1249 = vunpack.c.l.b16 %v1159
    %v1250 = vunpack.c.l.b16 %v1160
    %v1251 = vunpack.c.l.b16 %v1161
    %v1252 = vunpack.c.l.b16 %v1162
    %v1253 = vunpack.c.l.b16 %v1163
    %v1254 = vunpack.c.l.b16 %v1164
    %v1255 = vpack.c.b16 %v1248, %v1247
    %v1256 = vpack.c.b16 %v1250, %v1249
    %v1257 = vpack.c.b16 %v1252, %v1251
    %v1258 = vpack.c.b16 %v1254, %v1253
    %v1264 = vsel %vm846, %v1165, 0
    %1266 = vmatprep.subr.bf16.mxu0 0
    %1267 = vmatpush1.bf16.msra.mxu0 0
    %1268 = vmatprep.subr.bf16.mxu0 0
    %1269 = vmatpush1.bf16.msra.mxu0 0
    %1270 = vmatprep.subr.bf16.mxu0 0
    %1271 = vmatpush1.bf16.msra.mxu0 0
    %1272 = vmatprep.subr.bf16.mxu0 0
    %1273 = vmatpush1.bf16.msra.mxu0 0
    %1274 = vmatprep.subr.bf16.mxu0 0
    %1275 = vmatpush1.bf16.msra.mxu0 %v1258
    %1276 = vmatprep.subr.bf16.mxu0 0
    %1277 = vmatpush1.bf16.msra.mxu0 %v1257
    %1278 = vmatprep.subr.bf16.mxu0 0
    %1279 = vmatpush1.bf16.msra.mxu0 %v1256
    %1280 = vmatprep.subr.bf16.mxu0 0
    %1281 = vmatpush1.bf16.msra.mxu0 %v1255
    %1282 = vmatprep.subr.bf16.mxu0 0
    %1283 = vmatpush2.bf16.msra.mxu0 0
    %1284 = vmatprep.subr.bf16.mxu0 0
    %1285 = vmatpush2.bf16.msra.mxu0 0
    %1286 = vmatprep.subr.bf16.mxu0 0
    %1287 = vmatpush2.bf16.msra.mxu0 0
    %1288 = vmatprep.subr.bf16.mxu0 0
    %1289 = vmatpush2.bf16.msra.mxu0 0
    %1290 = vmatprep.subr.bf16.mxu0 0
    %1291 = vmatpush2.bf16.msra.mxu0 0
    %1292 = vmatprep.subr.bf16.mxu0 0
    %1293 = vmatpush2.bf16.msra.mxu0 0
    %1294 = vmatprep.subr.bf16.mxu0 0
    %1295 = vmatpush2.bf16.msra.mxu0 0
    %1296 = vmatprep.subr.bf16.mxu0 0
    %1297 = vmatpush2.bf16.msra.mxu0 0
    %1298 = vmatprep.mubr.bf16.mxu0 0
    %1299 = vmatmul.mubr.bf16.gmra.mxu0 %v1264
    %v1300 = vpop.f32.mrf.mxu0
    %v1301 = vadd.f32 %v1234, %v1300
    %v1302 = vpop.f32.mrf.mxu0
    %v1303 = vpop.f32.mrf.mxu0
    %v1304 = vpop.f32.mrf.mxu0
    %1305 = vdwg.mxu0
    %s1306 = scalar_lea.vmem %s11, 64
    %v1307 = vld [vmem:[%s1306] sm:$0xf]
    %v1308 = vld [vmem:[%s1306 + $0x4] sm:$0xf]
    %v1309 = vld [vmem:[%s1306 + $0x8] sm:$0xf]
    %v1310 = vld [vmem:[%s1306 + $0xc] sm:$0xf]
    %v1311 = vld [vmem:[%s1306 + $0x10] sm:$0xf]
    %v1312 = vld [vmem:[%s1306 + $0x14] sm:$0xf]
    %v1313 = vld [vmem:[%s1306 + $0x18] sm:$0xf]
    %v1314 = vld [vmem:[%s1306 + $0x1c] sm:$0xf]
    %v1315 = vpack.c.bf16 %v1156, %v1156
    %v1324 = vunpack.c.l.b16 %v1307
    %v1325 = vunpack.c.l.b16 %v1308
    %v1326 = vunpack.c.l.b16 %v1309
    %v1327 = vunpack.c.l.b16 %v1310
    %v1328 = vunpack.c.l.b16 %v1311
    %v1329 = vunpack.c.l.b16 %v1312
    %v1330 = vunpack.c.l.b16 %v1313
    %v1331 = vunpack.c.l.b16 %v1314
    %v1332 = vpack.c.b16 %v1325, %v1324
    %v1333 = vpack.c.b16 %v1327, %v1326
    %v1334 = vpack.c.b16 %v1329, %v1328
    %v1335 = vpack.c.b16 %v1331, %v1330
    %v1341 = vsel %vm846, %v1315, 0
    %1343 = vmatprep.subr.bf16.mxu0 0
    %1344 = vmatpush1.bf16.msra.mxu0 0
    %1345 = vmatprep.subr.bf16.mxu0 0
    %1346 = vmatpush1.bf16.msra.mxu0 0
    %1347 = vmatprep.subr.bf16.mxu0 0
    %1348 = vmatpush1.bf16.msra.mxu0 0
    %1349 = vmatprep.subr.bf16.mxu0 0
    %1350 = vmatpush1.bf16.msra.mxu0 0
    %1351 = vmatprep.subr.bf16.mxu0 0
    %1352 = vmatpush1.bf16.msra.mxu0 %v1335
    %1353 = vmatprep.subr.bf16.mxu0 0
    %1354 = vmatpush1.bf16.msra.mxu0 %v1334
    %1355 = vmatprep.subr.bf16.mxu0 0
    %1356 = vmatpush1.bf16.msra.mxu0 %v1333
    %1357 = vmatprep.subr.bf16.mxu0 0
    %1358 = vmatpush1.bf16.msra.mxu0 %v1332
    %1359 = vmatprep.subr.bf16.mxu0 0
    %1360 = vmatpush2.bf16.msra.mxu0 0
    %1361 = vmatprep.subr.bf16.mxu0 0
    %1362 = vmatpush2.bf16.msra.mxu0 0
    %1363 = vmatprep.subr.bf16.mxu0 0
    %1364 = vmatpush2.bf16.msra.mxu0 0
    %1365 = vmatprep.subr.bf16.mxu0 0
    %1366 = vmatpush2.bf16.msra.mxu0 0
    %1367 = vmatprep.subr.bf16.mxu0 0
    %1368 = vmatpush2.bf16.msra.mxu0 0
    %1369 = vmatprep.subr.bf16.mxu0 0
    %1370 = vmatpush2.bf16.msra.mxu0 0
    %1371 = vmatprep.subr.bf16.mxu0 0
    %1372 = vmatpush2.bf16.msra.mxu0 0
    %1373 = vmatprep.subr.bf16.mxu0 0
    %1374 = vmatpush2.bf16.msra.mxu0 0
    %1375 = vmatprep.mubr.bf16.mxu0 0
    %1376 = vmatmul.mubr.bf16.gmra.mxu0 %v1341
    %v1377 = vpop.f32.mrf.mxu0
    %v1378 = vadd.f32 0.0, %v1377
    %v1379 = vpop.f32.mrf.mxu0
    %v1380 = vpop.f32.mrf.mxu0
    %v1381 = vpop.f32.mrf.mxu0
    %1382 = vdwg.mxu0
    %v1383 = vadd.f32 %v1301, %v1378
    %v1384 = vld [vmem:[%s12] sm:$0x1]
    %v1386 = vlaneseq
    %v1387 = vshrl.u32 %v1386, 7
    %v1388 = vsub.s32 0, %v1387
    %v1389 = vrot.slane %v1384, %v1388
    %v1391 = vmul.f32 %v1383, %v1389
    %v1392 = vld [vmem:[%s13] sm:$0x1]
    %v1394 = vlaneseq
    %v1395 = vshrl.u32 %v1394, 7
    %v1396 = vsub.s32 0, %v1395
    %v1397 = vrot.slane %v1392, %v1396
    %v1399 = vadd.f32 %v1391, %v1397
    %v1400 = vmax.f32 %v1399, 0.0
    %v1402 = vrot.slane %v1400, 7
    %v1404 = vsel %vm505, 0.0, %v1402
    %v1405 = vrot.slane %v1400, 1
    %v1407 = vsel %vm558, %v1405, 0.0
    %v1408 = vld [vmem:[%s14] sm:$0xf]
    %v1409 = vld [vmem:[%s14 + $0x4] sm:$0xf]
    %v1410 = vld [vmem:[%s14 + $0x8] sm:$0xf]
    %v1411 = vld [vmem:[%s14 + $0xc] sm:$0xf]
    %v1412 = vld [vmem:[%s14 + $0x10] sm:$0xf]
    %v1413 = vld [vmem:[%s14 + $0x14] sm:$0xf]
    %v1414 = vld [vmem:[%s14 + $0x18] sm:$0xf]
    %v1415 = vld [vmem:[%s14 + $0x1c] sm:$0xf]
    %v1416 = vld [vmem:[%s14 + $0x20] sm:$0xf]
    %v1417 = vld [vmem:[%s14 + $0x24] sm:$0xf]
    %v1418 = vld [vmem:[%s14 + $0x28] sm:$0xf]
    %v1419 = vld [vmem:[%s14 + $0x2c] sm:$0xf]
    %v1420 = vld [vmem:[%s14 + $0x30] sm:$0xf]
    %v1421 = vld [vmem:[%s14 + $0x34] sm:$0xf]
    %v1422 = vld [vmem:[%s14 + $0x38] sm:$0xf]
    %v1423 = vld [vmem:[%s14 + $0x3c] sm:$0xf]
    %v1424 = vpack.c.bf16 %v1404, %v1404
    %s1425 = scalar_lea.vmem %s14, 64
    %v1426 = vld [vmem:[%s1425] sm:$0xf]
    %v1427 = vld [vmem:[%s1425 + $0x4] sm:$0xf]
    %v1428 = vld [vmem:[%s1425 + $0x8] sm:$0xf]
    %v1429 = vld [vmem:[%s1425 + $0xc] sm:$0xf]
    %v1430 = vld [vmem:[%s1425 + $0x10] sm:$0xf]
    %v1431 = vld [vmem:[%s1425 + $0x14] sm:$0xf]
    %v1432 = vld [vmem:[%s1425 + $0x18] sm:$0xf]
    %v1433 = vld [vmem:[%s1425 + $0x1c] sm:$0xf]
    %v1434 = vld [vmem:[%s1425 + $0x20] sm:$0xf]
    %v1435 = vld [vmem:[%s1425 + $0x24] sm:$0xf]
    %v1436 = vld [vmem:[%s1425 + $0x28] sm:$0xf]
    %v1437 = vld [vmem:[%s1425 + $0x2c] sm:$0xf]
    %v1438 = vld [vmem:[%s1425 + $0x30] sm:$0xf]
    %v1439 = vld [vmem:[%s1425 + $0x34] sm:$0xf]
    %v1440 = vld [vmem:[%s1425 + $0x38] sm:$0xf]
    %v1441 = vld [vmem:[%s1425 + $0x3c] sm:$0xf]
    %v1442 = vpack.c.bf16 %v1400, %v1400
    %v1459 = vunpack.c.l.b16 %v1426
    %v1460 = vunpack.c.l.b16 %v1427
    %v1461 = vunpack.c.l.b16 %v1428
    %v1462 = vunpack.c.l.b16 %v1429
    %v1463 = vunpack.c.l.b16 %v1430
    %v1464 = vunpack.c.l.b16 %v1431
    %v1465 = vunpack.c.l.b16 %v1432
    %v1466 = vunpack.c.l.b16 %v1433
    %v1467 = vunpack.c.l.b16 %v1434
    %v1468 = vunpack.c.l.b16 %v1435
    %v1469 = vunpack.c.l.b16 %v1436
    %v1470 = vunpack.c.l.b16 %v1437
    %v1471 = vunpack.c.l.b16 %v1438
    %v1472 = vunpack.c.l.b16 %v1439
    %v1473 = vunpack.c.l.b16 %v1440
    %v1474 = vunpack.c.l.b16 %v1441
    %v1475 = vpack.c.b16 %v1460, %v1459
    %v1476 = vpack.c.b16 %v1462, %v1461
    %v1477 = vpack.c.b16 %v1464, %v1463
    %v1478 = vpack.c.b16 %v1466, %v1465
    %v1479 = vpack.c.b16 %v1468, %v1467
    %v1480 = vpack.c.b16 %v1470, %v1469
    %v1481 = vpack.c.b16 %v1472, %v1471
    %v1482 = vpack.c.b16 %v1474, %v1473
    %1491 = vmatprep.subr.bf16.mxu0 0
    %1492 = vmatpush1.bf16.msra.mxu0 %v1482
    %1493 = vmatprep.subr.bf16.mxu0 0
    %1494 = vmatpush1.bf16.msra.mxu0 %v1481
    %1495 = vmatprep.subr.bf16.mxu0 0
    %1496 = vmatpush1.bf16.msra.mxu0 %v1480
    %1497 = vmatprep.subr.bf16.mxu0 0
    %1498 = vmatpush1.bf16.msra.mxu0 %v1479
    %1499 = vmatprep.subr.bf16.mxu0 0
    %1500 = vmatpush1.bf16.msra.mxu0 %v1478
    %1501 = vmatprep.subr.bf16.mxu0 0
    %1502 = vmatpush1.bf16.msra.mxu0 %v1477
    %1503 = vmatprep.subr.bf16.mxu0 0
    %1504 = vmatpush1.bf16.msra.mxu0 %v1476
    %1505 = vmatprep.subr.bf16.mxu0 0
    %1506 = vmatpush1.bf16.msra.mxu0 %v1475
    %1507 = vmatprep.subr.bf16.mxu0 0
    %1508 = vmatpush2.bf16.msra.mxu0 0
    %1509 = vmatprep.subr.bf16.mxu0 0
    %1510 = vmatpush2.bf16.msra.mxu0 0
    %1511 = vmatprep.subr.bf16.mxu0 0
    %1512 = vmatpush2.bf16.msra.mxu0 0
    %1513 = vmatprep.subr.bf16.mxu0 0
    %1514 = vmatpush2.bf16.msra.mxu0 0
    %1515 = vmatprep.subr.bf16.mxu0 0
    %1516 = vmatpush2.bf16.msra.mxu0 0
    %1517 = vmatprep.subr.bf16.mxu0 0
    %1518 = vmatpush2.bf16.msra.mxu0 0
    %1519 = vmatprep.subr.bf16.mxu0 0
    %1520 = vmatpush2.bf16.msra.mxu0 0
    %1521 = vmatprep.subr.bf16.mxu0 0
    %1522 = vmatpush2.bf16.msra.mxu0 0
    %1523 = vmatprep.mubr.bf16.mxu0 0
    %1524 = vmatmul.mubr.bf16.gmra.mxu0 %v1442
    %v1525 = vpop.f32.mrf.mxu0
    %v1526 = vadd.f32 0.0, %v1525
    %v1527 = vpop.f32.mrf.mxu0
    %v1528 = vpop.f32.mrf.mxu0
    %v1529 = vpop.f32.mrf.mxu0
    %1530 = vdwg.mxu0
    %v1547 = vunpack.c.l.b16 %v1408
    %v1548 = vunpack.c.l.b16 %v1409
    %v1549 = vunpack.c.l.b16 %v1410
    %v1550 = vunpack.c.l.b16 %v1411
    %v1551 = vunpack.c.l.b16 %v1412
    %v1552 = vunpack.c.l.b16 %v1413
    %v1553 = vunpack.c.l.b16 %v1414
    %v1554 = vunpack.c.l.b16 %v1415
    %v1555 = vunpack.c.l.b16 %v1416
    %v1556 = vunpack.c.l.b16 %v1417
    %v1557 = vunpack.c.l.b16 %v1418
    %v1558 = vunpack.c.l.b16 %v1419
    %v1559 = vunpack.c.l.b16 %v1420
    %v1560 = vunpack.c.l.b16 %v1421
    %v1561 = vunpack.c.l.b16 %v1422
    %v1562 = vunpack.c.l.b16 %v1423
    %v1563 = vpack.c.b16 %v1548, %v1547
    %v1564 = vpack.c.b16 %v1550, %v1549
    %v1565 = vpack.c.b16 %v1552, %v1551
    %v1566 = vpack.c.b16 %v1554, %v1553
    %v1567 = vpack.c.b16 %v1556, %v1555
    %v1568 = vpack.c.b16 %v1558, %v1557
    %v1569 = vpack.c.b16 %v1560, %v1559
    %v1570 = vpack.c.b16 %v1562, %v1561
    %1579 = vmatprep.subr.bf16.mxu0 0
    %1580 = vmatpush1.bf16.msra.mxu0 %v1570
    %1581 = vmatprep.subr.bf16.mxu0 0
    %1582 = vmatpush1.bf16.msra.mxu0 %v1569
    %1583 = vmatprep.subr.bf16.mxu0 0
    %1584 = vmatpush1.bf16.msra.mxu0 %v1568
    %1585 = vmatprep.subr.bf16.mxu0 0
    %1586 = vmatpush1.bf16.msra.mxu0 %v1567
    %1587 = vmatprep.subr.bf16.mxu0 0
    %1588 = vmatpush1.bf16.msra.mxu0 %v1566
    %1589 = vmatprep.subr.bf16.mxu0 0
    %1590 = vmatpush1.bf16.msra.mxu0 %v1565
    %1591 = vmatprep.subr.bf16.mxu0 0
    %1592 = vmatpush1.bf16.msra.mxu0 %v1564
    %1593 = vmatprep.subr.bf16.mxu0 0
    %1594 = vmatpush1.bf16.msra.mxu0 %v1563
    %1595 = vmatprep.subr.bf16.mxu0 0
    %1596 = vmatpush2.bf16.msra.mxu0 0
    %1597 = vmatprep.subr.bf16.mxu0 0
    %1598 = vmatpush2.bf16.msra.mxu0 0
    %1599 = vmatprep.subr.bf16.mxu0 0
    %1600 = vmatpush2.bf16.msra.mxu0 0
    %1601 = vmatprep.subr.bf16.mxu0 0
    %1602 = vmatpush2.bf16.msra.mxu0 0
    %1603 = vmatprep.subr.bf16.mxu0 0
    %1604 = vmatpush2.bf16.msra.mxu0 0
    %1605 = vmatprep.subr.bf16.mxu0 0
    %1606 = vmatpush2.bf16.msra.mxu0 0
    %1607 = vmatprep.subr.bf16.mxu0 0
    %1608 = vmatpush2.bf16.msra.mxu0 0
    %1609 = vmatprep.subr.bf16.mxu0 0
    %1610 = vmatpush2.bf16.msra.mxu0 0
    %1611 = vmatprep.mubr.bf16.mxu0 0
    %1612 = vmatmul.mubr.bf16.gmra.mxu0 %v1424
    %v1613 = vpop.f32.mrf.mxu0
    %v1614 = vadd.f32 %v1526, %v1613
    %v1615 = vpop.f32.mrf.mxu0
    %v1616 = vpop.f32.mrf.mxu0
    %v1617 = vpop.f32.mrf.mxu0
    %1618 = vdwg.mxu0
    %s1619 = scalar_lea.vmem %s14, 128
    %v1620 = vld [vmem:[%s1619] sm:$0xf]
    %v1621 = vld [vmem:[%s1619 + $0x4] sm:$0xf]
    %v1622 = vld [vmem:[%s1619 + $0x8] sm:$0xf]
    %v1623 = vld [vmem:[%s1619 + $0xc] sm:$0xf]
    %v1624 = vld [vmem:[%s1619 + $0x10] sm:$0xf]
    %v1625 = vld [vmem:[%s1619 + $0x14] sm:$0xf]
    %v1626 = vld [vmem:[%s1619 + $0x18] sm:$0xf]
    %v1627 = vld [vmem:[%s1619 + $0x1c] sm:$0xf]
    %v1628 = vld [vmem:[%s1619 + $0x20] sm:$0xf]
    %v1629 = vld [vmem:[%s1619 + $0x24] sm:$0xf]
    %v1630 = vld [vmem:[%s1619 + $0x28] sm:$0xf]
    %v1631 = vld [vmem:[%s1619 + $0x2c] sm:$0xf]
    %v1632 = vld [vmem:[%s1619 + $0x30] sm:$0xf]
    %v1633 = vld [vmem:[%s1619 + $0x34] sm:$0xf]
    %v1634 = vld [vmem:[%s1619 + $0x38] sm:$0xf]
    %v1635 = vld [vmem:[%s1619 + $0x3c] sm:$0xf]
    %v1636 = vpack.c.bf16 %v1407, %v1407
    %v1653 = vunpack.c.l.b16 %v1620
    %v1654 = vunpack.c.l.b16 %v1621
    %v1655 = vunpack.c.l.b16 %v1622
    %v1656 = vunpack.c.l.b16 %v1623
    %v1657 = vunpack.c.l.b16 %v1624
    %v1658 = vunpack.c.l.b16 %v1625
    %v1659 = vunpack.c.l.b16 %v1626
    %v1660 = vunpack.c.l.b16 %v1627
    %v1661 = vunpack.c.l.b16 %v1628
    %v1662 = vunpack.c.l.b16 %v1629
    %v1663 = vunpack.c.l.b16 %v1630
    %v1664 = vunpack.c.l.b16 %v1631
    %v1665 = vunpack.c.l.b16 %v1632
    %v1666 = vunpack.c.l.b16 %v1633
    %v1667 = vunpack.c.l.b16 %v1634
    %v1668 = vunpack.c.l.b16 %v1635
    %v1669 = vpack.c.b16 %v1654, %v1653
    %v1670 = vpack.c.b16 %v1656, %v1655
    %v1671 = vpack.c.b16 %v1658, %v1657
    %v1672 = vpack.c.b16 %v1660, %v1659
    %v1673 = vpack.c.b16 %v1662, %v1661
    %v1674 = vpack.c.b16 %v1664, %v1663
    %v1675 = vpack.c.b16 %v1666, %v1665
    %v1676 = vpack.c.b16 %v1668, %v1667
    %1685 = vmatprep.subr.bf16.mxu0 0
    %1686 = vmatpush1.bf16.msra.mxu0 %v1676
    %1687 = vmatprep.subr.bf16.mxu0 0
    %1688 = vmatpush1.bf16.msra.mxu0 %v1675
    %1689 = vmatprep.subr.bf16.mxu0 0
    %1690 = vmatpush1.bf16.msra.mxu0 %v1674
    %1691 = vmatprep.subr.bf16.mxu0 0
    %1692 = vmatpush1.bf16.msra.mxu0 %v1673
    %1693 = vmatprep.subr.bf16.mxu0 0
    %1694 = vmatpush1.bf16.msra.mxu0 %v1672
    %1695 = vmatprep.subr.bf16.mxu0 0
    %1696 = vmatpush1.bf16.msra.mxu0 %v1671
    %1697 = vmatprep.subr.bf16.mxu0 0
    %1698 = vmatpush1.bf16.msra.mxu0 %v1670
    %1699 = vmatprep.subr.bf16.mxu0 0
    %1700 = vmatpush1.bf16.msra.mxu0 %v1669
    %1701 = vmatprep.subr.bf16.mxu0 0
    %1702 = vmatpush2.bf16.msra.mxu0 0
    %1703 = vmatprep.subr.bf16.mxu0 0
    %1704 = vmatpush2.bf16.msra.mxu0 0
    %1705 = vmatprep.subr.bf16.mxu0 0
    %1706 = vmatpush2.bf16.msra.mxu0 0
    %1707 = vmatprep.subr.bf16.mxu0 0
    %1708 = vmatpush2.bf16.msra.mxu0 0
    %1709 = vmatprep.subr.bf16.mxu0 0
    %1710 = vmatpush2.bf16.msra.mxu0 0
    %1711 = vmatprep.subr.bf16.mxu0 0
    %1712 = vmatpush2.bf16.msra.mxu0 0
    %1713 = vmatprep.subr.bf16.mxu0 0
    %1714 = vmatpush2.bf16.msra.mxu0 0
    %1715 = vmatprep.subr.bf16.mxu0 0
    %1716 = vmatpush2.bf16.msra.mxu0 0
    %1717 = vmatprep.mubr.bf16.mxu0 0
    %1718 = vmatmul.mubr.bf16.gmra.mxu0 %v1636
    %v1719 = vpop.f32.mrf.mxu0
    %v1720 = vadd.f32 0.0, %v1719
    %v1721 = vpop.f32.mrf.mxu0
    %v1722 = vpop.f32.mrf.mxu0
    %v1723 = vpop.f32.mrf.mxu0
    %1724 = vdwg.mxu0
    %v1725 = vadd.f32 %v1614, %v1720
    %v1726 = vld [vmem:[%s15] sm:$0x1]
    %v1728 = vlaneseq
    %v1729 = vshrl.u32 %v1728, 7
    %v1730 = vsub.s32 0, %v1729
    %v1731 = vrot.slane %v1726, %v1730
    %v1733 = vmul.f32 %v1725, %v1731
    %v1734 = vld [vmem:[%s16] sm:$0x1]
    %v1736 = vlaneseq
    %v1737 = vshrl.u32 %v1736, 7
    %v1738 = vsub.s32 0, %v1737
    %v1739 = vrot.slane %v1734, %v1738
    %v1741 = vadd.f32 %v1733, %v1739
    %v1742 = vmax.f32 %v1741, 0.0
    %v1743 = vadd.f32 %v1742, %v1145
    %1744 = vst [vmem:[#allocation3] sm:$0xff] %v1743
    %v1745 = vld [vmem:[#allocation3] ss:$2 sm:$0xf]
    %s1746 = scalar_lea.vmem [#allocation3], 1
    %v1747 = vld [vmem:[%s1746] ss:$2 sm:$0xf]
    %v1748 = vmax.f32 %v1745, %v1747
    %v1749 = vld [vmem:[%s17] sm:$0xff]
    %v1750 = vld [vmem:[%s17 + $0x8] sm:$0xff]
    %v1751 = vld [vmem:[%s17 + $0x10] sm:$0xff]
    %v1752 = vld [vmem:[%s17 + $0x18] sm:$0xff]
    %v1753 = vld [vmem:[%s17 + $0x20] sm:$0xff]
    %v1754 = vld [vmem:[%s17 + $0x28] sm:$0xff]
    %v1755 = vld [vmem:[%s17 + $0x30] sm:$0xff]
    %v1756 = vld [vmem:[%s17 + $0x38] sm:$0xff]
    %v1757 = vld [vmem:[%s17 + $0x40] sm:$0xff]
    %v1758 = vld [vmem:[%s17 + $0x48] sm:$0xff]
    %v1759 = vld [vmem:[%s17 + $0x50] sm:$0xff]
    %v1760 = vld [vmem:[%s17 + $0x58] sm:$0xff]
    %v1761 = vld [vmem:[%s17 + $0x60] sm:$0xff]
    %v1762 = vld [vmem:[%s17 + $0x68] sm:$0xff]
    %v1763 = vld [vmem:[%s17 + $0x70] sm:$0xff]
    %v1764 = vld [vmem:[%s17 + $0x78] sm:$0xff]
    %v1765 = vld [vmem:[%s17 + $0x80] sm:$0xff]
    %v1766 = vld [vmem:[%s17 + $0x88] sm:$0xff]
    %v1767 = vld [vmem:[%s17 + $0x90] sm:$0xff]
    %v1768 = vld [vmem:[%s17 + $0x98] sm:$0xff]
    %v1769 = vld [vmem:[%s17 + $0xa0] sm:$0xff]
    %v1770 = vld [vmem:[%s17 + $0xa8] sm:$0xff]
    %v1771 = vld [vmem:[%s17 + $0xb0] sm:$0xff]
    %v1772 = vld [vmem:[%s17 + $0xb8] sm:$0xff]
    %v1773 = vld [vmem:[%s17 + $0xc0] sm:$0xff]
    %v1774 = vld [vmem:[%s17 + $0xc8] sm:$0xff]
    %v1775 = vld [vmem:[%s17 + $0xd0] sm:$0xff]
    %v1776 = vld [vmem:[%s17 + $0xd8] sm:$0xff]
    %v1777 = vld [vmem:[%s17 + $0xe0] sm:$0xff]
    %v1778 = vld [vmem:[%s17 + $0xe8] sm:$0xff]
    %v1779 = vld [vmem:[%s17 + $0xf0] sm:$0xff]
    %v1780 = vld [vmem:[%s17 + $0xf8] sm:$0xff]
    %v1781 = vld [vmem:[%s17 + $0x100] sm:$0xff]
    %v1782 = vld [vmem:[%s17 + $0x108] sm:$0xff]
    %v1783 = vld [vmem:[%s17 + $0x110] sm:$0xff]
    %v1784 = vld [vmem:[%s17 + $0x118] sm:$0xff]
    %v1785 = vld [vmem:[%s17 + $0x120] sm:$0xff]
    %v1786 = vld [vmem:[%s17 + $0x128] sm:$0xff]
    %v1787 = vld [vmem:[%s17 + $0x130] sm:$0xff]
    %v1788 = vld [vmem:[%s17 + $0x138] sm:$0xff]
    %v1789 = vld [vmem:[%s17 + $0x140] sm:$0xff]
    %v1790 = vld [vmem:[%s17 + $0x148] sm:$0xff]
    %v1791 = vld [vmem:[%s17 + $0x150] sm:$0xff]
    %v1792 = vld [vmem:[%s17 + $0x158] sm:$0xff]
    %v1793 = vld [vmem:[%s17 + $0x160] sm:$0xff]
    %v1794 = vld [vmem:[%s17 + $0x168] sm:$0xff]
    %v1795 = vld [vmem:[%s17 + $0x170] sm:$0xff]
    %v1796 = vld [vmem:[%s17 + $0x178] sm:$0xff]
    %v1797 = vld [vmem:[%s17 + $0x180] sm:$0xff]
    %v1798 = vld [vmem:[%s17 + $0x188] sm:$0xff]
    %v1799 = vld [vmem:[%s17 + $0x190] sm:$0xff]
    %v1800 = vld [vmem:[%s17 + $0x198] sm:$0xff]
    %v1801 = vld [vmem:[%s17 + $0x1a0] sm:$0xff]
    %v1802 = vld [vmem:[%s17 + $0x1a8] sm:$0xff]
    %v1803 = vld [vmem:[%s17 + $0x1b0] sm:$0xff]
    %v1804 = vld [vmem:[%s17 + $0x1b8] sm:$0xff]
    %v1805 = vld [vmem:[%s17 + $0x1c0] sm:$0xff]
    %v1806 = vld [vmem:[%s17 + $0x1c8] sm:$0xff]
    %v1807 = vld [vmem:[%s17 + $0x1d0] sm:$0xff]
    %v1808 = vld [vmem:[%s17 + $0x1d8] sm:$0xff]
    %v1809 = vld [vmem:[%s17 + $0x1e0] sm:$0xff]
    %v1810 = vld [vmem:[%s17 + $0x1e8] sm:$0xff]
    %v1811 = vld [vmem:[%s17 + $0x1f0] sm:$0xff]
    %v1812 = vld [vmem:[%s17 + $0x1f8] sm:$0xff]
    %v1813 = vpack.c.bf16 %v1748, %v1748
    %v1878 = vunpack.c.l.b16 %v1749
    %v1879 = vunpack.c.h.b16 %v1749
    %v1880 = vunpack.c.l.b16 %v1750
    %v1881 = vunpack.c.h.b16 %v1750
    %v1882 = vunpack.c.l.b16 %v1751
    %v1883 = vunpack.c.h.b16 %v1751
    %v1884 = vunpack.c.l.b16 %v1752
    %v1885 = vunpack.c.h.b16 %v1752
    %v1886 = vunpack.c.l.b16 %v1753
    %v1887 = vunpack.c.h.b16 %v1753
    %v1888 = vunpack.c.l.b16 %v1754
    %v1889 = vunpack.c.h.b16 %v1754
    %v1890 = vunpack.c.l.b16 %v1755
    %v1891 = vunpack.c.h.b16 %v1755
    %v1892 = vunpack.c.l.b16 %v1756
    %v1893 = vunpack.c.h.b16 %v1756
    %v1894 = vunpack.c.l.b16 %v1757
    %v1895 = vunpack.c.h.b16 %v1757
    %v1896 = vunpack.c.l.b16 %v1758
    %v1897 = vunpack.c.h.b16 %v1758
    %v1898 = vunpack.c.l.b16 %v1759
    %v1899 = vunpack.c.h.b16 %v1759
    %v1900 = vunpack.c.l.b16 %v1760
    %v1901 = vunpack.c.h.b16 %v1760
    %v1902 = vunpack.c.l.b16 %v1761
    %v1903 = vunpack.c.h.b16 %v1761
    %v1904 = vunpack.c.l.b16 %v1762
    %v1905 = vunpack.c.h.b16 %v1762
    %v1906 = vunpack.c.l.b16 %v1763
    %v1907 = vunpack.c.h.b16 %v1763
    %v1908 = vunpack.c.l.b16 %v1764
    %v1909 = vunpack.c.h.b16 %v1764
    %v1910 = vunpack.c.l.b16 %v1765
    %v1911 = vunpack.c.h.b16 %v1765
    %v1912 = vunpack.c.l.b16 %v1766
    %v1913 = vunpack.c.h.b16 %v1766
    %v1914 = vunpack.c.l.b16 %v1767
    %v1915 = vunpack.c.h.b16 %v1767
    %v1916 = vunpack.c.l.b16 %v1768
    %v1917 = vunpack.c.h.b16 %v1768
    %v1918 = vunpack.c.l.b16 %v1769
    %v1919 = vunpack.c.h.b16 %v1769
    %v1920 = vunpack.c.l.b16 %v1770
    %v1921 = vunpack.c.h.b16 %v1770
    %v1922 = vunpack.c.l.b16 %v1771
    %v1923 = vunpack.c.h.b16 %v1771
    %v1924 = vunpack.c.l.b16 %v1772
    %v1925 = vunpack.c.h.b16 %v1772
    %v1926 = vunpack.c.l.b16 %v1773
    %v1927 = vunpack.c.h.b16 %v1773
    %v1928 = vunpack.c.l.b16 %v1774
    %v1929 = vunpack.c.h.b16 %v1774
    %v1930 = vunpack.c.l.b16 %v1775
    %v1931 = vunpack.c.h.b16 %v1775
    %v1932 = vunpack.c.l.b16 %v1776
    %v1933 = vunpack.c.h.b16 %v1776
    %v1934 = vunpack.c.l.b16 %v1777
    %v1935 = vunpack.c.h.b16 %v1777
    %v1936 = vunpack.c.l.b16 %v1778
    %v1937 = vunpack.c.h.b16 %v1778
    %v1938 = vunpack.c.l.b16 %v1779
    %v1939 = vunpack.c.h.b16 %v1779
    %v1940 = vunpack.c.l.b16 %v1780
    %v1941 = vunpack.c.h.b16 %v1780
    %v1942 = vunpack.c.l.b16 %v1781
    %v1943 = vunpack.c.h.b16 %v1781
    %v1944 = vunpack.c.l.b16 %v1782
    %v1945 = vunpack.c.h.b16 %v1782
    %v1946 = vunpack.c.l.b16 %v1783
    %v1947 = vunpack.c.h.b16 %v1783
    %v1948 = vunpack.c.l.b16 %v1784
    %v1949 = vunpack.c.h.b16 %v1784
    %v1950 = vunpack.c.l.b16 %v1785
    %v1951 = vunpack.c.h.b16 %v1785
    %v1952 = vunpack.c.l.b16 %v1786
    %v1953 = vunpack.c.h.b16 %v1786
    %v1954 = vunpack.c.l.b16 %v1787
    %v1955 = vunpack.c.h.b16 %v1787
    %v1956 = vunpack.c.l.b16 %v1788
    %v1957 = vunpack.c.h.b16 %v1788
    %v1958 = vunpack.c.l.b16 %v1789
    %v1959 = vunpack.c.h.b16 %v1789
    %v1960 = vunpack.c.l.b16 %v1790
    %v1961 = vunpack.c.h.b16 %v1790
    %v1962 = vunpack.c.l.b16 %v1791
    %v1963 = vunpack.c.h.b16 %v1791
    %v1964 = vunpack.c.l.b16 %v1792
    %v1965 = vunpack.c.h.b16 %v1792
    %v1966 = vunpack.c.l.b16 %v1793
    %v1967 = vunpack.c.h.b16 %v1793
    %v1968 = vunpack.c.l.b16 %v1794
    %v1969 = vunpack.c.h.b16 %v1794
    %v1970 = vunpack.c.l.b16 %v1795
    %v1971 = vunpack.c.h.b16 %v1795
    %v1972 = vunpack.c.l.b16 %v1796
    %v1973 = vunpack.c.h.b16 %v1796
    %v1974 = vunpack.c.l.b16 %v1797
    %v1975 = vunpack.c.h.b16 %v1797
    %v1976 = vunpack.c.l.b16 %v1798
    %v1977 = vunpack.c.h.b16 %v1798
    %v1978 = vunpack.c.l.b16 %v1799
    %v1979 = vunpack.c.h.b16 %v1799
    %v1980 = vunpack.c.l.b16 %v1800
    %v1981 = vunpack.c.h.b16 %v1800
    %v1982 = vunpack.c.l.b16 %v1801
    %v1983 = vunpack.c.h.b16 %v1801
    %v1984 = vunpack.c.l.b16 %v1802
    %v1985 = vunpack.c.h.b16 %v1802
    %v1986 = vunpack.c.l.b16 %v1803
    %v1987 = vunpack.c.h.b16 %v1803
    %v1988 = vunpack.c.l.b16 %v1804
    %v1989 = vunpack.c.h.b16 %v1804
    %v1990 = vunpack.c.l.b16 %v1805
    %v1991 = vunpack.c.h.b16 %v1805
    %v1992 = vunpack.c.l.b16 %v1806
    %v1993 = vunpack.c.h.b16 %v1806
    %v1994 = vunpack.c.l.b16 %v1807
    %v1995 = vunpack.c.h.b16 %v1807
    %v1996 = vunpack.c.l.b16 %v1808
    %v1997 = vunpack.c.h.b16 %v1808
    %v1998 = vunpack.c.l.b16 %v1809
    %v1999 = vunpack.c.h.b16 %v1809
    %v2000 = vunpack.c.l.b16 %v1810
    %v2001 = vunpack.c.h.b16 %v1810
    %v2002 = vunpack.c.l.b16 %v1811
    %v2003 = vunpack.c.h.b16 %v1811
    %v2004 = vunpack.c.l.b16 %v1812
    %v2005 = vunpack.c.h.b16 %v1812
    %v2006 = vpack.c.b16 %v1886, %v1878
    %v2007 = vpack.c.b16 %v1887, %v1879
    %v2008 = vpack.c.b16 %v1888, %v1880
    %v2009 = vpack.c.b16 %v1889, %v1881
    %v2010 = vpack.c.b16 %v1890, %v1882
    %v2011 = vpack.c.b16 %v1891, %v1883
    %v2012 = vpack.c.b16 %v1892, %v1884
    %v2013 = vpack.c.b16 %v1893, %v1885
    %v2014 = vpack.c.b16 %v1902, %v1894
    %v2015 = vpack.c.b16 %v1903, %v1895
    %v2016 = vpack.c.b16 %v1904, %v1896
    %v2017 = vpack.c.b16 %v1905, %v1897
    %v2018 = vpack.c.b16 %v1906, %v1898
    %v2019 = vpack.c.b16 %v1907, %v1899
    %v2020 = vpack.c.b16 %v1908, %v1900
    %v2021 = vpack.c.b16 %v1909, %v1901
    %v2022 = vpack.c.b16 %v1918, %v1910
    %v2023 = vpack.c.b16 %v1919, %v1911
    %v2024 = vpack.c.b16 %v1920, %v1912
    %v2025 = vpack.c.b16 %v1921, %v1913
    %v2026 = vpack.c.b16 %v1922, %v1914
    %v2027 = vpack.c.b16 %v1923, %v1915
    %v2028 = vpack.c.b16 %v1924, %v1916
    %v2029 = vpack.c.b16 %v1925, %v1917
    %v2030 = vpack.c.b16 %v1934, %v1926
    %v2031 = vpack.c.b16 %v1935, %v1927
    %v2032 = vpack.c.b16 %v1936, %v1928
    %v2033 = vpack.c.b16 %v1937, %v1929
    %v2034 = vpack.c.b16 %v1938, %v1930
    %v2035 = vpack.c.b16 %v1939, %v1931
    %v2036 = vpack.c.b16 %v1940, %v1932
    %v2037 = vpack.c.b16 %v1941, %v1933
    %v2038 = vpack.c.b16 %v1950, %v1942
    %v2039 = vpack.c.b16 %v1951, %v1943
    %v2040 = vpack.c.b16 %v1952, %v1944
    %v2041 = vpack.c.b16 %v1953, %v1945
    %v2042 = vpack.c.b16 %v1954, %v1946
    %v2043 = vpack.c.b16 %v1955, %v1947
    %v2044 = vpack.c.b16 %v1956, %v1948
    %v2045 = vpack.c.b16 %v1957, %v1949
    %v2046 = vpack.c.b16 %v1966, %v1958
    %v2047 = vpack.c.b16 %v1967, %v1959
    %v2048 = vpack.c.b16 %v1968, %v1960
    %v2049 = vpack.c.b16 %v1969, %v1961
    %v2050 = vpack.c.b16 %v1970, %v1962
    %v2051 = vpack.c.b16 %v1971, %v1963
    %v2052 = vpack.c.b16 %v1972, %v1964
    %v2053 = vpack.c.b16 %v1973, %v1965
    %v2054 = vpack.c.b16 %v1982, %v1974
    %v2055 = vpack.c.b16 %v1983, %v1975
    %v2056 = vpack.c.b16 %v1984, %v1976
    %v2057 = vpack.c.b16 %v1985, %v1977
    %v2058 = vpack.c.b16 %v1986, %v1978
    %v2059 = vpack.c.b16 %v1987, %v1979
    %v2060 = vpack.c.b16 %v1988, %v1980
    %v2061 = vpack.c.b16 %v1989, %v1981
    %v2062 = vpack.c.b16 %v1998, %v1990
    %v2063 = vpack.c.b16 %v1999, %v1991
    %v2064 = vpack.c.b16 %v2000, %v1992
    %v2065 = vpack.c.b16 %v2001, %v1993
    %v2066 = vpack.c.b16 %v2002, %v1994
    %v2067 = vpack.c.b16 %v2003, %v1995
    %v2068 = vpack.c.b16 %v2004, %v1996
    %v2069 = vpack.c.b16 %v2005, %v1997
    %2134 = vmatprep.subr.bf16.mxu0 %v2063
    %2135 = vmatpush1.bf16.msra.mxu0 %v2062
    %2136 = vmatprep.subr.bf16.mxu0 %v2055
    %2137 = vmatpush1.bf16.msra.mxu0 %v2054
    %2138 = vmatprep.subr.bf16.mxu0 %v2047
    %2139 = vmatpush1.bf16.msra.mxu0 %v2046
    %2140 = vmatprep.subr.bf16.mxu0 %v2039
    %2141 = vmatpush1.bf16.msra.mxu0 %v2038
    %2142 = vmatprep.subr.bf16.mxu0 %v2031
    %2143 = vmatpush1.bf16.msra.mxu0 %v2030
    %2144 = vmatprep.subr.bf16.mxu0 %v2023
    %2145 = vmatpush1.bf16.msra.mxu0 %v2022
    %2146 = vmatprep.subr.bf16.mxu0 %v2015
    %2147 = vmatpush1.bf16.msra.mxu0 %v2014
    %2148 = vmatprep.subr.bf16.mxu0 %v2007
    %2149 = vmatpush1.bf16.msra.mxu0 %v2006
    %2150 = vmatprep.subr.bf16.mxu0 0
    %2151 = vmatpush2.bf16.msra.mxu0 0
    %2152 = vmatprep.subr.bf16.mxu0 0
    %2153 = vmatpush2.bf16.msra.mxu0 0
    %2154 = vmatprep.subr.bf16.mxu0 0
    %2155 = vmatpush2.bf16.msra.mxu0 0
    %2156 = vmatprep.subr.bf16.mxu0 0
    %2157 = vmatpush2.bf16.msra.mxu0 0
    %2158 = vmatprep.subr.bf16.mxu0 0
    %2159 = vmatpush2.bf16.msra.mxu0 0
    %2160 = vmatprep.subr.bf16.mxu0 0
    %2161 = vmatpush2.bf16.msra.mxu0 0
    %2162 = vmatprep.subr.bf16.mxu0 0
    %2163 = vmatpush2.bf16.msra.mxu0 0
    %2164 = vmatprep.subr.bf16.mxu0 0
    %2165 = vmatpush2.bf16.msra.mxu0 0
    %2166 = vmatprep.mubr.bf16.mxu0 0
    %2167 = vmatmul.mubr.bf16.gmra.mxu0 %v1813
    %v2168 = vpop.f32.mrf.mxu0
    %v2169 = vadd.f32 0.0, %v2168
    %v2170 = vpop.f32.mrf.mxu0
    %v2171 = vadd.f32 0.0, %v2170
    %v2172 = vpop.f32.mrf.mxu0
    %v2173 = vpop.f32.mrf.mxu0
    %2174 = vdwg.mxu0
    %2175 = vmatprep.subr.bf16.mxu0 %v2065
    %2176 = vmatpush1.bf16.msra.mxu0 %v2064
    %2177 = vmatprep.subr.bf16.mxu0 %v2057
    %2178 = vmatpush1.bf16.msra.mxu0 %v2056
    %2179 = vmatprep.subr.bf16.mxu0 %v2049
    %2180 = vmatpush1.bf16.msra.mxu0 %v2048
    %2181 = vmatprep.subr.bf16.mxu0 %v2041
    %2182 = vmatpush1.bf16.msra.mxu0 %v2040
    %2183 = vmatprep.subr.bf16.mxu0 %v2033
    %2184 = vmatpush1.bf16.msra.mxu0 %v2032
    %2185 = vmatprep.subr.bf16.mxu0 %v2025
    %2186 = vmatpush1.bf16.msra.mxu0 %v2024
    %2187 = vmatprep.subr.bf16.mxu0 %v2017
    %2188 = vmatpush1.bf16.msra.mxu0 %v2016
    %2189 = vmatprep.subr.bf16.mxu0 %v2009
    %2190 = vmatpush1.bf16.msra.mxu0 %v2008
    %2191 = vmatprep.subr.bf16.mxu0 0
    %2192 = vmatpush2.bf16.msra.mxu0 0
    %2193 = vmatprep.subr.bf16.mxu0 0
    %2194 = vmatpush2.bf16.msra.mxu0 0
    %2195 = vmatprep.subr.bf16.mxu0 0
    %2196 = vmatpush2.bf16.msra.mxu0 0
    %2197 = vmatprep.subr.bf16.mxu0 0
    %2198 = vmatpush2.bf16.msra.mxu0 0
    %2199 = vmatprep.subr.bf16.mxu0 0
    %2200 = vmatpush2.bf16.msra.mxu0 0
    %2201 = vmatprep.subr.bf16.mxu0 0
    %2202 = vmatpush2.bf16.msra.mxu0 0
    %2203 = vmatprep.subr.bf16.mxu0 0
    %2204 = vmatpush2.bf16.msra.mxu0 0
    %2205 = vmatprep.subr.bf16.mxu0 0
    %2206 = vmatpush2.bf16.msra.mxu0 0
    %2207 = vmatprep.mubr.bf16.mxu0 0
    %2208 = vmatmul.mubr.bf16.gmra.mxu0 %v1813
    %v2209 = vpop.f32.mrf.mxu0
    %v2210 = vadd.f32 0.0, %v2209
    %v2211 = vpop.f32.mrf.mxu0
    %v2212 = vadd.f32 0.0, %v2211
    %v2213 = vpop.f32.mrf.mxu0
    %v2214 = vpop.f32.mrf.mxu0
    %2215 = vdwg.mxu0
    %2216 = vmatprep.subr.bf16.mxu0 %v2067
    %2217 = vmatpush1.bf16.msra.mxu0 %v2066
    %2218 = vmatprep.subr.bf16.mxu0 %v2059
    %2219 = vmatpush1.bf16.msra.mxu0 %v2058
    %2220 = vmatprep.subr.bf16.mxu0 %v2051
    %2221 = vmatpush1.bf16.msra.mxu0 %v2050
    %2222 = vmatprep.subr.bf16.mxu0 %v2043
    %2223 = vmatpush1.bf16.msra.mxu0 %v2042
    %2224 = vmatprep.subr.bf16.mxu0 %v2035
    %2225 = vmatpush1.bf16.msra.mxu0 %v2034
    %2226 = vmatprep.subr.bf16.mxu0 %v2027
    %2227 = vmatpush1.bf16.msra.mxu0 %v2026
    %2228 = vmatprep.subr.bf16.mxu0 %v2019
    %2229 = vmatpush1.bf16.msra.mxu0 %v2018
    %2230 = vmatprep.subr.bf16.mxu0 %v2011
    %2231 = vmatpush1.bf16.msra.mxu0 %v2010
    %2232 = vmatprep.subr.bf16.mxu0 0
    %2233 = vmatpush2.bf16.msra.mxu0 0
    %2234 = vmatprep.subr.bf16.mxu0 0
    %2235 = vmatpush2.bf16.msra.mxu0 0
    %2236 = vmatprep.subr.bf16.mxu0 0
    %2237 = vmatpush2.bf16.msra.mxu0 0
    %2238 = vmatprep.subr.bf16.mxu0 0
    %2239 = vmatpush2.bf16.msra.mxu0 0
    %2240 = vmatprep.subr.bf16.mxu0 0
    %2241 = vmatpush2.bf16.msra.mxu0 0
    %2242 = vmatprep.subr.bf16.mxu0 0
    %2243 = vmatpush2.bf16.msra.mxu0 0
    %2244 = vmatprep.subr.bf16.mxu0 0
    %2245 = vmatpush2.bf16.msra.mxu0 0
    %2246 = vmatprep.subr.bf16.mxu0 0
    %2247 = vmatpush2.bf16.msra.mxu0 0
    %2248 = vmatprep.mubr.bf16.mxu0 0
    %2249 = vmatmul.mubr.bf16.gmra.mxu0 %v1813
    %v2250 = vpop.f32.mrf.mxu0
    %v2251 = vadd.f32 0.0, %v2250
    %v2252 = vpop.f32.mrf.mxu0
    %v2253 = vadd.f32 0.0, %v2252
    %v2254 = vpop.f32.mrf.mxu0
    %v2255 = vpop.f32.mrf.mxu0
    %2256 = vdwg.mxu0
    %2257 = vmatprep.subr.bf16.mxu0 %v2069
    %2258 = vmatpush1.bf16.msra.mxu0 %v2068
    %2259 = vmatprep.subr.bf16.mxu0 %v2061
    %2260 = vmatpush1.bf16.msra.mxu0 %v2060
    %2261 = vmatprep.subr.bf16.mxu0 %v2053
    %2262 = vmatpush1.bf16.msra.mxu0 %v2052
    %2263 = vmatprep.subr.bf16.mxu0 %v2045
    %2264 = vmatpush1.bf16.msra.mxu0 %v2044
    %2265 = vmatprep.subr.bf16.mxu0 %v2037
    %2266 = vmatpush1.bf16.msra.mxu0 %v2036
    %2267 = vmatprep.subr.bf16.mxu0 %v2029
    %2268 = vmatpush1.bf16.msra.mxu0 %v2028
    %2269 = vmatprep.subr.bf16.mxu0 %v2021
    %2270 = vmatpush1.bf16.msra.mxu0 %v2020
    %2271 = vmatprep.subr.bf16.mxu0 %v2013
    %2272 = vmatpush1.bf16.msra.mxu0 %v2012
    %2273 = vmatprep.subr.bf16.mxu0 0
    %2274 = vmatpush2.bf16.msra.mxu0 0
    %2275 = vmatprep.subr.bf16.mxu0 0
    %2276 = vmatpush2.bf16.msra.mxu0 0
    %2277 = vmatprep.subr.bf16.mxu0 0
    %2278 = vmatpush2.bf16.msra.mxu0 0
    %2279 = vmatprep.subr.bf16.mxu0 0
    %2280 = vmatpush2.bf16.msra.mxu0 0
    %2281 = vmatprep.subr.bf16.mxu0 0
    %2282 = vmatpush2.bf16.msra.mxu0 0
    %2283 = vmatprep.subr.bf16.mxu0 0
    %2284 = vmatpush2.bf16.msra.mxu0 0
    %2285 = vmatprep.subr.bf16.mxu0 0
    %2286 = vmatpush2.bf16.msra.mxu0 0
    %2287 = vmatprep.subr.bf16.mxu0 0
    %2288 = vmatpush2.bf16.msra.mxu0 0
    %2289 = vmatprep.mubr.bf16.mxu0 0
    %2290 = vmatmul.mubr.bf16.gmra.mxu0 %v1813
    %v2291 = vpop.f32.mrf.mxu0
    %v2292 = vadd.f32 0.0, %v2291
    %v2293 = vpop.f32.mrf.mxu0
    %v2294 = vadd.f32 0.0, %v2293
    %v2295 = vpop.f32.mrf.mxu0
    %v2296 = vpop.f32.mrf.mxu0
    %2297 = vdwg.mxu0
    %s2298 = scalar_lea.vmem %s0, 16
    %v2299 = vld [vmem:[%s2298] sm:$0xff]
    %v2300 = vld [vmem:[%s2298 + $0x8] sm:$0xff]
    %v2301 = vld [vmem:[%s1] sm:$0xf]
    %v2302 = vld [vmem:[%s1 + $0x4] sm:$0xf]
    %v2303 = vld [vmem:[%s1 + $0x8] sm:$0xf]
    %v2304 = vld [vmem:[%s1 + $0xc] sm:$0xf]
    %v2305 = vld [vmem:[%s1 + $0x10] sm:$0x1]
    %v2306 = vpack.c.bf16 %v2300, %v2299
    %v2307 = vld [vmem:[%s2] sm:$0x1]
    %v2309 = vlaneseq
    %v2310 = vshrl.u32 %v2309, 7
    %v2311 = vsub.s32 0, %v2310
    %v2312 = vrot.slane %v2307, %v2311
    %v2319 = vunpack.c.l.b16 %v2301
    %v2320 = vunpack.c.l.b16 %v2302
    %v2321 = vunpack.c.l.b16 %v2303
    %v2322 = vunpack.c.l.b16 %v2304
    %v2323 = vunpack.c.l.b16 %v2305
    %v2324 = vpack.c.b16 %v2320, %v2319
    %v2325 = vpack.c.b16 %v2322, %v2321
    %v2326 = vpack.c.b16 %v2323, %v2323
    %v2330 = vsel %vm501, %v2306, 0
    %v2333 = vsel %vm505, %v2326, 0
    %2335 = vmatprep.subr.bf16.mxu0 0
    %2336 = vmatpush1.bf16.msra.mxu0 0
    %2337 = vmatprep.subr.bf16.mxu0 0
    %2338 = vmatpush1.bf16.msra.mxu0 0
    %2339 = vmatprep.subr.bf16.mxu0 0
    %2340 = vmatpush1.bf16.msra.mxu0 0
    %2341 = vmatprep.subr.bf16.mxu0 0
    %2342 = vmatpush1.bf16.msra.mxu0 0
    %2343 = vmatprep.subr.bf16.mxu0 0
    %2344 = vmatpush1.bf16.msra.mxu0 0
    %2345 = vmatprep.subr.bf16.mxu0 0
    %2346 = vmatpush1.bf16.msra.mxu0 %v2333
    %2347 = vmatprep.subr.bf16.mxu0 0
    %2348 = vmatpush1.bf16.msra.mxu0 %v2325
    %2349 = vmatprep.subr.bf16.mxu0 0
    %2350 = vmatpush1.bf16.msra.mxu0 %v2324
    %2351 = vmatprep.subr.bf16.mxu0 0
    %2352 = vmatpush2.bf16.msra.mxu0 0
    %2353 = vmatprep.subr.bf16.mxu0 0
    %2354 = vmatpush2.bf16.msra.mxu0 0
    %2355 = vmatprep.subr.bf16.mxu0 0
    %2356 = vmatpush2.bf16.msra.mxu0 0
    %2357 = vmatprep.subr.bf16.mxu0 0
    %2358 = vmatpush2.bf16.msra.mxu0 0
    %2359 = vmatprep.subr.bf16.mxu0 0
    %2360 = vmatpush2.bf16.msra.mxu0 0
    %2361 = vmatprep.subr.bf16.mxu0 0
    %2362 = vmatpush2.bf16.msra.mxu0 0
    %2363 = vmatprep.subr.bf16.mxu0 0
    %2364 = vmatpush2.bf16.msra.mxu0 0
    %2365 = vmatprep.subr.bf16.mxu0 0
    %2366 = vmatpush2.bf16.msra.mxu0 0
    %2367 = vmatprep.mubr.bf16.mxu0 0
    %2368 = vmatmul.mubr.bf16.gmra.mxu0 %v2330
    %v2369 = vpop.f32.mrf.mxu0
    %v2370 = vadd.f32 %v2312, %v2369
    %v2371 = vpop.f32.mrf.mxu0
    %v2372 = vpop.f32.mrf.mxu0
    %v2373 = vadd.f32 %v2312, %v2372
    %v2374 = vpop.f32.mrf.mxu0
    %2375 = vdwg.mxu0
    %v2378 = vrot.slane %v2299, 7
    %v2379 = vrot.slane %v2300, 7
    %v2380 = vsel %vm505, %v2378, %v2379
    %v2383 = vsel %vm505, 0.0, %v2378
    %v2384 = vrot.slane %v2299, 1
    %v2385 = vrot.slane %v2300, 1
    %v2386 = vsel %vm558, %v2384, %v2385
    %v2389 = vsel %vm558, %v2385, 0.0
    %v2390 = vld [vmem:[%s3] sm:$0xf]
    %v2391 = vld [vmem:[%s3 + $0x4] sm:$0xf]
    %v2392 = vld [vmem:[%s3 + $0x8] sm:$0xf]
    %v2393 = vld [vmem:[%s3 + $0xc] sm:$0xf]
    %v2394 = vld [vmem:[%s3 + $0x10] sm:$0x1]
    %v2395 = vpack.c.bf16 %v2380, %v2383
    %v2396 = vld [vmem:[%s571] sm:$0xf]
    %v2397 = vld [vmem:[%s571 + $0x4] sm:$0xf]
    %v2398 = vld [vmem:[%s571 + $0x8] sm:$0xf]
    %v2399 = vld [vmem:[%s571 + $0xc] sm:$0xf]
    %v2400 = vld [vmem:[%s571 + $0x10] sm:$0x1]
    %v2406 = vunpack.c.l.b16 %v2396
    %v2407 = vunpack.c.l.b16 %v2397
    %v2408 = vunpack.c.l.b16 %v2398
    %v2409 = vunpack.c.l.b16 %v2399
    %v2410 = vunpack.c.l.b16 %v2400
    %v2411 = vpack.c.b16 %v2407, %v2406
    %v2412 = vpack.c.b16 %v2409, %v2408
    %v2413 = vpack.c.b16 %v2410, %v2410
    %v2417 = vsel %vm505, %v2413, 0
    %2419 = vmatprep.subr.bf16.mxu0 0
    %2420 = vmatpush1.bf16.msra.mxu0 0
    %2421 = vmatprep.subr.bf16.mxu0 0
    %2422 = vmatpush1.bf16.msra.mxu0 0
    %2423 = vmatprep.subr.bf16.mxu0 0
    %2424 = vmatpush1.bf16.msra.mxu0 0
    %2425 = vmatprep.subr.bf16.mxu0 0
    %2426 = vmatpush1.bf16.msra.mxu0 0
    %2427 = vmatprep.subr.bf16.mxu0 0
    %2428 = vmatpush1.bf16.msra.mxu0 0
    %2429 = vmatprep.subr.bf16.mxu0 0
    %2430 = vmatpush1.bf16.msra.mxu0 %v2417
    %2431 = vmatprep.subr.bf16.mxu0 0
    %2432 = vmatpush1.bf16.msra.mxu0 %v2412
    %2433 = vmatprep.subr.bf16.mxu0 0
    %2434 = vmatpush1.bf16.msra.mxu0 %v2411
    %2435 = vmatprep.subr.bf16.mxu0 0
    %2436 = vmatpush2.bf16.msra.mxu0 0
    %2437 = vmatprep.subr.bf16.mxu0 0
    %2438 = vmatpush2.bf16.msra.mxu0 0
    %2439 = vmatprep.subr.bf16.mxu0 0
    %2440 = vmatpush2.bf16.msra.mxu0 0
    %2441 = vmatprep.subr.bf16.mxu0 0
    %2442 = vmatpush2.bf16.msra.mxu0 0
    %2443 = vmatprep.subr.bf16.mxu0 0
    %2444 = vmatpush2.bf16.msra.mxu0 0
    %2445 = vmatprep.subr.bf16.mxu0 0
    %2446 = vmatpush2.bf16.msra.mxu0 0
    %2447 = vmatprep.subr.bf16.mxu0 0
    %2448 = vmatpush2.bf16.msra.mxu0 0
    %2449 = vmatprep.subr.bf16.mxu0 0
    %2450 = vmatpush2.bf16.msra.mxu0 0
    %2451 = vmatprep.mubr.bf16.mxu0 0
    %2452 = vmatmul.mubr.bf16.gmra.mxu0 %v2330
    %v2453 = vpop.f32.mrf.mxu0
    %v2454 = vadd.f32 0.0, %v2453
    %v2455 = vpop.f32.mrf.mxu0
    %v2456 = vpop.f32.mrf.mxu0
    %v2457 = vadd.f32 0.0, %v2456
    %v2458 = vpop.f32.mrf.mxu0
    %2459 = vdwg.mxu0
    %v2465 = vunpack.c.l.b16 %v2390
    %v2466 = vunpack.c.l.b16 %v2391
    %v2467 = vunpack.c.l.b16 %v2392
    %v2468 = vunpack.c.l.b16 %v2393
    %v2469 = vunpack.c.l.b16 %v2394
    %v2470 = vpack.c.b16 %v2466, %v2465
    %v2471 = vpack.c.b16 %v2468, %v2467
    %v2472 = vpack.c.b16 %v2469, %v2469
    %v2476 = vsel %vm501, %v2395, 0
    %v2479 = vsel %vm505, %v2472, 0
    %2481 = vmatprep.subr.bf16.mxu0 0
    %2482 = vmatpush1.bf16.msra.mxu0 0
    %2483 = vmatprep.subr.bf16.mxu0 0
    %2484 = vmatpush1.bf16.msra.mxu0 0
    %2485 = vmatprep.subr.bf16.mxu0 0
    %2486 = vmatpush1.bf16.msra.mxu0 0
    %2487 = vmatprep.subr.bf16.mxu0 0
    %2488 = vmatpush1.bf16.msra.mxu0 0
    %2489 = vmatprep.subr.bf16.mxu0 0
    %2490 = vmatpush1.bf16.msra.mxu0 0
    %2491 = vmatprep.subr.bf16.mxu0 0
    %2492 = vmatpush1.bf16.msra.mxu0 %v2479
    %2493 = vmatprep.subr.bf16.mxu0 0
    %2494 = vmatpush1.bf16.msra.mxu0 %v2471
    %2495 = vmatprep.subr.bf16.mxu0 0
    %2496 = vmatpush1.bf16.msra.mxu0 %v2470
    %2497 = vmatprep.subr.bf16.mxu0 0
    %2498 = vmatpush2.bf16.msra.mxu0 0
    %2499 = vmatprep.subr.bf16.mxu0 0
    %2500 = vmatpush2.bf16.msra.mxu0 0
    %2501 = vmatprep.subr.bf16.mxu0 0
    %2502 = vmatpush2.bf16.msra.mxu0 0
    %2503 = vmatprep.subr.bf16.mxu0 0
    %2504 = vmatpush2.bf16.msra.mxu0 0
    %2505 = vmatprep.subr.bf16.mxu0 0
    %2506 = vmatpush2.bf16.msra.mxu0 0
    %2507 = vmatprep.subr.bf16.mxu0 0
    %2508 = vmatpush2.bf16.msra.mxu0 0
    %2509 = vmatprep.subr.bf16.mxu0 0
    %2510 = vmatpush2.bf16.msra.mxu0 0
    %2511 = vmatprep.subr.bf16.mxu0 0
    %2512 = vmatpush2.bf16.msra.mxu0 0
    %2513 = vmatprep.mubr.bf16.mxu0 0
    %2514 = vmatmul.mubr.bf16.gmra.mxu0 %v2476
    %v2515 = vpop.f32.mrf.mxu0
    %v2516 = vadd.f32 %v2454, %v2515
    %v2517 = vpop.f32.mrf.mxu0
    %v2518 = vpop.f32.mrf.mxu0
    %v2519 = vadd.f32 %v2457, %v2518
    %v2520 = vpop.f32.mrf.mxu0
    %2521 = vdwg.mxu0
    %v2522 = vld [vmem:[%s698] sm:$0xf]
    %v2523 = vld [vmem:[%s698 + $0x4] sm:$0xf]
    %v2524 = vld [vmem:[%s698 + $0x8] sm:$0xf]
    %v2525 = vld [vmem:[%s698 + $0xc] sm:$0xf]
    %v2526 = vld [vmem:[%s698 + $0x10] sm:$0x1]
    %v2527 = vpack.c.bf16 %v2389, %v2386
    %v2533 = vunpack.c.l.b16 %v2522
    %v2534 = vunpack.c.l.b16 %v2523
    %v2535 = vunpack.c.l.b16 %v2524
    %v2536 = vunpack.c.l.b16 %v2525
    %v2537 = vunpack.c.l.b16 %v2526
    %v2538 = vpack.c.b16 %v2534, %v2533
    %v2539 = vpack.c.b16 %v2536, %v2535
    %v2540 = vpack.c.b16 %v2537, %v2537
    %v2544 = vsel %vm501, %v2527, 0
    %v2547 = vsel %vm505, %v2540, 0
    %2549 = vmatprep.subr.bf16.mxu0 0
    %2550 = vmatpush1.bf16.msra.mxu0 0
    %2551 = vmatprep.subr.bf16.mxu0 0
    %2552 = vmatpush1.bf16.msra.mxu0 0
    %2553 = vmatprep.subr.bf16.mxu0 0
    %2554 = vmatpush1.bf16.msra.mxu0 0
    %2555 = vmatprep.subr.bf16.mxu0 0
    %2556 = vmatpush1.bf16.msra.mxu0 0
    %2557 = vmatprep.subr.bf16.mxu0 0
    %2558 = vmatpush1.bf16.msra.mxu0 0
    %2559 = vmatprep.subr.bf16.mxu0 0
    %2560 = vmatpush1.bf16.msra.mxu0 %v2547
    %2561 = vmatprep.subr.bf16.mxu0 0
    %2562 = vmatpush1.bf16.msra.mxu0 %v2539
    %2563 = vmatprep.subr.bf16.mxu0 0
    %2564 = vmatpush1.bf16.msra.mxu0 %v2538
    %2565 = vmatprep.subr.bf16.mxu0 0
    %2566 = vmatpush2.bf16.msra.mxu0 0
    %2567 = vmatprep.subr.bf16.mxu0 0
    %2568 = vmatpush2.bf16.msra.mxu0 0
    %2569 = vmatprep.subr.bf16.mxu0 0
    %2570 = vmatpush2.bf16.msra.mxu0 0
    %2571 = vmatprep.subr.bf16.mxu0 0
    %2572 = vmatpush2.bf16.msra.mxu0 0
    %2573 = vmatprep.subr.bf16.mxu0 0
    %2574 = vmatpush2.bf16.msra.mxu0 0
    %2575 = vmatprep.subr.bf16.mxu0 0
    %2576 = vmatpush2.bf16.msra.mxu0 0
    %2577 = vmatprep.subr.bf16.mxu0 0
    %2578 = vmatpush2.bf16.msra.mxu0 0
    %2579 = vmatprep.subr.bf16.mxu0 0
    %2580 = vmatpush2.bf16.msra.mxu0 0
    %2581 = vmatprep.mubr.bf16.mxu0 0
    %2582 = vmatmul.mubr.bf16.gmra.mxu0 %v2544
    %v2583 = vpop.f32.mrf.mxu0
    %v2584 = vadd.f32 0.0, %v2583
    %v2585 = vpop.f32.mrf.mxu0
    %v2586 = vpop.f32.mrf.mxu0
    %v2587 = vadd.f32 0.0, %v2586
    %v2588 = vpop.f32.mrf.mxu0
    %2589 = vdwg.mxu0
    %v2590 = vadd.f32 %v2516, %v2584
    %v2591 = vadd.f32 %v2519, %v2587
    %v2592 = vld [vmem:[%s4] sm:$0x1]
    %v2594 = vlaneseq
    %v2595 = vshrl.u32 %v2594, 7
    %v2596 = vsub.s32 0, %v2595
    %v2597 = vrot.slane %v2592, %v2596
    %v2599 = vmul.f32 %v2590, %v2597
    %v2600 = vmul.f32 %v2591, %v2597
    %v2601 = vld [vmem:[%s5] sm:$0x1]
    %v2603 = vlaneseq
    %v2604 = vshrl.u32 %v2603, 7
    %v2605 = vsub.s32 0, %v2604
    %v2606 = vrot.slane %v2601, %v2605
    %v2608 = vadd.f32 %v2599, %v2606
    %v2609 = vadd.f32 %v2600, %v2606
    %v2610 = vmax.f32 %v2608, 0.0
    %v2611 = vmax.f32 %v2609, 0.0
    %v2614 = vrot.slane %v2610, 7
    %v2615 = vrot.slane %v2611, 7
    %v2616 = vsel %vm505, %v2614, %v2615
    %v2619 = vsel %vm505, 0.0, %v2614
    %v2620 = vrot.slane %v2610, 1
    %v2621 = vrot.slane %v2611, 1
    %v2622 = vsel %vm558, %v2620, %v2621
    %v2625 = vsel %vm558, %v2621, 0.0
    %v2626 = vld [vmem:[%s6] sm:$0xf]
    %v2627 = vld [vmem:[%s6 + $0x4] sm:$0xf]
    %v2628 = vld [vmem:[%s6 + $0x8] sm:$0xf]
    %v2629 = vld [vmem:[%s6 + $0xc] sm:$0xf]
    %v2630 = vld [vmem:[%s6 + $0x10] sm:$0xf]
    %v2631 = vld [vmem:[%s6 + $0x14] sm:$0xf]
    %v2632 = vld [vmem:[%s6 + $0x18] sm:$0xf]
    %v2633 = vld [vmem:[%s6 + $0x1c] sm:$0xf]
    %v2634 = vpack.c.bf16 %v2616, %v2619
    %v2635 = vld [vmem:[%s812] sm:$0xf]
    %v2636 = vld [vmem:[%s812 + $0x4] sm:$0xf]
    %v2637 = vld [vmem:[%s812 + $0x8] sm:$0xf]
    %v2638 = vld [vmem:[%s812 + $0xc] sm:$0xf]
    %v2639 = vld [vmem:[%s812 + $0x10] sm:$0xf]
    %v2640 = vld [vmem:[%s812 + $0x14] sm:$0xf]
    %v2641 = vld [vmem:[%s812 + $0x18] sm:$0xf]
    %v2642 = vld [vmem:[%s812 + $0x1c] sm:$0xf]
    %v2643 = vpack.c.bf16 %v2611, %v2610
    %v2652 = vunpack.c.l.b16 %v2635
    %v2653 = vunpack.c.l.b16 %v2636
    %v2654 = vunpack.c.l.b16 %v2637
    %v2655 = vunpack.c.l.b16 %v2638
    %v2656 = vunpack.c.l.b16 %v2639
    %v2657 = vunpack.c.l.b16 %v2640
    %v2658 = vunpack.c.l.b16 %v2641
    %v2659 = vunpack.c.l.b16 %v2642
    %v2660 = vpack.c.b16 %v2653, %v2652
    %v2661 = vpack.c.b16 %v2655, %v2654
    %v2662 = vpack.c.b16 %v2657, %v2656
    %v2663 = vpack.c.b16 %v2659, %v2658
    %v2669 = vsel %vm846, %v2643, 0
    %2671 = vmatprep.subr.bf16.mxu0 0
    %2672 = vmatpush1.bf16.msra.mxu0 0
    %2673 = vmatprep.subr.bf16.mxu0 0
    %2674 = vmatpush1.bf16.msra.mxu0 0
    %2675 = vmatprep.subr.bf16.mxu0 0
    %2676 = vmatpush1.bf16.msra.mxu0 0
    %2677 = vmatprep.subr.bf16.mxu0 0
    %2678 = vmatpush1.bf16.msra.mxu0 0
    %2679 = vmatprep.subr.bf16.mxu0 0
    %2680 = vmatpush1.bf16.msra.mxu0 %v2663
    %2681 = vmatprep.subr.bf16.mxu0 0
    %2682 = vmatpush1.bf16.msra.mxu0 %v2662
    %2683 = vmatprep.subr.bf16.mxu0 0
    %2684 = vmatpush1.bf16.msra.mxu0 %v2661
    %2685 = vmatprep.subr.bf16.mxu0 0
    %2686 = vmatpush1.bf16.msra.mxu0 %v2660
    %2687 = vmatprep.subr.bf16.mxu0 0
    %2688 = vmatpush2.bf16.msra.mxu0 0
    %2689 = vmatprep.subr.bf16.mxu0 0
    %2690 = vmatpush2.bf16.msra.mxu0 0
    %2691 = vmatprep.subr.bf16.mxu0 0
    %2692 = vmatpush2.bf16.msra.mxu0 0
    %2693 = vmatprep.subr.bf16.mxu0 0
    %2694 = vmatpush2.bf16.msra.mxu0 0
    %2695 = vmatprep.subr.bf16.mxu0 0
    %2696 = vmatpush2.bf16.msra.mxu0 0
    %2697 = vmatprep.subr.bf16.mxu0 0
    %2698 = vmatpush2.bf16.msra.mxu0 0
    %2699 = vmatprep.subr.bf16.mxu0 0
    %2700 = vmatpush2.bf16.msra.mxu0 0
    %2701 = vmatprep.subr.bf16.mxu0 0
    %2702 = vmatpush2.bf16.msra.mxu0 0
    %2703 = vmatprep.mubr.bf16.mxu0 0
    %2704 = vmatmul.mubr.bf16.gmra.mxu0 %v2669
    %v2705 = vpop.f32.mrf.mxu0
    %v2706 = vadd.f32 0.0, %v2705
    %v2707 = vpop.f32.mrf.mxu0
    %v2708 = vpop.f32.mrf.mxu0
    %v2709 = vadd.f32 0.0, %v2708
    %v2710 = vpop.f32.mrf.mxu0
    %2711 = vdwg.mxu0
    %v2720 = vunpack.c.l.b16 %v2626
    %v2721 = vunpack.c.l.b16 %v2627
    %v2722 = vunpack.c.l.b16 %v2628
    %v2723 = vunpack.c.l.b16 %v2629
    %v2724 = vunpack.c.l.b16 %v2630
    %v2725 = vunpack.c.l.b16 %v2631
    %v2726 = vunpack.c.l.b16 %v2632
    %v2727 = vunpack.c.l.b16 %v2633
    %v2728 = vpack.c.b16 %v2721, %v2720
    %v2729 = vpack.c.b16 %v2723, %v2722
    %v2730 = vpack.c.b16 %v2725, %v2724
    %v2731 = vpack.c.b16 %v2727, %v2726
    %v2737 = vsel %vm846, %v2634, 0
    %2739 = vmatprep.subr.bf16.mxu0 0
    %2740 = vmatpush1.bf16.msra.mxu0 0
    %2741 = vmatprep.subr.bf16.mxu0 0
    %2742 = vmatpush1.bf16.msra.mxu0 0
    %2743 = vmatprep.subr.bf16.mxu0 0
    %2744 = vmatpush1.bf16.msra.mxu0 0
    %2745 = vmatprep.subr.bf16.mxu0 0
    %2746 = vmatpush1.bf16.msra.mxu0 0
    %2747 = vmatprep.subr.bf16.mxu0 0
    %2748 = vmatpush1.bf16.msra.mxu0 %v2731
    %2749 = vmatprep.subr.bf16.mxu0 0
    %2750 = vmatpush1.bf16.msra.mxu0 %v2730
    %2751 = vmatprep.subr.bf16.mxu0 0
    %2752 = vmatpush1.bf16.msra.mxu0 %v2729
    %2753 = vmatprep.subr.bf16.mxu0 0
    %2754 = vmatpush1.bf16.msra.mxu0 %v2728
    %2755 = vmatprep.subr.bf16.mxu0 0
    %2756 = vmatpush2.bf16.msra.mxu0 0
    %2757 = vmatprep.subr.bf16.mxu0 0
    %2758 = vmatpush2.bf16.msra.mxu0 0
    %2759 = vmatprep.subr.bf16.mxu0 0
    %2760 = vmatpush2.bf16.msra.mxu0 0
    %2761 = vmatprep.subr.bf16.mxu0 0
    %2762 = vmatpush2.bf16.msra.mxu0 0
    %2763 = vmatprep.subr.bf16.mxu0 0
    %2764 = vmatpush2.bf16.msra.mxu0 0
    %2765 = vmatprep.subr.bf16.mxu0 0
    %2766 = vmatpush2.bf16.msra.mxu0 0
    %2767 = vmatprep.subr.bf16.mxu0 0
    %2768 = vmatpush2.bf16.msra.mxu0 0
    %2769 = vmatprep.subr.bf16.mxu0 0
    %2770 = vmatpush2.bf16.msra.mxu0 0
    %2771 = vmatprep.mubr.bf16.mxu0 0
    %2772 = vmatmul.mubr.bf16.gmra.mxu0 %v2737
    %v2773 = vpop.f32.mrf.mxu0
    %v2774 = vadd.f32 %v2706, %v2773
    %v2775 = vpop.f32.mrf.mxu0
    %v2776 = vpop.f32.mrf.mxu0
    %v2777 = vadd.f32 %v2709, %v2776
    %v2778 = vpop.f32.mrf.mxu0
    %2779 = vdwg.mxu0
    %v2780 = vld [vmem:[%s959] sm:$0xf]
    %v2781 = vld [vmem:[%s959 + $0x4] sm:$0xf]
    %v2782 = vld [vmem:[%s959 + $0x8] sm:$0xf]
    %v2783 = vld [vmem:[%s959 + $0xc] sm:$0xf]
    %v2784 = vld [vmem:[%s959 + $0x10] sm:$0xf]
    %v2785 = vld [vmem:[%s959 + $0x14] sm:$0xf]
    %v2786 = vld [vmem:[%s959 + $0x18] sm:$0xf]
    %v2787 = vld [vmem:[%s959 + $0x1c] sm:$0xf]
    %v2788 = vpack.c.bf16 %v2625, %v2622
    %v2797 = vunpack.c.l.b16 %v2780
    %v2798 = vunpack.c.l.b16 %v2781
    %v2799 = vunpack.c.l.b16 %v2782
    %v2800 = vunpack.c.l.b16 %v2783
    %v2801 = vunpack.c.l.b16 %v2784
    %v2802 = vunpack.c.l.b16 %v2785
    %v2803 = vunpack.c.l.b16 %v2786
    %v2804 = vunpack.c.l.b16 %v2787
    %v2805 = vpack.c.b16 %v2798, %v2797
    %v2806 = vpack.c.b16 %v2800, %v2799
    %v2807 = vpack.c.b16 %v2802, %v2801
    %v2808 = vpack.c.b16 %v2804, %v2803
    %v2814 = vsel %vm846, %v2788, 0
    %2816 = vmatprep.subr.bf16.mxu0 0
    %2817 = vmatpush1.bf16.msra.mxu0 0
    %2818 = vmatprep.subr.bf16.mxu0 0
    %2819 = vmatpush1.bf16.msra.mxu0 0
    %2820 = vmatprep.subr.bf16.mxu0 0
    %2821 = vmatpush1.bf16.msra.mxu0 0
    %2822 = vmatprep.subr.bf16.mxu0 0
    %2823 = vmatpush1.bf16.msra.mxu0 0
    %2824 = vmatprep.subr.bf16.mxu0 0
    %2825 = vmatpush1.bf16.msra.mxu0 %v2808
    %2826 = vmatprep.subr.bf16.mxu0 0
    %2827 = vmatpush1.bf16.msra.mxu0 %v2807
    %2828 = vmatprep.subr.bf16.mxu0 0
    %2829 = vmatpush1.bf16.msra.mxu0 %v2806
    %2830 = vmatprep.subr.bf16.mxu0 0
    %2831 = vmatpush1.bf16.msra.mxu0 %v2805
    %2832 = vmatprep.subr.bf16.mxu0 0
    %2833 = vmatpush2.bf16.msra.mxu0 0
    %2834 = vmatprep.subr.bf16.mxu0 0
    %2835 = vmatpush2.bf16.msra.mxu0 0
    %2836 = vmatprep.subr.bf16.mxu0 0
    %2837 = vmatpush2.bf16.msra.mxu0 0
    %2838 = vmatprep.subr.bf16.mxu0 0
    %2839 = vmatpush2.bf16.msra.mxu0 0
    %2840 = vmatprep.subr.bf16.mxu0 0
    %2841 = vmatpush2.bf16.msra.mxu0 0
    %2842 = vmatprep.subr.bf16.mxu0 0
    %2843 = vmatpush2.bf16.msra.mxu0 0
    %2844 = vmatprep.subr.bf16.mxu0 0
    %2845 = vmatpush2.bf16.msra.mxu0 0
    %2846 = vmatprep.subr.bf16.mxu0 0
    %2847 = vmatpush2.bf16.msra.mxu0 0
    %2848 = vmatprep.mubr.bf16.mxu0 0
    %2849 = vmatmul.mubr.bf16.gmra.mxu0 %v2814
    %v2850 = vpop.f32.mrf.mxu0
    %v2851 = vadd.f32 0.0, %v2850
    %v2852 = vpop.f32.mrf.mxu0
    %v2853 = vpop.f32.mrf.mxu0
    %v2854 = vadd.f32 0.0, %v2853
    %v2855 = vpop.f32.mrf.mxu0
    %2856 = vdwg.mxu0
    %v2857 = vadd.f32 %v2774, %v2851
    %v2858 = vadd.f32 %v2777, %v2854
    %v2859 = vld [vmem:[%s7] sm:$0x1]
    %v2861 = vlaneseq
    %v2862 = vshrl.u32 %v2861, 7
    %v2863 = vsub.s32 0, %v2862
    %v2864 = vrot.slane %v2859, %v2863
    %v2866 = vmul.f32 %v2857, %v2864
    %v2867 = vmul.f32 %v2858, %v2864
    %v2868 = vld [vmem:[%s8] sm:$0x1]
    %v2870 = vlaneseq
    %v2871 = vshrl.u32 %v2870, 7
    %v2872 = vsub.s32 0, %v2871
    %v2873 = vrot.slane %v2868, %v2872
    %v2875 = vadd.f32 %v2866, %v2873
    %v2876 = vadd.f32 %v2867, %v2873
    %v2877 = vmax.f32 %v2875, 0.0
    %v2878 = vmax.f32 %v2876, 0.0
    %v2879 = vadd.f32 %v2877, %v2370
    %v2880 = vadd.f32 %v2878, %v2373
    %2881 = vst.msk [vmem:[#allocation2] sm:$0xff] %vm846, %v2879
    %2882 = vst.msk [vmem:[#allocation2 + $0x8] sm:$0xff] %vm846, %v2880
    %v2883 = vld [vmem:[#allocation2] ss:$2 sm:$0xff]
    %v2884 = vld [vmem:[%s1064] ss:$2 sm:$0xff]
    %v2885 = vmax.f32 %v2883, %v2884
    %v2886 = vld [vmem:[%s9] sm:$0xf]
    %v2887 = vld [vmem:[%s9 + $0x4] sm:$0xf]
    %v2888 = vld [vmem:[%s9 + $0x8] sm:$0xf]
    %v2889 = vld [vmem:[%s9 + $0xc] sm:$0xf]
    %v2890 = vld [vmem:[%s9 + $0x10] sm:$0xf]
    %v2891 = vld [vmem:[%s9 + $0x14] sm:$0xf]
    %v2892 = vld [vmem:[%s9 + $0x18] sm:$0xf]
    %v2893 = vld [vmem:[%s9 + $0x1c] sm:$0xf]
    %v2894 = vpack.c.bf16 %v2885, %v2885
    %v2895 = vld [vmem:[%s10] sm:$0x1]
    %v2897 = vlaneseq
    %v2898 = vshrl.u32 %v2897, 7
    %v2899 = vsub.s32 0, %v2898
    %v2900 = vrot.slane %v2895, %v2899
    %v2910 = vunpack.c.l.b16 %v2886
    %v2911 = vunpack.c.l.b16 %v2887
    %v2912 = vunpack.c.l.b16 %v2888
    %v2913 = vunpack.c.l.b16 %v2889
    %v2914 = vunpack.c.l.b16 %v2890
    %v2915 = vunpack.c.l.b16 %v2891
    %v2916 = vunpack.c.l.b16 %v2892
    %v2917 = vunpack.c.l.b16 %v2893
    %v2918 = vpack.c.b16 %v2911, %v2910
    %v2919 = vpack.c.b16 %v2913, %v2912
    %v2920 = vpack.c.b16 %v2915, %v2914
    %v2921 = vpack.c.b16 %v2917, %v2916
    %v2927 = vsel %vm846, %v2894, 0
    %2929 = vmatprep.subr.bf16.mxu0 0
    %2930 = vmatpush1.bf16.msra.mxu0 0
    %2931 = vmatprep.subr.bf16.mxu0 0
    %2932 = vmatpush1.bf16.msra.mxu0 0
    %2933 = vmatprep.subr.bf16.mxu0 0
    %2934 = vmatpush1.bf16.msra.mxu0 0
    %2935 = vmatprep.subr.bf16.mxu0 0
    %2936 = vmatpush1.bf16.msra.mxu0 0
    %2937 = vmatprep.subr.bf16.mxu0 0
    %2938 = vmatpush1.bf16.msra.mxu0 %v2921
    %2939 = vmatprep.subr.bf16.mxu0 0
    %2940 = vmatpush1.bf16.msra.mxu0 %v2920
    %2941 = vmatprep.subr.bf16.mxu0 0
    %2942 = vmatpush1.bf16.msra.mxu0 %v2919
    %2943 = vmatprep.subr.bf16.mxu0 0
    %2944 = vmatpush1.bf16.msra.mxu0 %v2918
    %2945 = vmatprep.subr.bf16.mxu0 0
    %2946 = vmatpush2.bf16.msra.mxu0 0
    %2947 = vmatprep.subr.bf16.mxu0 0
    %2948 = vmatpush2.bf16.msra.mxu0 0
    %2949 = vmatprep.subr.bf16.mxu0 0
    %2950 = vmatpush2.bf16.msra.mxu0 0
    %2951 = vmatprep.subr.bf16.mxu0 0
    %2952 = vmatpush2.bf16.msra.mxu0 0
    %2953 = vmatprep.subr.bf16.mxu0 0
    %2954 = vmatpush2.bf16.msra.mxu0 0
    %2955 = vmatprep.subr.bf16.mxu0 0
    %2956 = vmatpush2.bf16.msra.mxu0 0
    %2957 = vmatprep.subr.bf16.mxu0 0
    %2958 = vmatpush2.bf16.msra.mxu0 0
    %2959 = vmatprep.subr.bf16.mxu0 0
    %2960 = vmatpush2.bf16.msra.mxu0 0
    %2961 = vmatprep.mubr.bf16.mxu0 0
    %2962 = vmatmul.mubr.bf16.gmra.mxu0 %v2927
    %v2963 = vpop.f32.mrf.mxu0
    %v2964 = vadd.f32 %v2900, %v2963
    %v2965 = vpop.f32.mrf.mxu0
    %v2966 = vpop.f32.mrf.mxu0
    %v2967 = vpop.f32.mrf.mxu0
    %2968 = vdwg.mxu0
    %v2970 = vrot.slane %v2885, 7
    %v2972 = vsel %vm505, 0.0, %v2970
    %v2973 = vrot.slane %v2885, 1
    %v2975 = vsel %vm558, %v2973, 0.0
    %v2976 = vld [vmem:[%s11] sm:$0xf]
    %v2977 = vld [vmem:[%s11 + $0x4] sm:$0xf]
    %v2978 = vld [vmem:[%s11 + $0x8] sm:$0xf]
    %v2979 = vld [vmem:[%s11 + $0xc] sm:$0xf]
    %v2980 = vld [vmem:[%s11 + $0x10] sm:$0xf]
    %v2981 = vld [vmem:[%s11 + $0x14] sm:$0xf]
    %v2982 = vld [vmem:[%s11 + $0x18] sm:$0xf]
    %v2983 = vld [vmem:[%s11 + $0x1c] sm:$0xf]
    %v2984 = vpack.c.bf16 %v2972, %v2972
    %v2985 = vld [vmem:[%s1166] sm:$0xf]
    %v2986 = vld [vmem:[%s1166 + $0x4] sm:$0xf]
    %v2987 = vld [vmem:[%s1166 + $0x8] sm:$0xf]
    %v2988 = vld [vmem:[%s1166 + $0xc] sm:$0xf]
    %v2989 = vld [vmem:[%s1166 + $0x10] sm:$0xf]
    %v2990 = vld [vmem:[%s1166 + $0x14] sm:$0xf]
    %v2991 = vld [vmem:[%s1166 + $0x18] sm:$0xf]
    %v2992 = vld [vmem:[%s1166 + $0x1c] sm:$0xf]
    %v3001 = vunpack.c.l.b16 %v2985
    %v3002 = vunpack.c.l.b16 %v2986
    %v3003 = vunpack.c.l.b16 %v2987
    %v3004 = vunpack.c.l.b16 %v2988
    %v3005 = vunpack.c.l.b16 %v2989
    %v3006 = vunpack.c.l.b16 %v2990
    %v3007 = vunpack.c.l.b16 %v2991
    %v3008 = vunpack.c.l.b16 %v2992
    %v3009 = vpack.c.b16 %v3002, %v3001
    %v3010 = vpack.c.b16 %v3004, %v3003
    %v3011 = vpack.c.b16 %v3006, %v3005
    %v3012 = vpack.c.b16 %v3008, %v3007
    %3017 = vmatprep.subr.bf16.mxu0 0
    %3018 = vmatpush1.bf16.msra.mxu0 0
    %3019 = vmatprep.subr.bf16.mxu0 0
    %3020 = vmatpush1.bf16.msra.mxu0 0
    %3021 = vmatprep.subr.bf16.mxu0 0
    %3022 = vmatpush1.bf16.msra.mxu0 0
    %3023 = vmatprep.subr.bf16.mxu0 0
    %3024 = vmatpush1.bf16.msra.mxu0 0
    %3025 = vmatprep.subr.bf16.mxu0 0
    %3026 = vmatpush1.bf16.msra.mxu0 %v3012
    %3027 = vmatprep.subr.bf16.mxu0 0
    %3028 = vmatpush1.bf16.msra.mxu0 %v3011
    %3029 = vmatprep.subr.bf16.mxu0 0
    %3030 = vmatpush1.bf16.msra.mxu0 %v3010
    %3031 = vmatprep.subr.bf16.mxu0 0
    %3032 = vmatpush1.bf16.msra.mxu0 %v3009
    %3033 = vmatprep.subr.bf16.mxu0 0
    %3034 = vmatpush2.bf16.msra.mxu0 0
    %3035 = vmatprep.subr.bf16.mxu0 0
    %3036 = vmatpush2.bf16.msra.mxu0 0
    %3037 = vmatprep.subr.bf16.mxu0 0
    %3038 = vmatpush2.bf16.msra.mxu0 0
    %3039 = vmatprep.subr.bf16.mxu0 0
    %3040 = vmatpush2.bf16.msra.mxu0 0
    %3041 = vmatprep.subr.bf16.mxu0 0
    %3042 = vmatpush2.bf16.msra.mxu0 0
    %3043 = vmatprep.subr.bf16.mxu0 0
    %3044 = vmatpush2.bf16.msra.mxu0 0
    %3045 = vmatprep.subr.bf16.mxu0 0
    %3046 = vmatpush2.bf16.msra.mxu0 0
    %3047 = vmatprep.subr.bf16.mxu0 0
    %3048 = vmatpush2.bf16.msra.mxu0 0
    %3049 = vmatprep.mubr.bf16.mxu0 0
    %3050 = vmatmul.mubr.bf16.gmra.mxu0 %v2927
    %v3051 = vpop.f32.mrf.mxu0
    %v3052 = vadd.f32 0.0, %v3051
    %v3053 = vpop.f32.mrf.mxu0
    %v3054 = vpop.f32.mrf.mxu0
    %v3055 = vpop.f32.mrf.mxu0
    %3056 = vdwg.mxu0
    %v3065 = vunpack.c.l.b16 %v2976
    %v3066 = vunpack.c.l.b16 %v2977
    %v3067 = vunpack.c.l.b16 %v2978
    %v3068 = vunpack.c.l.b16 %v2979
    %v3069 = vunpack.c.l.b16 %v2980
    %v3070 = vunpack.c.l.b16 %v2981
    %v3071 = vunpack.c.l.b16 %v2982
    %v3072 = vunpack.c.l.b16 %v2983
    %v3073 = vpack.c.b16 %v3066, %v3065
    %v3074 = vpack.c.b16 %v3068, %v3067
    %v3075 = vpack.c.b16 %v3070, %v3069
    %v3076 = vpack.c.b16 %v3072, %v3071
    %v3082 = vsel %vm846, %v2984, 0
    %3084 = vmatprep.subr.bf16.mxu0 0
    %3085 = vmatpush1.bf16.msra.mxu0 0
    %3086 = vmatprep.subr.bf16.mxu0 0
    %3087 = vmatpush1.bf16.msra.mxu0 0
    %3088 = vmatprep.subr.bf16.mxu0 0
    %3089 = vmatpush1.bf16.msra.mxu0 0
    %3090 = vmatprep.subr.bf16.mxu0 0
    %3091 = vmatpush1.bf16.msra.mxu0 0
    %3092 = vmatprep.subr.bf16.mxu0 0
    %3093 = vmatpush1.bf16.msra.mxu0 %v3076
    %3094 = vmatprep.subr.bf16.mxu0 0
    %3095 = vmatpush1.bf16.msra.mxu0 %v3075
    %3096 = vmatprep.subr.bf16.mxu0 0
    %3097 = vmatpush1.bf16.msra.mxu0 %v3074
    %3098 = vmatprep.subr.bf16.mxu0 0
    %3099 = vmatpush1.bf16.msra.mxu0 %v3073
    %3100 = vmatprep.subr.bf16.mxu0 0
    %3101 = vmatpush2.bf16.msra.mxu0 0
    %3102 = vmatprep.subr.bf16.mxu0 0
    %3103 = vmatpush2.bf16.msra.mxu0 0
    %3104 = vmatprep.subr.bf16.mxu0 0
    %3105 = vmatpush2.bf16.msra.mxu0 0
    %3106 = vmatprep.subr.bf16.mxu0 0
    %3107 = vmatpush2.bf16.msra.mxu0 0
    %3108 = vmatprep.subr.bf16.mxu0 0
    %3109 = vmatpush2.bf16.msra.mxu0 0
    %3110 = vmatprep.subr.bf16.mxu0 0
    %3111 = vmatpush2.bf16.msra.mxu0 0
    %3112 = vmatprep.subr.bf16.mxu0 0
    %3113 = vmatpush2.bf16.msra.mxu0 0
    %3114 = vmatprep.subr.bf16.mxu0 0
    %3115 = vmatpush2.bf16.msra.mxu0 0
    %3116 = vmatprep.mubr.bf16.mxu0 0
    %3117 = vmatmul.mubr.bf16.gmra.mxu0 %v3082
    %v3118 = vpop.f32.mrf.mxu0
    %v3119 = vadd.f32 %v3052, %v3118
    %v3120 = vpop.f32.mrf.mxu0
    %v3121 = vpop.f32.mrf.mxu0
    %v3122 = vpop.f32.mrf.mxu0
    %3123 = vdwg.mxu0
    %v3124 = vld [vmem:[%s1306] sm:$0xf]
    %v3125 = vld [vmem:[%s1306 + $0x4] sm:$0xf]
    %v3126 = vld [vmem:[%s1306 + $0x8] sm:$0xf]
    %v3127 = vld [vmem:[%s1306 + $0xc] sm:$0xf]
    %v3128 = vld [vmem:[%s1306 + $0x10] sm:$0xf]
    %v3129 = vld [vmem:[%s1306 + $0x14] sm:$0xf]
    %v3130 = vld [vmem:[%s1306 + $0x18] sm:$0xf]
    %v3131 = vld [vmem:[%s1306 + $0x1c] sm:$0xf]
    %v3132 = vpack.c.bf16 %v2975, %v2975
    %v3141 = vunpack.c.l.b16 %v3124
    %v3142 = vunpack.c.l.b16 %v3125
    %v3143 = vunpack.c.l.b16 %v3126
    %v3144 = vunpack.c.l.b16 %v3127
    %v3145 = vunpack.c.l.b16 %v3128
    %v3146 = vunpack.c.l.b16 %v3129
    %v3147 = vunpack.c.l.b16 %v3130
    %v3148 = vunpack.c.l.b16 %v3131
    %v3149 = vpack.c.b16 %v3142, %v3141
    %v3150 = vpack.c.b16 %v3144, %v3143
    %v3151 = vpack.c.b16 %v3146, %v3145
    %v3152 = vpack.c.b16 %v3148, %v3147
    %v3158 = vsel %vm846, %v3132, 0
    %3160 = vmatprep.subr.bf16.mxu0 0
    %3161 = vmatpush1.bf16.msra.mxu0 0
    %3162 = vmatprep.subr.bf16.mxu0 0
    %3163 = vmatpush1.bf16.msra.mxu0 0
    %3164 = vmatprep.subr.bf16.mxu0 0
    %3165 = vmatpush1.bf16.msra.mxu0 0
    %3166 = vmatprep.subr.bf16.mxu0 0
    %3167 = vmatpush1.bf16.msra.mxu0 0
    %3168 = vmatprep.subr.bf16.mxu0 0
    %3169 = vmatpush1.bf16.msra.mxu0 %v3152
    %3170 = vmatprep.subr.bf16.mxu0 0
    %3171 = vmatpush1.bf16.msra.mxu0 %v3151
    %3172 = vmatprep.subr.bf16.mxu0 0
    %3173 = vmatpush1.bf16.msra.mxu0 %v3150
    %3174 = vmatprep.subr.bf16.mxu0 0
    %3175 = vmatpush1.bf16.msra.mxu0 %v3149
    %3176 = vmatprep.subr.bf16.mxu0 0
    %3177 = vmatpush2.bf16.msra.mxu0 0
    %3178 = vmatprep.subr.bf16.mxu0 0
    %3179 = vmatpush2.bf16.msra.mxu0 0
    %3180 = vmatprep.subr.bf16.mxu0 0
    %3181 = vmatpush2.bf16.msra.mxu0 0
    %3182 = vmatprep.subr.bf16.mxu0 0
    %3183 = vmatpush2.bf16.msra.mxu0 0
    %3184 = vmatprep.subr.bf16.mxu0 0
    %3185 = vmatpush2.bf16.msra.mxu0 0
    %3186 = vmatprep.subr.bf16.mxu0 0
    %3187 = vmatpush2.bf16.msra.mxu0 0
    %3188 = vmatprep.subr.bf16.mxu0 0
    %3189 = vmatpush2.bf16.msra.mxu0 0
    %3190 = vmatprep.subr.bf16.mxu0 0
    %3191 = vmatpush2.bf16.msra.mxu0 0
    %3192 = vmatprep.mubr.bf16.mxu0 0
    %3193 = vmatmul.mubr.bf16.gmra.mxu0 %v3158
    %v3194 = vpop.f32.mrf.mxu0
    %v3195 = vadd.f32 0.0, %v3194
    %v3196 = vpop.f32.mrf.mxu0
    %v3197 = vpop.f32.mrf.mxu0
    %v3198 = vpop.f32.mrf.mxu0
    %3199 = vdwg.mxu0
    %v3200 = vadd.f32 %v3119, %v3195
    %v3201 = vld [vmem:[%s12] sm:$0x1]
    %v3203 = vlaneseq
    %v3204 = vshrl.u32 %v3203, 7
    %v3205 = vsub.s32 0, %v3204
    %v3206 = vrot.slane %v3201, %v3205
    %v3208 = vmul.f32 %v3200, %v3206
    %v3209 = vld [vmem:[%s13] sm:$0x1]
    %v3211 = vlaneseq
    %v3212 = vshrl.u32 %v3211, 7
    %v3213 = vsub.s32 0, %v3212
    %v3214 = vrot.slane %v3209, %v3213
    %v3216 = vadd.f32 %v3208, %v3214
    %v3217 = vmax.f32 %v3216, 0.0
    %v3219 = vrot.slane %v3217, 7
    %v3221 = vsel %vm505, 0.0, %v3219
    %v3222 = vrot.slane %v3217, 1
    %v3224 = vsel %vm558, %v3222, 0.0
    %v3225 = vld [vmem:[%s14] sm:$0xf]
    %v3226 = vld [vmem:[%s14 + $0x4] sm:$0xf]
    %v3227 = vld [vmem:[%s14 + $0x8] sm:$0xf]
    %v3228 = vld [vmem:[%s14 + $0xc] sm:$0xf]
    %v3229 = vld [vmem:[%s14 + $0x10] sm:$0xf]
    %v3230 = vld [vmem:[%s14 + $0x14] sm:$0xf]
    %v3231 = vld [vmem:[%s14 + $0x18] sm:$0xf]
    %v3232 = vld [vmem:[%s14 + $0x1c] sm:$0xf]
    %v3233 = vld [vmem:[%s14 + $0x20] sm:$0xf]
    %v3234 = vld [vmem:[%s14 + $0x24] sm:$0xf]
    %v3235 = vld [vmem:[%s14 + $0x28] sm:$0xf]
    %v3236 = vld [vmem:[%s14 + $0x2c] sm:$0xf]
    %v3237 = vld [vmem:[%s14 + $0x30] sm:$0xf]
    %v3238 = vld [vmem:[%s14 + $0x34] sm:$0xf]
    %v3239 = vld [vmem:[%s14 + $0x38] sm:$0xf]
    %v3240 = vld [vmem:[%s14 + $0x3c] sm:$0xf]
    %v3241 = vpack.c.bf16 %v3221, %v3221
    %v3242 = vld [vmem:[%s1425] sm:$0xf]
    %v3243 = vld [vmem:[%s1425 + $0x4] sm:$0xf]
    %v3244 = vld [vmem:[%s1425 + $0x8] sm:$0xf]
    %v3245 = vld [vmem:[%s1425 + $0xc] sm:$0xf]
    %v3246 = vld [vmem:[%s1425 + $0x10] sm:$0xf]
    %v3247 = vld [vmem:[%s1425 + $0x14] sm:$0xf]
    %v3248 = vld [vmem:[%s1425 + $0x18] sm:$0xf]
    %v3249 = vld [vmem:[%s1425 + $0x1c] sm:$0xf]
    %v3250 = vld [vmem:[%s1425 + $0x20] sm:$0xf]
    %v3251 = vld [vmem:[%s1425 + $0x24] sm:$0xf]
    %v3252 = vld [vmem:[%s1425 + $0x28] sm:$0xf]
    %v3253 = vld [vmem:[%s1425 + $0x2c] sm:$0xf]
    %v3254 = vld [vmem:[%s1425 + $0x30] sm:$0xf]
    %v3255 = vld [vmem:[%s1425 + $0x34] sm:$0xf]
    %v3256 = vld [vmem:[%s1425 + $0x38] sm:$0xf]
    %v3257 = vld [vmem:[%s1425 + $0x3c] sm:$0xf]
    %v3258 = vpack.c.bf16 %v3217, %v3217
    %v3275 = vunpack.c.l.b16 %v3242
    %v3276 = vunpack.c.l.b16 %v3243
    %v3277 = vunpack.c.l.b16 %v3244
    %v3278 = vunpack.c.l.b16 %v3245
    %v3279 = vunpack.c.l.b16 %v3246
    %v3280 = vunpack.c.l.b16 %v3247
    %v3281 = vunpack.c.l.b16 %v3248
    %v3282 = vunpack.c.l.b16 %v3249
    %v3283 = vunpack.c.l.b16 %v3250
    %v3284 = vunpack.c.l.b16 %v3251
    %v3285 = vunpack.c.l.b16 %v3252
    %v3286 = vunpack.c.l.b16 %v3253
    %v3287 = vunpack.c.l.b16 %v3254
    %v3288 = vunpack.c.l.b16 %v3255
    %v3289 = vunpack.c.l.b16 %v3256
    %v3290 = vunpack.c.l.b16 %v3257
    %v3291 = vpack.c.b16 %v3276, %v3275
    %v3292 = vpack.c.b16 %v3278, %v3277
    %v3293 = vpack.c.b16 %v3280, %v3279
    %v3294 = vpack.c.b16 %v3282, %v3281
    %v3295 = vpack.c.b16 %v3284, %v3283
    %v3296 = vpack.c.b16 %v3286, %v3285
    %v3297 = vpack.c.b16 %v3288, %v3287
    %v3298 = vpack.c.b16 %v3290, %v3289
    %3307 = vmatprep.subr.bf16.mxu0 0
    %3308 = vmatpush1.bf16.msra.mxu0 %v3298
    %3309 = vmatprep.subr.bf16.mxu0 0
    %3310 = vmatpush1.bf16.msra.mxu0 %v3297
    %3311 = vmatprep.subr.bf16.mxu0 0
    %3312 = vmatpush1.bf16.msra.mxu0 %v3296
    %3313 = vmatprep.subr.bf16.mxu0 0
    %3314 = vmatpush1.bf16.msra.mxu0 %v3295
    %3315 = vmatprep.subr.bf16.mxu0 0
    %3316 = vmatpush1.bf16.msra.mxu0 %v3294
    %3317 = vmatprep.subr.bf16.mxu0 0
    %3318 = vmatpush1.bf16.msra.mxu0 %v3293
    %3319 = vmatprep.subr.bf16.mxu0 0
    %3320 = vmatpush1.bf16.msra.mxu0 %v3292
    %3321 = vmatprep.subr.bf16.mxu0 0
    %3322 = vmatpush1.bf16.msra.mxu0 %v3291
    %3323 = vmatprep.subr.bf16.mxu0 0
    %3324 = vmatpush2.bf16.msra.mxu0 0
    %3325 = vmatprep.subr.bf16.mxu0 0
    %3326 = vmatpush2.bf16.msra.mxu0 0
    %3327 = vmatprep.subr.bf16.mxu0 0
    %3328 = vmatpush2.bf16.msra.mxu0 0
    %3329 = vmatprep.subr.bf16.mxu0 0
    %3330 = vmatpush2.bf16.msra.mxu0 0
    %3331 = vmatprep.subr.bf16.mxu0 0
    %3332 = vmatpush2.bf16.msra.mxu0 0
    %3333 = vmatprep.subr.bf16.mxu0 0
    %3334 = vmatpush2.bf16.msra.mxu0 0
    %3335 = vmatprep.subr.bf16.mxu0 0
    %3336 = vmatpush2.bf16.msra.mxu0 0
    %3337 = vmatprep.subr.bf16.mxu0 0
    %3338 = vmatpush2.bf16.msra.mxu0 0
    %3339 = vmatprep.mubr.bf16.mxu0 0
    %3340 = vmatmul.mubr.bf16.gmra.mxu0 %v3258
    %v3341 = vpop.f32.mrf.mxu0
    %v3342 = vadd.f32 0.0, %v3341
    %v3343 = vpop.f32.mrf.mxu0
    %v3344 = vpop.f32.mrf.mxu0
    %v3345 = vpop.f32.mrf.mxu0
    %3346 = vdwg.mxu0
    %v3363 = vunpack.c.l.b16 %v3225
    %v3364 = vunpack.c.l.b16 %v3226
    %v3365 = vunpack.c.l.b16 %v3227
    %v3366 = vunpack.c.l.b16 %v3228
    %v3367 = vunpack.c.l.b16 %v3229
    %v3368 = vunpack.c.l.b16 %v3230
    %v3369 = vunpack.c.l.b16 %v3231
    %v3370 = vunpack.c.l.b16 %v3232
    %v3371 = vunpack.c.l.b16 %v3233
    %v3372 = vunpack.c.l.b16 %v3234
    %v3373 = vunpack.c.l.b16 %v3235
    %v3374 = vunpack.c.l.b16 %v3236
    %v3375 = vunpack.c.l.b16 %v3237
    %v3376 = vunpack.c.l.b16 %v3238
    %v3377 = vunpack.c.l.b16 %v3239
    %v3378 = vunpack.c.l.b16 %v3240
    %v3379 = vpack.c.b16 %v3364, %v3363
    %v3380 = vpack.c.b16 %v3366, %v3365
    %v3381 = vpack.c.b16 %v3368, %v3367
    %v3382 = vpack.c.b16 %v3370, %v3369
    %v3383 = vpack.c.b16 %v3372, %v3371
    %v3384 = vpack.c.b16 %v3374, %v3373
    %v3385 = vpack.c.b16 %v3376, %v3375
    %v3386 = vpack.c.b16 %v3378, %v3377
    %3395 = vmatprep.subr.bf16.mxu0 0
    %3396 = vmatpush1.bf16.msra.mxu0 %v3386
    %3397 = vmatprep.subr.bf16.mxu0 0
    %3398 = vmatpush1.bf16.msra.mxu0 %v3385
    %3399 = vmatprep.subr.bf16.mxu0 0
    %3400 = vmatpush1.bf16.msra.mxu0 %v3384
    %3401 = vmatprep.subr.bf16.mxu0 0
    %3402 = vmatpush1.bf16.msra.mxu0 %v3383
    %3403 = vmatprep.subr.bf16.mxu0 0
    %3404 = vmatpush1.bf16.msra.mxu0 %v3382
    %3405 = vmatprep.subr.bf16.mxu0 0
    %3406 = vmatpush1.bf16.msra.mxu0 %v3381
    %3407 = vmatprep.subr.bf16.mxu0 0
    %3408 = vmatpush1.bf16.msra.mxu0 %v3380
    %3409 = vmatprep.subr.bf16.mxu0 0
    %3410 = vmatpush1.bf16.msra.mxu0 %v3379
    %3411 = vmatprep.subr.bf16.mxu0 0
    %3412 = vmatpush2.bf16.msra.mxu0 0
    %3413 = vmatprep.subr.bf16.mxu0 0
    %3414 = vmatpush2.bf16.msra.mxu0 0
    %3415 = vmatprep.subr.bf16.mxu0 0
    %3416 = vmatpush2.bf16.msra.mxu0 0
    %3417 = vmatprep.subr.bf16.mxu0 0
    %3418 = vmatpush2.bf16.msra.mxu0 0
    %3419 = vmatprep.subr.bf16.mxu0 0
    %3420 = vmatpush2.bf16.msra.mxu0 0
    %3421 = vmatprep.subr.bf16.mxu0 0
    %3422 = vmatpush2.bf16.msra.mxu0 0
    %3423 = vmatprep.subr.bf16.mxu0 0
    %3424 = vmatpush2.bf16.msra.mxu0 0
    %3425 = vmatprep.subr.bf16.mxu0 0
    %3426 = vmatpush2.bf16.msra.mxu0 0
    %3427 = vmatprep.mubr.bf16.mxu0 0
    %3428 = vmatmul.mubr.bf16.gmra.mxu0 %v3241
    %v3429 = vpop.f32.mrf.mxu0
    %v3430 = vadd.f32 %v3342, %v3429
    %v3431 = vpop.f32.mrf.mxu0
    %v3432 = vpop.f32.mrf.mxu0
    %v3433 = vpop.f32.mrf.mxu0
    %3434 = vdwg.mxu0
    %v3435 = vld [vmem:[%s1619] sm:$0xf]
    %v3436 = vld [vmem:[%s1619 + $0x4] sm:$0xf]
    %v3437 = vld [vmem:[%s1619 + $0x8] sm:$0xf]
    %v3438 = vld [vmem:[%s1619 + $0xc] sm:$0xf]
    %v3439 = vld [vmem:[%s1619 + $0x10] sm:$0xf]
    %v3440 = vld [vmem:[%s1619 + $0x14] sm:$0xf]
    %v3441 = vld [vmem:[%s1619 + $0x18] sm:$0xf]
    %v3442 = vld [vmem:[%s1619 + $0x1c] sm:$0xf]
    %v3443 = vld [vmem:[%s1619 + $0x20] sm:$0xf]
    %v3444 = vld [vmem:[%s1619 + $0x24] sm:$0xf]
    %v3445 = vld [vmem:[%s1619 + $0x28] sm:$0xf]
    %v3446 = vld [vmem:[%s1619 + $0x2c] sm:$0xf]
    %v3447 = vld [vmem:[%s1619 + $0x30] sm:$0xf]
    %v3448 = vld [vmem:[%s1619 + $0x34] sm:$0xf]
    %v3449 = vld [vmem:[%s1619 + $0x38] sm:$0xf]
    %v3450 = vld [vmem:[%s1619 + $0x3c] sm:$0xf]
    %v3451 = vpack.c.bf16 %v3224, %v3224
    %v3468 = vunpack.c.l.b16 %v3435
    %v3469 = vunpack.c.l.b16 %v3436
    %v3470 = vunpack.c.l.b16 %v3437
    %v3471 = vunpack.c.l.b16 %v3438
    %v3472 = vunpack.c.l.b16 %v3439
    %v3473 = vunpack.c.l.b16 %v3440
    %v3474 = vunpack.c.l.b16 %v3441
    %v3475 = vunpack.c.l.b16 %v3442
    %v3476 = vunpack.c.l.b16 %v3443
    %v3477 = vunpack.c.l.b16 %v3444
    %v3478 = vunpack.c.l.b16 %v3445
    %v3479 = vunpack.c.l.b16 %v3446
    %v3480 = vunpack.c.l.b16 %v3447
    %v3481 = vunpack.c.l.b16 %v3448
    %v3482 = vunpack.c.l.b16 %v3449
    %v3483 = vunpack.c.l.b16 %v3450
    %v3484 = vpack.c.b16 %v3469, %v3468
    %v3485 = vpack.c.b16 %v3471, %v3470
    %v3486 = vpack.c.b16 %v3473, %v3472
    %v3487 = vpack.c.b16 %v3475, %v3474
    %v3488 = vpack.c.b16 %v3477, %v3476
    %v3489 = vpack.c.b16 %v3479, %v3478
    %v3490 = vpack.c.b16 %v3481, %v3480
    %v3491 = vpack.c.b16 %v3483, %v3482
    %3500 = vmatprep.subr.bf16.mxu0 0
    %3501 = vmatpush1.bf16.msra.mxu0 %v3491
    %3502 = vmatprep.subr.bf16.mxu0 0
    %3503 = vmatpush1.bf16.msra.mxu0 %v3490
    %3504 = vmatprep.subr.bf16.mxu0 0
    %3505 = vmatpush1.bf16.msra.mxu0 %v3489
    %3506 = vmatprep.subr.bf16.mxu0 0
    %3507 = vmatpush1.bf16.msra.mxu0 %v3488
    %3508 = vmatprep.subr.bf16.mxu0 0
    %3509 = vmatpush1.bf16.msra.mxu0 %v3487
    %3510 = vmatprep.subr.bf16.mxu0 0
    %3511 = vmatpush1.bf16.msra.mxu0 %v3486
    %3512 = vmatprep.subr.bf16.mxu0 0
    %3513 = vmatpush1.bf16.msra.mxu0 %v3485
    %3514 = vmatprep.subr.bf16.mxu0 0
    %3515 = vmatpush1.bf16.msra.mxu0 %v3484
    %3516 = vmatprep.subr.bf16.mxu0 0
    %3517 = vmatpush2.bf16.msra.mxu0 0
    %3518 = vmatprep.subr.bf16.mxu0 0
    %3519 = vmatpush2.bf16.msra.mxu0 0
    %3520 = vmatprep.subr.bf16.mxu0 0
    %3521 = vmatpush2.bf16.msra.mxu0 0
    %3522 = vmatprep.subr.bf16.mxu0 0
    %3523 = vmatpush2.bf16.msra.mxu0 0
    %3524 = vmatprep.subr.bf16.mxu0 0
    %3525 = vmatpush2.bf16.msra.mxu0 0
    %3526 = vmatprep.subr.bf16.mxu0 0
    %3527 = vmatpush2.bf16.msra.mxu0 0
    %3528 = vmatprep.subr.bf16.mxu0 0
    %3529 = vmatpush2.bf16.msra.mxu0 0
    %3530 = vmatprep.subr.bf16.mxu0 0
    %3531 = vmatpush2.bf16.msra.mxu0 0
    %3532 = vmatprep.mubr.bf16.mxu0 0
    %3533 = vmatmul.mubr.bf16.gmra.mxu0 %v3451
    %v3534 = vpop.f32.mrf.mxu0
    %v3535 = vadd.f32 0.0, %v3534
    %v3536 = vpop.f32.mrf.mxu0
    %v3537 = vpop.f32.mrf.mxu0
    %v3538 = vpop.f32.mrf.mxu0
    %3539 = vdwg.mxu0
    %v3540 = vadd.f32 %v3430, %v3535
    %v3541 = vld [vmem:[%s15] sm:$0x1]
    %v3543 = vlaneseq
    %v3544 = vshrl.u32 %v3543, 7
    %v3545 = vsub.s32 0, %v3544
    %v3546 = vrot.slane %v3541, %v3545
    %v3548 = vmul.f32 %v3540, %v3546
    %v3549 = vld [vmem:[%s16] sm:$0x1]
    %v3551 = vlaneseq
    %v3552 = vshrl.u32 %v3551, 7
    %v3553 = vsub.s32 0, %v3552
    %v3554 = vrot.slane %v3549, %v3553
    %v3556 = vadd.f32 %v3548, %v3554
    %v3557 = vmax.f32 %v3556, 0.0
    %v3558 = vadd.f32 %v3557, %v2964
    %3559 = vst [vmem:[#allocation3] sm:$0xff] %v3558
    %v3560 = vld [vmem:[#allocation3] ss:$2 sm:$0xf]
    %v3561 = vld [vmem:[%s1746] ss:$2 sm:$0xf]
    %v3562 = vmax.f32 %v3560, %v3561
    %v3563 = vld [vmem:[%s17] sm:$0xff]
    %v3564 = vld [vmem:[%s17 + $0x8] sm:$0xff]
    %v3565 = vld [vmem:[%s17 + $0x10] sm:$0xff]
    %v3566 = vld [vmem:[%s17 + $0x18] sm:$0xff]
    %v3567 = vld [vmem:[%s17 + $0x20] sm:$0xff]
    %v3568 = vld [vmem:[%s17 + $0x28] sm:$0xff]
    %v3569 = vld [vmem:[%s17 + $0x30] sm:$0xff]
    %v3570 = vld [vmem:[%s17 + $0x38] sm:$0xff]
    %v3571 = vld [vmem:[%s17 + $0x40] sm:$0xff]
    %v3572 = vld [vmem:[%s17 + $0x48] sm:$0xff]
    %v3573 = vld [vmem:[%s17 + $0x50] sm:$0xff]
    %v3574 = vld [vmem:[%s17 + $0x58] sm:$0xff]
    %v3575 = vld [vmem:[%s17 + $0x60] sm:$0xff]
    %v3576 = vld [vmem:[%s17 + $0x68] sm:$0xff]
    %v3577 = vld [vmem:[%s17 + $0x70] sm:$0xff]
    %v3578 = vld [vmem:[%s17 + $0x78] sm:$0xff]
    %v3579 = vld [vmem:[%s17 + $0x80] sm:$0xff]
    %v3580 = vld [vmem:[%s17 + $0x88] sm:$0xff]
    %v3581 = vld [vmem:[%s17 + $0x90] sm:$0xff]
    %v3582 = vld [vmem:[%s17 + $0x98] sm:$0xff]
    %v3583 = vld [vmem:[%s17 + $0xa0] sm:$0xff]
    %v3584 = vld [vmem:[%s17 + $0xa8] sm:$0xff]
    %v3585 = vld [vmem:[%s17 + $0xb0] sm:$0xff]
    %v3586 = vld [vmem:[%s17 + $0xb8] sm:$0xff]
    %v3587 = vld [vmem:[%s17 + $0xc0] sm:$0xff]
    %v3588 = vld [vmem:[%s17 + $0xc8] sm:$0xff]
    %v3589 = vld [vmem:[%s17 + $0xd0] sm:$0xff]
    %v3590 = vld [vmem:[%s17 + $0xd8] sm:$0xff]
    %v3591 = vld [vmem:[%s17 + $0xe0] sm:$0xff]
    %v3592 = vld [vmem:[%s17 + $0xe8] sm:$0xff]
    %v3593 = vld [vmem:[%s17 + $0xf0] sm:$0xff]
    %v3594 = vld [vmem:[%s17 + $0xf8] sm:$0xff]
    %v3595 = vld [vmem:[%s17 + $0x100] sm:$0xff]
    %v3596 = vld [vmem:[%s17 + $0x108] sm:$0xff]
    %v3597 = vld [vmem:[%s17 + $0x110] sm:$0xff]
    %v3598 = vld [vmem:[%s17 + $0x118] sm:$0xff]
    %v3599 = vld [vmem:[%s17 + $0x120] sm:$0xff]
    %v3600 = vld [vmem:[%s17 + $0x128] sm:$0xff]
    %v3601 = vld [vmem:[%s17 + $0x130] sm:$0xff]
    %v3602 = vld [vmem:[%s17 + $0x138] sm:$0xff]
    %v3603 = vld [vmem:[%s17 + $0x140] sm:$0xff]
    %v3604 = vld [vmem:[%s17 + $0x148] sm:$0xff]
    %v3605 = vld [vmem:[%s17 + $0x150] sm:$0xff]
    %v3606 = vld [vmem:[%s17 + $0x158] sm:$0xff]
    %v3607 = vld [vmem:[%s17 + $0x160] sm:$0xff]
    %v3608 = vld [vmem:[%s17 + $0x168] sm:$0xff]
    %v3609 = vld [vmem:[%s17 + $0x170] sm:$0xff]
    %v3610 = vld [vmem:[%s17 + $0x178] sm:$0xff]
    %v3611 = vld [vmem:[%s17 + $0x180] sm:$0xff]
    %v3612 = vld [vmem:[%s17 + $0x188] sm:$0xff]
    %v3613 = vld [vmem:[%s17 + $0x190] sm:$0xff]
    %v3614 = vld [vmem:[%s17 + $0x198] sm:$0xff]
    %v3615 = vld [vmem:[%s17 + $0x1a0] sm:$0xff]
    %v3616 = vld [vmem:[%s17 + $0x1a8] sm:$0xff]
    %v3617 = vld [vmem:[%s17 + $0x1b0] sm:$0xff]
    %v3618 = vld [vmem:[%s17 + $0x1b8] sm:$0xff]
    %v3619 = vld [vmem:[%s17 + $0x1c0] sm:$0xff]
    %v3620 = vld [vmem:[%s17 + $0x1c8] sm:$0xff]
    %v3621 = vld [vmem:[%s17 + $0x1d0] sm:$0xff]
    %v3622 = vld [vmem:[%s17 + $0x1d8] sm:$0xff]
    %v3623 = vld [vmem:[%s17 + $0x1e0] sm:$0xff]
    %v3624 = vld [vmem:[%s17 + $0x1e8] sm:$0xff]
    %v3625 = vld [vmem:[%s17 + $0x1f0] sm:$0xff]
    %v3626 = vld [vmem:[%s17 + $0x1f8] sm:$0xff]
    %v3627 = vpack.c.bf16 %v3562, %v3562
    %v3692 = vunpack.c.l.b16 %v3563
    %v3693 = vunpack.c.h.b16 %v3563
    %v3694 = vunpack.c.l.b16 %v3564
    %v3695 = vunpack.c.h.b16 %v3564
    %v3696 = vunpack.c.l.b16 %v3565
    %v3697 = vunpack.c.h.b16 %v3565
    %v3698 = vunpack.c.l.b16 %v3566
    %v3699 = vunpack.c.h.b16 %v3566
    %v3700 = vunpack.c.l.b16 %v3567
    %v3701 = vunpack.c.h.b16 %v3567
    %v3702 = vunpack.c.l.b16 %v3568
    %v3703 = vunpack.c.h.b16 %v3568
    %v3704 = vunpack.c.l.b16 %v3569
    %v3705 = vunpack.c.h.b16 %v3569
    %v3706 = vunpack.c.l.b16 %v3570
    %v3707 = vunpack.c.h.b16 %v3570
    %v3708 = vunpack.c.l.b16 %v3571
    %v3709 = vunpack.c.h.b16 %v3571
    %v3710 = vunpack.c.l.b16 %v3572
    %v3711 = vunpack.c.h.b16 %v3572
    %v3712 = vunpack.c.l.b16 %v3573
    %v3713 = vunpack.c.h.b16 %v3573
    %v3714 = vunpack.c.l.b16 %v3574
    %v3715 = vunpack.c.h.b16 %v3574
    %v3716 = vunpack.c.l.b16 %v3575
    %v3717 = vunpack.c.h.b16 %v3575
    %v3718 = vunpack.c.l.b16 %v3576
    %v3719 = vunpack.c.h.b16 %v3576
    %v3720 = vunpack.c.l.b16 %v3577
    %v3721 = vunpack.c.h.b16 %v3577
    %v3722 = vunpack.c.l.b16 %v3578
    %v3723 = vunpack.c.h.b16 %v3578
    %v3724 = vunpack.c.l.b16 %v3579
    %v3725 = vunpack.c.h.b16 %v3579
    %v3726 = vunpack.c.l.b16 %v3580
    %v3727 = vunpack.c.h.b16 %v3580
    %v3728 = vunpack.c.l.b16 %v3581
    %v3729 = vunpack.c.h.b16 %v3581
    %v3730 = vunpack.c.l.b16 %v3582
    %v3731 = vunpack.c.h.b16 %v3582
    %v3732 = vunpack.c.l.b16 %v3583
    %v3733 = vunpack.c.h.b16 %v3583
    %v3734 = vunpack.c.l.b16 %v3584
    %v3735 = vunpack.c.h.b16 %v3584
    %v3736 = vunpack.c.l.b16 %v3585
    %v3737 = vunpack.c.h.b16 %v3585
    %v3738 = vunpack.c.l.b16 %v3586
    %v3739 = vunpack.c.h.b16 %v3586
    %v3740 = vunpack.c.l.b16 %v3587
    %v3741 = vunpack.c.h.b16 %v3587
    %v3742 = vunpack.c.l.b16 %v3588
    %v3743 = vunpack.c.h.b16 %v3588
    %v3744 = vunpack.c.l.b16 %v3589
    %v3745 = vunpack.c.h.b16 %v3589
    %v3746 = vunpack.c.l.b16 %v3590
    %v3747 = vunpack.c.h.b16 %v3590
    %v3748 = vunpack.c.l.b16 %v3591
    %v3749 = vunpack.c.h.b16 %v3591
    %v3750 = vunpack.c.l.b16 %v3592
    %v3751 = vunpack.c.h.b16 %v3592
    %v3752 = vunpack.c.l.b16 %v3593
    %v3753 = vunpack.c.h.b16 %v3593
    %v3754 = vunpack.c.l.b16 %v3594
    %v3755 = vunpack.c.h.b16 %v3594
    %v3756 = vunpack.c.l.b16 %v3595
    %v3757 = vunpack.c.h.b16 %v3595
    %v3758 = vunpack.c.l.b16 %v3596
    %v3759 = vunpack.c.h.b16 %v3596
    %v3760 = vunpack.c.l.b16 %v3597
    %v3761 = vunpack.c.h.b16 %v3597
    %v3762 = vunpack.c.l.b16 %v3598
    %v3763 = vunpack.c.h.b16 %v3598
    %v3764 = vunpack.c.l.b16 %v3599
    %v3765 = vunpack.c.h.b16 %v3599
    %v3766 = vunpack.c.l.b16 %v3600
    %v3767 = vunpack.c.h.b16 %v3600
    %v3768 = vunpack.c.l.b16 %v3601
    %v3769 = vunpack.c.h.b16 %v3601
    %v3770 = vunpack.c.l.b16 %v3602
    %v3771 = vunpack.c.h.b16 %v3602
    %v3772 = vunpack.c.l.b16 %v3603
    %v3773 = vunpack.c.h.b16 %v3603
    %v3774 = vunpack.c.l.b16 %v3604
    %v3775 = vunpack.c.h.b16 %v3604
    %v3776 = vunpack.c.l.b16 %v3605
    %v3777 = vunpack.c.h.b16 %v3605
    %v3778 = vunpack.c.l.b16 %v3606
    %v3779 = vunpack.c.h.b16 %v3606
    %v3780 = vunpack.c.l.b16 %v3607
    %v3781 = vunpack.c.h.b16 %v3607
    %v3782 = vunpack.c.l.b16 %v3608
    %v3783 = vunpack.c.h.b16 %v3608
    %v3784 = vunpack.c.l.b16 %v3609
    %v3785 = vunpack.c.h.b16 %v3609
    %v3786 = vunpack.c.l.b16 %v3610
    %v3787 = vunpack.c.h.b16 %v3610
    %v3788 = vunpack.c.l.b16 %v3611
    %v3789 = vunpack.c.h.b16 %v3611
    %v3790 = vunpack.c.l.b16 %v3612
    %v3791 = vunpack.c.h.b16 %v3612
    %v3792 = vunpack.c.l.b16 %v3613
    %v3793 = vunpack.c.h.b16 %v3613
    %v3794 = vunpack.c.l.b16 %v3614
    %v3795 = vunpack.c.h.b16 %v3614
    %v3796 = vunpack.c.l.b16 %v3615
    %v3797 = vunpack.c.h.b16 %v3615
    %v3798 = vunpack.c.l.b16 %v3616
    %v3799 = vunpack.c.h.b16 %v3616
    %v3800 = vunpack.c.l.b16 %v3617
    %v3801 = vunpack.c.h.b16 %v3617
    %v3802 = vunpack.c.l.b16 %v3618
    %v3803 = vunpack.c.h.b16 %v3618
    %v3804 = vunpack.c.l.b16 %v3619
    %v3805 = vunpack.c.h.b16 %v3619
    %v3806 = vunpack.c.l.b16 %v3620
    %v3807 = vunpack.c.h.b16 %v3620
    %v3808 = vunpack.c.l.b16 %v3621
    %v3809 = vunpack.c.h.b16 %v3621
    %v3810 = vunpack.c.l.b16 %v3622
    %v3811 = vunpack.c.h.b16 %v3622
    %v3812 = vunpack.c.l.b16 %v3623
    %v3813 = vunpack.c.h.b16 %v3623
    %v3814 = vunpack.c.l.b16 %v3624
    %v3815 = vunpack.c.h.b16 %v3624
    %v3816 = vunpack.c.l.b16 %v3625
    %v3817 = vunpack.c.h.b16 %v3625
    %v3818 = vunpack.c.l.b16 %v3626
    %v3819 = vunpack.c.h.b16 %v3626
    %v3820 = vpack.c.b16 %v3700, %v3692
    %v3821 = vpack.c.b16 %v3701, %v3693
    %v3822 = vpack.c.b16 %v3702, %v3694
    %v3823 = vpack.c.b16 %v3703, %v3695
    %v3824 = vpack.c.b16 %v3704, %v3696
    %v3825 = vpack.c.b16 %v3705, %v3697
    %v3826 = vpack.c.b16 %v3706, %v3698
    %v3827 = vpack.c.b16 %v3707, %v3699
    %v3828 = vpack.c.b16 %v3716, %v3708
    %v3829 = vpack.c.b16 %v3717, %v3709
    %v3830 = vpack.c.b16 %v3718, %v3710
    %v3831 = vpack.c.b16 %v3719, %v3711
    %v3832 = vpack.c.b16 %v3720, %v3712
    %v3833 = vpack.c.b16 %v3721, %v3713
    %v3834 = vpack.c.b16 %v3722, %v3714
    %v3835 = vpack.c.b16 %v3723, %v3715
    %v3836 = vpack.c.b16 %v3732, %v3724
    %v3837 = vpack.c.b16 %v3733, %v3725
    %v3838 = vpack.c.b16 %v3734, %v3726
    %v3839 = vpack.c.b16 %v3735, %v3727
    %v3840 = vpack.c.b16 %v3736, %v3728
    %v3841 = vpack.c.b16 %v3737, %v3729
    %v3842 = vpack.c.b16 %v3738, %v3730
    %v3843 = vpack.c.b16 %v3739, %v3731
    %v3844 = vpack.c.b16 %v3748, %v3740
    %v3845 = vpack.c.b16 %v3749, %v3741
    %v3846 = vpack.c.b16 %v3750, %v3742
    %v3847 = vpack.c.b16 %v3751, %v3743
    %v3848 = vpack.c.b16 %v3752, %v3744
    %v3849 = vpack.c.b16 %v3753, %v3745
    %v3850 = vpack.c.b16 %v3754, %v3746
    %v3851 = vpack.c.b16 %v3755, %v3747
    %v3852 = vpack.c.b16 %v3764, %v3756
    %v3853 = vpack.c.b16 %v3765, %v3757
    %v3854 = vpack.c.b16 %v3766, %v3758
    %v3855 = vpack.c.b16 %v3767, %v3759
    %v3856 = vpack.c.b16 %v3768, %v3760
    %v3857 = vpack.c.b16 %v3769, %v3761
    %v3858 = vpack.c.b16 %v3770, %v3762
    %v3859 = vpack.c.b16 %v3771, %v3763
    %v3860 = vpack.c.b16 %v3780, %v3772
    %v3861 = vpack.c.b16 %v3781, %v3773
    %v3862 = vpack.c.b16 %v3782, %v3774
    %v3863 = vpack.c.b16 %v3783, %v3775
    %v3864 = vpack.c.b16 %v3784, %v3776
    %v3865 = vpack.c.b16 %v3785, %v3777
    %v3866 = vpack.c.b16 %v3786, %v3778
    %v3867 = vpack.c.b16 %v3787, %v3779
    %v3868 = vpack.c.b16 %v3796, %v3788
    %v3869 = vpack.c.b16 %v3797, %v3789
    %v3870 = vpack.c.b16 %v3798, %v3790
    %v3871 = vpack.c.b16 %v3799, %v3791
    %v3872 = vpack.c.b16 %v3800, %v3792
    %v3873 = vpack.c.b16 %v3801, %v3793
    %v3874 = vpack.c.b16 %v3802, %v3794
    %v3875 = vpack.c.b16 %v3803, %v3795
    %v3876 = vpack.c.b16 %v3812, %v3804
    %v3877 = vpack.c.b16 %v3813, %v3805
    %v3878 = vpack.c.b16 %v3814, %v3806
    %v3879 = vpack.c.b16 %v3815, %v3807
    %v3880 = vpack.c.b16 %v3816, %v3808
    %v3881 = vpack.c.b16 %v3817, %v3809
    %v3882 = vpack.c.b16 %v3818, %v3810
    %v3883 = vpack.c.b16 %v3819, %v3811
    %3948 = vmatprep.subr.bf16.mxu0 %v3877
    %3949 = vmatpush1.bf16.msra.mxu0 %v3876
    %3950 = vmatprep.subr.bf16.mxu0 %v3869
    %3951 = vmatpush1.bf16.msra.mxu0 %v3868
    %3952 = vmatprep.subr.bf16.mxu0 %v3861
    %3953 = vmatpush1.bf16.msra.mxu0 %v3860
    %3954 = vmatprep.subr.bf16.mxu0 %v3853
    %3955 = vmatpush1.bf16.msra.mxu0 %v3852
    %3956 = vmatprep.subr.bf16.mxu0 %v3845
    %3957 = vmatpush1.bf16.msra.mxu0 %v3844
    %3958 = vmatprep.subr.bf16.mxu0 %v3837
    %3959 = vmatpush1.bf16.msra.mxu0 %v3836
    %3960 = vmatprep.subr.bf16.mxu0 %v3829
    %3961 = vmatpush1.bf16.msra.mxu0 %v3828
    %3962 = vmatprep.subr.bf16.mxu0 %v3821
    %3963 = vmatpush1.bf16.msra.mxu0 %v3820
    %3964 = vmatprep.subr.bf16.mxu0 0
    %3965 = vmatpush2.bf16.msra.mxu0 0
    %3966 = vmatprep.subr.bf16.mxu0 0
    %3967 = vmatpush2.bf16.msra.mxu0 0
    %3968 = vmatprep.subr.bf16.mxu0 0
    %3969 = vmatpush2.bf16.msra.mxu0 0
    %3970 = vmatprep.subr.bf16.mxu0 0
    %3971 = vmatpush2.bf16.msra.mxu0 0
    %3972 = vmatprep.subr.bf16.mxu0 0
    %3973 = vmatpush2.bf16.msra.mxu0 0
    %3974 = vmatprep.subr.bf16.mxu0 0
    %3975 = vmatpush2.bf16.msra.mxu0 0
    %3976 = vmatprep.subr.bf16.mxu0 0
    %3977 = vmatpush2.bf16.msra.mxu0 0
    %3978 = vmatprep.subr.bf16.mxu0 0
    %3979 = vmatpush2.bf16.msra.mxu0 0
    %3980 = vmatprep.mubr.bf16.mxu0 0
    %3981 = vmatmul.mubr.bf16.gmra.mxu0 %v3627
    %v3982 = vpop.f32.mrf.mxu0
    %v3983 = vadd.f32 0.0, %v3982
    %v3984 = vpop.f32.mrf.mxu0
    %v3985 = vadd.f32 0.0, %v3984
    %v3986 = vpop.f32.mrf.mxu0
    %v3987 = vpop.f32.mrf.mxu0
    %3988 = vdwg.mxu0
    %3989 = vmatprep.subr.bf16.mxu0 %v3879
    %3990 = vmatpush1.bf16.msra.mxu0 %v3878
    %3991 = vmatprep.subr.bf16.mxu0 %v3871
    %3992 = vmatpush1.bf16.msra.mxu0 %v3870
    %3993 = vmatprep.subr.bf16.mxu0 %v3863
    %3994 = vmatpush1.bf16.msra.mxu0 %v3862
    %3995 = vmatprep.subr.bf16.mxu0 %v3855
    %3996 = vmatpush1.bf16.msra.mxu0 %v3854
    %3997 = vmatprep.subr.bf16.mxu0 %v3847
    %3998 = vmatpush1.bf16.msra.mxu0 %v3846
    %3999 = vmatprep.subr.bf16.mxu0 %v3839
    %4000 = vmatpush1.bf16.msra.mxu0 %v3838
    %4001 = vmatprep.subr.bf16.mxu0 %v3831
    %4002 = vmatpush1.bf16.msra.mxu0 %v3830
    %4003 = vmatprep.subr.bf16.mxu0 %v3823
    %4004 = vmatpush1.bf16.msra.mxu0 %v3822
    %4005 = vmatprep.subr.bf16.mxu0 0
    %4006 = vmatpush2.bf16.msra.mxu0 0
    %4007 = vmatprep.subr.bf16.mxu0 0
    %4008 = vmatpush2.bf16.msra.mxu0 0
    %4009 = vmatprep.subr.bf16.mxu0 0
    %4010 = vmatpush2.bf16.msra.mxu0 0
    %4011 = vmatprep.subr.bf16.mxu0 0
    %4012 = vmatpush2.bf16.msra.mxu0 0
    %4013 = vmatprep.subr.bf16.mxu0 0
    %4014 = vmatpush2.bf16.msra.mxu0 0
    %4015 = vmatprep.subr.bf16.mxu0 0
    %4016 = vmatpush2.bf16.msra.mxu0 0
    %4017 = vmatprep.subr.bf16.mxu0 0
    %4018 = vmatpush2.bf16.msra.mxu0 0
    %4019 = vmatprep.subr.bf16.mxu0 0
    %4020 = vmatpush2.bf16.msra.mxu0 0
    %4021 = vmatprep.mubr.bf16.mxu0 0
    %4022 = vmatmul.mubr.bf16.gmra.mxu0 %v3627
    %v4023 = vpop.f32.mrf.mxu0
    %v4024 = vadd.f32 0.0, %v4023
    %v4025 = vpop.f32.mrf.mxu0
    %v4026 = vadd.f32 0.0, %v4025
    %v4027 = vpop.f32.mrf.mxu0
    %v4028 = vpop.f32.mrf.mxu0
    %4029 = vdwg.mxu0
    %4030 = vmatprep.subr.bf16.mxu0 %v3881
    %4031 = vmatpush1.bf16.msra.mxu0 %v3880
    %4032 = vmatprep.subr.bf16.mxu0 %v3873
    %4033 = vmatpush1.bf16.msra.mxu0 %v3872
    %4034 = vmatprep.subr.bf16.mxu0 %v3865
    %4035 = vmatpush1.bf16.msra.mxu0 %v3864
    %4036 = vmatprep.subr.bf16.mxu0 %v3857
    %4037 = vmatpush1.bf16.msra.mxu0 %v3856
    %4038 = vmatprep.subr.bf16.mxu0 %v3849
    %4039 = vmatpush1.bf16.msra.mxu0 %v3848
    %4040 = vmatprep.subr.bf16.mxu0 %v3841
    %4041 = vmatpush1.bf16.msra.mxu0 %v3840
    %4042 = vmatprep.subr.bf16.mxu0 %v3833
    %4043 = vmatpush1.bf16.msra.mxu0 %v3832
    %4044 = vmatprep.subr.bf16.mxu0 %v3825
    %4045 = vmatpush1.bf16.msra.mxu0 %v3824
    %4046 = vmatprep.subr.bf16.mxu0 0
    %4047 = vmatpush2.bf16.msra.mxu0 0
    %4048 = vmatprep.subr.bf16.mxu0 0
    %4049 = vmatpush2.bf16.msra.mxu0 0
    %4050 = vmatprep.subr.bf16.mxu0 0
    %4051 = vmatpush2.bf16.msra.mxu0 0
    %4052 = vmatprep.subr.bf16.mxu0 0
    %4053 = vmatpush2.bf16.msra.mxu0 0
    %4054 = vmatprep.subr.bf16.mxu0 0
    %4055 = vmatpush2.bf16.msra.mxu0 0
    %4056 = vmatprep.subr.bf16.mxu0 0
    %4057 = vmatpush2.bf16.msra.mxu0 0
    %4058 = vmatprep.subr.bf16.mxu0 0
    %4059 = vmatpush2.bf16.msra.mxu0 0
    %4060 = vmatprep.subr.bf16.mxu0 0
    %4061 = vmatpush2.bf16.msra.mxu0 0
    %4062 = vmatprep.mubr.bf16.mxu0 0
    %4063 = vmatmul.mubr.bf16.gmra.mxu0 %v3627
    %v4064 = vpop.f32.mrf.mxu0
    %v4065 = vadd.f32 0.0, %v4064
    %v4066 = vpop.f32.mrf.mxu0
    %v4067 = vadd.f32 0.0, %v4066
    %v4068 = vpop.f32.mrf.mxu0
    %v4069 = vpop.f32.mrf.mxu0
    %4070 = vdwg.mxu0
    %4071 = vmatprep.subr.bf16.mxu0 %v3883
    %4072 = vmatpush1.bf16.msra.mxu0 %v3882
    %4073 = vmatprep.subr.bf16.mxu0 %v3875
    %4074 = vmatpush1.bf16.msra.mxu0 %v3874
    %4075 = vmatprep.subr.bf16.mxu0 %v3867
    %4076 = vmatpush1.bf16.msra.mxu0 %v3866
    %4077 = vmatprep.subr.bf16.mxu0 %v3859
    %4078 = vmatpush1.bf16.msra.mxu0 %v3858
    %4079 = vmatprep.subr.bf16.mxu0 %v3851
    %4080 = vmatpush1.bf16.msra.mxu0 %v3850
    %4081 = vmatprep.subr.bf16.mxu0 %v3843
    %4082 = vmatpush1.bf16.msra.mxu0 %v3842
    %4083 = vmatprep.subr.bf16.mxu0 %v3835
    %4084 = vmatpush1.bf16.msra.mxu0 %v3834
    %4085 = vmatprep.subr.bf16.mxu0 %v3827
    %4086 = vmatpush1.bf16.msra.mxu0 %v3826
    %4087 = vmatprep.subr.bf16.mxu0 0
    %4088 = vmatpush2.bf16.msra.mxu0 0
    %4089 = vmatprep.subr.bf16.mxu0 0
    %4090 = vmatpush2.bf16.msra.mxu0 0
    %4091 = vmatprep.subr.bf16.mxu0 0
    %4092 = vmatpush2.bf16.msra.mxu0 0
    %4093 = vmatprep.subr.bf16.mxu0 0
    %4094 = vmatpush2.bf16.msra.mxu0 0
    %4095 = vmatprep.subr.bf16.mxu0 0
    %4096 = vmatpush2.bf16.msra.mxu0 0
    %4097 = vmatprep.subr.bf16.mxu0 0
    %4098 = vmatpush2.bf16.msra.mxu0 0
    %4099 = vmatprep.subr.bf16.mxu0 0
    %4100 = vmatpush2.bf16.msra.mxu0 0
    %4101 = vmatprep.subr.bf16.mxu0 0
    %4102 = vmatpush2.bf16.msra.mxu0 0
    %4103 = vmatprep.mubr.bf16.mxu0 0
    %4104 = vmatmul.mubr.bf16.gmra.mxu0 %v3627
    %v4105 = vpop.f32.mrf.mxu0
    %v4106 = vadd.f32 0.0, %v4105
    %v4107 = vpop.f32.mrf.mxu0
    %v4108 = vadd.f32 0.0, %v4107
    %v4109 = vpop.f32.mrf.mxu0
    %v4110 = vpop.f32.mrf.mxu0
    %4111 = vdwg.mxu0
    %v4120 = vrot.slane %v3983, 7
    %v4121 = vrot.slane %v3985, 7
    %v4122 = vrot.slane %v4024, 7
    %v4123 = vrot.slane %v4026, 7
    %v4124 = vrot.slane %v4065, 7
    %v4125 = vrot.slane %v4067, 7
    %v4126 = vrot.slane %v4106, 7
    %v4127 = vrot.slane %v4108, 7
    %v4136 = vsel %vm505, %v2169, %v4120
    %v4137 = vsel %vm505, %v2171, %v4121
    %v4138 = vsel %vm505, %v2210, %v4122
    %v4139 = vsel %vm505, %v2212, %v4123
    %v4140 = vsel %vm505, %v2251, %v4124
    %v4141 = vsel %vm505, %v2253, %v4125
    %v4142 = vsel %vm505, %v2292, %v4126
    %v4143 = vsel %vm505, %v2294, %v4127
    %v4272 = vunpack.c.l.b16 %v85
    %v4273 = vunpack.c.h.b16 %v85
    %v4274 = vunpack.c.l.b16 %v86
    %v4275 = vunpack.c.h.b16 %v86
    %v4276 = vunpack.c.l.b16 %v87
    %v4277 = vunpack.c.h.b16 %v87
    %v4278 = vunpack.c.l.b16 %v88
    %v4279 = vunpack.c.h.b16 %v88
    %v4280 = vunpack.c.l.b16 %v89
    %v4281 = vunpack.c.h.b16 %v89
    %v4282 = vunpack.c.l.b16 %v90
    %v4283 = vunpack.c.h.b16 %v90
    %v4284 = vunpack.c.l.b16 %v91
    %v4285 = vunpack.c.h.b16 %v91
    %v4286 = vunpack.c.l.b16 %v92
    %v4287 = vunpack.c.h.b16 %v92
    %v4288 = vunpack.c.l.b16 %v93
    %v4289 = vunpack.c.h.b16 %v93
    %v4290 = vunpack.c.l.b16 %v94
    %v4291 = vunpack.c.h.b16 %v94
    %v4292 = vunpack.c.l.b16 %v95
    %v4293 = vunpack.c.h.b16 %v95
    %v4294 = vunpack.c.l.b16 %v96
    %v4295 = vunpack.c.h.b16 %v96
    %v4296 = vunpack.c.l.b16 %v97
    %v4297 = vunpack.c.h.b16 %v97
    %v4298 = vunpack.c.l.b16 %v98
    %v4299 = vunpack.c.h.b16 %v98
    %v4300 = vunpack.c.l.b16 %v99
    %v4301 = vunpack.c.h.b16 %v99
    %v4302 = vunpack.c.l.b16 %v100
    %v4303 = vunpack.c.h.b16 %v100
    %v4304 = vunpack.c.l.b16 %v101
    %v4305 = vunpack.c.h.b16 %v101
    %v4306 = vunpack.c.l.b16 %v102
    %v4307 = vunpack.c.h.b16 %v102
    %v4308 = vunpack.c.l.b16 %v103
    %v4309 = vunpack.c.h.b16 %v103
    %v4310 = vunpack.c.l.b16 %v104
    %v4311 = vunpack.c.h.b16 %v104
    %v4312 = vunpack.c.l.b16 %v105
    %v4313 = vunpack.c.h.b16 %v105
    %v4314 = vunpack.c.l.b16 %v106
    %v4315 = vunpack.c.h.b16 %v106
    %v4316 = vunpack.c.l.b16 %v107
    %v4317 = vunpack.c.h.b16 %v107
    %v4318 = vunpack.c.l.b16 %v108
    %v4319 = vunpack.c.h.b16 %v108
    %v4320 = vunpack.c.l.b16 %v109
    %v4321 = vunpack.c.h.b16 %v109
    %v4322 = vunpack.c.l.b16 %v110
    %v4323 = vunpack.c.h.b16 %v110
    %v4324 = vunpack.c.l.b16 %v111
    %v4325 = vunpack.c.h.b16 %v111
    %v4326 = vunpack.c.l.b16 %v112
    %v4327 = vunpack.c.h.b16 %v112
    %v4328 = vunpack.c.l.b16 %v113
    %v4329 = vunpack.c.h.b16 %v113
    %v4330 = vunpack.c.l.b16 %v114
    %v4331 = vunpack.c.h.b16 %v114
    %v4332 = vunpack.c.l.b16 %v115
    %v4333 = vunpack.c.h.b16 %v115
    %v4334 = vunpack.c.l.b16 %v116
    %v4335 = vunpack.c.h.b16 %v116
    %v4336 = vunpack.c.l.b16 %v117
    %v4337 = vunpack.c.h.b16 %v117
    %v4338 = vunpack.c.l.b16 %v118
    %v4339 = vunpack.c.h.b16 %v118
    %v4340 = vunpack.c.l.b16 %v119
    %v4341 = vunpack.c.h.b16 %v119
    %v4342 = vunpack.c.l.b16 %v120
    %v4343 = vunpack.c.h.b16 %v120
    %v4344 = vunpack.c.l.b16 %v121
    %v4345 = vunpack.c.h.b16 %v121
    %v4346 = vunpack.c.l.b16 %v122
    %v4347 = vunpack.c.h.b16 %v122
    %v4348 = vunpack.c.l.b16 %v123
    %v4349 = vunpack.c.h.b16 %v123
    %v4350 = vunpack.c.l.b16 %v124
    %v4351 = vunpack.c.h.b16 %v124
    %v4352 = vunpack.c.l.b16 %v125
    %v4353 = vunpack.c.h.b16 %v125
    %v4354 = vunpack.c.l.b16 %v126
    %v4355 = vunpack.c.h.b16 %v126
    %v4356 = vunpack.c.l.b16 %v127
    %v4357 = vunpack.c.h.b16 %v127
    %v4358 = vunpack.c.l.b16 %v128
    %v4359 = vunpack.c.h.b16 %v128
    %v4360 = vunpack.c.l.b16 %v129
    %v4361 = vunpack.c.h.b16 %v129
    %v4362 = vunpack.c.l.b16 %v130
    %v4363 = vunpack.c.h.b16 %v130
    %v4364 = vunpack.c.l.b16 %v131
    %v4365 = vunpack.c.h.b16 %v131
    %v4366 = vunpack.c.l.b16 %v132
    %v4367 = vunpack.c.h.b16 %v132
    %v4368 = vunpack.c.l.b16 %v133
    %v4369 = vunpack.c.h.b16 %v133
    %v4370 = vunpack.c.l.b16 %v134
    %v4371 = vunpack.c.h.b16 %v134
    %v4372 = vunpack.c.l.b16 %v135
    %v4373 = vunpack.c.h.b16 %v135
    %v4374 = vunpack.c.l.b16 %v136
    %v4375 = vunpack.c.h.b16 %v136
    %v4376 = vunpack.c.l.b16 %v137
    %v4377 = vunpack.c.h.b16 %v137
    %v4378 = vunpack.c.l.b16 %v138
    %v4379 = vunpack.c.h.b16 %v138
    %v4380 = vunpack.c.l.b16 %v139
    %v4381 = vunpack.c.h.b16 %v139
    %v4382 = vunpack.c.l.b16 %v140
    %v4383 = vunpack.c.h.b16 %v140
    %v4384 = vunpack.c.l.b16 %v141
    %v4385 = vunpack.c.h.b16 %v141
    %v4386 = vunpack.c.l.b16 %v142
    %v4387 = vunpack.c.h.b16 %v142
    %v4388 = vunpack.c.l.b16 %v143
    %v4389 = vunpack.c.h.b16 %v143
    %v4390 = vunpack.c.l.b16 %v144
    %v4391 = vunpack.c.h.b16 %v144
    %v4392 = vunpack.c.l.b16 %v145
    %v4393 = vunpack.c.h.b16 %v145
    %v4394 = vunpack.c.l.b16 %v146
    %v4395 = vunpack.c.h.b16 %v146
    %v4396 = vunpack.c.l.b16 %v147
    %v4397 = vunpack.c.h.b16 %v147
    %v4398 = vunpack.c.l.b16 %v148
    %v4399 = vunpack.c.h.b16 %v148
    %v4400 = vunpack.c.l.b16 %v149
    %v4401 = vunpack.c.h.b16 %v149
    %v4402 = vunpack.c.l.b16 %v150
    %v4403 = vunpack.c.h.b16 %v150
    %v4404 = vunpack.c.l.b16 %v151
    %v4405 = vunpack.c.h.b16 %v151
    %v4406 = vunpack.c.l.b16 %v152
    %v4407 = vunpack.c.h.b16 %v152
    %v4408 = vunpack.c.l.b16 %v153
    %v4409 = vunpack.c.h.b16 %v153
    %v4410 = vunpack.c.l.b16 %v154
    %v4411 = vunpack.c.h.b16 %v154
    %v4412 = vunpack.c.l.b16 %v155
    %v4413 = vunpack.c.h.b16 %v155
    %v4414 = vunpack.c.l.b16 %v156
    %v4415 = vunpack.c.h.b16 %v156
    %v4416 = vunpack.c.l.b16 %v157
    %v4417 = vunpack.c.h.b16 %v157
    %v4418 = vunpack.c.l.b16 %v158
    %v4419 = vunpack.c.h.b16 %v158
    %v4420 = vunpack.c.l.b16 %v159
    %v4421 = vunpack.c.h.b16 %v159
    %v4422 = vunpack.c.l.b16 %v160
    %v4423 = vunpack.c.h.b16 %v160
    %v4424 = vunpack.c.l.b16 %v161
    %v4425 = vunpack.c.h.b16 %v161
    %v4426 = vunpack.c.l.b16 %v162
    %v4427 = vunpack.c.h.b16 %v162
    %v4428 = vunpack.c.l.b16 %v163
    %v4429 = vunpack.c.h.b16 %v163
    %v4430 = vunpack.c.l.b16 %v164
    %v4431 = vunpack.c.h.b16 %v164
    %v4432 = vunpack.c.l.b16 %v165
    %v4433 = vunpack.c.h.b16 %v165
    %v4434 = vunpack.c.l.b16 %v166
    %v4435 = vunpack.c.h.b16 %v166
    %v4436 = vunpack.c.l.b16 %v167
    %v4437 = vunpack.c.h.b16 %v167
    %v4438 = vunpack.c.l.b16 %v168
    %v4439 = vunpack.c.h.b16 %v168
    %v4440 = vunpack.c.l.b16 %v169
    %v4441 = vunpack.c.h.b16 %v169
    %v4442 = vunpack.c.l.b16 %v170
    %v4443 = vunpack.c.h.b16 %v170
    %v4444 = vunpack.c.l.b16 %v171
    %v4445 = vunpack.c.h.b16 %v171
    %v4446 = vunpack.c.l.b16 %v172
    %v4447 = vunpack.c.h.b16 %v172
    %v4448 = vunpack.c.l.b16 %v173
    %v4449 = vunpack.c.h.b16 %v173
    %v4450 = vunpack.c.l.b16 %v174
    %v4451 = vunpack.c.h.b16 %v174
    %v4452 = vunpack.c.l.b16 %v175
    %v4453 = vunpack.c.h.b16 %v175
    %v4454 = vunpack.c.l.b16 %v176
    %v4455 = vunpack.c.h.b16 %v176
    %v4456 = vunpack.c.l.b16 %v177
    %v4457 = vunpack.c.h.b16 %v177
    %v4458 = vunpack.c.l.b16 %v178
    %v4459 = vunpack.c.h.b16 %v178
    %v4460 = vunpack.c.l.b16 %v179
    %v4461 = vunpack.c.h.b16 %v179
    %v4462 = vunpack.c.l.b16 %v180
    %v4463 = vunpack.c.h.b16 %v180
    %v4464 = vunpack.c.l.b16 %v181
    %v4465 = vunpack.c.h.b16 %v181
    %v4466 = vunpack.c.l.b16 %v182
    %v4467 = vunpack.c.h.b16 %v182
    %v4468 = vunpack.c.l.b16 %v183
    %v4469 = vunpack.c.h.b16 %v183
    %v4470 = vunpack.c.l.b16 %v184
    %v4471 = vunpack.c.h.b16 %v184
    %v4472 = vunpack.c.l.b16 %v185
    %v4473 = vunpack.c.h.b16 %v185
    %v4474 = vunpack.c.l.b16 %v186
    %v4475 = vunpack.c.h.b16 %v186
    %v4476 = vunpack.c.l.b16 %v187
    %v4477 = vunpack.c.h.b16 %v187
    %v4478 = vunpack.c.l.b16 %v188
    %v4479 = vunpack.c.h.b16 %v188
    %v4480 = vunpack.c.l.b16 %v189
    %v4481 = vunpack.c.h.b16 %v189
    %v4482 = vunpack.c.l.b16 %v190
    %v4483 = vunpack.c.h.b16 %v190
    %v4484 = vunpack.c.l.b16 %v191
    %v4485 = vunpack.c.h.b16 %v191
    %v4486 = vunpack.c.l.b16 %v192
    %v4487 = vunpack.c.h.b16 %v192
    %v4488 = vunpack.c.l.b16 %v193
    %v4489 = vunpack.c.h.b16 %v193
    %v4490 = vunpack.c.l.b16 %v194
    %v4491 = vunpack.c.h.b16 %v194
    %v4492 = vunpack.c.l.b16 %v195
    %v4493 = vunpack.c.h.b16 %v195
    %v4494 = vunpack.c.l.b16 %v196
    %v4495 = vunpack.c.h.b16 %v196
    %v4496 = vunpack.c.l.b16 %v197
    %v4497 = vunpack.c.h.b16 %v197
    %v4498 = vunpack.c.l.b16 %v198
    %v4499 = vunpack.c.h.b16 %v198
    %v4500 = vunpack.c.l.b16 %v199
    %v4501 = vunpack.c.h.b16 %v199
    %v4502 = vunpack.c.l.b16 %v200
    %v4503 = vunpack.c.h.b16 %v200
    %v4504 = vunpack.c.l.b16 %v201
    %v4505 = vunpack.c.h.b16 %v201
    %v4506 = vunpack.c.l.b16 %v202
    %v4507 = vunpack.c.h.b16 %v202
    %v4508 = vunpack.c.l.b16 %v203
    %v4509 = vunpack.c.h.b16 %v203
    %v4510 = vunpack.c.l.b16 %v204
    %v4511 = vunpack.c.h.b16 %v204
    %v4512 = vunpack.c.l.b16 %v205
    %v4513 = vunpack.c.h.b16 %v205
    %v4514 = vunpack.c.l.b16 %v206
    %v4515 = vunpack.c.h.b16 %v206
    %v4516 = vunpack.c.l.b16 %v207
    %v4517 = vunpack.c.h.b16 %v207
    %v4518 = vunpack.c.l.b16 %v208
    %v4519 = vunpack.c.h.b16 %v208
    %v4520 = vunpack.c.l.b16 %v209
    %v4521 = vunpack.c.h.b16 %v209
    %v4522 = vunpack.c.l.b16 %v210
    %v4523 = vunpack.c.h.b16 %v210
    %v4524 = vunpack.c.l.b16 %v211
    %v4525 = vunpack.c.h.b16 %v211
    %v4526 = vunpack.c.l.b16 %v212
    %v4527 = vunpack.c.h.b16 %v212
    %v4528 = vpack.c.b16 %v4280, %v4272
    %v4529 = vpack.c.b16 %v4281, %v4273
    %v4530 = vpack.c.b16 %v4282, %v4274
    %v4531 = vpack.c.b16 %v4283, %v4275
    %v4532 = vpack.c.b16 %v4284, %v4276
    %v4533 = vpack.c.b16 %v4285, %v4277
    %v4534 = vpack.c.b16 %v4286, %v4278
    %v4535 = vpack.c.b16 %v4287, %v4279
    %v4536 = vpack.c.b16 %v4296, %v4288
    %v4537 = vpack.c.b16 %v4297, %v4289
    %v4538 = vpack.c.b16 %v4298, %v4290
    %v4539 = vpack.c.b16 %v4299, %v4291
    %v4540 = vpack.c.b16 %v4300, %v4292
    %v4541 = vpack.c.b16 %v4301, %v4293
    %v4542 = vpack.c.b16 %v4302, %v4294
    %v4543 = vpack.c.b16 %v4303, %v4295
    %v4544 = vpack.c.b16 %v4312, %v4304
    %v4545 = vpack.c.b16 %v4313, %v4305
    %v4546 = vpack.c.b16 %v4314, %v4306
    %v4547 = vpack.c.b16 %v4315, %v4307
    %v4548 = vpack.c.b16 %v4316, %v4308
    %v4549 = vpack.c.b16 %v4317, %v4309
    %v4550 = vpack.c.b16 %v4318, %v4310
    %v4551 = vpack.c.b16 %v4319, %v4311
    %v4552 = vpack.c.b16 %v4328, %v4320
    %v4553 = vpack.c.b16 %v4329, %v4321
    %v4554 = vpack.c.b16 %v4330, %v4322
    %v4555 = vpack.c.b16 %v4331, %v4323
    %v4556 = vpack.c.b16 %v4332, %v4324
    %v4557 = vpack.c.b16 %v4333, %v4325
    %v4558 = vpack.c.b16 %v4334, %v4326
    %v4559 = vpack.c.b16 %v4335, %v4327
    %v4560 = vpack.c.b16 %v4344, %v4336
    %v4561 = vpack.c.b16 %v4345, %v4337
    %v4562 = vpack.c.b16 %v4346, %v4338
    %v4563 = vpack.c.b16 %v4347, %v4339
    %v4564 = vpack.c.b16 %v4348, %v4340
    %v4565 = vpack.c.b16 %v4349, %v4341
    %v4566 = vpack.c.b16 %v4350, %v4342
    %v4567 = vpack.c.b16 %v4351, %v4343
    %v4568 = vpack.c.b16 %v4360, %v4352
    %v4569 = vpack.c.b16 %v4361, %v4353
    %v4570 = vpack.c.b16 %v4362, %v4354
    %v4571 = vpack.c.b16 %v4363, %v4355
    %v4572 = vpack.c.b16 %v4364, %v4356
    %v4573 = vpack.c.b16 %v4365, %v4357
    %v4574 = vpack.c.b16 %v4366, %v4358
    %v4575 = vpack.c.b16 %v4367, %v4359
    %v4576 = vpack.c.b16 %v4376, %v4368
    %v4577 = vpack.c.b16 %v4377, %v4369
    %v4578 = vpack.c.b16 %v4378, %v4370
    %v4579 = vpack.c.b16 %v4379, %v4371
    %v4580 = vpack.c.b16 %v4380, %v4372
    %v4581 = vpack.c.b16 %v4381, %v4373
    %v4582 = vpack.c.b16 %v4382, %v4374
    %v4583 = vpack.c.b16 %v4383, %v4375
    %v4584 = vpack.c.b16 %v4392, %v4384
    %v4585 = vpack.c.b16 %v4393, %v4385
    %v4586 = vpack.c.b16 %v4394, %v4386
    %v4587 = vpack.c.b16 %v4395, %v4387
    %v4588 = vpack.c.b16 %v4396, %v4388
    %v4589 = vpack.c.b16 %v4397, %v4389
    %v4590 = vpack.c.b16 %v4398, %v4390
    %v4591 = vpack.c.b16 %v4399, %v4391
    %v4592 = vpack.c.b16 %v4408, %v4400
    %v4593 = vpack.c.b16 %v4409, %v4401
    %v4594 = vpack.c.b16 %v4410, %v4402
    %v4595 = vpack.c.b16 %v4411, %v4403
    %v4596 = vpack.c.b16 %v4412, %v4404
    %v4597 = vpack.c.b16 %v4413, %v4405
    %v4598 = vpack.c.b16 %v4414, %v4406
    %v4599 = vpack.c.b16 %v4415, %v4407
    %v4600 = vpack.c.b16 %v4424, %v4416
    %v4601 = vpack.c.b16 %v4425, %v4417
    %v4602 = vpack.c.b16 %v4426, %v4418
    %v4603 = vpack.c.b16 %v4427, %v4419
    %v4604 = vpack.c.b16 %v4428, %v4420
    %v4605 = vpack.c.b16 %v4429, %v4421
    %v4606 = vpack.c.b16 %v4430, %v4422
    %v4607 = vpack.c.b16 %v4431, %v4423
    %v4608 = vpack.c.b16 %v4440, %v4432
    %v4609 = vpack.c.b16 %v4441, %v4433
    %v4610 = vpack.c.b16 %v4442, %v4434
    %v4611 = vpack.c.b16 %v4443, %v4435
    %v4612 = vpack.c.b16 %v4444, %v4436
    %v4613 = vpack.c.b16 %v4445, %v4437
    %v4614 = vpack.c.b16 %v4446, %v4438
    %v4615 = vpack.c.b16 %v4447, %v4439
    %v4616 = vpack.c.b16 %v4456, %v4448
    %v4617 = vpack.c.b16 %v4457, %v4449
    %v4618 = vpack.c.b16 %v4458, %v4450
    %v4619 = vpack.c.b16 %v4459, %v4451
    %v4620 = vpack.c.b16 %v4460, %v4452
    %v4621 = vpack.c.b16 %v4461, %v4453
    %v4622 = vpack.c.b16 %v4462, %v4454
    %v4623 = vpack.c.b16 %v4463, %v4455
    %v4624 = vpack.c.b16 %v4472, %v4464
    %v4625 = vpack.c.b16 %v4473, %v4465
    %v4626 = vpack.c.b16 %v4474, %v4466
    %v4627 = vpack.c.b16 %v4475, %v4467
    %v4628 = vpack.c.b16 %v4476, %v4468
    %v4629 = vpack.c.b16 %v4477, %v4469
    %v4630 = vpack.c.b16 %v4478, %v4470
    %v4631 = vpack.c.b16 %v4479, %v4471
    %v4632 = vpack.c.b16 %v4488, %v4480
    %v4633 = vpack.c.b16 %v4489, %v4481
    %v4634 = vpack.c.b16 %v4490, %v4482
    %v4635 = vpack.c.b16 %v4491, %v4483
    %v4636 = vpack.c.b16 %v4492, %v4484
    %v4637 = vpack.c.b16 %v4493, %v4485
    %v4638 = vpack.c.b16 %v4494, %v4486
    %v4639 = vpack.c.b16 %v4495, %v4487
    %v4640 = vpack.c.b16 %v4504, %v4496
    %v4641 = vpack.c.b16 %v4505, %v4497
    %v4642 = vpack.c.b16 %v4506, %v4498
    %v4643 = vpack.c.b16 %v4507, %v4499
    %v4644 = vpack.c.b16 %v4508, %v4500
    %v4645 = vpack.c.b16 %v4509, %v4501
    %v4646 = vpack.c.b16 %v4510, %v4502
    %v4647 = vpack.c.b16 %v4511, %v4503
    %v4648 = vpack.c.b16 %v4520, %v4512
    %v4649 = vpack.c.b16 %v4521, %v4513
    %v4650 = vpack.c.b16 %v4522, %v4514
    %v4651 = vpack.c.b16 %v4523, %v4515
    %v4652 = vpack.c.b16 %v4524, %v4516
    %v4653 = vpack.c.b16 %v4525, %v4517
    %v4654 = vpack.c.b16 %v4526, %v4518
    %v4655 = vpack.c.b16 %v4527, %v4519
    %4784 = vmatprep.subr.bf16.mxu0 %v4585
    %4785 = vmatpush1.bf16.msra.mxu0 %v4584
    %4786 = vmatprep.subr.bf16.mxu0 %v4577
    %4787 = vmatpush1.bf16.msra.mxu0 %v4576
    %4788 = vmatprep.subr.bf16.mxu0 %v4569
    %4789 = vmatpush1.bf16.msra.mxu0 %v4568
    %4790 = vmatprep.subr.bf16.mxu0 %v4561
    %4791 = vmatpush1.bf16.msra.mxu0 %v4560
    %4792 = vmatprep.subr.bf16.mxu0 %v4553
    %4793 = vmatpush1.bf16.msra.mxu0 %v4552
    %4794 = vmatprep.subr.bf16.mxu0 %v4545
    %4795 = vmatpush1.bf16.msra.mxu0 %v4544
    %4796 = vmatprep.subr.bf16.mxu0 %v4537
    %4797 = vmatpush1.bf16.msra.mxu0 %v4536
    %4798 = vmatprep.subr.bf16.mxu0 %v4529
    %4799 = vmatpush1.bf16.msra.mxu0 %v4528
    %4800 = vmatprep.subr.bf16.mxu0 %v4649
    %4801 = vmatpush2.bf16.msra.mxu0 %v4648
    %4802 = vmatprep.subr.bf16.mxu0 %v4641
    %4803 = vmatpush2.bf16.msra.mxu0 %v4640
    %4804 = vmatprep.subr.bf16.mxu0 %v4633
    %4805 = vmatpush2.bf16.msra.mxu0 %v4632
    %4806 = vmatprep.subr.bf16.mxu0 %v4625
    %4807 = vmatpush2.bf16.msra.mxu0 %v4624
    %4808 = vmatprep.subr.bf16.mxu0 %v4617
    %4809 = vmatpush2.bf16.msra.mxu0 %v4616
    %4810 = vmatprep.subr.bf16.mxu0 %v4609
    %4811 = vmatpush2.bf16.msra.mxu0 %v4608
    %4812 = vmatprep.subr.bf16.mxu0 %v4601
    %4813 = vmatpush2.bf16.msra.mxu0 %v4600
    %4814 = vmatprep.subr.bf16.mxu0 %v4593
    %4815 = vmatpush2.bf16.msra.mxu0 %v4592
    %4816 = vmatprep.mubr.bf16.mxu0 0
    %4817 = vmatmul.mubr.bf16.gmra.mxu0 0
    %v4818 = vpop.f32.mrf.mxu0
    %v4819 = vadd.f32 0.0, %v4818
    %v4820 = vpop.f32.mrf.mxu0
    %v4821 = vadd.f32 0.0, %v4820
    %v4822 = vpop.f32.mrf.mxu0
    %v4823 = vpop.f32.mrf.mxu0
    %4824 = vdwg.mxu0
    %4825 = vmatprep.subr.bf16.mxu0 %v4587
    %4826 = vmatpush1.bf16.msra.mxu0 %v4586
    %4827 = vmatprep.subr.bf16.mxu0 %v4579
    %4828 = vmatpush1.bf16.msra.mxu0 %v4578
    %4829 = vmatprep.subr.bf16.mxu0 %v4571
    %4830 = vmatpush1.bf16.msra.mxu0 %v4570
    %4831 = vmatprep.subr.bf16.mxu0 %v4563
    %4832 = vmatpush1.bf16.msra.mxu0 %v4562
    %4833 = vmatprep.subr.bf16.mxu0 %v4555
    %4834 = vmatpush1.bf16.msra.mxu0 %v4554
    %4835 = vmatprep.subr.bf16.mxu0 %v4547
    %4836 = vmatpush1.bf16.msra.mxu0 %v4546
    %4837 = vmatprep.subr.bf16.mxu0 %v4539
    %4838 = vmatpush1.bf16.msra.mxu0 %v4538
    %4839 = vmatprep.subr.bf16.mxu0 %v4531
    %4840 = vmatpush1.bf16.msra.mxu0 %v4530
    %4841 = vmatprep.subr.bf16.mxu0 %v4651
    %4842 = vmatpush2.bf16.msra.mxu0 %v4650
    %4843 = vmatprep.subr.bf16.mxu0 %v4643
    %4844 = vmatpush2.bf16.msra.mxu0 %v4642
    %4845 = vmatprep.subr.bf16.mxu0 %v4635
    %4846 = vmatpush2.bf16.msra.mxu0 %v4634
    %4847 = vmatprep.subr.bf16.mxu0 %v4627
    %4848 = vmatpush2.bf16.msra.mxu0 %v4626
    %4849 = vmatprep.subr.bf16.mxu0 %v4619
    %4850 = vmatpush2.bf16.msra.mxu0 %v4618
    %4851 = vmatprep.subr.bf16.mxu0 %v4611
    %4852 = vmatpush2.bf16.msra.mxu0 %v4610
    %4853 = vmatprep.subr.bf16.mxu0 %v4603
    %4854 = vmatpush2.bf16.msra.mxu0 %v4602
    %4855 = vmatprep.subr.bf16.mxu0 %v4595
    %4856 = vmatpush2.bf16.msra.mxu0 %v4594
    %4857 = vmatprep.mubr.bf16.mxu0 0
    %4858 = vmatmul.mubr.bf16.gmra.mxu0 0
    %v4859 = vpop.f32.mrf.mxu0
    %v4860 = vadd.f32 0.0, %v4859
    %v4861 = vpop.f32.mrf.mxu0
    %v4862 = vadd.f32 0.0, %v4861
    %v4863 = vpop.f32.mrf.mxu0
    %v4864 = vpop.f32.mrf.mxu0
    %4865 = vdwg.mxu0
    %4866 = vmatprep.subr.bf16.mxu0 %v4589
    %4867 = vmatpush1.bf16.msra.mxu0 %v4588
    %4868 = vmatprep.subr.bf16.mxu0 %v4581
    %4869 = vmatpush1.bf16.msra.mxu0 %v4580
    %4870 = vmatprep.subr.bf16.mxu0 %v4573
    %4871 = vmatpush1.bf16.msra.mxu0 %v4572
    %4872 = vmatprep.subr.bf16.mxu0 %v4565
    %4873 = vmatpush1.bf16.msra.mxu0 %v4564
    %4874 = vmatprep.subr.bf16.mxu0 %v4557
    %4875 = vmatpush1.bf16.msra.mxu0 %v4556
    %4876 = vmatprep.subr.bf16.mxu0 %v4549
    %4877 = vmatpush1.bf16.msra.mxu0 %v4548
    %4878 = vmatprep.subr.bf16.mxu0 %v4541
    %4879 = vmatpush1.bf16.msra.mxu0 %v4540
    %4880 = vmatprep.subr.bf16.mxu0 %v4533
    %4881 = vmatpush1.bf16.msra.mxu0 %v4532
    %4882 = vmatprep.subr.bf16.mxu0 %v4653
    %4883 = vmatpush2.bf16.msra.mxu0 %v4652
    %4884 = vmatprep.subr.bf16.mxu0 %v4645
    %4885 = vmatpush2.bf16.msra.mxu0 %v4644
    %4886 = vmatprep.subr.bf16.mxu0 %v4637
    %4887 = vmatpush2.bf16.msra.mxu0 %v4636
    %4888 = vmatprep.subr.bf16.mxu0 %v4629
    %4889 = vmatpush2.bf16.msra.mxu0 %v4628
    %4890 = vmatprep.subr.bf16.mxu0 %v4621
    %4891 = vmatpush2.bf16.msra.mxu0 %v4620
    %4892 = vmatprep.subr.bf16.mxu0 %v4613
    %4893 = vmatpush2.bf16.msra.mxu0 %v4612
    %4894 = vmatprep.subr.bf16.mxu0 %v4605
    %4895 = vmatpush2.bf16.msra.mxu0 %v4604
    %4896 = vmatprep.subr.bf16.mxu0 %v4597
    %4897 = vmatpush2.bf16.msra.mxu0 %v4596
    %4898 = vmatprep.mubr.bf16.mxu0 0
    %4899 = vmatmul.mubr.bf16.gmra.mxu0 0
    %v4900 = vpop.f32.mrf.mxu0
    %v4901 = vadd.f32 0.0, %v4900
    %v4902 = vpop.f32.mrf.mxu0
    %v4903 = vadd.f32 0.0, %v4902
    %v4904 = vpop.f32.mrf.mxu0
    %v4905 = vpop.f32.mrf.mxu0
    %4906 = vdwg.mxu0
    %4907 = vmatprep.subr.bf16.mxu0 %v4591
    %4908 = vmatpush1.bf16.msra.mxu0 %v4590
    %4909 = vmatprep.subr.bf16.mxu0 %v4583
    %4910 = vmatpush1.bf16.msra.mxu0 %v4582
    %4911 = vmatprep.subr.bf16.mxu0 %v4575
    %4912 = vmatpush1.bf16.msra.mxu0 %v4574
    %4913 = vmatprep.subr.bf16.mxu0 %v4567
    %4914 = vmatpush1.bf16.msra.mxu0 %v4566
    %4915 = vmatprep.subr.bf16.mxu0 %v4559
    %4916 = vmatpush1.bf16.msra.mxu0 %v4558
    %4917 = vmatprep.subr.bf16.mxu0 %v4551
    %4918 = vmatpush1.bf16.msra.mxu0 %v4550
    %4919 = vmatprep.subr.bf16.mxu0 %v4543
    %4920 = vmatpush1.bf16.msra.mxu0 %v4542
    %4921 = vmatprep.subr.bf16.mxu0 %v4535
    %4922 = vmatpush1.bf16.msra.mxu0 %v4534
    %4923 = vmatprep.subr.bf16.mxu0 %v4655
    %4924 = vmatpush2.bf16.msra.mxu0 %v4654
    %4925 = vmatprep.subr.bf16.mxu0 %v4647
    %4926 = vmatpush2.bf16.msra.mxu0 %v4646
    %4927 = vmatprep.subr.bf16.mxu0 %v4639
    %4928 = vmatpush2.bf16.msra.mxu0 %v4638
    %4929 = vmatprep.subr.bf16.mxu0 %v4631
    %4930 = vmatpush2.bf16.msra.mxu0 %v4630
    %4931 = vmatprep.subr.bf16.mxu0 %v4623
    %4932 = vmatpush2.bf16.msra.mxu0 %v4622
    %4933 = vmatprep.subr.bf16.mxu0 %v4615
    %4934 = vmatpush2.bf16.msra.mxu0 %v4614
    %4935 = vmatprep.subr.bf16.mxu0 %v4607
    %4936 = vmatpush2.bf16.msra.mxu0 %v4606
    %4937 = vmatprep.subr.bf16.mxu0 %v4599
    %4938 = vmatpush2.bf16.msra.mxu0 %v4598
    %4939 = vmatprep.mubr.bf16.mxu0 0
    %4940 = vmatmul.mubr.bf16.gmra.mxu0 0
    %v4941 = vpop.f32.mrf.mxu0
    %v4942 = vadd.f32 0.0, %v4941
    %v4943 = vpop.f32.mrf.mxu0
    %v4944 = vadd.f32 0.0, %v4943
    %v4945 = vpop.f32.mrf.mxu0
    %v4946 = vpop.f32.mrf.mxu0
    %4947 = vdwg.mxu0
    %v4948 = vadd.f32 %v4136, %v4819
    %v4949 = vadd.f32 %v4137, %v4821
    %v4950 = vadd.f32 %v4138, %v4860
    %v4951 = vadd.f32 %v4139, %v4862
    %v4952 = vadd.f32 %v4140, %v4901
    %v4953 = vadd.f32 %v4141, %v4903
    %v4954 = vadd.f32 %v4142, %v4942
    %v4955 = vadd.f32 %v4143, %v4944
    %v4957 = vlaneseq
    %v4958 = vshrl.u32 %v4957, 7
    %v4959 = vsub.s32 0, %v4958
    %v4960 = vrot.slane %v213, %v4959
    %v4961 = vlaneseq
    %v4962 = vshrl.u32 %v4961, 7
    %v4963 = vsub.s32 1, %v4962
    %v4964 = vrot.slane %v213, %v4963
    %v4965 = vlaneseq
    %v4966 = vshrl.u32 %v4965, 7
    %v4967 = vsub.s32 2, %v4966
    %v4968 = vrot.slane %v213, %v4967
    %v4969 = vlaneseq
    %v4970 = vshrl.u32 %v4969, 7
    %v4971 = vsub.s32 3, %v4970
    %v4972 = vrot.slane %v213, %v4971
    %v4973 = vlaneseq
    %v4974 = vshrl.u32 %v4973, 7
    %v4975 = vsub.s32 4, %v4974
    %v4976 = vrot.slane %v213, %v4975
    %v4977 = vlaneseq
    %v4978 = vshrl.u32 %v4977, 7
    %v4979 = vsub.s32 5, %v4978
    %v4980 = vrot.slane %v213, %v4979
    %v4981 = vlaneseq
    %v4982 = vshrl.u32 %v4981, 7
    %v4983 = vsub.s32 6, %v4982
    %v4984 = vrot.slane %v213, %v4983
    %v4985 = vlaneseq
    %v4986 = vshrl.u32 %v4985, 7
    %v4987 = vsub.s32 7, %v4986
    %v4988 = vrot.slane %v213, %v4987
    %v4997 = vadd.f32 %v4948, %v4960
    %v4998 = vadd.f32 %v4949, %v4964
    %v4999 = vadd.f32 %v4950, %v4968
    %v5000 = vadd.f32 %v4951, %v4972
    %v5001 = vadd.f32 %v4952, %v4976
    %v5002 = vadd.f32 %v4953, %v4980
    %v5003 = vadd.f32 %v4954, %v4984
    %v5004 = vadd.f32 %v4955, %v4988
    %v5005 = vxor.u32 %v4997, 2147483648
    %v5006 = vxor.u32 %v4998, 2147483648
    %v5007 = vmul.f32 %v5005, 1.442695
    %v5008 = vpow.pop %v5007
    %v5009 = vmul.f32 %v5006, 1.442695
    %v5010 = vpow.pop %v5009
    %v5011 = vadd.f32 %v5008, 1.0
    %v5012 = vadd.f32 %v5010, 1.0
    %v5013 = vrcp.pop %v5011
    %v5014 = vmul.f32 1.0, %v5013
    %v5015 = vrcp.pop %v5012
    %v5016 = vmul.f32 1.0, %v5015
    %v5017 = vxor.u32 %v4999, 2147483648
    %v5018 = vxor.u32 %v5000, 2147483648
    %v5019 = vmul.f32 %v5017, 1.442695
    %v5020 = vpow.pop %v5019
    %v5021 = vmul.f32 %v5018, 1.442695
    %v5022 = vpow.pop %v5021
    %v5023 = vadd.f32 %v5020, 1.0
    %v5024 = vadd.f32 %v5022, 1.0
    %v5025 = vrcp.pop %v5023
    %v5026 = vmul.f32 1.0, %v5025
    %v5027 = vrcp.pop %v5024
    %v5028 = vmul.f32 1.0, %v5027
    %v5029 = vtanh.pop %v5001
    %v5030 = vtanh.pop %v5002
    %v5031 = vxor.u32 %v5003, 2147483648
    %v5032 = vxor.u32 %v5004, 2147483648
    %v5033 = vmul.f32 %v5031, 1.442695
    %v5034 = vpow.pop %v5033
    %v5035 = vmul.f32 %v5032, 1.442695
    %v5036 = vpow.pop %v5035
    %v5037 = vadd.f32 %v5034, 1.0
    %v5038 = vadd.f32 %v5036, 1.0
    %v5039 = vrcp.pop %v5037
    %v5040 = vmul.f32 1.0, %v5039
    %v5041 = vrcp.pop %v5038
    %v5042 = vmul.f32 1.0, %v5041
    %v5043 = vmul.f32 %v5026, 0.0
    %v5044 = vmul.f32 %v5028, 0.0
    %v5045 = vmul.f32 %v5014, %v5029
    %v5046 = vmul.f32 %v5016, %v5030
    %v5047 = vadd.f32 %v5043, %v5045
    %v5048 = vadd.f32 %v5044, %v5046
    %v5049 = vtanh.pop %v5047
    %v5050 = vtanh.pop %v5048
    %v5051 = vmul.f32 %v5040, %v5049
    %v5052 = vmul.f32 %v5042, %v5050
    %v5053 = vpack.c.bf16 %v5051, %v5051
    %v5054 = vpack.c.bf16 %v5052, %v5052
    %v5055 = vpack.c.bf16 0.0, 0.0
    %v5057 = vlaneseq
    %v5058 = vshrl.u32 %v5057, 7
    %v5059 = vsub.s32 0, %v5058
    %v5060 = vrot.slane %v470, %v5059
    %v5061 = vlaneseq
    %v5062 = vshrl.u32 %v5061, 7
    %v5063 = vsub.s32 1, %v5062
    %v5064 = vrot.slane %v470, %v5063
    %v5065 = vlaneseq
    %v5066 = vshrl.u32 %v5065, 7
    %v5067 = vsub.s32 2, %v5066
    %v5068 = vrot.slane %v470, %v5067
    %v5069 = vlaneseq
    %v5070 = vshrl.u32 %v5069, 7
    %v5071 = vsub.s32 3, %v5070
    %v5072 = vrot.slane %v470, %v5071
    %v5073 = vlaneseq
    %v5074 = vshrl.u32 %v5073, 7
    %v5075 = vsub.s32 4, %v5074
    %v5076 = vrot.slane %v470, %v5075
    %v5077 = vlaneseq
    %v5078 = vshrl.u32 %v5077, 7
    %v5079 = vsub.s32 5, %v5078
    %v5080 = vrot.slane %v470, %v5079
    %v5081 = vlaneseq
    %v5082 = vshrl.u32 %v5081, 7
    %v5083 = vsub.s32 6, %v5082
    %v5084 = vrot.slane %v470, %v5083
    %v5085 = vlaneseq
    %v5086 = vshrl.u32 %v5085, 7
    %v5087 = vsub.s32 7, %v5086
    %v5088 = vrot.slane %v470, %v5087
    %v5353 = vunpack.c.l.b16 %v214
    %v5354 = vunpack.c.h.b16 %v214
    %v5355 = vunpack.c.l.b16 %v215
    %v5356 = vunpack.c.h.b16 %v215
    %v5357 = vunpack.c.l.b16 %v216
    %v5358 = vunpack.c.h.b16 %v216
    %v5359 = vunpack.c.l.b16 %v217
    %v5360 = vunpack.c.h.b16 %v217
    %v5361 = vunpack.c.l.b16 %v218
    %v5362 = vunpack.c.h.b16 %v218
    %v5363 = vunpack.c.l.b16 %v219
    %v5364 = vunpack.c.h.b16 %v219
    %v5365 = vunpack.c.l.b16 %v220
    %v5366 = vunpack.c.h.b16 %v220
    %v5367 = vunpack.c.l.b16 %v221
    %v5368 = vunpack.c.h.b16 %v221
    %v5369 = vunpack.c.l.b16 %v222
    %v5370 = vunpack.c.h.b16 %v222
    %v5371 = vunpack.c.l.b16 %v223
    %v5372 = vunpack.c.h.b16 %v223
    %v5373 = vunpack.c.l.b16 %v224
    %v5374 = vunpack.c.h.b16 %v224
    %v5375 = vunpack.c.l.b16 %v225
    %v5376 = vunpack.c.h.b16 %v225
    %v5377 = vunpack.c.l.b16 %v226
    %v5378 = vunpack.c.h.b16 %v226
    %v5379 = vunpack.c.l.b16 %v227
    %v5380 = vunpack.c.h.b16 %v227
    %v5381 = vunpack.c.l.b16 %v228
    %v5382 = vunpack.c.h.b16 %v228
    %v5383 = vunpack.c.l.b16 %v229
    %v5384 = vunpack.c.h.b16 %v229
    %v5385 = vunpack.c.l.b16 %v230
    %v5386 = vunpack.c.h.b16 %v230
    %v5387 = vunpack.c.l.b16 %v231
    %v5388 = vunpack.c.h.b16 %v231
    %v5389 = vunpack.c.l.b16 %v232
    %v5390 = vunpack.c.h.b16 %v232
    %v5391 = vunpack.c.l.b16 %v233
    %v5392 = vunpack.c.h.b16 %v233
    %v5393 = vunpack.c.l.b16 %v234
    %v5394 = vunpack.c.h.b16 %v234
    %v5395 = vunpack.c.l.b16 %v235
    %v5396 = vunpack.c.h.b16 %v235
    %v5397 = vunpack.c.l.b16 %v236
    %v5398 = vunpack.c.h.b16 %v236
    %v5399 = vunpack.c.l.b16 %v237
    %v5400 = vunpack.c.h.b16 %v237
    %v5401 = vunpack.c.l.b16 %v238
    %v5402 = vunpack.c.h.b16 %v238
    %v5403 = vunpack.c.l.b16 %v239
    %v5404 = vunpack.c.h.b16 %v239
    %v5405 = vunpack.c.l.b16 %v240
    %v5406 = vunpack.c.h.b16 %v240
    %v5407 = vunpack.c.l.b16 %v241
    %v5408 = vunpack.c.h.b16 %v241
    %v5409 = vunpack.c.l.b16 %v242
    %v5410 = vunpack.c.h.b16 %v242
    %v5411 = vunpack.c.l.b16 %v243
    %v5412 = vunpack.c.h.b16 %v243
    %v5413 = vunpack.c.l.b16 %v244
    %v5414 = vunpack.c.h.b16 %v244
    %v5415 = vunpack.c.l.b16 %v245
    %v5416 = vunpack.c.h.b16 %v245
    %v5417 = vunpack.c.l.b16 %v246
    %v5418 = vunpack.c.h.b16 %v246
    %v5419 = vunpack.c.l.b16 %v247
    %v5420 = vunpack.c.h.b16 %v247
    %v5421 = vunpack.c.l.b16 %v248
    %v5422 = vunpack.c.h.b16 %v248
    %v5423 = vunpack.c.l.b16 %v249
    %v5424 = vunpack.c.h.b16 %v249
    %v5425 = vunpack.c.l.b16 %v250
    %v5426 = vunpack.c.h.b16 %v250
    %v5427 = vunpack.c.l.b16 %v251
    %v5428 = vunpack.c.h.b16 %v251
    %v5429 = vunpack.c.l.b16 %v252
    %v5430 = vunpack.c.h.b16 %v252
    %v5431 = vunpack.c.l.b16 %v253
    %v5432 = vunpack.c.h.b16 %v253
    %v5433 = vunpack.c.l.b16 %v254
    %v5434 = vunpack.c.h.b16 %v254
    %v5435 = vunpack.c.l.b16 %v255
    %v5436 = vunpack.c.h.b16 %v255
    %v5437 = vunpack.c.l.b16 %v256
    %v5438 = vunpack.c.h.b16 %v256
    %v5439 = vunpack.c.l.b16 %v257
    %v5440 = vunpack.c.h.b16 %v257
    %v5441 = vunpack.c.l.b16 %v258
    %v5442 = vunpack.c.h.b16 %v258
    %v5443 = vunpack.c.l.b16 %v259
    %v5444 = vunpack.c.h.b16 %v259
    %v5445 = vunpack.c.l.b16 %v260
    %v5446 = vunpack.c.h.b16 %v260
    %v5447 = vunpack.c.l.b16 %v261
    %v5448 = vunpack.c.h.b16 %v261
    %v5449 = vunpack.c.l.b16 %v262
    %v5450 = vunpack.c.h.b16 %v262
    %v5451 = vunpack.c.l.b16 %v263
    %v5452 = vunpack.c.h.b16 %v263
    %v5453 = vunpack.c.l.b16 %v264
    %v5454 = vunpack.c.h.b16 %v264
    %v5455 = vunpack.c.l.b16 %v265
    %v5456 = vunpack.c.h.b16 %v265
    %v5457 = vunpack.c.l.b16 %v266
    %v5458 = vunpack.c.h.b16 %v266
    %v5459 = vunpack.c.l.b16 %v267
    %v5460 = vunpack.c.h.b16 %v267
    %v5461 = vunpack.c.l.b16 %v268
    %v5462 = vunpack.c.h.b16 %v268
    %v5463 = vunpack.c.l.b16 %v269
    %v5464 = vunpack.c.h.b16 %v269
    %v5465 = vunpack.c.l.b16 %v270
    %v5466 = vunpack.c.h.b16 %v270
    %v5467 = vunpack.c.l.b16 %v271
    %v5468 = vunpack.c.h.b16 %v271
    %v5469 = vunpack.c.l.b16 %v272
    %v5470 = vunpack.c.h.b16 %v272
    %v5471 = vunpack.c.l.b16 %v273
    %v5472 = vunpack.c.h.b16 %v273
    %v5473 = vunpack.c.l.b16 %v274
    %v5474 = vunpack.c.h.b16 %v274
    %v5475 = vunpack.c.l.b16 %v275
    %v5476 = vunpack.c.h.b16 %v275
    %v5477 = vunpack.c.l.b16 %v276
    %v5478 = vunpack.c.h.b16 %v276
    %v5479 = vunpack.c.l.b16 %v277
    %v5480 = vunpack.c.h.b16 %v277
    %v5481 = vunpack.c.l.b16 %v278
    %v5482 = vunpack.c.h.b16 %v278
    %v5483 = vunpack.c.l.b16 %v279
    %v5484 = vunpack.c.h.b16 %v279
    %v5485 = vunpack.c.l.b16 %v280
    %v5486 = vunpack.c.h.b16 %v280
    %v5487 = vunpack.c.l.b16 %v281
    %v5488 = vunpack.c.h.b16 %v281
    %v5489 = vunpack.c.l.b16 %v282
    %v5490 = vunpack.c.h.b16 %v282
    %v5491 = vunpack.c.l.b16 %v283
    %v5492 = vunpack.c.h.b16 %v283
    %v5493 = vunpack.c.l.b16 %v284
    %v5494 = vunpack.c.h.b16 %v284
    %v5495 = vunpack.c.l.b16 %v285
    %v5496 = vunpack.c.h.b16 %v285
    %v5497 = vunpack.c.l.b16 %v286
    %v5498 = vunpack.c.h.b16 %v286
    %v5499 = vunpack.c.l.b16 %v287
    %v5500 = vunpack.c.h.b16 %v287
    %v5501 = vunpack.c.l.b16 %v288
    %v5502 = vunpack.c.h.b16 %v288
    %v5503 = vunpack.c.l.b16 %v289
    %v5504 = vunpack.c.h.b16 %v289
    %v5505 = vunpack.c.l.b16 %v290
    %v5506 = vunpack.c.h.b16 %v290
    %v5507 = vunpack.c.l.b16 %v291
    %v5508 = vunpack.c.h.b16 %v291
    %v5509 = vunpack.c.l.b16 %v292
    %v5510 = vunpack.c.h.b16 %v292
    %v5511 = vunpack.c.l.b16 %v293
    %v5512 = vunpack.c.h.b16 %v293
    %v5513 = vunpack.c.l.b16 %v294
    %v5514 = vunpack.c.h.b16 %v294
    %v5515 = vunpack.c.l.b16 %v295
    %v5516 = vunpack.c.h.b16 %v295
    %v5517 = vunpack.c.l.b16 %v296
    %v5518 = vunpack.c.h.b16 %v296
    %v5519 = vunpack.c.l.b16 %v297
    %v5520 = vunpack.c.h.b16 %v297
    %v5521 = vunpack.c.l.b16 %v298
    %v5522 = vunpack.c.h.b16 %v298
    %v5523 = vunpack.c.l.b16 %v299
    %v5524 = vunpack.c.h.b16 %v299
    %v5525 = vunpack.c.l.b16 %v300
    %v5526 = vunpack.c.h.b16 %v300
    %v5527 = vunpack.c.l.b16 %v301
    %v5528 = vunpack.c.h.b16 %v301
    %v5529 = vunpack.c.l.b16 %v302
    %v5530 = vunpack.c.h.b16 %v302
    %v5531 = vunpack.c.l.b16 %v303
    %v5532 = vunpack.c.h.b16 %v303
    %v5533 = vunpack.c.l.b16 %v304
    %v5534 = vunpack.c.h.b16 %v304
    %v5535 = vunpack.c.l.b16 %v305
    %v5536 = vunpack.c.h.b16 %v305
    %v5537 = vunpack.c.l.b16 %v306
    %v5538 = vunpack.c.h.b16 %v306
    %v5539 = vunpack.c.l.b16 %v307
    %v5540 = vunpack.c.h.b16 %v307
    %v5541 = vunpack.c.l.b16 %v308
    %v5542 = vunpack.c.h.b16 %v308
    %v5543 = vunpack.c.l.b16 %v309
    %v5544 = vunpack.c.h.b16 %v309
    %v5545 = vunpack.c.l.b16 %v310
    %v5546 = vunpack.c.h.b16 %v310
    %v5547 = vunpack.c.l.b16 %v311
    %v5548 = vunpack.c.h.b16 %v311
    %v5549 = vunpack.c.l.b16 %v312
    %v5550 = vunpack.c.h.b16 %v312
    %v5551 = vunpack.c.l.b16 %v313
    %v5552 = vunpack.c.h.b16 %v313
    %v5553 = vunpack.c.l.b16 %v314
    %v5554 = vunpack.c.h.b16 %v314
    %v5555 = vunpack.c.l.b16 %v315
    %v5556 = vunpack.c.h.b16 %v315
    %v5557 = vunpack.c.l.b16 %v316
    %v5558 = vunpack.c.h.b16 %v316
    %v5559 = vunpack.c.l.b16 %v317
    %v5560 = vunpack.c.h.b16 %v317
    %v5561 = vunpack.c.l.b16 %v318
    %v5562 = vunpack.c.h.b16 %v318
    %v5563 = vunpack.c.l.b16 %v319
    %v5564 = vunpack.c.h.b16 %v319
    %v5565 = vunpack.c.l.b16 %v320
    %v5566 = vunpack.c.h.b16 %v320
    %v5567 = vunpack.c.l.b16 %v321
    %v5568 = vunpack.c.h.b16 %v321
    %v5569 = vunpack.c.l.b16 %v322
    %v5570 = vunpack.c.h.b16 %v322
    %v5571 = vunpack.c.l.b16 %v323
    %v5572 = vunpack.c.h.b16 %v323
    %v5573 = vunpack.c.l.b16 %v324
    %v5574 = vunpack.c.h.b16 %v324
    %v5575 = vunpack.c.l.b16 %v325
    %v5576 = vunpack.c.h.b16 %v325
    %v5577 = vunpack.c.l.b16 %v326
    %v5578 = vunpack.c.h.b16 %v326
    %v5579 = vunpack.c.l.b16 %v327
    %v5580 = vunpack.c.h.b16 %v327
    %v5581 = vunpack.c.l.b16 %v328
    %v5582 = vunpack.c.h.b16 %v328
    %v5583 = vunpack.c.l.b16 %v329
    %v5584 = vunpack.c.h.b16 %v329
    %v5585 = vunpack.c.l.b16 %v330
    %v5586 = vunpack.c.h.b16 %v330
    %v5587 = vunpack.c.l.b16 %v331
    %v5588 = vunpack.c.h.b16 %v331
    %v5589 = vunpack.c.l.b16 %v332
    %v5590 = vunpack.c.h.b16 %v332
    %v5591 = vunpack.c.l.b16 %v333
    %v5592 = vunpack.c.h.b16 %v333
    %v5593 = vunpack.c.l.b16 %v334
    %v5594 = vunpack.c.h.b16 %v334
    %v5595 = vunpack.c.l.b16 %v335
    %v5596 = vunpack.c.h.b16 %v335
    %v5597 = vunpack.c.l.b16 %v336
    %v5598 = vunpack.c.h.b16 %v336
    %v5599 = vunpack.c.l.b16 %v337
    %v5600 = vunpack.c.h.b16 %v337
    %v5601 = vunpack.c.l.b16 %v338
    %v5602 = vunpack.c.h.b16 %v338
    %v5603 = vunpack.c.l.b16 %v339
    %v5604 = vunpack.c.h.b16 %v339
    %v5605 = vunpack.c.l.b16 %v340
    %v5606 = vunpack.c.h.b16 %v340
    %v5607 = vunpack.c.l.b16 %v341
    %v5608 = vunpack.c.h.b16 %v341
    %v5609 = vunpack.c.l.b16 %v342
    %v5610 = vunpack.c.h.b16 %v342
    %v5611 = vunpack.c.l.b16 %v343
    %v5612 = vunpack.c.h.b16 %v343
    %v5613 = vunpack.c.l.b16 %v344
    %v5614 = vunpack.c.h.b16 %v344
    %v5615 = vunpack.c.l.b16 %v345
    %v5616 = vunpack.c.h.b16 %v345
    %v5617 = vunpack.c.l.b16 %v346
    %v5618 = vunpack.c.h.b16 %v346
    %v5619 = vunpack.c.l.b16 %v347
    %v5620 = vunpack.c.h.b16 %v347
    %v5621 = vunpack.c.l.b16 %v348
    %v5622 = vunpack.c.h.b16 %v348
    %v5623 = vunpack.c.l.b16 %v349
    %v5624 = vunpack.c.h.b16 %v349
    %v5625 = vunpack.c.l.b16 %v350
    %v5626 = vunpack.c.h.b16 %v350
    %v5627 = vunpack.c.l.b16 %v351
    %v5628 = vunpack.c.h.b16 %v351
    %v5629 = vunpack.c.l.b16 %v352
    %v5630 = vunpack.c.h.b16 %v352
    %v5631 = vunpack.c.l.b16 %v353
    %v5632 = vunpack.c.h.b16 %v353
    %v5633 = vunpack.c.l.b16 %v354
    %v5634 = vunpack.c.h.b16 %v354
    %v5635 = vunpack.c.l.b16 %v355
    %v5636 = vunpack.c.h.b16 %v355
    %v5637 = vunpack.c.l.b16 %v356
    %v5638 = vunpack.c.h.b16 %v356
    %v5639 = vunpack.c.l.b16 %v357
    %v5640 = vunpack.c.h.b16 %v357
    %v5641 = vunpack.c.l.b16 %v358
    %v5642 = vunpack.c.h.b16 %v358
    %v5643 = vunpack.c.l.b16 %v359
    %v5644 = vunpack.c.h.b16 %v359
    %v5645 = vunpack.c.l.b16 %v360
    %v5646 = vunpack.c.h.b16 %v360
    %v5647 = vunpack.c.l.b16 %v361
    %v5648 = vunpack.c.h.b16 %v361
    %v5649 = vunpack.c.l.b16 %v362
    %v5650 = vunpack.c.h.b16 %v362
    %v5651 = vunpack.c.l.b16 %v363
    %v5652 = vunpack.c.h.b16 %v363
    %v5653 = vunpack.c.l.b16 %v364
    %v5654 = vunpack.c.h.b16 %v364
    %v5655 = vunpack.c.l.b16 %v365
    %v5656 = vunpack.c.h.b16 %v365
    %v5657 = vunpack.c.l.b16 %v366
    %v5658 = vunpack.c.h.b16 %v366
    %v5659 = vunpack.c.l.b16 %v367
    %v5660 = vunpack.c.h.b16 %v367
    %v5661 = vunpack.c.l.b16 %v368
    %v5662 = vunpack.c.h.b16 %v368
    %v5663 = vunpack.c.l.b16 %v369
    %v5664 = vunpack.c.h.b16 %v369
    %v5665 = vunpack.c.l.b16 %v370
    %v5666 = vunpack.c.h.b16 %v370
    %v5667 = vunpack.c.l.b16 %v371
    %v5668 = vunpack.c.h.b16 %v371
    %v5669 = vunpack.c.l.b16 %v372
    %v5670 = vunpack.c.h.b16 %v372
    %v5671 = vunpack.c.l.b16 %v373
    %v5672 = vunpack.c.h.b16 %v373
    %v5673 = vunpack.c.l.b16 %v374
    %v5674 = vunpack.c.h.b16 %v374
    %v5675 = vunpack.c.l.b16 %v375
    %v5676 = vunpack.c.h.b16 %v375
    %v5677 = vunpack.c.l.b16 %v376
    %v5678 = vunpack.c.h.b16 %v376
    %v5679 = vunpack.c.l.b16 %v377
    %v5680 = vunpack.c.h.b16 %v377
    %v5681 = vunpack.c.l.b16 %v378
    %v5682 = vunpack.c.h.b16 %v378
    %v5683 = vunpack.c.l.b16 %v379
    %v5684 = vunpack.c.h.b16 %v379
    %v5685 = vunpack.c.l.b16 %v380
    %v5686 = vunpack.c.h.b16 %v380
    %v5687 = vunpack.c.l.b16 %v381
    %v5688 = vunpack.c.h.b16 %v381
    %v5689 = vunpack.c.l.b16 %v382
    %v5690 = vunpack.c.h.b16 %v382
    %v5691 = vunpack.c.l.b16 %v383
    %v5692 = vunpack.c.h.b16 %v383
    %v5693 = vunpack.c.l.b16 %v384
    %v5694 = vunpack.c.h.b16 %v384
    %v5695 = vunpack.c.l.b16 %v385
    %v5696 = vunpack.c.h.b16 %v385
    %v5697 = vunpack.c.l.b16 %v386
    %v5698 = vunpack.c.h.b16 %v386
    %v5699 = vunpack.c.l.b16 %v387
    %v5700 = vunpack.c.h.b16 %v387
    %v5701 = vunpack.c.l.b16 %v388
    %v5702 = vunpack.c.h.b16 %v388
    %v5703 = vunpack.c.l.b16 %v389
    %v5704 = vunpack.c.h.b16 %v389
    %v5705 = vunpack.c.l.b16 %v390
    %v5706 = vunpack.c.h.b16 %v390
    %v5707 = vunpack.c.l.b16 %v391
    %v5708 = vunpack.c.h.b16 %v391
    %v5709 = vunpack.c.l.b16 %v392
    %v5710 = vunpack.c.h.b16 %v392
    %v5711 = vunpack.c.l.b16 %v393
    %v5712 = vunpack.c.h.b16 %v393
    %v5713 = vunpack.c.l.b16 %v394
    %v5714 = vunpack.c.h.b16 %v394
    %v5715 = vunpack.c.l.b16 %v395
    %v5716 = vunpack.c.h.b16 %v395
    %v5717 = vunpack.c.l.b16 %v396
    %v5718 = vunpack.c.h.b16 %v396
    %v5719 = vunpack.c.l.b16 %v397
    %v5720 = vunpack.c.h.b16 %v397
    %v5721 = vunpack.c.l.b16 %v398
    %v5722 = vunpack.c.h.b16 %v398
    %v5723 = vunpack.c.l.b16 %v399
    %v5724 = vunpack.c.h.b16 %v399
    %v5725 = vunpack.c.l.b16 %v400
    %v5726 = vunpack.c.h.b16 %v400
    %v5727 = vunpack.c.l.b16 %v401
    %v5728 = vunpack.c.h.b16 %v401
    %v5729 = vunpack.c.l.b16 %v402
    %v5730 = vunpack.c.h.b16 %v402
    %v5731 = vunpack.c.l.b16 %v403
    %v5732 = vunpack.c.h.b16 %v403
    %v5733 = vunpack.c.l.b16 %v404
    %v5734 = vunpack.c.h.b16 %v404
    %v5735 = vunpack.c.l.b16 %v405
    %v5736 = vunpack.c.h.b16 %v405
    %v5737 = vunpack.c.l.b16 %v406
    %v5738 = vunpack.c.h.b16 %v406
    %v5739 = vunpack.c.l.b16 %v407
    %v5740 = vunpack.c.h.b16 %v407
    %v5741 = vunpack.c.l.b16 %v408
    %v5742 = vunpack.c.h.b16 %v408
    %v5743 = vunpack.c.l.b16 %v409
    %v5744 = vunpack.c.h.b16 %v409
    %v5745 = vunpack.c.l.b16 %v410
    %v5746 = vunpack.c.h.b16 %v410
    %v5747 = vunpack.c.l.b16 %v411
    %v5748 = vunpack.c.h.b16 %v411
    %v5749 = vunpack.c.l.b16 %v412
    %v5750 = vunpack.c.h.b16 %v412
    %v5751 = vunpack.c.l.b16 %v413
    %v5752 = vunpack.c.h.b16 %v413
    %v5753 = vunpack.c.l.b16 %v414
    %v5754 = vunpack.c.h.b16 %v414
    %v5755 = vunpack.c.l.b16 %v415
    %v5756 = vunpack.c.h.b16 %v415
    %v5757 = vunpack.c.l.b16 %v416
    %v5758 = vunpack.c.h.b16 %v416
    %v5759 = vunpack.c.l.b16 %v417
    %v5760 = vunpack.c.h.b16 %v417
    %v5761 = vunpack.c.l.b16 %v418
    %v5762 = vunpack.c.h.b16 %v418
    %v5763 = vunpack.c.l.b16 %v419
    %v5764 = vunpack.c.h.b16 %v419
    %v5765 = vunpack.c.l.b16 %v420
    %v5766 = vunpack.c.h.b16 %v420
    %v5767 = vunpack.c.l.b16 %v421
    %v5768 = vunpack.c.h.b16 %v421
    %v5769 = vunpack.c.l.b16 %v422
    %v5770 = vunpack.c.h.b16 %v422
    %v5771 = vunpack.c.l.b16 %v423
    %v5772 = vunpack.c.h.b16 %v423
    %v5773 = vunpack.c.l.b16 %v424
    %v5774 = vunpack.c.h.b16 %v424
    %v5775 = vunpack.c.l.b16 %v425
    %v5776 = vunpack.c.h.b16 %v425
    %v5777 = vunpack.c.l.b16 %v426
    %v5778 = vunpack.c.h.b16 %v426
    %v5779 = vunpack.c.l.b16 %v427
    %v5780 = vunpack.c.h.b16 %v427
    %v5781 = vunpack.c.l.b16 %v428
    %v5782 = vunpack.c.h.b16 %v428
    %v5783 = vunpack.c.l.b16 %v429
    %v5784 = vunpack.c.h.b16 %v429
    %v5785 = vunpack.c.l.b16 %v430
    %v5786 = vunpack.c.h.b16 %v430
    %v5787 = vunpack.c.l.b16 %v431
    %v5788 = vunpack.c.h.b16 %v431
    %v5789 = vunpack.c.l.b16 %v432
    %v5790 = vunpack.c.h.b16 %v432
    %v5791 = vunpack.c.l.b16 %v433
    %v5792 = vunpack.c.h.b16 %v433
    %v5793 = vunpack.c.l.b16 %v434
    %v5794 = vunpack.c.h.b16 %v434
    %v5795 = vunpack.c.l.b16 %v435
    %v5796 = vunpack.c.h.b16 %v435
    %v5797 = vunpack.c.l.b16 %v436
    %v5798 = vunpack.c.h.b16 %v436
    %v5799 = vunpack.c.l.b16 %v437
    %v5800 = vunpack.c.h.b16 %v437
    %v5801 = vunpack.c.l.b16 %v438
    %v5802 = vunpack.c.h.b16 %v438
    %v5803 = vunpack.c.l.b16 %v439
    %v5804 = vunpack.c.h.b16 %v439
    %v5805 = vunpack.c.l.b16 %v440
    %v5806 = vunpack.c.h.b16 %v440
    %v5807 = vunpack.c.l.b16 %v441
    %v5808 = vunpack.c.h.b16 %v441
    %v5809 = vunpack.c.l.b16 %v442
    %v5810 = vunpack.c.h.b16 %v442
    %v5811 = vunpack.c.l.b16 %v443
    %v5812 = vunpack.c.h.b16 %v443
    %v5813 = vunpack.c.l.b16 %v444
    %v5814 = vunpack.c.h.b16 %v444
    %v5815 = vunpack.c.l.b16 %v445
    %v5816 = vunpack.c.h.b16 %v445
    %v5817 = vunpack.c.l.b16 %v446
    %v5818 = vunpack.c.h.b16 %v446
    %v5819 = vunpack.c.l.b16 %v447
    %v5820 = vunpack.c.h.b16 %v447
    %v5821 = vunpack.c.l.b16 %v448
    %v5822 = vunpack.c.h.b16 %v448
    %v5823 = vunpack.c.l.b16 %v449
    %v5824 = vunpack.c.h.b16 %v449
    %v5825 = vunpack.c.l.b16 %v450
    %v5826 = vunpack.c.h.b16 %v450
    %v5827 = vunpack.c.l.b16 %v451
    %v5828 = vunpack.c.h.b16 %v451
    %v5829 = vunpack.c.l.b16 %v452
    %v5830 = vunpack.c.h.b16 %v452
    %v5831 = vunpack.c.l.b16 %v453
    %v5832 = vunpack.c.h.b16 %v453
    %v5833 = vunpack.c.l.b16 %v454
    %v5834 = vunpack.c.h.b16 %v454
    %v5835 = vunpack.c.l.b16 %v455
    %v5836 = vunpack.c.h.b16 %v455
    %v5837 = vunpack.c.l.b16 %v456
    %v5838 = vunpack.c.h.b16 %v456
    %v5839 = vunpack.c.l.b16 %v457
    %v5840 = vunpack.c.h.b16 %v457
    %v5841 = vunpack.c.l.b16 %v458
    %v5842 = vunpack.c.h.b16 %v458
    %v5843 = vunpack.c.l.b16 %v459
    %v5844 = vunpack.c.h.b16 %v459
    %v5845 = vunpack.c.l.b16 %v460
    %v5846 = vunpack.c.h.b16 %v460
    %v5847 = vunpack.c.l.b16 %v461
    %v5848 = vunpack.c.h.b16 %v461
    %v5849 = vunpack.c.l.b16 %v462
    %v5850 = vunpack.c.h.b16 %v462
    %v5851 = vunpack.c.l.b16 %v463
    %v5852 = vunpack.c.h.b16 %v463
    %v5853 = vunpack.c.l.b16 %v464
    %v5854 = vunpack.c.h.b16 %v464
    %v5855 = vunpack.c.l.b16 %v465
    %v5856 = vunpack.c.h.b16 %v465
    %v5857 = vunpack.c.l.b16 %v466
    %v5858 = vunpack.c.h.b16 %v466
    %v5859 = vunpack.c.l.b16 %v467
    %v5860 = vunpack.c.h.b16 %v467
    %v5861 = vunpack.c.l.b16 %v468
    %v5862 = vunpack.c.h.b16 %v468
    %v5863 = vunpack.c.l.b16 %v469
    %v5864 = vunpack.c.h.b16 %v469
    %v5865 = vpack.c.b16 %v5361, %v5353
    %v5866 = vpack.c.b16 %v5362, %v5354
    %v5867 = vpack.c.b16 %v5363, %v5355
    %v5868 = vpack.c.b16 %v5364, %v5356
    %v5869 = vpack.c.b16 %v5365, %v5357
    %v5870 = vpack.c.b16 %v5366, %v5358
    %v5871 = vpack.c.b16 %v5367, %v5359
    %v5872 = vpack.c.b16 %v5368, %v5360
    %v5873 = vpack.c.b16 %v5377, %v5369
    %v5874 = vpack.c.b16 %v5378, %v5370
    %v5875 = vpack.c.b16 %v5379, %v5371
    %v5876 = vpack.c.b16 %v5380, %v5372
    %v5877 = vpack.c.b16 %v5381, %v5373
    %v5878 = vpack.c.b16 %v5382, %v5374
    %v5879 = vpack.c.b16 %v5383, %v5375
    %v5880 = vpack.c.b16 %v5384, %v5376
    %v5881 = vpack.c.b16 %v5393, %v5385
    %v5882 = vpack.c.b16 %v5394, %v5386
    %v5883 = vpack.c.b16 %v5395, %v5387
    %v5884 = vpack.c.b16 %v5396, %v5388
    %v5885 = vpack.c.b16 %v5397, %v5389
    %v5886 = vpack.c.b16 %v5398, %v5390
    %v5887 = vpack.c.b16 %v5399, %v5391
    %v5888 = vpack.c.b16 %v5400, %v5392
    %v5889 = vpack.c.b16 %v5409, %v5401
    %v5890 = vpack.c.b16 %v5410, %v5402
    %v5891 = vpack.c.b16 %v5411, %v5403
    %v5892 = vpack.c.b16 %v5412, %v5404
    %v5893 = vpack.c.b16 %v5413, %v5405
    %v5894 = vpack.c.b16 %v5414, %v5406
    %v5895 = vpack.c.b16 %v5415, %v5407
    %v5896 = vpack.c.b16 %v5416, %v5408
    %v5897 = vpack.c.b16 %v5425, %v5417
    %v5898 = vpack.c.b16 %v5426, %v5418
    %v5899 = vpack.c.b16 %v5427, %v5419
    %v5900 = vpack.c.b16 %v5428, %v5420
    %v5901 = vpack.c.b16 %v5429, %v5421
    %v5902 = vpack.c.b16 %v5430, %v5422
    %v5903 = vpack.c.b16 %v5431, %v5423
    %v5904 = vpack.c.b16 %v5432, %v5424
    %v5905 = vpack.c.b16 %v5441, %v5433
    %v5906 = vpack.c.b16 %v5442, %v5434
    %v5907 = vpack.c.b16 %v5443, %v5435
    %v5908 = vpack.c.b16 %v5444, %v5436
    %v5909 = vpack.c.b16 %v5445, %v5437
    %v5910 = vpack.c.b16 %v5446, %v5438
    %v5911 = vpack.c.b16 %v5447, %v5439
    %v5912 = vpack.c.b16 %v5448, %v5440
    %v5913 = vpack.c.b16 %v5457, %v5449
    %v5914 = vpack.c.b16 %v5458, %v5450
    %v5915 = vpack.c.b16 %v5459, %v5451
    %v5916 = vpack.c.b16 %v5460, %v5452
    %v5917 = vpack.c.b16 %v5461, %v5453
    %v5918 = vpack.c.b16 %v5462, %v5454
    %v5919 = vpack.c.b16 %v5463, %v5455
    %v5920 = vpack.c.b16 %v5464, %v5456
    %v5921 = vpack.c.b16 %v5473, %v5465
    %v5922 = vpack.c.b16 %v5474, %v5466
    %v5923 = vpack.c.b16 %v5475, %v5467
    %v5924 = vpack.c.b16 %v5476, %v5468
    %v5925 = vpack.c.b16 %v5477, %v5469
    %v5926 = vpack.c.b16 %v5478, %v5470
    %v5927 = vpack.c.b16 %v5479, %v5471
    %v5928 = vpack.c.b16 %v5480, %v5472
    %v5929 = vpack.c.b16 %v5489, %v5481
    %v5930 = vpack.c.b16 %v5490, %v5482
    %v5931 = vpack.c.b16 %v5491, %v5483
    %v5932 = vpack.c.b16 %v5492, %v5484
    %v5933 = vpack.c.b16 %v5493, %v5485
    %v5934 = vpack.c.b16 %v5494, %v5486
    %v5935 = vpack.c.b16 %v5495, %v5487
    %v5936 = vpack.c.b16 %v5496, %v5488
    %v5937 = vpack.c.b16 %v5505, %v5497
    %v5938 = vpack.c.b16 %v5506, %v5498
    %v5939 = vpack.c.b16 %v5507, %v5499
    %v5940 = vpack.c.b16 %v5508, %v5500
    %v5941 = vpack.c.b16 %v5509, %v5501
    %v5942 = vpack.c.b16 %v5510, %v5502
    %v5943 = vpack.c.b16 %v5511, %v5503
    %v5944 = vpack.c.b16 %v5512, %v5504
    %v5945 = vpack.c.b16 %v5521, %v5513
    %v5946 = vpack.c.b16 %v5522, %v5514
    %v5947 = vpack.c.b16 %v5523, %v5515
    %v5948 = vpack.c.b16 %v5524, %v5516
    %v5949 = vpack.c.b16 %v5525, %v5517
    %v5950 = vpack.c.b16 %v5526, %v5518
    %v5951 = vpack.c.b16 %v5527, %v5519
    %v5952 = vpack.c.b16 %v5528, %v5520
    %v5953 = vpack.c.b16 %v5537, %v5529
    %v5954 = vpack.c.b16 %v5538, %v5530
    %v5955 = vpack.c.b16 %v5539, %v5531
    %v5956 = vpack.c.b16 %v5540, %v5532
    %v5957 = vpack.c.b16 %v5541, %v5533
    %v5958 = vpack.c.b16 %v5542, %v5534
    %v5959 = vpack.c.b16 %v5543, %v5535
    %v5960 = vpack.c.b16 %v5544, %v5536
    %v5961 = vpack.c.b16 %v5553, %v5545
    %v5962 = vpack.c.b16 %v5554, %v5546
    %v5963 = vpack.c.b16 %v5555, %v5547
    %v5964 = vpack.c.b16 %v5556, %v5548
    %v5965 = vpack.c.b16 %v5557, %v5549
    %v5966 = vpack.c.b16 %v5558, %v5550
    %v5967 = vpack.c.b16 %v5559, %v5551
    %v5968 = vpack.c.b16 %v5560, %v5552
    %v5969 = vpack.c.b16 %v5569, %v5561
    %v5970 = vpack.c.b16 %v5570, %v5562
    %v5971 = vpack.c.b16 %v5571, %v5563
    %v5972 = vpack.c.b16 %v5572, %v5564
    %v5973 = vpack.c.b16 %v5573, %v5565
    %v5974 = vpack.c.b16 %v5574, %v5566
    %v5975 = vpack.c.b16 %v5575, %v5567
    %v5976 = vpack.c.b16 %v5576, %v5568
    %v5977 = vpack.c.b16 %v5585, %v5577
    %v5978 = vpack.c.b16 %v5586, %v5578
    %v5979 = vpack.c.b16 %v5587, %v5579
    %v5980 = vpack.c.b16 %v5588, %v5580
    %v5981 = vpack.c.b16 %v5589, %v5581
    %v5982 = vpack.c.b16 %v5590, %v5582
    %v5983 = vpack.c.b16 %v5591, %v5583
    %v5984 = vpack.c.b16 %v5592, %v5584
    %v5985 = vpack.c.b16 %v5601, %v5593
    %v5986 = vpack.c.b16 %v5602, %v5594
    %v5987 = vpack.c.b16 %v5603, %v5595
    %v5988 = vpack.c.b16 %v5604, %v5596
    %v5989 = vpack.c.b16 %v5605, %v5597
    %v5990 = vpack.c.b16 %v5606, %v5598
    %v5991 = vpack.c.b16 %v5607, %v5599
    %v5992 = vpack.c.b16 %v5608, %v5600
    %v5993 = vpack.c.b16 %v5617, %v5609
    %v5994 = vpack.c.b16 %v5618, %v5610
    %v5995 = vpack.c.b16 %v5619, %v5611
    %v5996 = vpack.c.b16 %v5620, %v5612
    %v5997 = vpack.c.b16 %v5621, %v5613
    %v5998 = vpack.c.b16 %v5622, %v5614
    %v5999 = vpack.c.b16 %v5623, %v5615
    %v6000 = vpack.c.b16 %v5624, %v5616
    %v6001 = vpack.c.b16 %v5633, %v5625
    %v6002 = vpack.c.b16 %v5634, %v5626
    %v6003 = vpack.c.b16 %v5635, %v5627
    %v6004 = vpack.c.b16 %v5636, %v5628
    %v6005 = vpack.c.b16 %v5637, %v5629
    %v6006 = vpack.c.b16 %v5638, %v5630
    %v6007 = vpack.c.b16 %v5639, %v5631
    %v6008 = vpack.c.b16 %v5640, %v5632
    %v6009 = vpack.c.b16 %v5649, %v5641
    %v6010 = vpack.c.b16 %v5650, %v5642
    %v6011 = vpack.c.b16 %v5651, %v5643
    %v6012 = vpack.c.b16 %v5652, %v5644
    %v6013 = vpack.c.b16 %v5653, %v5645
    %v6014 = vpack.c.b16 %v5654, %v5646
    %v6015 = vpack.c.b16 %v5655, %v5647
    %v6016 = vpack.c.b16 %v5656, %v5648
    %v6017 = vpack.c.b16 %v5665, %v5657
    %v6018 = vpack.c.b16 %v5666, %v5658
    %v6019 = vpack.c.b16 %v5667, %v5659
    %v6020 = vpack.c.b16 %v5668, %v5660
    %v6021 = vpack.c.b16 %v5669, %v5661
    %v6022 = vpack.c.b16 %v5670, %v5662
    %v6023 = vpack.c.b16 %v5671, %v5663
    %v6024 = vpack.c.b16 %v5672, %v5664
    %v6025 = vpack.c.b16 %v5681, %v5673
    %v6026 = vpack.c.b16 %v5682, %v5674
    %v6027 = vpack.c.b16 %v5683, %v5675
    %v6028 = vpack.c.b16 %v5684, %v5676
    %v6029 = vpack.c.b16 %v5685, %v5677
    %v6030 = vpack.c.b16 %v5686, %v5678
    %v6031 = vpack.c.b16 %v5687, %v5679
    %v6032 = vpack.c.b16 %v5688, %v5680
    %v6033 = vpack.c.b16 %v5697, %v5689
    %v6034 = vpack.c.b16 %v5698, %v5690
    %v6035 = vpack.c.b16 %v5699, %v5691
    %v6036 = vpack.c.b16 %v5700, %v5692
    %v6037 = vpack.c.b16 %v5701, %v5693
    %v6038 = vpack.c.b16 %v5702, %v5694
    %v6039 = vpack.c.b16 %v5703, %v5695
    %v6040 = vpack.c.b16 %v5704, %v5696
    %v6041 = vpack.c.b16 %v5713, %v5705
    %v6042 = vpack.c.b16 %v5714, %v5706
    %v6043 = vpack.c.b16 %v5715, %v5707
    %v6044 = vpack.c.b16 %v5716, %v5708
    %v6045 = vpack.c.b16 %v5717, %v5709
    %v6046 = vpack.c.b16 %v5718, %v5710
    %v6047 = vpack.c.b16 %v5719, %v5711
    %v6048 = vpack.c.b16 %v5720, %v5712
    %v6049 = vpack.c.b16 %v5729, %v5721
    %v6050 = vpack.c.b16 %v5730, %v5722
    %v6051 = vpack.c.b16 %v5731, %v5723
    %v6052 = vpack.c.b16 %v5732, %v5724
    %v6053 = vpack.c.b16 %v5733, %v5725
    %v6054 = vpack.c.b16 %v5734, %v5726
    %v6055 = vpack.c.b16 %v5735, %v5727
    %v6056 = vpack.c.b16 %v5736, %v5728
    %v6057 = vpack.c.b16 %v5745, %v5737
    %v6058 = vpack.c.b16 %v5746, %v5738
    %v6059 = vpack.c.b16 %v5747, %v5739
    %v6060 = vpack.c.b16 %v5748, %v5740
    %v6061 = vpack.c.b16 %v5749, %v5741
    %v6062 = vpack.c.b16 %v5750, %v5742
    %v6063 = vpack.c.b16 %v5751, %v5743
    %v6064 = vpack.c.b16 %v5752, %v5744
    %v6065 = vpack.c.b16 %v5761, %v5753
    %v6066 = vpack.c.b16 %v5762, %v5754
    %v6067 = vpack.c.b16 %v5763, %v5755
    %v6068 = vpack.c.b16 %v5764, %v5756
    %v6069 = vpack.c.b16 %v5765, %v5757
    %v6070 = vpack.c.b16 %v5766, %v5758
    %v6071 = vpack.c.b16 %v5767, %v5759
    %v6072 = vpack.c.b16 %v5768, %v5760
    %v6073 = vpack.c.b16 %v5777, %v5769
    %v6074 = vpack.c.b16 %v5778, %v5770
    %v6075 = vpack.c.b16 %v5779, %v5771
    %v6076 = vpack.c.b16 %v5780, %v5772
    %v6077 = vpack.c.b16 %v5781, %v5773
    %v6078 = vpack.c.b16 %v5782, %v5774
    %v6079 = vpack.c.b16 %v5783, %v5775
    %v6080 = vpack.c.b16 %v5784, %v5776
    %v6081 = vpack.c.b16 %v5793, %v5785
    %v6082 = vpack.c.b16 %v5794, %v5786
    %v6083 = vpack.c.b16 %v5795, %v5787
    %v6084 = vpack.c.b16 %v5796, %v5788
    %v6085 = vpack.c.b16 %v5797, %v5789
    %v6086 = vpack.c.b16 %v5798, %v5790
    %v6087 = vpack.c.b16 %v5799, %v5791
    %v6088 = vpack.c.b16 %v5800, %v5792
    %v6089 = vpack.c.b16 %v5809, %v5801
    %v6090 = vpack.c.b16 %v5810, %v5802
    %v6091 = vpack.c.b16 %v5811, %v5803
    %v6092 = vpack.c.b16 %v5812, %v5804
    %v6093 = vpack.c.b16 %v5813, %v5805
    %v6094 = vpack.c.b16 %v5814, %v5806
    %v6095 = vpack.c.b16 %v5815, %v5807
    %v6096 = vpack.c.b16 %v5816, %v5808
    %v6097 = vpack.c.b16 %v5825, %v5817
    %v6098 = vpack.c.b16 %v5826, %v5818
    %v6099 = vpack.c.b16 %v5827, %v5819
    %v6100 = vpack.c.b16 %v5828, %v5820
    %v6101 = vpack.c.b16 %v5829, %v5821
    %v6102 = vpack.c.b16 %v5830, %v5822
    %v6103 = vpack.c.b16 %v5831, %v5823
    %v6104 = vpack.c.b16 %v5832, %v5824
    %v6105 = vpack.c.b16 %v5841, %v5833
    %v6106 = vpack.c.b16 %v5842, %v5834
    %v6107 = vpack.c.b16 %v5843, %v5835
    %v6108 = vpack.c.b16 %v5844, %v5836
    %v6109 = vpack.c.b16 %v5845, %v5837
    %v6110 = vpack.c.b16 %v5846, %v5838
    %v6111 = vpack.c.b16 %v5847, %v5839
    %v6112 = vpack.c.b16 %v5848, %v5840
    %v6113 = vpack.c.b16 %v5857, %v5849
    %v6114 = vpack.c.b16 %v5858, %v5850
    %v6115 = vpack.c.b16 %v5859, %v5851
    %v6116 = vpack.c.b16 %v5860, %v5852
    %v6117 = vpack.c.b16 %v5861, %v5853
    %v6118 = vpack.c.b16 %v5862, %v5854
    %v6119 = vpack.c.b16 %v5863, %v5855
    %v6120 = vpack.c.b16 %v5864, %v5856
    %6377 = vmatprep.subr.bf16.mxu0 %v5922
    %6378 = vmatpush1.bf16.msra.mxu0 %v5921
    %6379 = vmatprep.subr.bf16.mxu0 %v5914
    %6380 = vmatpush1.bf16.msra.mxu0 %v5913
    %6381 = vmatprep.subr.bf16.mxu0 %v5906
    %6382 = vmatpush1.bf16.msra.mxu0 %v5905
    %6383 = vmatprep.subr.bf16.mxu0 %v5898
    %6384 = vmatpush1.bf16.msra.mxu0 %v5897
    %6385 = vmatprep.subr.bf16.mxu0 %v5890
    %6386 = vmatpush1.bf16.msra.mxu0 %v5889
    %6387 = vmatprep.subr.bf16.mxu0 %v5882
    %6388 = vmatpush1.bf16.msra.mxu0 %v5881
    %6389 = vmatprep.subr.bf16.mxu0 %v5874
    %6390 = vmatpush1.bf16.msra.mxu0 %v5873
    %6391 = vmatprep.subr.bf16.mxu0 %v5866
    %6392 = vmatpush1.bf16.msra.mxu0 %v5865
    %6393 = vmatprep.subr.bf16.mxu0 %v5986
    %6394 = vmatpush2.bf16.msra.mxu0 %v5985
    %6395 = vmatprep.subr.bf16.mxu0 %v5978
    %6396 = vmatpush2.bf16.msra.mxu0 %v5977
    %6397 = vmatprep.subr.bf16.mxu0 %v5970
    %6398 = vmatpush2.bf16.msra.mxu0 %v5969
    %6399 = vmatprep.subr.bf16.mxu0 %v5962
    %6400 = vmatpush2.bf16.msra.mxu0 %v5961
    %6401 = vmatprep.subr.bf16.mxu0 %v5954
    %6402 = vmatpush2.bf16.msra.mxu0 %v5953
    %6403 = vmatprep.subr.bf16.mxu0 %v5946
    %6404 = vmatpush2.bf16.msra.mxu0 %v5945
    %6405 = vmatprep.subr.bf16.mxu0 %v5938
    %6406 = vmatpush2.bf16.msra.mxu0 %v5937
    %6407 = vmatprep.subr.bf16.mxu0 %v5930
    %6408 = vmatpush2.bf16.msra.mxu0 %v5929
    %6409 = vmatprep.mubr.bf16.mxu0 %v5054
    %6410 = vmatmul.mubr.bf16.gmra.mxu0 %v5053
    %v6411 = vpop.f32.mrf.mxu0
    %v6412 = vadd.f32 %v5060, %v6411
    %v6413 = vpop.f32.mrf.mxu0
    %v6414 = vadd.f32 %v5064, %v6413
    %v6415 = vpop.f32.mrf.mxu0
    %v6416 = vpop.f32.mrf.mxu0
    %6417 = vdwg.mxu0
    %6418 = vmatprep.subr.bf16.mxu0 %v6050
    %6419 = vmatpush1.bf16.msra.mxu0 %v6049
    %6420 = vmatprep.subr.bf16.mxu0 %v6042
    %6421 = vmatpush1.bf16.msra.mxu0 %v6041
    %6422 = vmatprep.subr.bf16.mxu0 %v6034
    %6423 = vmatpush1.bf16.msra.mxu0 %v6033
    %6424 = vmatprep.subr.bf16.mxu0 %v6026
    %6425 = vmatpush1.bf16.msra.mxu0 %v6025
    %6426 = vmatprep.subr.bf16.mxu0 %v6018
    %6427 = vmatpush1.bf16.msra.mxu0 %v6017
    %6428 = vmatprep.subr.bf16.mxu0 %v6010
    %6429 = vmatpush1.bf16.msra.mxu0 %v6009
    %6430 = vmatprep.subr.bf16.mxu0 %v6002
    %6431 = vmatpush1.bf16.msra.mxu0 %v6001
    %6432 = vmatprep.subr.bf16.mxu0 %v5994
    %6433 = vmatpush1.bf16.msra.mxu0 %v5993
    %6434 = vmatprep.subr.bf16.mxu0 %v6114
    %6435 = vmatpush2.bf16.msra.mxu0 %v6113
    %6436 = vmatprep.subr.bf16.mxu0 %v6106
    %6437 = vmatpush2.bf16.msra.mxu0 %v6105
    %6438 = vmatprep.subr.bf16.mxu0 %v6098
    %6439 = vmatpush2.bf16.msra.mxu0 %v6097
    %6440 = vmatprep.subr.bf16.mxu0 %v6090
    %6441 = vmatpush2.bf16.msra.mxu0 %v6089
    %6442 = vmatprep.subr.bf16.mxu0 %v6082
    %6443 = vmatpush2.bf16.msra.mxu0 %v6081
    %6444 = vmatprep.subr.bf16.mxu0 %v6074
    %6445 = vmatpush2.bf16.msra.mxu0 %v6073
    %6446 = vmatprep.subr.bf16.mxu0 %v6066
    %6447 = vmatpush2.bf16.msra.mxu0 %v6065
    %6448 = vmatprep.subr.bf16.mxu0 %v6058
    %6449 = vmatpush2.bf16.msra.mxu0 %v6057
    %6450 = vmatprep.mubr.bf16.mxu0 %v5055
    %6451 = vmatmul.mubr.bf16.gmra.mxu0 %v5055
    %v6452 = vpop.f32.mrf.mxu0
    %v6453 = vadd.f32 %v6412, %v6452
    %v6454 = vpop.f32.mrf.mxu0
    %v6455 = vadd.f32 %v6414, %v6454
    %v6456 = vpop.f32.mrf.mxu0
    %v6457 = vpop.f32.mrf.mxu0
    %6458 = vdwg.mxu0
    %6459 = vmatprep.subr.bf16.mxu0 %v5924
    %6460 = vmatpush1.bf16.msra.mxu0 %v5923
    %6461 = vmatprep.subr.bf16.mxu0 %v5916
    %6462 = vmatpush1.bf16.msra.mxu0 %v5915
    %6463 = vmatprep.subr.bf16.mxu0 %v5908
    %6464 = vmatpush1.bf16.msra.mxu0 %v5907
    %6465 = vmatprep.subr.bf16.mxu0 %v5900
    %6466 = vmatpush1.bf16.msra.mxu0 %v5899
    %6467 = vmatprep.subr.bf16.mxu0 %v5892
    %6468 = vmatpush1.bf16.msra.mxu0 %v5891
    %6469 = vmatprep.subr.bf16.mxu0 %v5884
    %6470 = vmatpush1.bf16.msra.mxu0 %v5883
    %6471 = vmatprep.subr.bf16.mxu0 %v5876
    %6472 = vmatpush1.bf16.msra.mxu0 %v5875
    %6473 = vmatprep.subr.bf16.mxu0 %v5868
    %6474 = vmatpush1.bf16.msra.mxu0 %v5867
    %6475 = vmatprep.subr.bf16.mxu0 %v5988
    %6476 = vmatpush2.bf16.msra.mxu0 %v5987
    %6477 = vmatprep.subr.bf16.mxu0 %v5980
    %6478 = vmatpush2.bf16.msra.mxu0 %v5979
    %6479 = vmatprep.subr.bf16.mxu0 %v5972
    %6480 = vmatpush2.bf16.msra.mxu0 %v5971
    %6481 = vmatprep.subr.bf16.mxu0 %v5964
    %6482 = vmatpush2.bf16.msra.mxu0 %v5963
    %6483 = vmatprep.subr.bf16.mxu0 %v5956
    %6484 = vmatpush2.bf16.msra.mxu0 %v5955
    %6485 = vmatprep.subr.bf16.mxu0 %v5948
    %6486 = vmatpush2.bf16.msra.mxu0 %v5947
    %6487 = vmatprep.subr.bf16.mxu0 %v5940
    %6488 = vmatpush2.bf16.msra.mxu0 %v5939
    %6489 = vmatprep.subr.bf16.mxu0 %v5932
    %6490 = vmatpush2.bf16.msra.mxu0 %v5931
    %6491 = vmatprep.mubr.bf16.mxu0 %v5054
    %6492 = vmatmul.mubr.bf16.gmra.mxu0 %v5053
    %v6493 = vpop.f32.mrf.mxu0
    %v6494 = vadd.f32 %v5068, %v6493
    %v6495 = vpop.f32.mrf.mxu0
    %v6496 = vadd.f32 %v5072, %v6495
    %v6497 = vpop.f32.mrf.mxu0
    %v6498 = vpop.f32.mrf.mxu0
    %6499 = vdwg.mxu0
    %6500 = vmatprep.subr.bf16.mxu0 %v6052
    %6501 = vmatpush1.bf16.msra.mxu0 %v6051
    %6502 = vmatprep.subr.bf16.mxu0 %v6044
    %6503 = vmatpush1.bf16.msra.mxu0 %v6043
    %6504 = vmatprep.subr.bf16.mxu0 %v6036
    %6505 = vmatpush1.bf16.msra.mxu0 %v6035
    %6506 = vmatprep.subr.bf16.mxu0 %v6028
    %6507 = vmatpush1.bf16.msra.mxu0 %v6027
    %6508 = vmatprep.subr.bf16.mxu0 %v6020
    %6509 = vmatpush1.bf16.msra.mxu0 %v6019
    %6510 = vmatprep.subr.bf16.mxu0 %v6012
    %6511 = vmatpush1.bf16.msra.mxu0 %v6011
    %6512 = vmatprep.subr.bf16.mxu0 %v6004
    %6513 = vmatpush1.bf16.msra.mxu0 %v6003
    %6514 = vmatprep.subr.bf16.mxu0 %v5996
    %6515 = vmatpush1.bf16.msra.mxu0 %v5995
    %6516 = vmatprep.subr.bf16.mxu0 %v6116
    %6517 = vmatpush2.bf16.msra.mxu0 %v6115
    %6518 = vmatprep.subr.bf16.mxu0 %v6108
    %6519 = vmatpush2.bf16.msra.mxu0 %v6107
    %6520 = vmatprep.subr.bf16.mxu0 %v6100
    %6521 = vmatpush2.bf16.msra.mxu0 %v6099
    %6522 = vmatprep.subr.bf16.mxu0 %v6092
    %6523 = vmatpush2.bf16.msra.mxu0 %v6091
    %6524 = vmatprep.subr.bf16.mxu0 %v6084
    %6525 = vmatpush2.bf16.msra.mxu0 %v6083
    %6526 = vmatprep.subr.bf16.mxu0 %v6076
    %6527 = vmatpush2.bf16.msra.mxu0 %v6075
    %6528 = vmatprep.subr.bf16.mxu0 %v6068
    %6529 = vmatpush2.bf16.msra.mxu0 %v6067
    %6530 = vmatprep.subr.bf16.mxu0 %v6060
    %6531 = vmatpush2.bf16.msra.mxu0 %v6059
    %6532 = vmatprep.mubr.bf16.mxu0 %v5055
    %6533 = vmatmul.mubr.bf16.gmra.mxu0 %v5055
    %v6534 = vpop.f32.mrf.mxu0
    %v6535 = vadd.f32 %v6494, %v6534
    %v6536 = vpop.f32.mrf.mxu0
    %v6537 = vadd.f32 %v6496, %v6536
    %v6538 = vpop.f32.mrf.mxu0
    %v6539 = vpop.f32.mrf.mxu0
    %6540 = vdwg.mxu0
    %6541 = vmatprep.subr.bf16.mxu0 %v5926
    %6542 = vmatpush1.bf16.msra.mxu0 %v5925
    %6543 = vmatprep.subr.bf16.mxu0 %v5918
    %6544 = vmatpush1.bf16.msra.mxu0 %v5917
    %6545 = vmatprep.subr.bf16.mxu0 %v5910
    %6546 = vmatpush1.bf16.msra.mxu0 %v5909
    %6547 = vmatprep.subr.bf16.mxu0 %v5902
    %6548 = vmatpush1.bf16.msra.mxu0 %v5901
    %6549 = vmatprep.subr.bf16.mxu0 %v5894
    %6550 = vmatpush1.bf16.msra.mxu0 %v5893
    %6551 = vmatprep.subr.bf16.mxu0 %v5886
    %6552 = vmatpush1.bf16.msra.mxu0 %v5885
    %6553 = vmatprep.subr.bf16.mxu0 %v5878
    %6554 = vmatpush1.bf16.msra.mxu0 %v5877
    %6555 = vmatprep.subr.bf16.mxu0 %v5870
    %6556 = vmatpush1.bf16.msra.mxu0 %v5869
    %6557 = vmatprep.subr.bf16.mxu0 %v5990
    %6558 = vmatpush2.bf16.msra.mxu0 %v5989
    %6559 = vmatprep.subr.bf16.mxu0 %v5982
    %6560 = vmatpush2.bf16.msra.mxu0 %v5981
    %6561 = vmatprep.subr.bf16.mxu0 %v5974
    %6562 = vmatpush2.bf16.msra.mxu0 %v5973
    %6563 = vmatprep.subr.bf16.mxu0 %v5966
    %6564 = vmatpush2.bf16.msra.mxu0 %v5965
    %6565 = vmatprep.subr.bf16.mxu0 %v5958
    %6566 = vmatpush2.bf16.msra.mxu0 %v5957
    %6567 = vmatprep.subr.bf16.mxu0 %v5950
    %6568 = vmatpush2.bf16.msra.mxu0 %v5949
    %6569 = vmatprep.subr.bf16.mxu0 %v5942
    %6570 = vmatpush2.bf16.msra.mxu0 %v5941
    %6571 = vmatprep.subr.bf16.mxu0 %v5934
    %6572 = vmatpush2.bf16.msra.mxu0 %v5933
    %6573 = vmatprep.mubr.bf16.mxu0 %v5054
    %6574 = vmatmul.mubr.bf16.gmra.mxu0 %v5053
    %v6575 = vpop.f32.mrf.mxu0
    %v6576 = vadd.f32 %v5076, %v6575
    %v6577 = vpop.f32.mrf.mxu0
    %v6578 = vadd.f32 %v5080, %v6577
    %v6579 = vpop.f32.mrf.mxu0
    %v6580 = vpop.f32.mrf.mxu0
    %6581 = vdwg.mxu0
    %6582 = vmatprep.subr.bf16.mxu0 %v6054
    %6583 = vmatpush1.bf16.msra.mxu0 %v6053
    %6584 = vmatprep.subr.bf16.mxu0 %v6046
    %6585 = vmatpush1.bf16.msra.mxu0 %v6045
    %6586 = vmatprep.subr.bf16.mxu0 %v6038
    %6587 = vmatpush1.bf16.msra.mxu0 %v6037
    %6588 = vmatprep.subr.bf16.mxu0 %v6030
    %6589 = vmatpush1.bf16.msra.mxu0 %v6029
    %6590 = vmatprep.subr.bf16.mxu0 %v6022
    %6591 = vmatpush1.bf16.msra.mxu0 %v6021
    %6592 = vmatprep.subr.bf16.mxu0 %v6014
    %6593 = vmatpush1.bf16.msra.mxu0 %v6013
    %6594 = vmatprep.subr.bf16.mxu0 %v6006
    %6595 = vmatpush1.bf16.msra.mxu0 %v6005
    %6596 = vmatprep.subr.bf16.mxu0 %v5998
    %6597 = vmatpush1.bf16.msra.mxu0 %v5997
    %6598 = vmatprep.subr.bf16.mxu0 %v6118
    %6599 = vmatpush2.bf16.msra.mxu0 %v6117
    %6600 = vmatprep.subr.bf16.mxu0 %v6110
    %6601 = vmatpush2.bf16.msra.mxu0 %v6109
    %6602 = vmatprep.subr.bf16.mxu0 %v6102
    %6603 = vmatpush2.bf16.msra.mxu0 %v6101
    %6604 = vmatprep.subr.bf16.mxu0 %v6094
    %6605 = vmatpush2.bf16.msra.mxu0 %v6093
    %6606 = vmatprep.subr.bf16.mxu0 %v6086
    %6607 = vmatpush2.bf16.msra.mxu0 %v6085
    %6608 = vmatprep.subr.bf16.mxu0 %v6078
    %6609 = vmatpush2.bf16.msra.mxu0 %v6077
    %6610 = vmatprep.subr.bf16.mxu0 %v6070
    %6611 = vmatpush2.bf16.msra.mxu0 %v6069
    %6612 = vmatprep.subr.bf16.mxu0 %v6062
    %6613 = vmatpush2.bf16.msra.mxu0 %v6061
    %6614 = vmatprep.mubr.bf16.mxu0 %v5055
    %6615 = vmatmul.mubr.bf16.gmra.mxu0 %v5055
    %v6616 = vpop.f32.mrf.mxu0
    %v6617 = vadd.f32 %v6576, %v6616
    %v6618 = vpop.f32.mrf.mxu0
    %v6619 = vadd.f32 %v6578, %v6618
    %v6620 = vpop.f32.mrf.mxu0
    %v6621 = vpop.f32.mrf.mxu0
    %6622 = vdwg.mxu0
    %6623 = vmatprep.subr.bf16.mxu0 %v5928
    %6624 = vmatpush1.bf16.msra.mxu0 %v5927
    %6625 = vmatprep.subr.bf16.mxu0 %v5920
    %6626 = vmatpush1.bf16.msra.mxu0 %v5919
    %6627 = vmatprep.subr.bf16.mxu0 %v5912
    %6628 = vmatpush1.bf16.msra.mxu0 %v5911
    %6629 = vmatprep.subr.bf16.mxu0 %v5904
    %6630 = vmatpush1.bf16.msra.mxu0 %v5903
    %6631 = vmatprep.subr.bf16.mxu0 %v5896
    %6632 = vmatpush1.bf16.msra.mxu0 %v5895
    %6633 = vmatprep.subr.bf16.mxu0 %v5888
    %6634 = vmatpush1.bf16.msra.mxu0 %v5887
    %6635 = vmatprep.subr.bf16.mxu0 %v5880
    %6636 = vmatpush1.bf16.msra.mxu0 %v5879
    %6637 = vmatprep.subr.bf16.mxu0 %v5872
    %6638 = vmatpush1.bf16.msra.mxu0 %v5871
    %6639 = vmatprep.subr.bf16.mxu0 %v5992
    %6640 = vmatpush2.bf16.msra.mxu0 %v5991
    %6641 = vmatprep.subr.bf16.mxu0 %v5984
    %6642 = vmatpush2.bf16.msra.mxu0 %v5983
    %6643 = vmatprep.subr.bf16.mxu0 %v5976
    %6644 = vmatpush2.bf16.msra.mxu0 %v5975
    %6645 = vmatprep.subr.bf16.mxu0 %v5968
    %6646 = vmatpush2.bf16.msra.mxu0 %v5967
    %6647 = vmatprep.subr.bf16.mxu0 %v5960
    %6648 = vmatpush2.bf16.msra.mxu0 %v5959
    %6649 = vmatprep.subr.bf16.mxu0 %v5952
    %6650 = vmatpush2.bf16.msra.mxu0 %v5951
    %6651 = vmatprep.subr.bf16.mxu0 %v5944
    %6652 = vmatpush2.bf16.msra.mxu0 %v5943
    %6653 = vmatprep.subr.bf16.mxu0 %v5936
    %6654 = vmatpush2.bf16.msra.mxu0 %v5935
    %6655 = vmatprep.mubr.bf16.mxu0 %v5054
    %6656 = vmatmul.mubr.bf16.gmra.mxu0 %v5053
    %v6657 = vpop.f32.mrf.mxu0
    %v6658 = vadd.f32 %v5084, %v6657
    %v6659 = vpop.f32.mrf.mxu0
    %v6660 = vadd.f32 %v5088, %v6659
    %v6661 = vpop.f32.mrf.mxu0
    %v6662 = vpop.f32.mrf.mxu0
    %6663 = vdwg.mxu0
    %6664 = vmatprep.subr.bf16.mxu0 %v6056
    %6665 = vmatpush1.bf16.msra.mxu0 %v6055
    %6666 = vmatprep.subr.bf16.mxu0 %v6048
    %6667 = vmatpush1.bf16.msra.mxu0 %v6047
    %6668 = vmatprep.subr.bf16.mxu0 %v6040
    %6669 = vmatpush1.bf16.msra.mxu0 %v6039
    %6670 = vmatprep.subr.bf16.mxu0 %v6032
    %6671 = vmatpush1.bf16.msra.mxu0 %v6031
    %6672 = vmatprep.subr.bf16.mxu0 %v6024
    %6673 = vmatpush1.bf16.msra.mxu0 %v6023
    %6674 = vmatprep.subr.bf16.mxu0 %v6016
    %6675 = vmatpush1.bf16.msra.mxu0 %v6015
    %6676 = vmatprep.subr.bf16.mxu0 %v6008
    %6677 = vmatpush1.bf16.msra.mxu0 %v6007
    %6678 = vmatprep.subr.bf16.mxu0 %v6000
    %6679 = vmatpush1.bf16.msra.mxu0 %v5999
    %6680 = vmatprep.subr.bf16.mxu0 %v6120
    %6681 = vmatpush2.bf16.msra.mxu0 %v6119
    %6682 = vmatprep.subr.bf16.mxu0 %v6112
    %6683 = vmatpush2.bf16.msra.mxu0 %v6111
    %6684 = vmatprep.subr.bf16.mxu0 %v6104
    %6685 = vmatpush2.bf16.msra.mxu0 %v6103
    %6686 = vmatprep.subr.bf16.mxu0 %v6096
    %6687 = vmatpush2.bf16.msra.mxu0 %v6095
    %6688 = vmatprep.subr.bf16.mxu0 %v6088
    %6689 = vmatpush2.bf16.msra.mxu0 %v6087
    %6690 = vmatprep.subr.bf16.mxu0 %v6080
    %6691 = vmatpush2.bf16.msra.mxu0 %v6079
    %6692 = vmatprep.subr.bf16.mxu0 %v6072
    %6693 = vmatpush2.bf16.msra.mxu0 %v6071
    %6694 = vmatprep.subr.bf16.mxu0 %v6064
    %6695 = vmatpush2.bf16.msra.mxu0 %v6063
    %6696 = vmatprep.mubr.bf16.mxu0 %v5055
    %6697 = vmatmul.mubr.bf16.gmra.mxu0 %v5055
    %v6698 = vpop.f32.mrf.mxu0
    %v6699 = vadd.f32 %v6658, %v6698
    %v6700 = vpop.f32.mrf.mxu0
    %v6701 = vadd.f32 %v6660, %v6700
    %v6702 = vpop.f32.mrf.mxu0
    %v6703 = vpop.f32.mrf.mxu0
    %6704 = vdwg.mxu0
    %v6705 = vxor.u32 %v6453, 2147483648
    %v6706 = vxor.u32 %v6455, 2147483648
    %v6707 = vmul.f32 %v6705, 1.442695
    %v6708 = vpow.pop %v6707
    %v6709 = vmul.f32 %v6706, 1.442695
    %v6710 = vpow.pop %v6709
    %v6711 = vadd.f32 %v6708, 1.0
    %v6712 = vadd.f32 %v6710, 1.0
    %v6713 = vrcp.pop %v6711
    %v6714 = vmul.f32 1.0, %v6713
    %v6715 = vrcp.pop %v6712
    %v6716 = vmul.f32 1.0, %v6715
    %v6717 = vxor.u32 %v6535, 2147483648
    %v6718 = vxor.u32 %v6537, 2147483648
    %v6719 = vmul.f32 %v6717, 1.442695
    %v6720 = vpow.pop %v6719
    %v6721 = vmul.f32 %v6718, 1.442695
    %v6722 = vpow.pop %v6721
    %v6723 = vadd.f32 %v6720, 1.0
    %v6724 = vadd.f32 %v6722, 1.0
    %v6725 = vrcp.pop %v6723
    %v6726 = vmul.f32 1.0, %v6725
    %v6727 = vrcp.pop %v6724
    %v6728 = vmul.f32 1.0, %v6727
    %v6729 = vtanh.pop %v6617
    %v6730 = vtanh.pop %v6619
    %v6731 = vxor.u32 %v6699, 2147483648
    %v6732 = vxor.u32 %v6701, 2147483648
    %v6733 = vmul.f32 %v6731, 1.442695
    %v6734 = vpow.pop %v6733
    %v6735 = vmul.f32 %v6732, 1.442695
    %v6736 = vpow.pop %v6735
    %v6737 = vadd.f32 %v6734, 1.0
    %v6738 = vadd.f32 %v6736, 1.0
    %v6739 = vrcp.pop %v6737
    %v6740 = vmul.f32 1.0, %v6739
    %v6741 = vrcp.pop %v6738
    %v6742 = vmul.f32 1.0, %v6741
    %v6743 = vmul.f32 %v6726, 0.0
    %v6744 = vmul.f32 %v6728, 0.0
    %v6745 = vmul.f32 %v6714, %v6729
    %v6746 = vmul.f32 %v6716, %v6730
    %v6747 = vadd.f32 %v6743, %v6745
    %v6748 = vadd.f32 %v6744, %v6746
    %v6749 = vtanh.pop %v6747
    %v6750 = vtanh.pop %v6748
    %v6751 = vmul.f32 %v6740, %v6749
    %v6752 = vmul.f32 %v6742, %v6750
    %v6761 = vrot.slane %v2169, 1
    %v6762 = vrot.slane %v2171, 1
    %v6763 = vrot.slane %v2210, 1
    %v6764 = vrot.slane %v2212, 1
    %v6765 = vrot.slane %v2251, 1
    %v6766 = vrot.slane %v2253, 1
    %v6767 = vrot.slane %v2292, 1
    %v6768 = vrot.slane %v2294, 1
    %v6777 = vsel %vm505, %v6761, %v3983
    %v6778 = vsel %vm505, %v6762, %v3985
    %v6779 = vsel %vm505, %v6763, %v4024
    %v6780 = vsel %vm505, %v6764, %v4026
    %v6781 = vsel %vm505, %v6765, %v4065
    %v6782 = vsel %vm505, %v6766, %v4067
    %v6783 = vsel %vm505, %v6767, %v4106
    %v6784 = vsel %vm505, %v6768, %v4108
    %6785 = vmatprep.subr.bf16.mxu0 %v4585
    %6786 = vmatpush1.bf16.msra.mxu0 %v4584
    %6787 = vmatprep.subr.bf16.mxu0 %v4577
    %6788 = vmatpush1.bf16.msra.mxu0 %v4576
    %6789 = vmatprep.subr.bf16.mxu0 %v4569
    %6790 = vmatpush1.bf16.msra.mxu0 %v4568
    %6791 = vmatprep.subr.bf16.mxu0 %v4561
    %6792 = vmatpush1.bf16.msra.mxu0 %v4560
    %6793 = vmatprep.subr.bf16.mxu0 %v4553
    %6794 = vmatpush1.bf16.msra.mxu0 %v4552
    %6795 = vmatprep.subr.bf16.mxu0 %v4545
    %6796 = vmatpush1.bf16.msra.mxu0 %v4544
    %6797 = vmatprep.subr.bf16.mxu0 %v4537
    %6798 = vmatpush1.bf16.msra.mxu0 %v4536
    %6799 = vmatprep.subr.bf16.mxu0 %v4529
    %6800 = vmatpush1.bf16.msra.mxu0 %v4528
    %6801 = vmatprep.subr.bf16.mxu0 %v4649
    %6802 = vmatpush2.bf16.msra.mxu0 %v4648
    %6803 = vmatprep.subr.bf16.mxu0 %v4641
    %6804 = vmatpush2.bf16.msra.mxu0 %v4640
    %6805 = vmatprep.subr.bf16.mxu0 %v4633
    %6806 = vmatpush2.bf16.msra.mxu0 %v4632
    %6807 = vmatprep.subr.bf16.mxu0 %v4625
    %6808 = vmatpush2.bf16.msra.mxu0 %v4624
    %6809 = vmatprep.subr.bf16.mxu0 %v4617
    %6810 = vmatpush2.bf16.msra.mxu0 %v4616
    %6811 = vmatprep.subr.bf16.mxu0 %v4609
    %6812 = vmatpush2.bf16.msra.mxu0 %v4608
    %6813 = vmatprep.subr.bf16.mxu0 %v4601
    %6814 = vmatpush2.bf16.msra.mxu0 %v4600
    %6815 = vmatprep.subr.bf16.mxu0 %v4593
    %6816 = vmatpush2.bf16.msra.mxu0 %v4592
    %6817 = vmatprep.mubr.bf16.mxu0 %v5054
    %6818 = vmatmul.mubr.bf16.gmra.mxu0 %v5053
    %v6819 = vpop.f32.mrf.mxu0
    %v6820 = vadd.f32 0.0, %v6819
    %v6821 = vpop.f32.mrf.mxu0
    %v6822 = vadd.f32 0.0, %v6821
    %v6823 = vpop.f32.mrf.mxu0
    %v6824 = vpop.f32.mrf.mxu0
    %6825 = vdwg.mxu0
    %6826 = vmatprep.subr.bf16.mxu0 %v4587
    %6827 = vmatpush1.bf16.msra.mxu0 %v4586
    %6828 = vmatprep.subr.bf16.mxu0 %v4579
    %6829 = vmatpush1.bf16.msra.mxu0 %v4578
    %6830 = vmatprep.subr.bf16.mxu0 %v4571
    %6831 = vmatpush1.bf16.msra.mxu0 %v4570
    %6832 = vmatprep.subr.bf16.mxu0 %v4563
    %6833 = vmatpush1.bf16.msra.mxu0 %v4562
    %6834 = vmatprep.subr.bf16.mxu0 %v4555
    %6835 = vmatpush1.bf16.msra.mxu0 %v4554
    %6836 = vmatprep.subr.bf16.mxu0 %v4547
    %6837 = vmatpush1.bf16.msra.mxu0 %v4546
    %6838 = vmatprep.subr.bf16.mxu0 %v4539
    %6839 = vmatpush1.bf16.msra.mxu0 %v4538
    %6840 = vmatprep.subr.bf16.mxu0 %v4531
    %6841 = vmatpush1.bf16.msra.mxu0 %v4530
    %6842 = vmatprep.subr.bf16.mxu0 %v4651
    %6843 = vmatpush2.bf16.msra.mxu0 %v4650
    %6844 = vmatprep.subr.bf16.mxu0 %v4643
    %6845 = vmatpush2.bf16.msra.mxu0 %v4642
    %6846 = vmatprep.subr.bf16.mxu0 %v4635
    %6847 = vmatpush2.bf16.msra.mxu0 %v4634
    %6848 = vmatprep.subr.bf16.mxu0 %v4627
    %6849 = vmatpush2.bf16.msra.mxu0 %v4626
    %6850 = vmatprep.subr.bf16.mxu0 %v4619
    %6851 = vmatpush2.bf16.msra.mxu0 %v4618
    %6852 = vmatprep.subr.bf16.mxu0 %v4611
    %6853 = vmatpush2.bf16.msra.mxu0 %v4610
    %6854 = vmatprep.subr.bf16.mxu0 %v4603
    %6855 = vmatpush2.bf16.msra.mxu0 %v4602
    %6856 = vmatprep.subr.bf16.mxu0 %v4595
    %6857 = vmatpush2.bf16.msra.mxu0 %v4594
    %6858 = vmatprep.mubr.bf16.mxu0 %v5054
    %6859 = vmatmul.mubr.bf16.gmra.mxu0 %v5053
    %v6860 = vpop.f32.mrf.mxu0
    %v6861 = vadd.f32 0.0, %v6860
    %v6862 = vpop.f32.mrf.mxu0
    %v6863 = vadd.f32 0.0, %v6862
    %v6864 = vpop.f32.mrf.mxu0
    %v6865 = vpop.f32.mrf.mxu0
    %6866 = vdwg.mxu0
    %6867 = vmatprep.subr.bf16.mxu0 %v4589
    %6868 = vmatpush1.bf16.msra.mxu0 %v4588
    %6869 = vmatprep.subr.bf16.mxu0 %v4581
    %6870 = vmatpush1.bf16.msra.mxu0 %v4580
    %6871 = vmatprep.subr.bf16.mxu0 %v4573
    %6872 = vmatpush1.bf16.msra.mxu0 %v4572
    %6873 = vmatprep.subr.bf16.mxu0 %v4565
    %6874 = vmatpush1.bf16.msra.mxu0 %v4564
    %6875 = vmatprep.subr.bf16.mxu0 %v4557
    %6876 = vmatpush1.bf16.msra.mxu0 %v4556
    %6877 = vmatprep.subr.bf16.mxu0 %v4549
    %6878 = vmatpush1.bf16.msra.mxu0 %v4548
    %6879 = vmatprep.subr.bf16.mxu0 %v4541
    %6880 = vmatpush1.bf16.msra.mxu0 %v4540
    %6881 = vmatprep.subr.bf16.mxu0 %v4533
    %6882 = vmatpush1.bf16.msra.mxu0 %v4532
    %6883 = vmatprep.subr.bf16.mxu0 %v4653
    %6884 = vmatpush2.bf16.msra.mxu0 %v4652
    %6885 = vmatprep.subr.bf16.mxu0 %v4645
    %6886 = vmatpush2.bf16.msra.mxu0 %v4644
    %6887 = vmatprep.subr.bf16.mxu0 %v4637
    %6888 = vmatpush2.bf16.msra.mxu0 %v4636
    %6889 = vmatprep.subr.bf16.mxu0 %v4629
    %6890 = vmatpush2.bf16.msra.mxu0 %v4628
    %6891 = vmatprep.subr.bf16.mxu0 %v4621
    %6892 = vmatpush2.bf16.msra.mxu0 %v4620
    %6893 = vmatprep.subr.bf16.mxu0 %v4613
    %6894 = vmatpush2.bf16.msra.mxu0 %v4612
    %6895 = vmatprep.subr.bf16.mxu0 %v4605
    %6896 = vmatpush2.bf16.msra.mxu0 %v4604
    %6897 = vmatprep.subr.bf16.mxu0 %v4597
    %6898 = vmatpush2.bf16.msra.mxu0 %v4596
    %6899 = vmatprep.mubr.bf16.mxu0 %v5054
    %6900 = vmatmul.mubr.bf16.gmra.mxu0 %v5053
    %v6901 = vpop.f32.mrf.mxu0
    %v6902 = vadd.f32 0.0, %v6901
    %v6903 = vpop.f32.mrf.mxu0
    %v6904 = vadd.f32 0.0, %v6903
    %v6905 = vpop.f32.mrf.mxu0
    %v6906 = vpop.f32.mrf.mxu0
    %6907 = vdwg.mxu0
    %6908 = vmatprep.subr.bf16.mxu0 %v4591
    %6909 = vmatpush1.bf16.msra.mxu0 %v4590
    %6910 = vmatprep.subr.bf16.mxu0 %v4583
    %6911 = vmatpush1.bf16.msra.mxu0 %v4582
    %6912 = vmatprep.subr.bf16.mxu0 %v4575
    %6913 = vmatpush1.bf16.msra.mxu0 %v4574
    %6914 = vmatprep.subr.bf16.mxu0 %v4567
    %6915 = vmatpush1.bf16.msra.mxu0 %v4566
    %6916 = vmatprep.subr.bf16.mxu0 %v4559
    %6917 = vmatpush1.bf16.msra.mxu0 %v4558
    %6918 = vmatprep.subr.bf16.mxu0 %v4551
    %6919 = vmatpush1.bf16.msra.mxu0 %v4550
    %6920 = vmatprep.subr.bf16.mxu0 %v4543
    %6921 = vmatpush1.bf16.msra.mxu0 %v4542
    %6922 = vmatprep.subr.bf16.mxu0 %v4535
    %6923 = vmatpush1.bf16.msra.mxu0 %v4534
    %6924 = vmatprep.subr.bf16.mxu0 %v4655
    %6925 = vmatpush2.bf16.msra.mxu0 %v4654
    %6926 = vmatprep.subr.bf16.mxu0 %v4647
    %6927 = vmatpush2.bf16.msra.mxu0 %v4646
    %6928 = vmatprep.subr.bf16.mxu0 %v4639
    %6929 = vmatpush2.bf16.msra.mxu0 %v4638
    %6930 = vmatprep.subr.bf16.mxu0 %v4631
    %6931 = vmatpush2.bf16.msra.mxu0 %v4630
    %6932 = vmatprep.subr.bf16.mxu0 %v4623
    %6933 = vmatpush2.bf16.msra.mxu0 %v4622
    %6934 = vmatprep.subr.bf16.mxu0 %v4615
    %6935 = vmatpush2.bf16.msra.mxu0 %v4614
    %6936 = vmatprep.subr.bf16.mxu0 %v4607
    %6937 = vmatpush2.bf16.msra.mxu0 %v4606
    %6938 = vmatprep.subr.bf16.mxu0 %v4599
    %6939 = vmatpush2.bf16.msra.mxu0 %v4598
    %6940 = vmatprep.mubr.bf16.mxu0 %v5054
    %6941 = vmatmul.mubr.bf16.gmra.mxu0 %v5053
    %v6942 = vpop.f32.mrf.mxu0
    %v6943 = vadd.f32 0.0, %v6942
    %v6944 = vpop.f32.mrf.mxu0
    %v6945 = vadd.f32 0.0, %v6944
    %v6946 = vpop.f32.mrf.mxu0
    %v6947 = vpop.f32.mrf.mxu0
    %6948 = vdwg.mxu0
    %v6949 = vadd.f32 %v6777, %v6820
    %v6950 = vadd.f32 %v6778, %v6822
    %v6951 = vadd.f32 %v6779, %v6861
    %v6952 = vadd.f32 %v6780, %v6863
    %v6953 = vadd.f32 %v6781, %v6902
    %v6954 = vadd.f32 %v6782, %v6904
    %v6955 = vadd.f32 %v6783, %v6943
    %v6956 = vadd.f32 %v6784, %v6945
    %v6957 = vadd.f32 %v6949, %v4960
    %v6958 = vadd.f32 %v6950, %v4964
    %v6959 = vadd.f32 %v6951, %v4968
    %v6960 = vadd.f32 %v6952, %v4972
    %v6961 = vadd.f32 %v6953, %v4976
    %v6962 = vadd.f32 %v6954, %v4980
    %v6963 = vadd.f32 %v6955, %v4984
    %v6964 = vadd.f32 %v6956, %v4988
    %v6965 = vxor.u32 %v6957, 2147483648
    %v6966 = vxor.u32 %v6958, 2147483648
    %v6967 = vmul.f32 %v6965, 1.442695
    %v6968 = vpow.pop %v6967
    %v6969 = vmul.f32 %v6966, 1.442695
    %v6970 = vpow.pop %v6969
    %v6971 = vadd.f32 %v6968, 1.0
    %v6972 = vadd.f32 %v6970, 1.0
    %v6973 = vrcp.pop %v6971
    %v6974 = vmul.f32 1.0, %v6973
    %v6975 = vrcp.pop %v6972
    %v6976 = vmul.f32 1.0, %v6975
    %v6977 = vxor.u32 %v6959, 2147483648
    %v6978 = vxor.u32 %v6960, 2147483648
    %v6979 = vmul.f32 %v6977, 1.442695
    %v6980 = vpow.pop %v6979
    %v6981 = vmul.f32 %v6978, 1.442695
    %v6982 = vpow.pop %v6981
    %v6983 = vadd.f32 %v6980, 1.0
    %v6984 = vadd.f32 %v6982, 1.0
    %v6985 = vrcp.pop %v6983
    %v6986 = vmul.f32 1.0, %v6985
    %v6987 = vrcp.pop %v6984
    %v6988 = vmul.f32 1.0, %v6987
    %v6989 = vtanh.pop %v6961
    %v6990 = vtanh.pop %v6962
    %v6991 = vxor.u32 %v6963, 2147483648
    %v6992 = vxor.u32 %v6964, 2147483648
    %v6993 = vmul.f32 %v6991, 1.442695
    %v6994 = vpow.pop %v6993
    %v6995 = vmul.f32 %v6992, 1.442695
    %v6996 = vpow.pop %v6995
    %v6997 = vadd.f32 %v6994, 1.0
    %v6998 = vadd.f32 %v6996, 1.0
    %v6999 = vrcp.pop %v6997
    %v7000 = vmul.f32 1.0, %v6999
    %v7001 = vrcp.pop %v6998
    %v7002 = vmul.f32 1.0, %v7001
    %v7003 = vmul.f32 %v6986, %v5047
    %v7004 = vmul.f32 %v6988, %v5048
    %v7005 = vmul.f32 %v6974, %v6989
    %v7006 = vmul.f32 %v6976, %v6990
    %v7007 = vadd.f32 %v7003, %v7005
    %v7008 = vadd.f32 %v7004, %v7006
    %v7009 = vtanh.pop %v7007
    %v7010 = vtanh.pop %v7008
    %v7011 = vmul.f32 %v7000, %v7009
    %v7012 = vmul.f32 %v7002, %v7010
    %v7013 = vpack.c.bf16 %v7011, %v7011
    %v7014 = vpack.c.bf16 %v7012, %v7012
    %v7015 = vpack.c.bf16 %v6751, %v6751
    %v7016 = vpack.c.bf16 %v6752, %v6752
    %7017 = vmatprep.subr.bf16.mxu0 %v5922
    %7018 = vmatpush1.bf16.msra.mxu0 %v5921
    %7019 = vmatprep.subr.bf16.mxu0 %v5914
    %7020 = vmatpush1.bf16.msra.mxu0 %v5913
    %7021 = vmatprep.subr.bf16.mxu0 %v5906
    %7022 = vmatpush1.bf16.msra.mxu0 %v5905
    %7023 = vmatprep.subr.bf16.mxu0 %v5898
    %7024 = vmatpush1.bf16.msra.mxu0 %v5897
    %7025 = vmatprep.subr.bf16.mxu0 %v5890
    %7026 = vmatpush1.bf16.msra.mxu0 %v5889
    %7027 = vmatprep.subr.bf16.mxu0 %v5882
    %7028 = vmatpush1.bf16.msra.mxu0 %v5881
    %7029 = vmatprep.subr.bf16.mxu0 %v5874
    %7030 = vmatpush1.bf16.msra.mxu0 %v5873
    %7031 = vmatprep.subr.bf16.mxu0 %v5866
    %7032 = vmatpush1.bf16.msra.mxu0 %v5865
    %7033 = vmatprep.subr.bf16.mxu0 %v5986
    %7034 = vmatpush2.bf16.msra.mxu0 %v5985
    %7035 = vmatprep.subr.bf16.mxu0 %v5978
    %7036 = vmatpush2.bf16.msra.mxu0 %v5977
    %7037 = vmatprep.subr.bf16.mxu0 %v5970
    %7038 = vmatpush2.bf16.msra.mxu0 %v5969
    %7039 = vmatprep.subr.bf16.mxu0 %v5962
    %7040 = vmatpush2.bf16.msra.mxu0 %v5961
    %7041 = vmatprep.subr.bf16.mxu0 %v5954
    %7042 = vmatpush2.bf16.msra.mxu0 %v5953
    %7043 = vmatprep.subr.bf16.mxu0 %v5946
    %7044 = vmatpush2.bf16.msra.mxu0 %v5945
    %7045 = vmatprep.subr.bf16.mxu0 %v5938
    %7046 = vmatpush2.bf16.msra.mxu0 %v5937
    %7047 = vmatprep.subr.bf16.mxu0 %v5930
    %7048 = vmatpush2.bf16.msra.mxu0 %v5929
    %7049 = vmatprep.mubr.bf16.mxu0 %v7014
    %7050 = vmatmul.mubr.bf16.gmra.mxu0 %v7013
    %v7051 = vpop.f32.mrf.mxu0
    %v7052 = vadd.f32 %v5060, %v7051
    %v7053 = vpop.f32.mrf.mxu0
    %v7054 = vadd.f32 %v5064, %v7053
    %v7055 = vpop.f32.mrf.mxu0
    %v7056 = vpop.f32.mrf.mxu0
    %7057 = vdwg.mxu0
    %7058 = vmatprep.subr.bf16.mxu0 %v6050
    %7059 = vmatpush1.bf16.msra.mxu0 %v6049
    %7060 = vmatprep.subr.bf16.mxu0 %v6042
    %7061 = vmatpush1.bf16.msra.mxu0 %v6041
    %7062 = vmatprep.subr.bf16.mxu0 %v6034
    %7063 = vmatpush1.bf16.msra.mxu0 %v6033
    %7064 = vmatprep.subr.bf16.mxu0 %v6026
    %7065 = vmatpush1.bf16.msra.mxu0 %v6025
    %7066 = vmatprep.subr.bf16.mxu0 %v6018
    %7067 = vmatpush1.bf16.msra.mxu0 %v6017
    %7068 = vmatprep.subr.bf16.mxu0 %v6010
    %7069 = vmatpush1.bf16.msra.mxu0 %v6009
    %7070 = vmatprep.subr.bf16.mxu0 %v6002
    %7071 = vmatpush1.bf16.msra.mxu0 %v6001
    %7072 = vmatprep.subr.bf16.mxu0 %v5994
    %7073 = vmatpush1.bf16.msra.mxu0 %v5993
    %7074 = vmatprep.subr.bf16.mxu0 %v6114
    %7075 = vmatpush2.bf16.msra.mxu0 %v6113
    %7076 = vmatprep.subr.bf16.mxu0 %v6106
    %7077 = vmatpush2.bf16.msra.mxu0 %v6105
    %7078 = vmatprep.subr.bf16.mxu0 %v6098
    %7079 = vmatpush2.bf16.msra.mxu0 %v6097
    %7080 = vmatprep.subr.bf16.mxu0 %v6090
    %7081 = vmatpush2.bf16.msra.mxu0 %v6089
    %7082 = vmatprep.subr.bf16.mxu0 %v6082
    %7083 = vmatpush2.bf16.msra.mxu0 %v6081
    %7084 = vmatprep.subr.bf16.mxu0 %v6074
    %7085 = vmatpush2.bf16.msra.mxu0 %v6073
    %7086 = vmatprep.subr.bf16.mxu0 %v6066
    %7087 = vmatpush2.bf16.msra.mxu0 %v6065
    %7088 = vmatprep.subr.bf16.mxu0 %v6058
    %7089 = vmatpush2.bf16.msra.mxu0 %v6057
    %7090 = vmatprep.mubr.bf16.mxu0 %v7016
    %7091 = vmatmul.mubr.bf16.gmra.mxu0 %v7015
    %v7092 = vpop.f32.mrf.mxu0
    %v7093 = vadd.f32 %v7052, %v7092
    %v7094 = vpop.f32.mrf.mxu0
    %v7095 = vadd.f32 %v7054, %v7094
    %v7096 = vpop.f32.mrf.mxu0
    %v7097 = vpop.f32.mrf.mxu0
    %7098 = vdwg.mxu0
    %7099 = vmatprep.subr.bf16.mxu0 %v5924
    %7100 = vmatpush1.bf16.msra.mxu0 %v5923
    %7101 = vmatprep.subr.bf16.mxu0 %v5916
    %7102 = vmatpush1.bf16.msra.mxu0 %v5915
    %7103 = vmatprep.subr.bf16.mxu0 %v5908
    %7104 = vmatpush1.bf16.msra.mxu0 %v5907
    %7105 = vmatprep.subr.bf16.mxu0 %v5900
    %7106 = vmatpush1.bf16.msra.mxu0 %v5899
    %7107 = vmatprep.subr.bf16.mxu0 %v5892
    %7108 = vmatpush1.bf16.msra.mxu0 %v5891
    %7109 = vmatprep.subr.bf16.mxu0 %v5884
    %7110 = vmatpush1.bf16.msra.mxu0 %v5883
    %7111 = vmatprep.subr.bf16.mxu0 %v5876
    %7112 = vmatpush1.bf16.msra.mxu0 %v5875
    %7113 = vmatprep.subr.bf16.mxu0 %v5868
    %7114 = vmatpush1.bf16.msra.mxu0 %v5867
    %7115 = vmatprep.subr.bf16.mxu0 %v5988
    %7116 = vmatpush2.bf16.msra.mxu0 %v5987
    %7117 = vmatprep.subr.bf16.mxu0 %v5980
    %7118 = vmatpush2.bf16.msra.mxu0 %v5979
    %7119 = vmatprep.subr.bf16.mxu0 %v5972
    %7120 = vmatpush2.bf16.msra.mxu0 %v5971
    %7121 = vmatprep.subr.bf16.mxu0 %v5964
    %7122 = vmatpush2.bf16.msra.mxu0 %v5963
    %7123 = vmatprep.subr.bf16.mxu0 %v5956
    %7124 = vmatpush2.bf16.msra.mxu0 %v5955
    %7125 = vmatprep.subr.bf16.mxu0 %v5948
    %7126 = vmatpush2.bf16.msra.mxu0 %v5947
    %7127 = vmatprep.subr.bf16.mxu0 %v5940
    %7128 = vmatpush2.bf16.msra.mxu0 %v5939
    %7129 = vmatprep.subr.bf16.mxu0 %v5932
    %7130 = vmatpush2.bf16.msra.mxu0 %v5931
    %7131 = vmatprep.mubr.bf16.mxu0 %v7014
    %7132 = vmatmul.mubr.bf16.gmra.mxu0 %v7013
    %v7133 = vpop.f32.mrf.mxu0
    %v7134 = vadd.f32 %v5068, %v7133
    %v7135 = vpop.f32.mrf.mxu0
    %v7136 = vadd.f32 %v5072, %v7135
    %v7137 = vpop.f32.mrf.mxu0
    %v7138 = vpop.f32.mrf.mxu0
    %7139 = vdwg.mxu0
    %7140 = vmatprep.subr.bf16.mxu0 %v6052
    %7141 = vmatpush1.bf16.msra.mxu0 %v6051
    %7142 = vmatprep.subr.bf16.mxu0 %v6044
    %7143 = vmatpush1.bf16.msra.mxu0 %v6043
    %7144 = vmatprep.subr.bf16.mxu0 %v6036
    %7145 = vmatpush1.bf16.msra.mxu0 %v6035
    %7146 = vmatprep.subr.bf16.mxu0 %v6028
    %7147 = vmatpush1.bf16.msra.mxu0 %v6027
    %7148 = vmatprep.subr.bf16.mxu0 %v6020
    %7149 = vmatpush1.bf16.msra.mxu0 %v6019
    %7150 = vmatprep.subr.bf16.mxu0 %v6012
    %7151 = vmatpush1.bf16.msra.mxu0 %v6011
    %7152 = vmatprep.subr.bf16.mxu0 %v6004
    %7153 = vmatpush1.bf16.msra.mxu0 %v6003
    %7154 = vmatprep.subr.bf16.mxu0 %v5996
    %7155 = vmatpush1.bf16.msra.mxu0 %v5995
    %7156 = vmatprep.subr.bf16.mxu0 %v6116
    %7157 = vmatpush2.bf16.msra.mxu0 %v6115
    %7158 = vmatprep.subr.bf16.mxu0 %v6108
    %7159 = vmatpush2.bf16.msra.mxu0 %v6107
    %7160 = vmatprep.subr.bf16.mxu0 %v6100
    %7161 = vmatpush2.bf16.msra.mxu0 %v6099
    %7162 = vmatprep.subr.bf16.mxu0 %v6092
    %7163 = vmatpush2.bf16.msra.mxu0 %v6091
    %7164 = vmatprep.subr.bf16.mxu0 %v6084
    %7165 = vmatpush2.bf16.msra.mxu0 %v6083
    %7166 = vmatprep.subr.bf16.mxu0 %v6076
    %7167 = vmatpush2.bf16.msra.mxu0 %v6075
    %7168 = vmatprep.subr.bf16.mxu0 %v6068
    %7169 = vmatpush2.bf16.msra.mxu0 %v6067
    %7170 = vmatprep.subr.bf16.mxu0 %v6060
    %7171 = vmatpush2.bf16.msra.mxu0 %v6059
    %7172 = vmatprep.mubr.bf16.mxu0 %v7016
    %7173 = vmatmul.mubr.bf16.gmra.mxu0 %v7015
    %v7174 = vpop.f32.mrf.mxu0
    %v7175 = vadd.f32 %v7134, %v7174
    %v7176 = vpop.f32.mrf.mxu0
    %v7177 = vadd.f32 %v7136, %v7176
    %v7178 = vpop.f32.mrf.mxu0
    %v7179 = vpop.f32.mrf.mxu0
    %7180 = vdwg.mxu0
    %7181 = vmatprep.subr.bf16.mxu0 %v5926
    %7182 = vmatpush1.bf16.msra.mxu0 %v5925
    %7183 = vmatprep.subr.bf16.mxu0 %v5918
    %7184 = vmatpush1.bf16.msra.mxu0 %v5917
    %7185 = vmatprep.subr.bf16.mxu0 %v5910
    %7186 = vmatpush1.bf16.msra.mxu0 %v5909
    %7187 = vmatprep.subr.bf16.mxu0 %v5902
    %7188 = vmatpush1.bf16.msra.mxu0 %v5901
    %7189 = vmatprep.subr.bf16.mxu0 %v5894
    %7190 = vmatpush1.bf16.msra.mxu0 %v5893
    %7191 = vmatprep.subr.bf16.mxu0 %v5886
    %7192 = vmatpush1.bf16.msra.mxu0 %v5885
    %7193 = vmatprep.subr.bf16.mxu0 %v5878
    %7194 = vmatpush1.bf16.msra.mxu0 %v5877
    %7195 = vmatprep.subr.bf16.mxu0 %v5870
    %7196 = vmatpush1.bf16.msra.mxu0 %v5869
    %7197 = vmatprep.subr.bf16.mxu0 %v5990
    %7198 = vmatpush2.bf16.msra.mxu0 %v5989
    %7199 = vmatprep.subr.bf16.mxu0 %v5982
    %7200 = vmatpush2.bf16.msra.mxu0 %v5981
    %7201 = vmatprep.subr.bf16.mxu0 %v5974
    %7202 = vmatpush2.bf16.msra.mxu0 %v5973
    %7203 = vmatprep.subr.bf16.mxu0 %v5966
    %7204 = vmatpush2.bf16.msra.mxu0 %v5965
    %7205 = vmatprep.subr.bf16.mxu0 %v5958
    %7206 = vmatpush2.bf16.msra.mxu0 %v5957
    %7207 = vmatprep.subr.bf16.mxu0 %v5950
    %7208 = vmatpush2.bf16.msra.mxu0 %v5949
    %7209 = vmatprep.subr.bf16.mxu0 %v5942
    %7210 = vmatpush2.bf16.msra.mxu0 %v5941
    %7211 = vmatprep.subr.bf16.mxu0 %v5934
    %7212 = vmatpush2.bf16.msra.mxu0 %v5933
    %7213 = vmatprep.mubr.bf16.mxu0 %v7014
    %7214 = vmatmul.mubr.bf16.gmra.mxu0 %v7013
    %v7215 = vpop.f32.mrf.mxu0
    %v7216 = vadd.f32 %v5076, %v7215
    %v7217 = vpop.f32.mrf.mxu0
    %v7218 = vadd.f32 %v5080, %v7217
    %v7219 = vpop.f32.mrf.mxu0
    %v7220 = vpop.f32.mrf.mxu0
    %7221 = vdwg.mxu0
    %7222 = vmatprep.subr.bf16.mxu0 %v6054
    %7223 = vmatpush1.bf16.msra.mxu0 %v6053
    %7224 = vmatprep.subr.bf16.mxu0 %v6046
    %7225 = vmatpush1.bf16.msra.mxu0 %v6045
    %7226 = vmatprep.subr.bf16.mxu0 %v6038
    %7227 = vmatpush1.bf16.msra.mxu0 %v6037
    %7228 = vmatprep.subr.bf16.mxu0 %v6030
    %7229 = vmatpush1.bf16.msra.mxu0 %v6029
    %7230 = vmatprep.subr.bf16.mxu0 %v6022
    %7231 = vmatpush1.bf16.msra.mxu0 %v6021
    %7232 = vmatprep.subr.bf16.mxu0 %v6014
    %7233 = vmatpush1.bf16.msra.mxu0 %v6013
    %7234 = vmatprep.subr.bf16.mxu0 %v6006
    %7235 = vmatpush1.bf16.msra.mxu0 %v6005
    %7236 = vmatprep.subr.bf16.mxu0 %v5998
    %7237 = vmatpush1.bf16.msra.mxu0 %v5997
    %7238 = vmatprep.subr.bf16.mxu0 %v6118
    %7239 = vmatpush2.bf16.msra.mxu0 %v6117
    %7240 = vmatprep.subr.bf16.mxu0 %v6110
    %7241 = vmatpush2.bf16.msra.mxu0 %v6109
    %7242 = vmatprep.subr.bf16.mxu0 %v6102
    %7243 = vmatpush2.bf16.msra.mxu0 %v6101
    %7244 = vmatprep.subr.bf16.mxu0 %v6094
    %7245 = vmatpush2.bf16.msra.mxu0 %v6093
    %7246 = vmatprep.subr.bf16.mxu0 %v6086
    %7247 = vmatpush2.bf16.msra.mxu0 %v6085
    %7248 = vmatprep.subr.bf16.mxu0 %v6078
    %7249 = vmatpush2.bf16.msra.mxu0 %v6077
    %7250 = vmatprep.subr.bf16.mxu0 %v6070
    %7251 = vmatpush2.bf16.msra.mxu0 %v6069
    %7252 = vmatprep.subr.bf16.mxu0 %v6062
    %7253 = vmatpush2.bf16.msra.mxu0 %v6061
    %7254 = vmatprep.mubr.bf16.mxu0 %v7016
    %7255 = vmatmul.mubr.bf16.gmra.mxu0 %v7015
    %v7256 = vpop.f32.mrf.mxu0
    %v7257 = vadd.f32 %v7216, %v7256
    %v7258 = vpop.f32.mrf.mxu0
    %v7259 = vadd.f32 %v7218, %v7258
    %v7260 = vpop.f32.mrf.mxu0
    %v7261 = vpop.f32.mrf.mxu0
    %7262 = vdwg.mxu0
    %7263 = vmatprep.subr.bf16.mxu0 %v5928
    %7264 = vmatpush1.bf16.msra.mxu0 %v5927
    %7265 = vmatprep.subr.bf16.mxu0 %v5920
    %7266 = vmatpush1.bf16.msra.mxu0 %v5919
    %7267 = vmatprep.subr.bf16.mxu0 %v5912
    %7268 = vmatpush1.bf16.msra.mxu0 %v5911
    %7269 = vmatprep.subr.bf16.mxu0 %v5904
    %7270 = vmatpush1.bf16.msra.mxu0 %v5903
    %7271 = vmatprep.subr.bf16.mxu0 %v5896
    %7272 = vmatpush1.bf16.msra.mxu0 %v5895
    %7273 = vmatprep.subr.bf16.mxu0 %v5888
    %7274 = vmatpush1.bf16.msra.mxu0 %v5887
    %7275 = vmatprep.subr.bf16.mxu0 %v5880
    %7276 = vmatpush1.bf16.msra.mxu0 %v5879
    %7277 = vmatprep.subr.bf16.mxu0 %v5872
    %7278 = vmatpush1.bf16.msra.mxu0 %v5871
    %7279 = vmatprep.subr.bf16.mxu0 %v5992
    %7280 = vmatpush2.bf16.msra.mxu0 %v5991
    %7281 = vmatprep.subr.bf16.mxu0 %v5984
    %7282 = vmatpush2.bf16.msra.mxu0 %v5983
    %7283 = vmatprep.subr.bf16.mxu0 %v5976
    %7284 = vmatpush2.bf16.msra.mxu0 %v5975
    %7285 = vmatprep.subr.bf16.mxu0 %v5968
    %7286 = vmatpush2.bf16.msra.mxu0 %v5967
    %7287 = vmatprep.subr.bf16.mxu0 %v5960
    %7288 = vmatpush2.bf16.msra.mxu0 %v5959
    %7289 = vmatprep.subr.bf16.mxu0 %v5952
    %7290 = vmatpush2.bf16.msra.mxu0 %v5951
    %7291 = vmatprep.subr.bf16.mxu0 %v5944
    %7292 = vmatpush2.bf16.msra.mxu0 %v5943
    %7293 = vmatprep.subr.bf16.mxu0 %v5936
    %7294 = vmatpush2.bf16.msra.mxu0 %v5935
    %7295 = vmatprep.mubr.bf16.mxu0 %v7014
    %7296 = vmatmul.mubr.bf16.gmra.mxu0 %v7013
    %v7297 = vpop.f32.mrf.mxu0
    %v7298 = vadd.f32 %v5084, %v7297
    %v7299 = vpop.f32.mrf.mxu0
    %v7300 = vadd.f32 %v5088, %v7299
    %v7301 = vpop.f32.mrf.mxu0
    %v7302 = vpop.f32.mrf.mxu0
    %7303 = vdwg.mxu0
    %7304 = vmatprep.subr.bf16.mxu0 %v6056
    %7305 = vmatpush1.bf16.msra.mxu0 %v6055
    %7306 = vmatprep.subr.bf16.mxu0 %v6048
    %7307 = vmatpush1.bf16.msra.mxu0 %v6047
    %7308 = vmatprep.subr.bf16.mxu0 %v6040
    %7309 = vmatpush1.bf16.msra.mxu0 %v6039
    %7310 = vmatprep.subr.bf16.mxu0 %v6032
    %7311 = vmatpush1.bf16.msra.mxu0 %v6031
    %7312 = vmatprep.subr.bf16.mxu0 %v6024
    %7313 = vmatpush1.bf16.msra.mxu0 %v6023
    %7314 = vmatprep.subr.bf16.mxu0 %v6016
    %7315 = vmatpush1.bf16.msra.mxu0 %v6015
    %7316 = vmatprep.subr.bf16.mxu0 %v6008
    %7317 = vmatpush1.bf16.msra.mxu0 %v6007
    %7318 = vmatprep.subr.bf16.mxu0 %v6000
    %7319 = vmatpush1.bf16.msra.mxu0 %v5999
    %7320 = vmatprep.subr.bf16.mxu0 %v6120
    %7321 = vmatpush2.bf16.msra.mxu0 %v6119
    %7322 = vmatprep.subr.bf16.mxu0 %v6112
    %7323 = vmatpush2.bf16.msra.mxu0 %v6111
    %7324 = vmatprep.subr.bf16.mxu0 %v6104
    %7325 = vmatpush2.bf16.msra.mxu0 %v6103
    %7326 = vmatprep.subr.bf16.mxu0 %v6096
    %7327 = vmatpush2.bf16.msra.mxu0 %v6095
    %7328 = vmatprep.subr.bf16.mxu0 %v6088
    %7329 = vmatpush2.bf16.msra.mxu0 %v6087
    %7330 = vmatprep.subr.bf16.mxu0 %v6080
    %7331 = vmatpush2.bf16.msra.mxu0 %v6079
    %7332 = vmatprep.subr.bf16.mxu0 %v6072
    %7333 = vmatpush2.bf16.msra.mxu0 %v6071
    %7334 = vmatprep.subr.bf16.mxu0 %v6064
    %7335 = vmatpush2.bf16.msra.mxu0 %v6063
    %7336 = vmatprep.mubr.bf16.mxu0 %v7016
    %7337 = vmatmul.mubr.bf16.gmra.mxu0 %v7015
    %v7338 = vpop.f32.mrf.mxu0
    %v7339 = vadd.f32 %v7298, %v7338
    %v7340 = vpop.f32.mrf.mxu0
    %v7341 = vadd.f32 %v7300, %v7340
    %v7342 = vpop.f32.mrf.mxu0
    %v7343 = vpop.f32.mrf.mxu0
    %7344 = vdwg.mxu0
    %v7345 = vxor.u32 %v7093, 2147483648
    %v7346 = vxor.u32 %v7095, 2147483648
    %v7347 = vmul.f32 %v7345, 1.442695
    %v7348 = vpow.pop %v7347
    %v7349 = vmul.f32 %v7346, 1.442695
    %v7350 = vpow.pop %v7349
    %v7351 = vadd.f32 %v7348, 1.0
    %v7352 = vadd.f32 %v7350, 1.0
    %v7353 = vrcp.pop %v7351
    %v7354 = vmul.f32 1.0, %v7353
    %v7355 = vrcp.pop %v7352
    %v7356 = vmul.f32 1.0, %v7355
    %v7357 = vxor.u32 %v7175, 2147483648
    %v7358 = vxor.u32 %v7177, 2147483648
    %v7359 = vmul.f32 %v7357, 1.442695
    %v7360 = vpow.pop %v7359
    %v7361 = vmul.f32 %v7358, 1.442695
    %v7362 = vpow.pop %v7361
    %v7363 = vadd.f32 %v7360, 1.0
    %v7364 = vadd.f32 %v7362, 1.0
    %v7365 = vrcp.pop %v7363
    %v7366 = vmul.f32 1.0, %v7365
    %v7367 = vrcp.pop %v7364
    %v7368 = vmul.f32 1.0, %v7367
    %v7369 = vtanh.pop %v7257
    %v7370 = vtanh.pop %v7259
    %v7371 = vxor.u32 %v7339, 2147483648
    %v7372 = vxor.u32 %v7341, 2147483648
    %v7373 = vmul.f32 %v7371, 1.442695
    %v7374 = vpow.pop %v7373
    %v7375 = vmul.f32 %v7372, 1.442695
    %v7376 = vpow.pop %v7375
    %v7377 = vadd.f32 %v7374, 1.0
    %v7378 = vadd.f32 %v7376, 1.0
    %v7379 = vrcp.pop %v7377
    %v7380 = vmul.f32 1.0, %v7379
    %v7381 = vrcp.pop %v7378
    %v7382 = vmul.f32 1.0, %v7381
    %v7383 = vmul.f32 %v7366, %v6747
    %v7384 = vmul.f32 %v7368, %v6748
    %v7385 = vmul.f32 %v7354, %v7369
    %v7386 = vmul.f32 %v7356, %v7370
    %v7387 = vadd.f32 %v7383, %v7385
    %v7388 = vadd.f32 %v7384, %v7386
    %v7389 = vtanh.pop %v7387
    %v7390 = vtanh.pop %v7388
    %v7391 = vmul.f32 %v7380, %v7389
    %v7392 = vmul.f32 %v7382, %v7390
    %v7393 = vrot.slane %v2169, 2
    %v7394 = vrot.slane %v2171, 2
    %v7395 = vrot.slane %v2210, 2
    %v7396 = vrot.slane %v2212, 2
    %v7397 = vrot.slane %v2251, 2
    %v7398 = vrot.slane %v2253, 2
    %v7399 = vrot.slane %v2292, 2
    %v7400 = vrot.slane %v2294, 2
    %v7409 = vrot.slane %v3983, 1
    %v7410 = vrot.slane %v3985, 1
    %v7411 = vrot.slane %v4024, 1
    %v7412 = vrot.slane %v4026, 1
    %v7413 = vrot.slane %v4065, 1
    %v7414 = vrot.slane %v4067, 1
    %v7415 = vrot.slane %v4106, 1
    %v7416 = vrot.slane %v4108, 1
    %v7425 = vsel %vm505, %v7393, %v7409
    %v7426 = vsel %vm505, %v7394, %v7410
    %v7427 = vsel %vm505, %v7395, %v7411
    %v7428 = vsel %vm505, %v7396, %v7412
    %v7429 = vsel %vm505, %v7397, %v7413
    %v7430 = vsel %vm505, %v7398, %v7414
    %v7431 = vsel %vm505, %v7399, %v7415
    %v7432 = vsel %vm505, %v7400, %v7416
    %7433 = vmatprep.subr.bf16.mxu0 %v4585
    %7434 = vmatpush1.bf16.msra.mxu0 %v4584
    %7435 = vmatprep.subr.bf16.mxu0 %v4577
    %7436 = vmatpush1.bf16.msra.mxu0 %v4576
    %7437 = vmatprep.subr.bf16.mxu0 %v4569
    %7438 = vmatpush1.bf16.msra.mxu0 %v4568
    %7439 = vmatprep.subr.bf16.mxu0 %v4561
    %7440 = vmatpush1.bf16.msra.mxu0 %v4560
    %7441 = vmatprep.subr.bf16.mxu0 %v4553
    %7442 = vmatpush1.bf16.msra.mxu0 %v4552
    %7443 = vmatprep.subr.bf16.mxu0 %v4545
    %7444 = vmatpush1.bf16.msra.mxu0 %v4544
    %7445 = vmatprep.subr.bf16.mxu0 %v4537
    %7446 = vmatpush1.bf16.msra.mxu0 %v4536
    %7447 = vmatprep.subr.bf16.mxu0 %v4529
    %7448 = vmatpush1.bf16.msra.mxu0 %v4528
    %7449 = vmatprep.subr.bf16.mxu0 %v4649
    %7450 = vmatpush2.bf16.msra.mxu0 %v4648
    %7451 = vmatprep.subr.bf16.mxu0 %v4641
    %7452 = vmatpush2.bf16.msra.mxu0 %v4640
    %7453 = vmatprep.subr.bf16.mxu0 %v4633
    %7454 = vmatpush2.bf16.msra.mxu0 %v4632
    %7455 = vmatprep.subr.bf16.mxu0 %v4625
    %7456 = vmatpush2.bf16.msra.mxu0 %v4624
    %7457 = vmatprep.subr.bf16.mxu0 %v4617
    %7458 = vmatpush2.bf16.msra.mxu0 %v4616
    %7459 = vmatprep.subr.bf16.mxu0 %v4609
    %7460 = vmatpush2.bf16.msra.mxu0 %v4608
    %7461 = vmatprep.subr.bf16.mxu0 %v4601
    %7462 = vmatpush2.bf16.msra.mxu0 %v4600
    %7463 = vmatprep.subr.bf16.mxu0 %v4593
    %7464 = vmatpush2.bf16.msra.mxu0 %v4592
    %7465 = vmatprep.mubr.bf16.mxu0 %v7014
    %7466 = vmatmul.mubr.bf16.gmra.mxu0 %v7013
    %v7467 = vpop.f32.mrf.mxu0
    %v7468 = vadd.f32 0.0, %v7467
    %v7469 = vpop.f32.mrf.mxu0
    %v7470 = vadd.f32 0.0, %v7469
    %v7471 = vpop.f32.mrf.mxu0
    %v7472 = vpop.f32.mrf.mxu0
    %7473 = vdwg.mxu0
    %7474 = vmatprep.subr.bf16.mxu0 %v4587
    %7475 = vmatpush1.bf16.msra.mxu0 %v4586
    %7476 = vmatprep.subr.bf16.mxu0 %v4579
    %7477 = vmatpush1.bf16.msra.mxu0 %v4578
    %7478 = vmatprep.subr.bf16.mxu0 %v4571
    %7479 = vmatpush1.bf16.msra.mxu0 %v4570
    %7480 = vmatprep.subr.bf16.mxu0 %v4563
    %7481 = vmatpush1.bf16.msra.mxu0 %v4562
    %7482 = vmatprep.subr.bf16.mxu0 %v4555
    %7483 = vmatpush1.bf16.msra.mxu0 %v4554
    %7484 = vmatprep.subr.bf16.mxu0 %v4547
    %7485 = vmatpush1.bf16.msra.mxu0 %v4546
    %7486 = vmatprep.subr.bf16.mxu0 %v4539
    %7487 = vmatpush1.bf16.msra.mxu0 %v4538
    %7488 = vmatprep.subr.bf16.mxu0 %v4531
    %7489 = vmatpush1.bf16.msra.mxu0 %v4530
    %7490 = vmatprep.subr.bf16.mxu0 %v4651
    %7491 = vmatpush2.bf16.msra.mxu0 %v4650
    %7492 = vmatprep.subr.bf16.mxu0 %v4643
    %7493 = vmatpush2.bf16.msra.mxu0 %v4642
    %7494 = vmatprep.subr.bf16.mxu0 %v4635
    %7495 = vmatpush2.bf16.msra.mxu0 %v4634
    %7496 = vmatprep.subr.bf16.mxu0 %v4627
    %7497 = vmatpush2.bf16.msra.mxu0 %v4626
    %7498 = vmatprep.subr.bf16.mxu0 %v4619
    %7499 = vmatpush2.bf16.msra.mxu0 %v4618
    %7500 = vmatprep.subr.bf16.mxu0 %v4611
    %7501 = vmatpush2.bf16.msra.mxu0 %v4610
    %7502 = vmatprep.subr.bf16.mxu0 %v4603
    %7503 = vmatpush2.bf16.msra.mxu0 %v4602
    %7504 = vmatprep.subr.bf16.mxu0 %v4595
    %7505 = vmatpush2.bf16.msra.mxu0 %v4594
    %7506 = vmatprep.mubr.bf16.mxu0 %v7014
    %7507 = vmatmul.mubr.bf16.gmra.mxu0 %v7013
    %v7508 = vpop.f32.mrf.mxu0
    %v7509 = vadd.f32 0.0, %v7508
    %v7510 = vpop.f32.mrf.mxu0
    %v7511 = vadd.f32 0.0, %v7510
    %v7512 = vpop.f32.mrf.mxu0
    %v7513 = vpop.f32.mrf.mxu0
    %7514 = vdwg.mxu0
    %7515 = vmatprep.subr.bf16.mxu0 %v4589
    %7516 = vmatpush1.bf16.msra.mxu0 %v4588
    %7517 = vmatprep.subr.bf16.mxu0 %v4581
    %7518 = vmatpush1.bf16.msra.mxu0 %v4580
    %7519 = vmatprep.subr.bf16.mxu0 %v4573
    %7520 = vmatpush1.bf16.msra.mxu0 %v4572
    %7521 = vmatprep.subr.bf16.mxu0 %v4565
    %7522 = vmatpush1.bf16.msra.mxu0 %v4564
    %7523 = vmatprep.subr.bf16.mxu0 %v4557
    %7524 = vmatpush1.bf16.msra.mxu0 %v4556
    %7525 = vmatprep.subr.bf16.mxu0 %v4549
    %7526 = vmatpush1.bf16.msra.mxu0 %v4548
    %7527 = vmatprep.subr.bf16.mxu0 %v4541
    %7528 = vmatpush1.bf16.msra.mxu0 %v4540
    %7529 = vmatprep.subr.bf16.mxu0 %v4533
    %7530 = vmatpush1.bf16.msra.mxu0 %v4532
    %7531 = vmatprep.subr.bf16.mxu0 %v4653
    %7532 = vmatpush2.bf16.msra.mxu0 %v4652
    %7533 = vmatprep.subr.bf16.mxu0 %v4645
    %7534 = vmatpush2.bf16.msra.mxu0 %v4644
    %7535 = vmatprep.subr.bf16.mxu0 %v4637
    %7536 = vmatpush2.bf16.msra.mxu0 %v4636
    %7537 = vmatprep.subr.bf16.mxu0 %v4629
    %7538 = vmatpush2.bf16.msra.mxu0 %v4628
    %7539 = vmatprep.subr.bf16.mxu0 %v4621
    %7540 = vmatpush2.bf16.msra.mxu0 %v4620
    %7541 = vmatprep.subr.bf16.mxu0 %v4613
    %7542 = vmatpush2.bf16.msra.mxu0 %v4612
    %7543 = vmatprep.subr.bf16.mxu0 %v4605
    %7544 = vmatpush2.bf16.msra.mxu0 %v4604
    %7545 = vmatprep.subr.bf16.mxu0 %v4597
    %7546 = vmatpush2.bf16.msra.mxu0 %v4596
    %7547 = vmatprep.mubr.bf16.mxu0 %v7014
    %7548 = vmatmul.mubr.bf16.gmra.mxu0 %v7013
    %v7549 = vpop.f32.mrf.mxu0
    %v7550 = vadd.f32 0.0, %v7549
    %v7551 = vpop.f32.mrf.mxu0
    %v7552 = vadd.f32 0.0, %v7551
    %v7553 = vpop.f32.mrf.mxu0
    %v7554 = vpop.f32.mrf.mxu0
    %7555 = vdwg.mxu0
    %7556 = vmatprep.subr.bf16.mxu0 %v4591
    %7557 = vmatpush1.bf16.msra.mxu0 %v4590
    %7558 = vmatprep.subr.bf16.mxu0 %v4583
    %7559 = vmatpush1.bf16.msra.mxu0 %v4582
    %7560 = vmatprep.subr.bf16.mxu0 %v4575
    %7561 = vmatpush1.bf16.msra.mxu0 %v4574
    %7562 = vmatprep.subr.bf16.mxu0 %v4567
    %7563 = vmatpush1.bf16.msra.mxu0 %v4566
    %7564 = vmatprep.subr.bf16.mxu0 %v4559
    %7565 = vmatpush1.bf16.msra.mxu0 %v4558
    %7566 = vmatprep.subr.bf16.mxu0 %v4551
    %7567 = vmatpush1.bf16.msra.mxu0 %v4550
    %7568 = vmatprep.subr.bf16.mxu0 %v4543
    %7569 = vmatpush1.bf16.msra.mxu0 %v4542
    %7570 = vmatprep.subr.bf16.mxu0 %v4535
    %7571 = vmatpush1.bf16.msra.mxu0 %v4534
    %7572 = vmatprep.subr.bf16.mxu0 %v4655
    %7573 = vmatpush2.bf16.msra.mxu0 %v4654
    %7574 = vmatprep.subr.bf16.mxu0 %v4647
    %7575 = vmatpush2.bf16.msra.mxu0 %v4646
    %7576 = vmatprep.subr.bf16.mxu0 %v4639
    %7577 = vmatpush2.bf16.msra.mxu0 %v4638
    %7578 = vmatprep.subr.bf16.mxu0 %v4631
    %7579 = vmatpush2.bf16.msra.mxu0 %v4630
    %7580 = vmatprep.subr.bf16.mxu0 %v4623
    %7581 = vmatpush2.bf16.msra.mxu0 %v4622
    %7582 = vmatprep.subr.bf16.mxu0 %v4615
    %7583 = vmatpush2.bf16.msra.mxu0 %v4614
    %7584 = vmatprep.subr.bf16.mxu0 %v4607
    %7585 = vmatpush2.bf16.msra.mxu0 %v4606
    %7586 = vmatprep.subr.bf16.mxu0 %v4599
    %7587 = vmatpush2.bf16.msra.mxu0 %v4598
    %7588 = vmatprep.mubr.bf16.mxu0 %v7014
    %7589 = vmatmul.mubr.bf16.gmra.mxu0 %v7013
    %v7590 = vpop.f32.mrf.mxu0
    %v7591 = vadd.f32 0.0, %v7590
    %v7592 = vpop.f32.mrf.mxu0
    %v7593 = vadd.f32 0.0, %v7592
    %v7594 = vpop.f32.mrf.mxu0
    %v7595 = vpop.f32.mrf.mxu0
    %7596 = vdwg.mxu0
    %v7597 = vadd.f32 %v7425, %v7468
    %v7598 = vadd.f32 %v7426, %v7470
    %v7599 = vadd.f32 %v7427, %v7509
    %v7600 = vadd.f32 %v7428, %v7511
    %v7601 = vadd.f32 %v7429, %v7550
    %v7602 = vadd.f32 %v7430, %v7552
    %v7603 = vadd.f32 %v7431, %v7591
    %v7604 = vadd.f32 %v7432, %v7593
    %v7605 = vadd.f32 %v7597, %v4960
    %v7606 = vadd.f32 %v7598, %v4964
    %v7607 = vadd.f32 %v7599, %v4968
    %v7608 = vadd.f32 %v7600, %v4972
    %v7609 = vadd.f32 %v7601, %v4976
    %v7610 = vadd.f32 %v7602, %v4980
    %v7611 = vadd.f32 %v7603, %v4984
    %v7612 = vadd.f32 %v7604, %v4988
    %v7613 = vxor.u32 %v7605, 2147483648
    %v7614 = vxor.u32 %v7606, 2147483648
    %v7615 = vmul.f32 %v7613, 1.442695
    %v7616 = vpow.pop %v7615
    %v7617 = vmul.f32 %v7614, 1.442695
    %v7618 = vpow.pop %v7617
    %v7619 = vadd.f32 %v7616, 1.0
    %v7620 = vadd.f32 %v7618, 1.0
    %v7621 = vrcp.pop %v7619
    %v7622 = vmul.f32 1.0, %v7621
    %v7623 = vrcp.pop %v7620
    %v7624 = vmul.f32 1.0, %v7623
    %v7625 = vxor.u32 %v7607, 2147483648
    %v7626 = vxor.u32 %v7608, 2147483648
    %v7627 = vmul.f32 %v7625, 1.442695
    %v7628 = vpow.pop %v7627
    %v7629 = vmul.f32 %v7626, 1.442695
    %v7630 = vpow.pop %v7629
    %v7631 = vadd.f32 %v7628, 1.0
    %v7632 = vadd.f32 %v7630, 1.0
    %v7633 = vrcp.pop %v7631
    %v7634 = vmul.f32 1.0, %v7633
    %v7635 = vrcp.pop %v7632
    %v7636 = vmul.f32 1.0, %v7635
    %v7637 = vtanh.pop %v7609
    %v7638 = vtanh.pop %v7610
    %v7639 = vxor.u32 %v7611, 2147483648
    %v7640 = vxor.u32 %v7612, 2147483648
    %v7641 = vmul.f32 %v7639, 1.442695
    %v7642 = vpow.pop %v7641
    %v7643 = vmul.f32 %v7640, 1.442695
    %v7644 = vpow.pop %v7643
    %v7645 = vadd.f32 %v7642, 1.0
    %v7646 = vadd.f32 %v7644, 1.0
    %v7647 = vrcp.pop %v7645
    %v7648 = vmul.f32 1.0, %v7647
    %v7649 = vrcp.pop %v7646
    %v7650 = vmul.f32 1.0, %v7649
    %v7651 = vmul.f32 %v7634, %v7007
    %v7652 = vmul.f32 %v7636, %v7008
    %v7653 = vmul.f32 %v7622, %v7637
    %v7654 = vmul.f32 %v7624, %v7638
    %v7655 = vadd.f32 %v7651, %v7653
    %v7656 = vadd.f32 %v7652, %v7654
    %v7657 = vtanh.pop %v7655
    %v7658 = vtanh.pop %v7656
    %v7659 = vmul.f32 %v7648, %v7657
    %v7660 = vmul.f32 %v7650, %v7658
    %v7661 = vpack.c.bf16 %v7659, %v7659
    %v7662 = vpack.c.bf16 %v7660, %v7660
    %v7663 = vpack.c.bf16 %v7391, %v7391
    %v7664 = vpack.c.bf16 %v7392, %v7392
    %7665 = vmatprep.subr.bf16.mxu0 %v5922
    %7666 = vmatpush1.bf16.msra.mxu0 %v5921
    %7667 = vmatprep.subr.bf16.mxu0 %v5914
    %7668 = vmatpush1.bf16.msra.mxu0 %v5913
    %7669 = vmatprep.subr.bf16.mxu0 %v5906
    %7670 = vmatpush1.bf16.msra.mxu0 %v5905
    %7671 = vmatprep.subr.bf16.mxu0 %v5898
    %7672 = vmatpush1.bf16.msra.mxu0 %v5897
    %7673 = vmatprep.subr.bf16.mxu0 %v5890
    %7674 = vmatpush1.bf16.msra.mxu0 %v5889
    %7675 = vmatprep.subr.bf16.mxu0 %v5882
    %7676 = vmatpush1.bf16.msra.mxu0 %v5881
    %7677 = vmatprep.subr.bf16.mxu0 %v5874
    %7678 = vmatpush1.bf16.msra.mxu0 %v5873
    %7679 = vmatprep.subr.bf16.mxu0 %v5866
    %7680 = vmatpush1.bf16.msra.mxu0 %v5865
    %7681 = vmatprep.subr.bf16.mxu0 %v5986
    %7682 = vmatpush2.bf16.msra.mxu0 %v5985
    %7683 = vmatprep.subr.bf16.mxu0 %v5978
    %7684 = vmatpush2.bf16.msra.mxu0 %v5977
    %7685 = vmatprep.subr.bf16.mxu0 %v5970
    %7686 = vmatpush2.bf16.msra.mxu0 %v5969
    %7687 = vmatprep.subr.bf16.mxu0 %v5962
    %7688 = vmatpush2.bf16.msra.mxu0 %v5961
    %7689 = vmatprep.subr.bf16.mxu0 %v5954
    %7690 = vmatpush2.bf16.msra.mxu0 %v5953
    %7691 = vmatprep.subr.bf16.mxu0 %v5946
    %7692 = vmatpush2.bf16.msra.mxu0 %v5945
    %7693 = vmatprep.subr.bf16.mxu0 %v5938
    %7694 = vmatpush2.bf16.msra.mxu0 %v5937
    %7695 = vmatprep.subr.bf16.mxu0 %v5930
    %7696 = vmatpush2.bf16.msra.mxu0 %v5929
    %7697 = vmatprep.mubr.bf16.mxu0 %v7662
    %7698 = vmatmul.mubr.bf16.gmra.mxu0 %v7661
    %v7699 = vpop.f32.mrf.mxu0
    %v7700 = vadd.f32 %v5060, %v7699
    %v7701 = vpop.f32.mrf.mxu0
    %v7702 = vadd.f32 %v5064, %v7701
    %v7703 = vpop.f32.mrf.mxu0
    %v7704 = vpop.f32.mrf.mxu0
    %7705 = vdwg.mxu0
    %7706 = vmatprep.subr.bf16.mxu0 %v6050
    %7707 = vmatpush1.bf16.msra.mxu0 %v6049
    %7708 = vmatprep.subr.bf16.mxu0 %v6042
    %7709 = vmatpush1.bf16.msra.mxu0 %v6041
    %7710 = vmatprep.subr.bf16.mxu0 %v6034
    %7711 = vmatpush1.bf16.msra.mxu0 %v6033
    %7712 = vmatprep.subr.bf16.mxu0 %v6026
    %7713 = vmatpush1.bf16.msra.mxu0 %v6025
    %7714 = vmatprep.subr.bf16.mxu0 %v6018
    %7715 = vmatpush1.bf16.msra.mxu0 %v6017
    %7716 = vmatprep.subr.bf16.mxu0 %v6010
    %7717 = vmatpush1.bf16.msra.mxu0 %v6009
    %7718 = vmatprep.subr.bf16.mxu0 %v6002
    %7719 = vmatpush1.bf16.msra.mxu0 %v6001
    %7720 = vmatprep.subr.bf16.mxu0 %v5994
    %7721 = vmatpush1.bf16.msra.mxu0 %v5993
    %7722 = vmatprep.subr.bf16.mxu0 %v6114
    %7723 = vmatpush2.bf16.msra.mxu0 %v6113
    %7724 = vmatprep.subr.bf16.mxu0 %v6106
    %7725 = vmatpush2.bf16.msra.mxu0 %v6105
    %7726 = vmatprep.subr.bf16.mxu0 %v6098
    %7727 = vmatpush2.bf16.msra.mxu0 %v6097
    %7728 = vmatprep.subr.bf16.mxu0 %v6090
    %7729 = vmatpush2.bf16.msra.mxu0 %v6089
    %7730 = vmatprep.subr.bf16.mxu0 %v6082
    %7731 = vmatpush2.bf16.msra.mxu0 %v6081
    %7732 = vmatprep.subr.bf16.mxu0 %v6074
    %7733 = vmatpush2.bf16.msra.mxu0 %v6073
    %7734 = vmatprep.subr.bf16.mxu0 %v6066
    %7735 = vmatpush2.bf16.msra.mxu0 %v6065
    %7736 = vmatprep.subr.bf16.mxu0 %v6058
    %7737 = vmatpush2.bf16.msra.mxu0 %v6057
    %7738 = vmatprep.mubr.bf16.mxu0 %v7664
    %7739 = vmatmul.mubr.bf16.gmra.mxu0 %v7663
    %v7740 = vpop.f32.mrf.mxu0
    %v7741 = vadd.f32 %v7700, %v7740
    %v7742 = vpop.f32.mrf.mxu0
    %v7743 = vadd.f32 %v7702, %v7742
    %v7744 = vpop.f32.mrf.mxu0
    %v7745 = vpop.f32.mrf.mxu0
    %7746 = vdwg.mxu0
    %7747 = vmatprep.subr.bf16.mxu0 %v5924
    %7748 = vmatpush1.bf16.msra.mxu0 %v5923
    %7749 = vmatprep.subr.bf16.mxu0 %v5916
    %7750 = vmatpush1.bf16.msra.mxu0 %v5915
    %7751 = vmatprep.subr.bf16.mxu0 %v5908
    %7752 = vmatpush1.bf16.msra.mxu0 %v5907
    %7753 = vmatprep.subr.bf16.mxu0 %v5900
    %7754 = vmatpush1.bf16.msra.mxu0 %v5899
    %7755 = vmatprep.subr.bf16.mxu0 %v5892
    %7756 = vmatpush1.bf16.msra.mxu0 %v5891
    %7757 = vmatprep.subr.bf16.mxu0 %v5884
    %7758 = vmatpush1.bf16.msra.mxu0 %v5883
    %7759 = vmatprep.subr.bf16.mxu0 %v5876
    %7760 = vmatpush1.bf16.msra.mxu0 %v5875
    %7761 = vmatprep.subr.bf16.mxu0 %v5868
    %7762 = vmatpush1.bf16.msra.mxu0 %v5867
    %7763 = vmatprep.subr.bf16.mxu0 %v5988
    %7764 = vmatpush2.bf16.msra.mxu0 %v5987
    %7765 = vmatprep.subr.bf16.mxu0 %v5980
    %7766 = vmatpush2.bf16.msra.mxu0 %v5979
    %7767 = vmatprep.subr.bf16.mxu0 %v5972
    %7768 = vmatpush2.bf16.msra.mxu0 %v5971
    %7769 = vmatprep.subr.bf16.mxu0 %v5964
    %7770 = vmatpush2.bf16.msra.mxu0 %v5963
    %7771 = vmatprep.subr.bf16.mxu0 %v5956
    %7772 = vmatpush2.bf16.msra.mxu0 %v5955
    %7773 = vmatprep.subr.bf16.mxu0 %v5948
    %7774 = vmatpush2.bf16.msra.mxu0 %v5947
    %7775 = vmatprep.subr.bf16.mxu0 %v5940
    %7776 = vmatpush2.bf16.msra.mxu0 %v5939
    %7777 = vmatprep.subr.bf16.mxu0 %v5932
    %7778 = vmatpush2.bf16.msra.mxu0 %v5931
    %7779 = vmatprep.mubr.bf16.mxu0 %v7662
    %7780 = vmatmul.mubr.bf16.gmra.mxu0 %v7661
    %v7781 = vpop.f32.mrf.mxu0
    %v7782 = vadd.f32 %v5068, %v7781
    %v7783 = vpop.f32.mrf.mxu0
    %v7784 = vadd.f32 %v5072, %v7783
    %v7785 = vpop.f32.mrf.mxu0
    %v7786 = vpop.f32.mrf.mxu0
    %7787 = vdwg.mxu0
    %7788 = vmatprep.subr.bf16.mxu0 %v6052
    %7789 = vmatpush1.bf16.msra.mxu0 %v6051
    %7790 = vmatprep.subr.bf16.mxu0 %v6044
    %7791 = vmatpush1.bf16.msra.mxu0 %v6043
    %7792 = vmatprep.subr.bf16.mxu0 %v6036
    %7793 = vmatpush1.bf16.msra.mxu0 %v6035
    %7794 = vmatprep.subr.bf16.mxu0 %v6028
    %7795 = vmatpush1.bf16.msra.mxu0 %v6027
    %7796 = vmatprep.subr.bf16.mxu0 %v6020
    %7797 = vmatpush1.bf16.msra.mxu0 %v6019
    %7798 = vmatprep.subr.bf16.mxu0 %v6012
    %7799 = vmatpush1.bf16.msra.mxu0 %v6011
    %7800 = vmatprep.subr.bf16.mxu0 %v6004
    %7801 = vmatpush1.bf16.msra.mxu0 %v6003
    %7802 = vmatprep.subr.bf16.mxu0 %v5996
    %7803 = vmatpush1.bf16.msra.mxu0 %v5995
    %7804 = vmatprep.subr.bf16.mxu0 %v6116
    %7805 = vmatpush2.bf16.msra.mxu0 %v6115
    %7806 = vmatprep.subr.bf16.mxu0 %v6108
    %7807 = vmatpush2.bf16.msra.mxu0 %v6107
    %7808 = vmatprep.subr.bf16.mxu0 %v6100
    %7809 = vmatpush2.bf16.msra.mxu0 %v6099
    %7810 = vmatprep.subr.bf16.mxu0 %v6092
    %7811 = vmatpush2.bf16.msra.mxu0 %v6091
    %7812 = vmatprep.subr.bf16.mxu0 %v6084
    %7813 = vmatpush2.bf16.msra.mxu0 %v6083
    %7814 = vmatprep.subr.bf16.mxu0 %v6076
    %7815 = vmatpush2.bf16.msra.mxu0 %v6075
    %7816 = vmatprep.subr.bf16.mxu0 %v6068
    %7817 = vmatpush2.bf16.msra.mxu0 %v6067
    %7818 = vmatprep.subr.bf16.mxu0 %v6060
    %7819 = vmatpush2.bf16.msra.mxu0 %v6059
    %7820 = vmatprep.mubr.bf16.mxu0 %v7664
    %7821 = vmatmul.mubr.bf16.gmra.mxu0 %v7663
    %v7822 = vpop.f32.mrf.mxu0
    %v7823 = vadd.f32 %v7782, %v7822
    %v7824 = vpop.f32.mrf.mxu0
    %v7825 = vadd.f32 %v7784, %v7824
    %v7826 = vpop.f32.mrf.mxu0
    %v7827 = vpop.f32.mrf.mxu0
    %7828 = vdwg.mxu0
    %7829 = vmatprep.subr.bf16.mxu0 %v5926
    %7830 = vmatpush1.bf16.msra.mxu0 %v5925
    %7831 = vmatprep.subr.bf16.mxu0 %v5918
    %7832 = vmatpush1.bf16.msra.mxu0 %v5917
    %7833 = vmatprep.subr.bf16.mxu0 %v5910
    %7834 = vmatpush1.bf16.msra.mxu0 %v5909
    %7835 = vmatprep.subr.bf16.mxu0 %v5902
    %7836 = vmatpush1.bf16.msra.mxu0 %v5901
    %7837 = vmatprep.subr.bf16.mxu0 %v5894
    %7838 = vmatpush1.bf16.msra.mxu0 %v5893
    %7839 = vmatprep.subr.bf16.mxu0 %v5886
    %7840 = vmatpush1.bf16.msra.mxu0 %v5885
    %7841 = vmatprep.subr.bf16.mxu0 %v5878
    %7842 = vmatpush1.bf16.msra.mxu0 %v5877
    %7843 = vmatprep.subr.bf16.mxu0 %v5870
    %7844 = vmatpush1.bf16.msra.mxu0 %v5869
    %7845 = vmatprep.subr.bf16.mxu0 %v5990
    %7846 = vmatpush2.bf16.msra.mxu0 %v5989
    %7847 = vmatprep.subr.bf16.mxu0 %v5982
    %7848 = vmatpush2.bf16.msra.mxu0 %v5981
    %7849 = vmatprep.subr.bf16.mxu0 %v5974
    %7850 = vmatpush2.bf16.msra.mxu0 %v5973
    %7851 = vmatprep.subr.bf16.mxu0 %v5966
    %7852 = vmatpush2.bf16.msra.mxu0 %v5965
    %7853 = vmatprep.subr.bf16.mxu0 %v5958
    %7854 = vmatpush2.bf16.msra.mxu0 %v5957
    %7855 = vmatprep.subr.bf16.mxu0 %v5950
    %7856 = vmatpush2.bf16.msra.mxu0 %v5949
    %7857 = vmatprep.subr.bf16.mxu0 %v5942
    %7858 = vmatpush2.bf16.msra.mxu0 %v5941
    %7859 = vmatprep.subr.bf16.mxu0 %v5934
    %7860 = vmatpush2.bf16.msra.mxu0 %v5933
    %7861 = vmatprep.mubr.bf16.mxu0 %v7662
    %7862 = vmatmul.mubr.bf16.gmra.mxu0 %v7661
    %v7863 = vpop.f32.mrf.mxu0
    %v7864 = vadd.f32 %v5076, %v7863
    %v7865 = vpop.f32.mrf.mxu0
    %v7866 = vadd.f32 %v5080, %v7865
    %v7867 = vpop.f32.mrf.mxu0
    %v7868 = vpop.f32.mrf.mxu0
    %7869 = vdwg.mxu0
    %7870 = vmatprep.subr.bf16.mxu0 %v6054
    %7871 = vmatpush1.bf16.msra.mxu0 %v6053
    %7872 = vmatprep.subr.bf16.mxu0 %v6046
    %7873 = vmatpush1.bf16.msra.mxu0 %v6045
    %7874 = vmatprep.subr.bf16.mxu0 %v6038
    %7875 = vmatpush1.bf16.msra.mxu0 %v6037
    %7876 = vmatprep.subr.bf16.mxu0 %v6030
    %7877 = vmatpush1.bf16.msra.mxu0 %v6029
    %7878 = vmatprep.subr.bf16.mxu0 %v6022
    %7879 = vmatpush1.bf16.msra.mxu0 %v6021
    %7880 = vmatprep.subr.bf16.mxu0 %v6014
    %7881 = vmatpush1.bf16.msra.mxu0 %v6013
    %7882 = vmatprep.subr.bf16.mxu0 %v6006
    %7883 = vmatpush1.bf16.msra.mxu0 %v6005
    %7884 = vmatprep.subr.bf16.mxu0 %v5998
    %7885 = vmatpush1.bf16.msra.mxu0 %v5997
    %7886 = vmatprep.subr.bf16.mxu0 %v6118
    %7887 = vmatpush2.bf16.msra.mxu0 %v6117
    %7888 = vmatprep.subr.bf16.mxu0 %v6110
    %7889 = vmatpush2.bf16.msra.mxu0 %v6109
    %7890 = vmatprep.subr.bf16.mxu0 %v6102
    %7891 = vmatpush2.bf16.msra.mxu0 %v6101
    %7892 = vmatprep.subr.bf16.mxu0 %v6094
    %7893 = vmatpush2.bf16.msra.mxu0 %v6093
    %7894 = vmatprep.subr.bf16.mxu0 %v6086
    %7895 = vmatpush2.bf16.msra.mxu0 %v6085
    %7896 = vmatprep.subr.bf16.mxu0 %v6078
    %7897 = vmatpush2.bf16.msra.mxu0 %v6077
    %7898 = vmatprep.subr.bf16.mxu0 %v6070
    %7899 = vmatpush2.bf16.msra.mxu0 %v6069
    %7900 = vmatprep.subr.bf16.mxu0 %v6062
    %7901 = vmatpush2.bf16.msra.mxu0 %v6061
    %7902 = vmatprep.mubr.bf16.mxu0 %v7664
    %7903 = vmatmul.mubr.bf16.gmra.mxu0 %v7663
    %v7904 = vpop.f32.mrf.mxu0
    %v7905 = vadd.f32 %v7864, %v7904
    %v7906 = vpop.f32.mrf.mxu0
    %v7907 = vadd.f32 %v7866, %v7906
    %v7908 = vpop.f32.mrf.mxu0
    %v7909 = vpop.f32.mrf.mxu0
    %7910 = vdwg.mxu0
    %7911 = vmatprep.subr.bf16.mxu0 %v5928
    %7912 = vmatpush1.bf16.msra.mxu0 %v5927
    %7913 = vmatprep.subr.bf16.mxu0 %v5920
    %7914 = vmatpush1.bf16.msra.mxu0 %v5919
    %7915 = vmatprep.subr.bf16.mxu0 %v5912
    %7916 = vmatpush1.bf16.msra.mxu0 %v5911
    %7917 = vmatprep.subr.bf16.mxu0 %v5904
    %7918 = vmatpush1.bf16.msra.mxu0 %v5903
    %7919 = vmatprep.subr.bf16.mxu0 %v5896
    %7920 = vmatpush1.bf16.msra.mxu0 %v5895
    %7921 = vmatprep.subr.bf16.mxu0 %v5888
    %7922 = vmatpush1.bf16.msra.mxu0 %v5887
    %7923 = vmatprep.subr.bf16.mxu0 %v5880
    %7924 = vmatpush1.bf16.msra.mxu0 %v5879
    %7925 = vmatprep.subr.bf16.mxu0 %v5872
    %7926 = vmatpush1.bf16.msra.mxu0 %v5871
    %7927 = vmatprep.subr.bf16.mxu0 %v5992
    %7928 = vmatpush2.bf16.msra.mxu0 %v5991
    %7929 = vmatprep.subr.bf16.mxu0 %v5984
    %7930 = vmatpush2.bf16.msra.mxu0 %v5983
    %7931 = vmatprep.subr.bf16.mxu0 %v5976
    %7932 = vmatpush2.bf16.msra.mxu0 %v5975
    %7933 = vmatprep.subr.bf16.mxu0 %v5968
    %7934 = vmatpush2.bf16.msra.mxu0 %v5967
    %7935 = vmatprep.subr.bf16.mxu0 %v5960
    %7936 = vmatpush2.bf16.msra.mxu0 %v5959
    %7937 = vmatprep.subr.bf16.mxu0 %v5952
    %7938 = vmatpush2.bf16.msra.mxu0 %v5951
    %7939 = vmatprep.subr.bf16.mxu0 %v5944
    %7940 = vmatpush2.bf16.msra.mxu0 %v5943
    %7941 = vmatprep.subr.bf16.mxu0 %v5936
    %7942 = vmatpush2.bf16.msra.mxu0 %v5935
    %7943 = vmatprep.mubr.bf16.mxu0 %v7662
    %7944 = vmatmul.mubr.bf16.gmra.mxu0 %v7661
    %v7945 = vpop.f32.mrf.mxu0
    %v7946 = vadd.f32 %v5084, %v7945
    %v7947 = vpop.f32.mrf.mxu0
    %v7948 = vadd.f32 %v5088, %v7947
    %v7949 = vpop.f32.mrf.mxu0
    %v7950 = vpop.f32.mrf.mxu0
    %7951 = vdwg.mxu0
    %7952 = vmatprep.subr.bf16.mxu0 %v6056
    %7953 = vmatpush1.bf16.msra.mxu0 %v6055
    %7954 = vmatprep.subr.bf16.mxu0 %v6048
    %7955 = vmatpush1.bf16.msra.mxu0 %v6047
    %7956 = vmatprep.subr.bf16.mxu0 %v6040
    %7957 = vmatpush1.bf16.msra.mxu0 %v6039
    %7958 = vmatprep.subr.bf16.mxu0 %v6032
    %7959 = vmatpush1.bf16.msra.mxu0 %v6031
    %7960 = vmatprep.subr.bf16.mxu0 %v6024
    %7961 = vmatpush1.bf16.msra.mxu0 %v6023
    %7962 = vmatprep.subr.bf16.mxu0 %v6016
    %7963 = vmatpush1.bf16.msra.mxu0 %v6015
    %7964 = vmatprep.subr.bf16.mxu0 %v6008
    %7965 = vmatpush1.bf16.msra.mxu0 %v6007
    %7966 = vmatprep.subr.bf16.mxu0 %v6000
    %7967 = vmatpush1.bf16.msra.mxu0 %v5999
    %7968 = vmatprep.subr.bf16.mxu0 %v6120
    %7969 = vmatpush2.bf16.msra.mxu0 %v6119
    %7970 = vmatprep.subr.bf16.mxu0 %v6112
    %7971 = vmatpush2.bf16.msra.mxu0 %v6111
    %7972 = vmatprep.subr.bf16.mxu0 %v6104
    %7973 = vmatpush2.bf16.msra.mxu0 %v6103
    %7974 = vmatprep.subr.bf16.mxu0 %v6096
    %7975 = vmatpush2.bf16.msra.mxu0 %v6095
    %7976 = vmatprep.subr.bf16.mxu0 %v6088
    %7977 = vmatpush2.bf16.msra.mxu0 %v6087
    %7978 = vmatprep.subr.bf16.mxu0 %v6080
    %7979 = vmatpush2.bf16.msra.mxu0 %v6079
    %7980 = vmatprep.subr.bf16.mxu0 %v6072
    %7981 = vmatpush2.bf16.msra.mxu0 %v6071
    %7982 = vmatprep.subr.bf16.mxu0 %v6064
    %7983 = vmatpush2.bf16.msra.mxu0 %v6063
    %7984 = vmatprep.mubr.bf16.mxu0 %v7664
    %7985 = vmatmul.mubr.bf16.gmra.mxu0 %v7663
    %v7986 = vpop.f32.mrf.mxu0
    %v7987 = vadd.f32 %v7946, %v7986
    %v7988 = vpop.f32.mrf.mxu0
    %v7989 = vadd.f32 %v7948, %v7988
    %v7990 = vpop.f32.mrf.mxu0
    %v7991 = vpop.f32.mrf.mxu0
    %7992 = vdwg.mxu0
    %v7993 = vxor.u32 %v7741, 2147483648
    %v7994 = vxor.u32 %v7743, 2147483648
    %v7995 = vmul.f32 %v7993, 1.442695
    %v7996 = vpow.pop %v7995
    %v7997 = vmul.f32 %v7994, 1.442695
    %v7998 = vpow.pop %v7997
    %v7999 = vadd.f32 %v7996, 1.0
    %v8000 = vadd.f32 %v7998, 1.0
    %v8001 = vrcp.pop %v7999
    %v8002 = vmul.f32 1.0, %v8001
    %v8003 = vrcp.pop %v8000
    %v8004 = vmul.f32 1.0, %v8003
    %v8005 = vxor.u32 %v7823, 2147483648
    %v8006 = vxor.u32 %v7825, 2147483648
    %v8007 = vmul.f32 %v8005, 1.442695
    %v8008 = vpow.pop %v8007
    %v8009 = vmul.f32 %v8006, 1.442695
    %v8010 = vpow.pop %v8009
    %v8011 = vadd.f32 %v8008, 1.0
    %v8012 = vadd.f32 %v8010, 1.0
    %v8013 = vrcp.pop %v8011
    %v8014 = vmul.f32 1.0, %v8013
    %v8015 = vrcp.pop %v8012
    %v8016 = vmul.f32 1.0, %v8015
    %v8017 = vtanh.pop %v7905
    %v8018 = vtanh.pop %v7907
    %v8019 = vxor.u32 %v7987, 2147483648
    %v8020 = vxor.u32 %v7989, 2147483648
    %v8021 = vmul.f32 %v8019, 1.442695
    %v8022 = vpow.pop %v8021
    %v8023 = vmul.f32 %v8020, 1.442695
    %v8024 = vpow.pop %v8023
    %v8025 = vadd.f32 %v8022, 1.0
    %v8026 = vadd.f32 %v8024, 1.0
    %v8027 = vrcp.pop %v8025
    %v8028 = vmul.f32 1.0, %v8027
    %v8029 = vrcp.pop %v8026
    %v8030 = vmul.f32 1.0, %v8029
    %v8031 = vmul.f32 %v8014, %v7387
    %v8032 = vmul.f32 %v8016, %v7388
    %v8033 = vmul.f32 %v8002, %v8017
    %v8034 = vmul.f32 %v8004, %v8018
    %v8035 = vadd.f32 %v8031, %v8033
    %v8036 = vadd.f32 %v8032, %v8034
    %v8037 = vtanh.pop %v8035
    %v8038 = vtanh.pop %v8036
    %v8039 = vmul.f32 %v8028, %v8037
    %v8040 = vmul.f32 %v8030, %v8038
    %v8041 = vrot.slane %v2169, 3
    %v8042 = vrot.slane %v2171, 3
    %v8043 = vrot.slane %v2210, 3
    %v8044 = vrot.slane %v2212, 3
    %v8045 = vrot.slane %v2251, 3
    %v8046 = vrot.slane %v2253, 3
    %v8047 = vrot.slane %v2292, 3
    %v8048 = vrot.slane %v2294, 3
    %v8057 = vrot.slane %v3983, 2
    %v8058 = vrot.slane %v3985, 2
    %v8059 = vrot.slane %v4024, 2
    %v8060 = vrot.slane %v4026, 2
    %v8061 = vrot.slane %v4065, 2
    %v8062 = vrot.slane %v4067, 2
    %v8063 = vrot.slane %v4106, 2
    %v8064 = vrot.slane %v4108, 2
    %v8073 = vsel %vm505, %v8041, %v8057
    %v8074 = vsel %vm505, %v8042, %v8058
    %v8075 = vsel %vm505, %v8043, %v8059
    %v8076 = vsel %vm505, %v8044, %v8060
    %v8077 = vsel %vm505, %v8045, %v8061
    %v8078 = vsel %vm505, %v8046, %v8062
    %v8079 = vsel %vm505, %v8047, %v8063
    %v8080 = vsel %vm505, %v8048, %v8064
    %8081 = vmatprep.subr.bf16.mxu0 %v4585
    %8082 = vmatpush1.bf16.msra.mxu0 %v4584
    %8083 = vmatprep.subr.bf16.mxu0 %v4577
    %8084 = vmatpush1.bf16.msra.mxu0 %v4576
    %8085 = vmatprep.subr.bf16.mxu0 %v4569
    %8086 = vmatpush1.bf16.msra.mxu0 %v4568
    %8087 = vmatprep.subr.bf16.mxu0 %v4561
    %8088 = vmatpush1.bf16.msra.mxu0 %v4560
    %8089 = vmatprep.subr.bf16.mxu0 %v4553
    %8090 = vmatpush1.bf16.msra.mxu0 %v4552
    %8091 = vmatprep.subr.bf16.mxu0 %v4545
    %8092 = vmatpush1.bf16.msra.mxu0 %v4544
    %8093 = vmatprep.subr.bf16.mxu0 %v4537
    %8094 = vmatpush1.bf16.msra.mxu0 %v4536
    %8095 = vmatprep.subr.bf16.mxu0 %v4529
    %8096 = vmatpush1.bf16.msra.mxu0 %v4528
    %8097 = vmatprep.subr.bf16.mxu0 %v4649
    %8098 = vmatpush2.bf16.msra.mxu0 %v4648
    %8099 = vmatprep.subr.bf16.mxu0 %v4641
    %8100 = vmatpush2.bf16.msra.mxu0 %v4640
    %8101 = vmatprep.subr.bf16.mxu0 %v4633
    %8102 = vmatpush2.bf16.msra.mxu0 %v4632
    %8103 = vmatprep.subr.bf16.mxu0 %v4625
    %8104 = vmatpush2.bf16.msra.mxu0 %v4624
    %8105 = vmatprep.subr.bf16.mxu0 %v4617
    %8106 = vmatpush2.bf16.msra.mxu0 %v4616
    %8107 = vmatprep.subr.bf16.mxu0 %v4609
    %8108 = vmatpush2.bf16.msra.mxu0 %v4608
    %8109 = vmatprep.subr.bf16.mxu0 %v4601
    %8110 = vmatpush2.bf16.msra.mxu0 %v4600
    %8111 = vmatprep.subr.bf16.mxu0 %v4593
    %8112 = vmatpush2.bf16.msra.mxu0 %v4592
    %8113 = vmatprep.mubr.bf16.mxu0 %v7662
    %8114 = vmatmul.mubr.bf16.gmra.mxu0 %v7661
    %v8115 = vpop.f32.mrf.mxu0
    %v8116 = vadd.f32 0.0, %v8115
    %v8117 = vpop.f32.mrf.mxu0
    %v8118 = vadd.f32 0.0, %v8117
    %v8119 = vpop.f32.mrf.mxu0
    %v8120 = vpop.f32.mrf.mxu0
    %8121 = vdwg.mxu0
    %8122 = vmatprep.subr.bf16.mxu0 %v4587
    %8123 = vmatpush1.bf16.msra.mxu0 %v4586
    %8124 = vmatprep.subr.bf16.mxu0 %v4579
    %8125 = vmatpush1.bf16.msra.mxu0 %v4578
    %8126 = vmatprep.subr.bf16.mxu0 %v4571
    %8127 = vmatpush1.bf16.msra.mxu0 %v4570
    %8128 = vmatprep.subr.bf16.mxu0 %v4563
    %8129 = vmatpush1.bf16.msra.mxu0 %v4562
    %8130 = vmatprep.subr.bf16.mxu0 %v4555
    %8131 = vmatpush1.bf16.msra.mxu0 %v4554
    %8132 = vmatprep.subr.bf16.mxu0 %v4547
    %8133 = vmatpush1.bf16.msra.mxu0 %v4546
    %8134 = vmatprep.subr.bf16.mxu0 %v4539
    %8135 = vmatpush1.bf16.msra.mxu0 %v4538
    %8136 = vmatprep.subr.bf16.mxu0 %v4531
    %8137 = vmatpush1.bf16.msra.mxu0 %v4530
    %8138 = vmatprep.subr.bf16.mxu0 %v4651
    %8139 = vmatpush2.bf16.msra.mxu0 %v4650
    %8140 = vmatprep.subr.bf16.mxu0 %v4643
    %8141 = vmatpush2.bf16.msra.mxu0 %v4642
    %8142 = vmatprep.subr.bf16.mxu0 %v4635
    %8143 = vmatpush2.bf16.msra.mxu0 %v4634
    %8144 = vmatprep.subr.bf16.mxu0 %v4627
    %8145 = vmatpush2.bf16.msra.mxu0 %v4626
    %8146 = vmatprep.subr.bf16.mxu0 %v4619
    %8147 = vmatpush2.bf16.msra.mxu0 %v4618
    %8148 = vmatprep.subr.bf16.mxu0 %v4611
    %8149 = vmatpush2.bf16.msra.mxu0 %v4610
    %8150 = vmatprep.subr.bf16.mxu0 %v4603
    %8151 = vmatpush2.bf16.msra.mxu0 %v4602
    %8152 = vmatprep.subr.bf16.mxu0 %v4595
    %8153 = vmatpush2.bf16.msra.mxu0 %v4594
    %8154 = vmatprep.mubr.bf16.mxu0 %v7662
    %8155 = vmatmul.mubr.bf16.gmra.mxu0 %v7661
    %v8156 = vpop.f32.mrf.mxu0
    %v8157 = vadd.f32 0.0, %v8156
    %v8158 = vpop.f32.mrf.mxu0
    %v8159 = vadd.f32 0.0, %v8158
    %v8160 = vpop.f32.mrf.mxu0
    %v8161 = vpop.f32.mrf.mxu0
    %8162 = vdwg.mxu0
    %8163 = vmatprep.subr.bf16.mxu0 %v4589
    %8164 = vmatpush1.bf16.msra.mxu0 %v4588
    %8165 = vmatprep.subr.bf16.mxu0 %v4581
    %8166 = vmatpush1.bf16.msra.mxu0 %v4580
    %8167 = vmatprep.subr.bf16.mxu0 %v4573
    %8168 = vmatpush1.bf16.msra.mxu0 %v4572
    %8169 = vmatprep.subr.bf16.mxu0 %v4565
    %8170 = vmatpush1.bf16.msra.mxu0 %v4564
    %8171 = vmatprep.subr.bf16.mxu0 %v4557
    %8172 = vmatpush1.bf16.msra.mxu0 %v4556
    %8173 = vmatprep.subr.bf16.mxu0 %v4549
    %8174 = vmatpush1.bf16.msra.mxu0 %v4548
    %8175 = vmatprep.subr.bf16.mxu0 %v4541
    %8176 = vmatpush1.bf16.msra.mxu0 %v4540
    %8177 = vmatprep.subr.bf16.mxu0 %v4533
    %8178 = vmatpush1.bf16.msra.mxu0 %v4532
    %8179 = vmatprep.subr.bf16.mxu0 %v4653
    %8180 = vmatpush2.bf16.msra.mxu0 %v4652
    %8181 = vmatprep.subr.bf16.mxu0 %v4645
    %8182 = vmatpush2.bf16.msra.mxu0 %v4644
    %8183 = vmatprep.subr.bf16.mxu0 %v4637
    %8184 = vmatpush2.bf16.msra.mxu0 %v4636
    %8185 = vmatprep.subr.bf16.mxu0 %v4629
    %8186 = vmatpush2.bf16.msra.mxu0 %v4628
    %8187 = vmatprep.subr.bf16.mxu0 %v4621
    %8188 = vmatpush2.bf16.msra.mxu0 %v4620
    %8189 = vmatprep.subr.bf16.mxu0 %v4613
    %8190 = vmatpush2.bf16.msra.mxu0 %v4612
    %8191 = vmatprep.subr.bf16.mxu0 %v4605
    %8192 = vmatpush2.bf16.msra.mxu0 %v4604
    %8193 = vmatprep.subr.bf16.mxu0 %v4597
    %8194 = vmatpush2.bf16.msra.mxu0 %v4596
    %8195 = vmatprep.mubr.bf16.mxu0 %v7662
    %8196 = vmatmul.mubr.bf16.gmra.mxu0 %v7661
    %v8197 = vpop.f32.mrf.mxu0
    %v8198 = vadd.f32 0.0, %v8197
    %v8199 = vpop.f32.mrf.mxu0
    %v8200 = vadd.f32 0.0, %v8199
    %v8201 = vpop.f32.mrf.mxu0
    %v8202 = vpop.f32.mrf.mxu0
    %8203 = vdwg.mxu0
    %8204 = vmatprep.subr.bf16.mxu0 %v4591
    %8205 = vmatpush1.bf16.msra.mxu0 %v4590
    %8206 = vmatprep.subr.bf16.mxu0 %v4583
    %8207 = vmatpush1.bf16.msra.mxu0 %v4582
    %8208 = vmatprep.subr.bf16.mxu0 %v4575
    %8209 = vmatpush1.bf16.msra.mxu0 %v4574
    %8210 = vmatprep.subr.bf16.mxu0 %v4567
    %8211 = vmatpush1.bf16.msra.mxu0 %v4566
    %8212 = vmatprep.subr.bf16.mxu0 %v4559
    %8213 = vmatpush1.bf16.msra.mxu0 %v4558
    %8214 = vmatprep.subr.bf16.mxu0 %v4551
    %8215 = vmatpush1.bf16.msra.mxu0 %v4550
    %8216 = vmatprep.subr.bf16.mxu0 %v4543
    %8217 = vmatpush1.bf16.msra.mxu0 %v4542
    %8218 = vmatprep.subr.bf16.mxu0 %v4535
    %8219 = vmatpush1.bf16.msra.mxu0 %v4534
    %8220 = vmatprep.subr.bf16.mxu0 %v4655
    %8221 = vmatpush2.bf16.msra.mxu0 %v4654
    %8222 = vmatprep.subr.bf16.mxu0 %v4647
    %8223 = vmatpush2.bf16.msra.mxu0 %v4646
    %8224 = vmatprep.subr.bf16.mxu0 %v4639
    %8225 = vmatpush2.bf16.msra.mxu0 %v4638
    %8226 = vmatprep.subr.bf16.mxu0 %v4631
    %8227 = vmatpush2.bf16.msra.mxu0 %v4630
    %8228 = vmatprep.subr.bf16.mxu0 %v4623
    %8229 = vmatpush2.bf16.msra.mxu0 %v4622
    %8230 = vmatprep.subr.bf16.mxu0 %v4615
    %8231 = vmatpush2.bf16.msra.mxu0 %v4614
    %8232 = vmatprep.subr.bf16.mxu0 %v4607
    %8233 = vmatpush2.bf16.msra.mxu0 %v4606
    %8234 = vmatprep.subr.bf16.mxu0 %v4599
    %8235 = vmatpush2.bf16.msra.mxu0 %v4598
    %8236 = vmatprep.mubr.bf16.mxu0 %v7662
    %8237 = vmatmul.mubr.bf16.gmra.mxu0 %v7661
    %v8238 = vpop.f32.mrf.mxu0
    %v8239 = vadd.f32 0.0, %v8238
    %v8240 = vpop.f32.mrf.mxu0
    %v8241 = vadd.f32 0.0, %v8240
    %v8242 = vpop.f32.mrf.mxu0
    %v8243 = vpop.f32.mrf.mxu0
    %8244 = vdwg.mxu0
    %v8245 = vadd.f32 %v8073, %v8116
    %v8246 = vadd.f32 %v8074, %v8118
    %v8247 = vadd.f32 %v8075, %v8157
    %v8248 = vadd.f32 %v8076, %v8159
    %v8249 = vadd.f32 %v8077, %v8198
    %v8250 = vadd.f32 %v8078, %v8200
    %v8251 = vadd.f32 %v8079, %v8239
    %v8252 = vadd.f32 %v8080, %v8241
    %v8253 = vadd.f32 %v8245, %v4960
    %v8254 = vadd.f32 %v8246, %v4964
    %v8255 = vadd.f32 %v8247, %v4968
    %v8256 = vadd.f32 %v8248, %v4972
    %v8257 = vadd.f32 %v8249, %v4976
    %v8258 = vadd.f32 %v8250, %v4980
    %v8259 = vadd.f32 %v8251, %v4984
    %v8260 = vadd.f32 %v8252, %v4988
    %v8261 = vxor.u32 %v8253, 2147483648
    %v8262 = vxor.u32 %v8254, 2147483648
    %v8263 = vmul.f32 %v8261, 1.442695
    %v8264 = vpow.pop %v8263
    %v8265 = vmul.f32 %v8262, 1.442695
    %v8266 = vpow.pop %v8265
    %v8267 = vadd.f32 %v8264, 1.0
    %v8268 = vadd.f32 %v8266, 1.0
    %v8269 = vrcp.pop %v8267
    %v8270 = vmul.f32 1.0, %v8269
    %v8271 = vrcp.pop %v8268
    %v8272 = vmul.f32 1.0, %v8271
    %v8273 = vxor.u32 %v8255, 2147483648
    %v8274 = vxor.u32 %v8256, 2147483648
    %v8275 = vmul.f32 %v8273, 1.442695
    %v8276 = vpow.pop %v8275
    %v8277 = vmul.f32 %v8274, 1.442695
    %v8278 = vpow.pop %v8277
    %v8279 = vadd.f32 %v8276, 1.0
    %v8280 = vadd.f32 %v8278, 1.0
    %v8281 = vrcp.pop %v8279
    %v8282 = vmul.f32 1.0, %v8281
    %v8283 = vrcp.pop %v8280
    %v8284 = vmul.f32 1.0, %v8283
    %v8285 = vtanh.pop %v8257
    %v8286 = vtanh.pop %v8258
    %v8287 = vxor.u32 %v8259, 2147483648
    %v8288 = vxor.u32 %v8260, 2147483648
    %v8289 = vmul.f32 %v8287, 1.442695
    %v8290 = vpow.pop %v8289
    %v8291 = vmul.f32 %v8288, 1.442695
    %v8292 = vpow.pop %v8291
    %v8293 = vadd.f32 %v8290, 1.0
    %v8294 = vadd.f32 %v8292, 1.0
    %v8295 = vrcp.pop %v8293
    %v8296 = vmul.f32 1.0, %v8295
    %v8297 = vrcp.pop %v8294
    %v8298 = vmul.f32 1.0, %v8297
    %v8299 = vmul.f32 %v8282, %v7655
    %v8300 = vmul.f32 %v8284, %v7656
    %v8301 = vmul.f32 %v8270, %v8285
    %v8302 = vmul.f32 %v8272, %v8286
    %v8303 = vadd.f32 %v8299, %v8301
    %v8304 = vadd.f32 %v8300, %v8302
    %v8305 = vtanh.pop %v8303
    %v8306 = vtanh.pop %v8304
    %v8307 = vmul.f32 %v8296, %v8305
    %v8308 = vmul.f32 %v8298, %v8306
    %v8309 = vpack.c.bf16 %v8307, %v8307
    %v8310 = vpack.c.bf16 %v8308, %v8308
    %v8311 = vpack.c.bf16 %v8039, %v8039
    %v8312 = vpack.c.bf16 %v8040, %v8040
    %8313 = vmatprep.subr.bf16.mxu0 %v5922
    %8314 = vmatpush1.bf16.msra.mxu0 %v5921
    %8315 = vmatprep.subr.bf16.mxu0 %v5914
    %8316 = vmatpush1.bf16.msra.mxu0 %v5913
    %8317 = vmatprep.subr.bf16.mxu0 %v5906
    %8318 = vmatpush1.bf16.msra.mxu0 %v5905
    %8319 = vmatprep.subr.bf16.mxu0 %v5898
    %8320 = vmatpush1.bf16.msra.mxu0 %v5897
    %8321 = vmatprep.subr.bf16.mxu0 %v5890
    %8322 = vmatpush1.bf16.msra.mxu0 %v5889
    %8323 = vmatprep.subr.bf16.mxu0 %v5882
    %8324 = vmatpush1.bf16.msra.mxu0 %v5881
    %8325 = vmatprep.subr.bf16.mxu0 %v5874
    %8326 = vmatpush1.bf16.msra.mxu0 %v5873
    %8327 = vmatprep.subr.bf16.mxu0 %v5866
    %8328 = vmatpush1.bf16.msra.mxu0 %v5865
    %8329 = vmatprep.subr.bf16.mxu0 %v5986
    %8330 = vmatpush2.bf16.msra.mxu0 %v5985
    %8331 = vmatprep.subr.bf16.mxu0 %v5978
    %8332 = vmatpush2.bf16.msra.mxu0 %v5977
    %8333 = vmatprep.subr.bf16.mxu0 %v5970
    %8334 = vmatpush2.bf16.msra.mxu0 %v5969
    %8335 = vmatprep.subr.bf16.mxu0 %v5962
    %8336 = vmatpush2.bf16.msra.mxu0 %v5961
    %8337 = vmatprep.subr.bf16.mxu0 %v5954
    %8338 = vmatpush2.bf16.msra.mxu0 %v5953
    %8339 = vmatprep.subr.bf16.mxu0 %v5946
    %8340 = vmatpush2.bf16.msra.mxu0 %v5945
    %8341 = vmatprep.subr.bf16.mxu0 %v5938
    %8342 = vmatpush2.bf16.msra.mxu0 %v5937
    %8343 = vmatprep.subr.bf16.mxu0 %v5930
    %8344 = vmatpush2.bf16.msra.mxu0 %v5929
    %8345 = vmatprep.mubr.bf16.mxu0 %v8310
    %8346 = vmatmul.mubr.bf16.gmra.mxu0 %v8309
    %v8347 = vpop.f32.mrf.mxu0
    %v8348 = vadd.f32 %v5060, %v8347
    %v8349 = vpop.f32.mrf.mxu0
    %v8350 = vadd.f32 %v5064, %v8349
    %v8351 = vpop.f32.mrf.mxu0
    %v8352 = vpop.f32.mrf.mxu0
    %8353 = vdwg.mxu0
    %8354 = vmatprep.subr.bf16.mxu0 %v6050
    %8355 = vmatpush1.bf16.msra.mxu0 %v6049
    %8356 = vmatprep.subr.bf16.mxu0 %v6042
    %8357 = vmatpush1.bf16.msra.mxu0 %v6041
    %8358 = vmatprep.subr.bf16.mxu0 %v6034
    %8359 = vmatpush1.bf16.msra.mxu0 %v6033
    %8360 = vmatprep.subr.bf16.mxu0 %v6026
    %8361 = vmatpush1.bf16.msra.mxu0 %v6025
    %8362 = vmatprep.subr.bf16.mxu0 %v6018
    %8363 = vmatpush1.bf16.msra.mxu0 %v6017
    %8364 = vmatprep.subr.bf16.mxu0 %v6010
    %8365 = vmatpush1.bf16.msra.mxu0 %v6009
    %8366 = vmatprep.subr.bf16.mxu0 %v6002
    %8367 = vmatpush1.bf16.msra.mxu0 %v6001
    %8368 = vmatprep.subr.bf16.mxu0 %v5994
    %8369 = vmatpush1.bf16.msra.mxu0 %v5993
    %8370 = vmatprep.subr.bf16.mxu0 %v6114
    %8371 = vmatpush2.bf16.msra.mxu0 %v6113
    %8372 = vmatprep.subr.bf16.mxu0 %v6106
    %8373 = vmatpush2.bf16.msra.mxu0 %v6105
    %8374 = vmatprep.subr.bf16.mxu0 %v6098
    %8375 = vmatpush2.bf16.msra.mxu0 %v6097
    %8376 = vmatprep.subr.bf16.mxu0 %v6090
    %8377 = vmatpush2.bf16.msra.mxu0 %v6089
    %8378 = vmatprep.subr.bf16.mxu0 %v6082
    %8379 = vmatpush2.bf16.msra.mxu0 %v6081
    %8380 = vmatprep.subr.bf16.mxu0 %v6074
    %8381 = vmatpush2.bf16.msra.mxu0 %v6073
    %8382 = vmatprep.subr.bf16.mxu0 %v6066
    %8383 = vmatpush2.bf16.msra.mxu0 %v6065
    %8384 = vmatprep.subr.bf16.mxu0 %v6058
    %8385 = vmatpush2.bf16.msra.mxu0 %v6057
    %8386 = vmatprep.mubr.bf16.mxu0 %v8312
    %8387 = vmatmul.mubr.bf16.gmra.mxu0 %v8311
    %v8388 = vpop.f32.mrf.mxu0
    %v8389 = vadd.f32 %v8348, %v8388
    %v8390 = vpop.f32.mrf.mxu0
    %v8391 = vadd.f32 %v8350, %v8390
    %v8392 = vpop.f32.mrf.mxu0
    %v8393 = vpop.f32.mrf.mxu0
    %8394 = vdwg.mxu0
    %8395 = vmatprep.subr.bf16.mxu0 %v5924
    %8396 = vmatpush1.bf16.msra.mxu0 %v5923
    %8397 = vmatprep.subr.bf16.mxu0 %v5916
    %8398 = vmatpush1.bf16.msra.mxu0 %v5915
    %8399 = vmatprep.subr.bf16.mxu0 %v5908
    %8400 = vmatpush1.bf16.msra.mxu0 %v5907
    %8401 = vmatprep.subr.bf16.mxu0 %v5900
    %8402 = vmatpush1.bf16.msra.mxu0 %v5899
    %8403 = vmatprep.subr.bf16.mxu0 %v5892
    %8404 = vmatpush1.bf16.msra.mxu0 %v5891
    %8405 = vmatprep.subr.bf16.mxu0 %v5884
    %8406 = vmatpush1.bf16.msra.mxu0 %v5883
    %8407 = vmatprep.subr.bf16.mxu0 %v5876
    %8408 = vmatpush1.bf16.msra.mxu0 %v5875
    %8409 = vmatprep.subr.bf16.mxu0 %v5868
    %8410 = vmatpush1.bf16.msra.mxu0 %v5867
    %8411 = vmatprep.subr.bf16.mxu0 %v5988
    %8412 = vmatpush2.bf16.msra.mxu0 %v5987
    %8413 = vmatprep.subr.bf16.mxu0 %v5980
    %8414 = vmatpush2.bf16.msra.mxu0 %v5979
    %8415 = vmatprep.subr.bf16.mxu0 %v5972
    %8416 = vmatpush2.bf16.msra.mxu0 %v5971
    %8417 = vmatprep.subr.bf16.mxu0 %v5964
    %8418 = vmatpush2.bf16.msra.mxu0 %v5963
    %8419 = vmatprep.subr.bf16.mxu0 %v5956
    %8420 = vmatpush2.bf16.msra.mxu0 %v5955
    %8421 = vmatprep.subr.bf16.mxu0 %v5948
    %8422 = vmatpush2.bf16.msra.mxu0 %v5947
    %8423 = vmatprep.subr.bf16.mxu0 %v5940
    %8424 = vmatpush2.bf16.msra.mxu0 %v5939
    %8425 = vmatprep.subr.bf16.mxu0 %v5932
    %8426 = vmatpush2.bf16.msra.mxu0 %v5931
    %8427 = vmatprep.mubr.bf16.mxu0 %v8310
    %8428 = vmatmul.mubr.bf16.gmra.mxu0 %v8309
    %v8429 = vpop.f32.mrf.mxu0
    %v8430 = vadd.f32 %v5068, %v8429
    %v8431 = vpop.f32.mrf.mxu0
    %v8432 = vadd.f32 %v5072, %v8431
    %v8433 = vpop.f32.mrf.mxu0
    %v8434 = vpop.f32.mrf.mxu0
    %8435 = vdwg.mxu0
    %8436 = vmatprep.subr.bf16.mxu0 %v6052
    %8437 = vmatpush1.bf16.msra.mxu0 %v6051
    %8438 = vmatprep.subr.bf16.mxu0 %v6044
    %8439 = vmatpush1.bf16.msra.mxu0 %v6043
    %8440 = vmatprep.subr.bf16.mxu0 %v6036
    %8441 = vmatpush1.bf16.msra.mxu0 %v6035
    %8442 = vmatprep.subr.bf16.mxu0 %v6028
    %8443 = vmatpush1.bf16.msra.mxu0 %v6027
    %8444 = vmatprep.subr.bf16.mxu0 %v6020
    %8445 = vmatpush1.bf16.msra.mxu0 %v6019
    %8446 = vmatprep.subr.bf16.mxu0 %v6012
    %8447 = vmatpush1.bf16.msra.mxu0 %v6011
    %8448 = vmatprep.subr.bf16.mxu0 %v6004
    %8449 = vmatpush1.bf16.msra.mxu0 %v6003
    %8450 = vmatprep.subr.bf16.mxu0 %v5996
    %8451 = vmatpush1.bf16.msra.mxu0 %v5995
    %8452 = vmatprep.subr.bf16.mxu0 %v6116
    %8453 = vmatpush2.bf16.msra.mxu0 %v6115
    %8454 = vmatprep.subr.bf16.mxu0 %v6108
    %8455 = vmatpush2.bf16.msra.mxu0 %v6107
    %8456 = vmatprep.subr.bf16.mxu0 %v6100
    %8457 = vmatpush2.bf16.msra.mxu0 %v6099
    %8458 = vmatprep.subr.bf16.mxu0 %v6092
    %8459 = vmatpush2.bf16.msra.mxu0 %v6091
    %8460 = vmatprep.subr.bf16.mxu0 %v6084
    %8461 = vmatpush2.bf16.msra.mxu0 %v6083
    %8462 = vmatprep.subr.bf16.mxu0 %v6076
    %8463 = vmatpush2.bf16.msra.mxu0 %v6075
    %8464 = vmatprep.subr.bf16.mxu0 %v6068
    %8465 = vmatpush2.bf16.msra.mxu0 %v6067
    %8466 = vmatprep.subr.bf16.mxu0 %v6060
    %8467 = vmatpush2.bf16.msra.mxu0 %v6059
    %8468 = vmatprep.mubr.bf16.mxu0 %v8312
    %8469 = vmatmul.mubr.bf16.gmra.mxu0 %v8311
    %v8470 = vpop.f32.mrf.mxu0
    %v8471 = vadd.f32 %v8430, %v8470
    %v8472 = vpop.f32.mrf.mxu0
    %v8473 = vadd.f32 %v8432, %v8472
    %v8474 = vpop.f32.mrf.mxu0
    %v8475 = vpop.f32.mrf.mxu0
    %8476 = vdwg.mxu0
    %8477 = vmatprep.subr.bf16.mxu0 %v5926
    %8478 = vmatpush1.bf16.msra.mxu0 %v5925
    %8479 = vmatprep.subr.bf16.mxu0 %v5918
    %8480 = vmatpush1.bf16.msra.mxu0 %v5917
    %8481 = vmatprep.subr.bf16.mxu0 %v5910
    %8482 = vmatpush1.bf16.msra.mxu0 %v5909
    %8483 = vmatprep.subr.bf16.mxu0 %v5902
    %8484 = vmatpush1.bf16.msra.mxu0 %v5901
    %8485 = vmatprep.subr.bf16.mxu0 %v5894
    %8486 = vmatpush1.bf16.msra.mxu0 %v5893
    %8487 = vmatprep.subr.bf16.mxu0 %v5886
    %8488 = vmatpush1.bf16.msra.mxu0 %v5885
    %8489 = vmatprep.subr.bf16.mxu0 %v5878
    %8490 = vmatpush1.bf16.msra.mxu0 %v5877
    %8491 = vmatprep.subr.bf16.mxu0 %v5870
    %8492 = vmatpush1.bf16.msra.mxu0 %v5869
    %8493 = vmatprep.subr.bf16.mxu0 %v5990
    %8494 = vmatpush2.bf16.msra.mxu0 %v5989
    %8495 = vmatprep.subr.bf16.mxu0 %v5982
    %8496 = vmatpush2.bf16.msra.mxu0 %v5981
    %8497 = vmatprep.subr.bf16.mxu0 %v5974
    %8498 = vmatpush2.bf16.msra.mxu0 %v5973
    %8499 = vmatprep.subr.bf16.mxu0 %v5966
    %8500 = vmatpush2.bf16.msra.mxu0 %v5965
    %8501 = vmatprep.subr.bf16.mxu0 %v5958
    %8502 = vmatpush2.bf16.msra.mxu0 %v5957
    %8503 = vmatprep.subr.bf16.mxu0 %v5950
    %8504 = vmatpush2.bf16.msra.mxu0 %v5949
    %8505 = vmatprep.subr.bf16.mxu0 %v5942
    %8506 = vmatpush2.bf16.msra.mxu0 %v5941
    %8507 = vmatprep.subr.bf16.mxu0 %v5934
    %8508 = vmatpush2.bf16.msra.mxu0 %v5933
    %8509 = vmatprep.mubr.bf16.mxu0 %v8310
    %8510 = vmatmul.mubr.bf16.gmra.mxu0 %v8309
    %v8511 = vpop.f32.mrf.mxu0
    %v8512 = vadd.f32 %v5076, %v8511
    %v8513 = vpop.f32.mrf.mxu0
    %v8514 = vadd.f32 %v5080, %v8513
    %v8515 = vpop.f32.mrf.mxu0
    %v8516 = vpop.f32.mrf.mxu0
    %8517 = vdwg.mxu0
    %8518 = vmatprep.subr.bf16.mxu0 %v6054
    %8519 = vmatpush1.bf16.msra.mxu0 %v6053
    %8520 = vmatprep.subr.bf16.mxu0 %v6046
    %8521 = vmatpush1.bf16.msra.mxu0 %v6045
    %8522 = vmatprep.subr.bf16.mxu0 %v6038
    %8523 = vmatpush1.bf16.msra.mxu0 %v6037
    %8524 = vmatprep.subr.bf16.mxu0 %v6030
    %8525 = vmatpush1.bf16.msra.mxu0 %v6029
    %8526 = vmatprep.subr.bf16.mxu0 %v6022
    %8527 = vmatpush1.bf16.msra.mxu0 %v6021
    %8528 = vmatprep.subr.bf16.mxu0 %v6014
    %8529 = vmatpush1.bf16.msra.mxu0 %v6013
    %8530 = vmatprep.subr.bf16.mxu0 %v6006
    %8531 = vmatpush1.bf16.msra.mxu0 %v6005
    %8532 = vmatprep.subr.bf16.mxu0 %v5998
    %8533 = vmatpush1.bf16.msra.mxu0 %v5997
    %8534 = vmatprep.subr.bf16.mxu0 %v6118
    %8535 = vmatpush2.bf16.msra.mxu0 %v6117
    %8536 = vmatprep.subr.bf16.mxu0 %v6110
    %8537 = vmatpush2.bf16.msra.mxu0 %v6109
    %8538 = vmatprep.subr.bf16.mxu0 %v6102
    %8539 = vmatpush2.bf16.msra.mxu0 %v6101
    %8540 = vmatprep.subr.bf16.mxu0 %v6094
    %8541 = vmatpush2.bf16.msra.mxu0 %v6093
    %8542 = vmatprep.subr.bf16.mxu0 %v6086
    %8543 = vmatpush2.bf16.msra.mxu0 %v6085
    %8544 = vmatprep.subr.bf16.mxu0 %v6078
    %8545 = vmatpush2.bf16.msra.mxu0 %v6077
    %8546 = vmatprep.subr.bf16.mxu0 %v6070
    %8547 = vmatpush2.bf16.msra.mxu0 %v6069
    %8548 = vmatprep.subr.bf16.mxu0 %v6062
    %8549 = vmatpush2.bf16.msra.mxu0 %v6061
    %8550 = vmatprep.mubr.bf16.mxu0 %v8312
    %8551 = vmatmul.mubr.bf16.gmra.mxu0 %v8311
    %v8552 = vpop.f32.mrf.mxu0
    %v8553 = vadd.f32 %v8512, %v8552
    %v8554 = vpop.f32.mrf.mxu0
    %v8555 = vadd.f32 %v8514, %v8554
    %v8556 = vpop.f32.mrf.mxu0
    %v8557 = vpop.f32.mrf.mxu0
    %8558 = vdwg.mxu0
    %8559 = vmatprep.subr.bf16.mxu0 %v5928
    %8560 = vmatpush1.bf16.msra.mxu0 %v5927
    %8561 = vmatprep.subr.bf16.mxu0 %v5920
    %8562 = vmatpush1.bf16.msra.mxu0 %v5919
    %8563 = vmatprep.subr.bf16.mxu0 %v5912
    %8564 = vmatpush1.bf16.msra.mxu0 %v5911
    %8565 = vmatprep.subr.bf16.mxu0 %v5904
    %8566 = vmatpush1.bf16.msra.mxu0 %v5903
    %8567 = vmatprep.subr.bf16.mxu0 %v5896
    %8568 = vmatpush1.bf16.msra.mxu0 %v5895
    %8569 = vmatprep.subr.bf16.mxu0 %v5888
    %8570 = vmatpush1.bf16.msra.mxu0 %v5887
    %8571 = vmatprep.subr.bf16.mxu0 %v5880
    %8572 = vmatpush1.bf16.msra.mxu0 %v5879
    %8573 = vmatprep.subr.bf16.mxu0 %v5872
    %8574 = vmatpush1.bf16.msra.mxu0 %v5871
    %8575 = vmatprep.subr.bf16.mxu0 %v5992
    %8576 = vmatpush2.bf16.msra.mxu0 %v5991
    %8577 = vmatprep.subr.bf16.mxu0 %v5984
    %8578 = vmatpush2.bf16.msra.mxu0 %v5983
    %8579 = vmatprep.subr.bf16.mxu0 %v5976
    %8580 = vmatpush2.bf16.msra.mxu0 %v5975
    %8581 = vmatprep.subr.bf16.mxu0 %v5968
    %8582 = vmatpush2.bf16.msra.mxu0 %v5967
    %8583 = vmatprep.subr.bf16.mxu0 %v5960
    %8584 = vmatpush2.bf16.msra.mxu0 %v5959
    %8585 = vmatprep.subr.bf16.mxu0 %v5952
    %8586 = vmatpush2.bf16.msra.mxu0 %v5951
    %8587 = vmatprep.subr.bf16.mxu0 %v5944
    %8588 = vmatpush2.bf16.msra.mxu0 %v5943
    %8589 = vmatprep.subr.bf16.mxu0 %v5936
    %8590 = vmatpush2.bf16.msra.mxu0 %v5935
    %8591 = vmatprep.mubr.bf16.mxu0 %v8310
    %8592 = vmatmul.mubr.bf16.gmra.mxu0 %v8309
    %v8593 = vpop.f32.mrf.mxu0
    %v8594 = vadd.f32 %v5084, %v8593
    %v8595 = vpop.f32.mrf.mxu0
    %v8596 = vadd.f32 %v5088, %v8595
    %v8597 = vpop.f32.mrf.mxu0
    %v8598 = vpop.f32.mrf.mxu0
    %8599 = vdwg.mxu0
    %8600 = vmatprep.subr.bf16.mxu0 %v6056
    %8601 = vmatpush1.bf16.msra.mxu0 %v6055
    %8602 = vmatprep.subr.bf16.mxu0 %v6048
    %8603 = vmatpush1.bf16.msra.mxu0 %v6047
    %8604 = vmatprep.subr.bf16.mxu0 %v6040
    %8605 = vmatpush1.bf16.msra.mxu0 %v6039
    %8606 = vmatprep.subr.bf16.mxu0 %v6032
    %8607 = vmatpush1.bf16.msra.mxu0 %v6031
    %8608 = vmatprep.subr.bf16.mxu0 %v6024
    %8609 = vmatpush1.bf16.msra.mxu0 %v6023
    %8610 = vmatprep.subr.bf16.mxu0 %v6016
    %8611 = vmatpush1.bf16.msra.mxu0 %v6015
    %8612 = vmatprep.subr.bf16.mxu0 %v6008
    %8613 = vmatpush1.bf16.msra.mxu0 %v6007
    %8614 = vmatprep.subr.bf16.mxu0 %v6000
    %8615 = vmatpush1.bf16.msra.mxu0 %v5999
    %8616 = vmatprep.subr.bf16.mxu0 %v6120
    %8617 = vmatpush2.bf16.msra.mxu0 %v6119
    %8618 = vmatprep.subr.bf16.mxu0 %v6112
    %8619 = vmatpush2.bf16.msra.mxu0 %v6111
    %8620 = vmatprep.subr.bf16.mxu0 %v6104
    %8621 = vmatpush2.bf16.msra.mxu0 %v6103
    %8622 = vmatprep.subr.bf16.mxu0 %v6096
    %8623 = vmatpush2.bf16.msra.mxu0 %v6095
    %8624 = vmatprep.subr.bf16.mxu0 %v6088
    %8625 = vmatpush2.bf16.msra.mxu0 %v6087
    %8626 = vmatprep.subr.bf16.mxu0 %v6080
    %8627 = vmatpush2.bf16.msra.mxu0 %v6079
    %8628 = vmatprep.subr.bf16.mxu0 %v6072
    %8629 = vmatpush2.bf16.msra.mxu0 %v6071
    %8630 = vmatprep.subr.bf16.mxu0 %v6064
    %8631 = vmatpush2.bf16.msra.mxu0 %v6063
    %8632 = vmatprep.mubr.bf16.mxu0 %v8312
    %8633 = vmatmul.mubr.bf16.gmra.mxu0 %v8311
    %v8634 = vpop.f32.mrf.mxu0
    %v8635 = vadd.f32 %v8594, %v8634
    %v8636 = vpop.f32.mrf.mxu0
    %v8637 = vadd.f32 %v8596, %v8636
    %v8638 = vpop.f32.mrf.mxu0
    %v8639 = vpop.f32.mrf.mxu0
    %8640 = vdwg.mxu0
    %v8641 = vxor.u32 %v8389, 2147483648
    %v8642 = vxor.u32 %v8391, 2147483648
    %v8643 = vmul.f32 %v8641, 1.442695
    %v8644 = vpow.pop %v8643
    %v8645 = vmul.f32 %v8642, 1.442695
    %v8646 = vpow.pop %v8645
    %v8647 = vadd.f32 %v8644, 1.0
    %v8648 = vadd.f32 %v8646, 1.0
    %v8649 = vrcp.pop %v8647
    %v8650 = vmul.f32 1.0, %v8649
    %v8651 = vrcp.pop %v8648
    %v8652 = vmul.f32 1.0, %v8651
    %v8653 = vxor.u32 %v8471, 2147483648
    %v8654 = vxor.u32 %v8473, 2147483648
    %v8655 = vmul.f32 %v8653, 1.442695
    %v8656 = vpow.pop %v8655
    %v8657 = vmul.f32 %v8654, 1.442695
    %v8658 = vpow.pop %v8657
    %v8659 = vadd.f32 %v8656, 1.0
    %v8660 = vadd.f32 %v8658, 1.0
    %v8661 = vrcp.pop %v8659
    %v8662 = vmul.f32 1.0, %v8661
    %v8663 = vrcp.pop %v8660
    %v8664 = vmul.f32 1.0, %v8663
    %v8665 = vtanh.pop %v8553
    %v8666 = vtanh.pop %v8555
    %v8667 = vxor.u32 %v8635, 2147483648
    %v8668 = vxor.u32 %v8637, 2147483648
    %v8669 = vmul.f32 %v8667, 1.442695
    %v8670 = vpow.pop %v8669
    %v8671 = vmul.f32 %v8668, 1.442695
    %v8672 = vpow.pop %v8671
    %v8673 = vadd.f32 %v8670, 1.0
    %v8674 = vadd.f32 %v8672, 1.0
    %v8675 = vrcp.pop %v8673
    %v8676 = vmul.f32 1.0, %v8675
    %v8677 = vrcp.pop %v8674
    %v8678 = vmul.f32 1.0, %v8677
    %v8679 = vmul.f32 %v8662, %v8035
    %v8680 = vmul.f32 %v8664, %v8036
    %v8681 = vmul.f32 %v8650, %v8665
    %v8682 = vmul.f32 %v8652, %v8666
    %v8683 = vadd.f32 %v8679, %v8681
    %v8684 = vadd.f32 %v8680, %v8682
    %v8685 = vtanh.pop %v8683
    %v8686 = vtanh.pop %v8684
    %v8687 = vmul.f32 %v8676, %v8685
    %v8688 = vmul.f32 %v8678, %v8686
    %v8689 = vld [vmem:[%s22] sm:$0xf]
    %v8690 = vld [vmem:[%s22 + $0x4] sm:$0xf]
    %v8691 = vld [vmem:[%s22 + $0x8] sm:$0xf]
    %v8692 = vld [vmem:[%s22 + $0xc] sm:$0xf]
    %v8693 = vld [vmem:[%s22 + $0x10] sm:$0xf]
    %v8694 = vld [vmem:[%s22 + $0x14] sm:$0xf]
    %v8695 = vld [vmem:[%s22 + $0x18] sm:$0xf]
    %v8696 = vld [vmem:[%s22 + $0x1c] sm:$0xf]
    %v8697 = vld [vmem:[%s22 + $0x20] sm:$0xf]
    %v8698 = vld [vmem:[%s22 + $0x24] sm:$0xf]
    %v8699 = vld [vmem:[%s22 + $0x28] sm:$0xf]
    %v8700 = vld [vmem:[%s22 + $0x2c] sm:$0xf]
    %v8701 = vld [vmem:[%s22 + $0x30] sm:$0xf]
    %v8702 = vld [vmem:[%s22 + $0x34] sm:$0xf]
    %v8703 = vld [vmem:[%s22 + $0x38] sm:$0xf]
    %v8704 = vld [vmem:[%s22 + $0x3c] sm:$0xf]
    %v8705 = vld [vmem:[%s22 + $0x40] sm:$0xf]
    %v8706 = vld [vmem:[%s22 + $0x44] sm:$0xf]
    %v8707 = vld [vmem:[%s22 + $0x48] sm:$0xf]
    %v8708 = vld [vmem:[%s22 + $0x4c] sm:$0xf]
    %v8709 = vld [vmem:[%s22 + $0x50] sm:$0xf]
    %v8710 = vld [vmem:[%s22 + $0x54] sm:$0xf]
    %v8711 = vld [vmem:[%s22 + $0x58] sm:$0xf]
    %v8712 = vld [vmem:[%s22 + $0x5c] sm:$0xf]
    %v8713 = vld [vmem:[%s22 + $0x60] sm:$0xf]
    %v8714 = vld [vmem:[%s22 + $0x64] sm:$0xf]
    %v8715 = vld [vmem:[%s22 + $0x68] sm:$0xf]
    %v8716 = vld [vmem:[%s22 + $0x6c] sm:$0xf]
    %v8717 = vld [vmem:[%s22 + $0x70] sm:$0xf]
    %v8718 = vld [vmem:[%s22 + $0x74] sm:$0xf]
    %v8719 = vld [vmem:[%s22 + $0x78] sm:$0xf]
    %v8720 = vld [vmem:[%s22 + $0x7c] sm:$0xf]
    %v8721 = vpack.c.bf16 %v8687, %v8687
    %v8722 = vpack.c.bf16 %v8688, %v8688
    %v8723 = vld [vmem:[%s23] sm:$0x1]
    %v8725 = vlaneseq
    %v8726 = vshrl.u32 %v8725, 7
    %v8727 = vsub.s32 0, %v8726
    %v8728 = vrot.slane %v8723, %v8727
    %v8762 = vunpack.c.l.b16 %v8689
    %v8763 = vunpack.c.l.b16 %v8690
    %v8764 = vunpack.c.l.b16 %v8691
    %v8765 = vunpack.c.l.b16 %v8692
    %v8766 = vunpack.c.l.b16 %v8693
    %v8767 = vunpack.c.l.b16 %v8694
    %v8768 = vunpack.c.l.b16 %v8695
    %v8769 = vunpack.c.l.b16 %v8696
    %v8770 = vunpack.c.l.b16 %v8697
    %v8771 = vunpack.c.l.b16 %v8698
    %v8772 = vunpack.c.l.b16 %v8699
    %v8773 = vunpack.c.l.b16 %v8700
    %v8774 = vunpack.c.l.b16 %v8701
    %v8775 = vunpack.c.l.b16 %v8702
    %v8776 = vunpack.c.l.b16 %v8703
    %v8777 = vunpack.c.l.b16 %v8704
    %v8778 = vunpack.c.l.b16 %v8705
    %v8779 = vunpack.c.l.b16 %v8706
    %v8780 = vunpack.c.l.b16 %v8707
    %v8781 = vunpack.c.l.b16 %v8708
    %v8782 = vunpack.c.l.b16 %v8709
    %v8783 = vunpack.c.l.b16 %v8710
    %v8784 = vunpack.c.l.b16 %v8711
    %v8785 = vunpack.c.l.b16 %v8712
    %v8786 = vunpack.c.l.b16 %v8713
    %v8787 = vunpack.c.l.b16 %v8714
    %v8788 = vunpack.c.l.b16 %v8715
    %v8789 = vunpack.c.l.b16 %v8716
    %v8790 = vunpack.c.l.b16 %v8717
    %v8791 = vunpack.c.l.b16 %v8718
    %v8792 = vunpack.c.l.b16 %v8719
    %v8793 = vunpack.c.l.b16 %v8720
    %v8794 = vpack.c.b16 %v8763, %v8762
    %v8795 = vpack.c.b16 %v8765, %v8764
    %v8796 = vpack.c.b16 %v8767, %v8766
    %v8797 = vpack.c.b16 %v8769, %v8768
    %v8798 = vpack.c.b16 %v8771, %v8770
    %v8799 = vpack.c.b16 %v8773, %v8772
    %v8800 = vpack.c.b16 %v8775, %v8774
    %v8801 = vpack.c.b16 %v8777, %v8776
    %v8802 = vpack.c.b16 %v8779, %v8778
    %v8803 = vpack.c.b16 %v8781, %v8780
    %v8804 = vpack.c.b16 %v8783, %v8782
    %v8805 = vpack.c.b16 %v8785, %v8784
    %v8806 = vpack.c.b16 %v8787, %v8786
    %v8807 = vpack.c.b16 %v8789, %v8788
    %v8808 = vpack.c.b16 %v8791, %v8790
    %v8809 = vpack.c.b16 %v8793, %v8792
    %8826 = vmatprep.subr.bf16.mxu0 0
    %8827 = vmatpush1.bf16.msra.mxu0 %v8801
    %8828 = vmatprep.subr.bf16.mxu0 0
    %8829 = vmatpush1.bf16.msra.mxu0 %v8800
    %8830 = vmatprep.subr.bf16.mxu0 0
    %8831 = vmatpush1.bf16.msra.mxu0 %v8799
    %8832 = vmatprep.subr.bf16.mxu0 0
    %8833 = vmatpush1.bf16.msra.mxu0 %v8798
    %8834 = vmatprep.subr.bf16.mxu0 0
    %8835 = vmatpush1.bf16.msra.mxu0 %v8797
    %8836 = vmatprep.subr.bf16.mxu0 0
    %8837 = vmatpush1.bf16.msra.mxu0 %v8796
    %8838 = vmatprep.subr.bf16.mxu0 0
    %8839 = vmatpush1.bf16.msra.mxu0 %v8795
    %8840 = vmatprep.subr.bf16.mxu0 0
    %8841 = vmatpush1.bf16.msra.mxu0 %v8794
    %8842 = vmatprep.subr.bf16.mxu0 0
    %8843 = vmatpush2.bf16.msra.mxu0 %v8809
    %8844 = vmatprep.subr.bf16.mxu0 0
    %8845 = vmatpush2.bf16.msra.mxu0 %v8808
    %8846 = vmatprep.subr.bf16.mxu0 0
    %8847 = vmatpush2.bf16.msra.mxu0 %v8807
    %8848 = vmatprep.subr.bf16.mxu0 0
    %8849 = vmatpush2.bf16.msra.mxu0 %v8806
    %8850 = vmatprep.subr.bf16.mxu0 0
    %8851 = vmatpush2.bf16.msra.mxu0 %v8805
    %8852 = vmatprep.subr.bf16.mxu0 0
    %8853 = vmatpush2.bf16.msra.mxu0 %v8804
    %8854 = vmatprep.subr.bf16.mxu0 0
    %8855 = vmatpush2.bf16.msra.mxu0 %v8803
    %8856 = vmatprep.subr.bf16.mxu0 0
    %8857 = vmatpush2.bf16.msra.mxu0 %v8802
    %8858 = vmatprep.mubr.bf16.mxu0 %v8722
    %8859 = vmatmul.mubr.bf16.gmra.mxu0 %v8721
    %v8860 = vpop.f32.mrf.mxu0
    %v8861 = vadd.f32 %v8728, %v8860
    %v8862 = vpop.f32.mrf.mxu0
    %v8863 = vpop.f32.mrf.mxu0
    %v8864 = vpop.f32.mrf.mxu0
    %8865 = vdwg.mxu0
    %v8866 = vmax.f32 %v8861, 0.0
    %v8867 = vld [vmem:[%s24] sm:$0xf]
    %v8868 = vld [vmem:[%s24 + $0x4] sm:$0xf]
    %v8869 = vld [vmem:[%s24 + $0x8] sm:$0xf]
    %v8870 = vld [vmem:[%s24 + $0xc] sm:$0xf]
    %v8871 = vld [vmem:[%s24 + $0x10] sm:$0xf]
    %v8872 = vld [vmem:[%s24 + $0x14] sm:$0xf]
    %v8873 = vld [vmem:[%s24 + $0x18] sm:$0xf]
    %v8874 = vld [vmem:[%s24 + $0x1c] sm:$0xf]
    %v8875 = vld [vmem:[%s24 + $0x20] sm:$0xf]
    %v8876 = vld [vmem:[%s24 + $0x24] sm:$0xf]
    %v8877 = vld [vmem:[%s24 + $0x28] sm:$0xf]
    %v8878 = vld [vmem:[%s24 + $0x2c] sm:$0xf]
    %v8879 = vld [vmem:[%s24 + $0x30] sm:$0xf]
    %v8880 = vld [vmem:[%s24 + $0x34] sm:$0xf]
    %v8881 = vld [vmem:[%s24 + $0x38] sm:$0xf]
    %v8882 = vld [vmem:[%s24 + $0x3c] sm:$0xf]
    %v8883 = vpack.c.bf16 %v8866, %v8866
    %v8884 = vld [vmem:[%s25] sm:$0x1]
    %v8886 = vlaneseq
    %v8887 = vshrl.u32 %v8886, 7
    %v8888 = vsub.s32 0, %v8887
    %v8889 = vrot.slane %v8884, %v8888
    %v8907 = vunpack.c.l.b16 %v8867
    %v8908 = vunpack.c.l.b16 %v8868
    %v8909 = vunpack.c.l.b16 %v8869
    %v8910 = vunpack.c.l.b16 %v8870
    %v8911 = vunpack.c.l.b16 %v8871
    %v8912 = vunpack.c.l.b16 %v8872
    %v8913 = vunpack.c.l.b16 %v8873
    %v8914 = vunpack.c.l.b16 %v8874
    %v8915 = vunpack.c.l.b16 %v8875
    %v8916 = vunpack.c.l.b16 %v8876
    %v8917 = vunpack.c.l.b16 %v8877
    %v8918 = vunpack.c.l.b16 %v8878
    %v8919 = vunpack.c.l.b16 %v8879
    %v8920 = vunpack.c.l.b16 %v8880
    %v8921 = vunpack.c.l.b16 %v8881
    %v8922 = vunpack.c.l.b16 %v8882
    %v8923 = vpack.c.b16 %v8908, %v8907
    %v8924 = vpack.c.b16 %v8910, %v8909
    %v8925 = vpack.c.b16 %v8912, %v8911
    %v8926 = vpack.c.b16 %v8914, %v8913
    %v8927 = vpack.c.b16 %v8916, %v8915
    %v8928 = vpack.c.b16 %v8918, %v8917
    %v8929 = vpack.c.b16 %v8920, %v8919
    %v8930 = vpack.c.b16 %v8922, %v8921
    %8939 = vmatprep.subr.bf16.mxu0 0
    %8940 = vmatpush1.bf16.msra.mxu0 %v8930
    %8941 = vmatprep.subr.bf16.mxu0 0
    %8942 = vmatpush1.bf16.msra.mxu0 %v8929
    %8943 = vmatprep.subr.bf16.mxu0 0
    %8944 = vmatpush1.bf16.msra.mxu0 %v8928
    %8945 = vmatprep.subr.bf16.mxu0 0
    %8946 = vmatpush1.bf16.msra.mxu0 %v8927
    %8947 = vmatprep.subr.bf16.mxu0 0
    %8948 = vmatpush1.bf16.msra.mxu0 %v8926
    %8949 = vmatprep.subr.bf16.mxu0 0
    %8950 = vmatpush1.bf16.msra.mxu0 %v8925
    %8951 = vmatprep.subr.bf16.mxu0 0
    %8952 = vmatpush1.bf16.msra.mxu0 %v8924
    %8953 = vmatprep.subr.bf16.mxu0 0
    %8954 = vmatpush1.bf16.msra.mxu0 %v8923
    %8955 = vmatprep.subr.bf16.mxu0 0
    %8956 = vmatpush2.bf16.msra.mxu0 0
    %8957 = vmatprep.subr.bf16.mxu0 0
    %8958 = vmatpush2.bf16.msra.mxu0 0
    %8959 = vmatprep.subr.bf16.mxu0 0
    %8960 = vmatpush2.bf16.msra.mxu0 0
    %8961 = vmatprep.subr.bf16.mxu0 0
    %8962 = vmatpush2.bf16.msra.mxu0 0
    %8963 = vmatprep.subr.bf16.mxu0 0
    %8964 = vmatpush2.bf16.msra.mxu0 0
    %8965 = vmatprep.subr.bf16.mxu0 0
    %8966 = vmatpush2.bf16.msra.mxu0 0
    %8967 = vmatprep.subr.bf16.mxu0 0
    %8968 = vmatpush2.bf16.msra.mxu0 0
    %8969 = vmatprep.subr.bf16.mxu0 0
    %8970 = vmatpush2.bf16.msra.mxu0 0
    %8971 = vmatprep.mubr.bf16.mxu0 0
    %8972 = vmatmul.mubr.bf16.gmra.mxu0 %v8883
    %v8973 = vpop.f32.mrf.mxu0
    %v8974 = vadd.f32 %v8889, %v8973
    %v8975 = vpop.f32.mrf.mxu0
    %v8976 = vpop.f32.mrf.mxu0
    %v8977 = vpop.f32.mrf.mxu0
    %8978 = vdwg.mxu0
    %vm8979 = vcmask 91136
    %8980 = vst.msk [vmem:[#allocation4] sm:$0x3] %vm8979, %v8974
    // Predicated region
    $region106: #{model_forward.1} parent=1 // pred_check
      _
    $region107: #{model_forward.1} parent=1 // pred_check_branch
      %8982 = sbr.rel (0) target = $region109
    $region108: #{model_forward.1} parent=1 // pred_region
      %s8984 = ssub.s32 32, 32
      %8985 = vsyncadd [#allocation5], %s8984
      %s8987 = sshll.u32 [#allocation4], 4
      %s8988 = int_to_ptr.vmem [resolvable:$true] %s8987
      %8990 = dma.vmem_to_hbm [thread:$0]  %s8988, 32, %s26, [#allocation5]
    $region109: #{model_forward.1} parent=1 // pred_fallthru
      _
    // Predicated region
    $region110: #{model_forward.1} parent=1 // pred_check
      _
    $region111: #{model_forward.1} parent=1 // pred_check_branch
      %8992 = sbr.rel (0) target = $region113
    $region112: #{model_forward.1} parent=1 // pred_region
      %8993 = dma.done [#allocation5], 32
    $region113: #{model_forward.1} parent=1 // pred_fallthru
      _
    %8994 = vsyncpa [#allocation5], 1

</llo_original>
